<compile_context>
chip_gen: v7x
topology: tpu7x:2x2x1
jax: 0.10.0
libtpu: 0.0.40
codegen_flags: <defaults>
</compile_context>

<pallas_src>
import functools

import jax
import jax.numpy as jnp
from jax.experimental import pallas as pl
from jax.experimental.pallas import tpu as pltpu

BN_EPS = 1e-5
# Safe on every generation (v5e/v6e physical 128 MiB, v7x physical 64 MiB);
# raises the v5e default scoped limit so tiles >= 512 rows stay profitable.
_VMEM_LIMIT = 48 * 1024 * 1024


def _largest_divisor(n, cap):
    for d in range(min(n, cap), 0, -1):
        if n % d == 0:
            return d
    return 1


# --------------------- 1x1 conv + BN + ReLU (branch 1) ----------------------

def _pw_conv_bn_relu_kernel(x_ref, w_ref, scale_ref, shift_ref, o_ref):
    # x: (1, TS, Cin)  w: (Cin, Cout)  scale/shift: (1, Cout)  o: (1, TS, Cout)
    y = jnp.dot(x_ref[0], w_ref[...], preferred_element_type=jnp.float32)
    y = y * scale_ref[...] + shift_ref[...]
    o_ref[0] = jnp.maximum(y, 0.0).astype(o_ref.dtype)


def pw_conv_bn_relu(x3, w, scale, shift, *, ts=512):
    N, HW, Cin = x3.shape
    Cout = w.shape[1]
    if ts >= HW:
        ts = HW
    else:
        ts = max(8, (ts // 8) * 8)          # second-minor block dim: mult of 8
    return pl.pallas_call(
        _pw_conv_bn_relu_kernel,
        out_shape=jax.ShapeDtypeStruct((N, HW, Cout), jnp.float32),
        grid=(N, pl.cdiv(HW, ts)),
        in_specs=[
            pl.BlockSpec((1, ts, Cin), lambda n, s: (n, s, 0)),
            pl.BlockSpec((Cin, Cout), lambda n, s: (0, 0)),
            pl.BlockSpec((1, Cout), lambda n, s: (0, 0)),
            pl.BlockSpec((1, Cout), lambda n, s: (0, 0)),
        ],
        out_specs=pl.BlockSpec((1, ts, Cout), lambda n, s: (n, s, 0)),
        compiler_params=pltpu.CompilerParams(
            dimension_semantics=("parallel", "parallel"),
            vmem_limit_bytes=_VMEM_LIMIT),
    )(x3, w, scale, shift)


# ------------------ dilated 3x3 conv + BN + ReLU (branches 2-4) -------------

def _dil_conv_bn_relu_kernel(x_ref, w_ref, scale_ref, shift_ref, o_ref,
                             acc_ref, *, out_w, dil, pad, th):
    # x: (1, th, Wp, CB)   w: (1, 3, CB, Cout)   acc: (th*out_w, Cout) f32
    ky = pl.program_id(2)
    ci = pl.program_id(3)

    @pl.when((ky == 0) & (ci == 0))
    def _init():
        acc_ref[...] = jnp.zeros_like(acc_ref)

    cb = x_ref.shape[-1]
    part = None
    for kx in range(3):
        start = pad + (kx - 1) * dil
        patch = x_ref[0, :, start:start + out_w, :]          # (th, out_w, cb)
        # NOTE: reshape forces a small per-tap VMEM relayout; kept because a
        # 2-D matmul is guaranteed to lower on all TPU generations.
        tap = jnp.dot(patch.reshape(th * out_w, cb), w_ref[0, kx],
                      preferred_element_type=jnp.float32)
        part = tap if part is None else part + tap
    acc_ref[...] += part

    @pl.when((ky == pl.num_programs(2) - 1) & (ci == pl.num_programs(3) - 1))
    def _finalize():
        y = acc_ref[...] * scale_ref[...] + shift_ref[...]
        y = jnp.maximum(y, 0.0)
        o_ref[0] = y.reshape(th, out_w, o_ref.shape[-1]).astype(o_ref.dtype)


def dil_conv_bn_relu(x_pad, w, scale, shift, *, dil, out_h, out_w, pad, th,
                     cin_block=512):
    N, HP, WP, Cin = x_pad.shape
    Cout = w.shape[-1]
    assert pad % th == 0 and dil % th == 0 and dil <= pad

    # Cin blocking: lane (minor) dim of an input block must be a multiple of
    # 128 unless it is the full channel extent.
    if Cin > cin_block and Cin % cin_block == 0 and cin_block % 128 == 0:
        cb = cin_block
    else:
        cb = Cin
    ncb = Cin // cb
    n_rb = pl.cdiv(out_h, th)
    row_off0 = (pad - dil) // th       # block-index offset for tap ky = 0
    row_step = dil // th               # block-index step per ky

    kernel = functools.partial(_dil_conv_bn_relu_kernel,
                               out_w=out_w, dil=dil, pad=pad, th=th)
    return pl.pallas_call(
        kernel,
        out_shape=jax.ShapeDtypeStruct((N, out_h, out_w, Cout), jnp.float32),
        grid=(N, n_rb, 3, ncb),
        in_specs=[
            pl.BlockSpec(
                (1, th, WP, cb),
                lambda n, i, ky, c: (n, i + row_off0 + ky * row_step, 0, c)),
            pl.BlockSpec((1, 3, cb, Cout), lambda n, i, ky, c: (ky, 0, c, 0)),
            pl.BlockSpec((1, Cout), lambda n, i, ky, c: (0, 0)),
            pl.BlockSpec((1, Cout), lambda n, i, ky, c: (0, 0)),
        ],
        out_specs=pl.BlockSpec((1, th, out_w, Cout),
                               lambda n, i, ky, c: (n, i, 0, 0)),
        scratch_shapes=[pltpu.VMEM((th * out_w, Cout), jnp.float32)],
        compiler_params=pltpu.CompilerParams(
            dimension_semantics=("parallel", "parallel", "arbitrary",
                                 "arbitrary"),
            vmem_limit_bytes=_VMEM_LIMIT),
    )(x_pad, w, scale, shift)


# -------------- global avg pool + 1x1 conv + ReLU (branch 5) ----------------

def _pool_conv_relu_kernel(x_ref, w_ref, o_ref, acc_ref, *, inv_hw):
    # x: (1, TR, W, Cin)  w: (Cin, Cout)  acc: (1, Cin) f32  o: (1, 1, Cout)
    rb = pl.program_id(1)

    @pl.when(rb == 0)
    def _init():
        acc_ref[...] = jnp.zeros_like(acc_ref)

    tr, ww, cin = x_ref.shape[1], x_ref.shape[2], x_ref.shape[3]
    xs = x_ref[0].reshape(tr * ww, cin)
    acc_ref[...] += jnp.sum(xs, axis=0, keepdims=True)

    @pl.when(rb == pl.num_programs(1) - 1)
    def _finalize():
        pooled = acc_ref[...] * inv_hw
        y = jnp.dot(pooled, w_ref[...], preferred_element_type=jnp.float32)
        o_ref[0] = jnp.maximum(y, 0.0).astype(o_ref.dtype)


def pool_conv_relu(x_nhwc, w, *, row_tile=8):
    N, H, W, Cin = x_nhwc.shape
    Cout = w.shape[1]
    tr = _largest_divisor(H, row_tile)    # exact division: no garbage in sum
    kernel = functools.partial(_pool_conv_relu_kernel, inv_hw=1.0 / (H * W))
    return pl.pallas_call(
        kernel,
        out_shape=jax.ShapeDtypeStruct((N, 1, Cout), jnp.float32),
        grid=(N, H // tr),
        in_specs=[
            pl.BlockSpec((1, tr, W, Cin), lambda n, r: (n, r, 0, 0)),
            pl.BlockSpec((Cin, Cout), lambda n, r: (0, 0)),
        ],
        out_specs=pl.BlockSpec((1, 1, Cout), lambda n, r: (n, 0, 0)),
        scratch_shapes=[pltpu.VMEM((1, Cin), jnp.float32)],
        compiler_params=pltpu.CompilerParams(
            dimension_semantics=("parallel", "arbitrary"),
            vmem_limit_bytes=_VMEM_LIMIT),
    )(x_nhwc, w)


# ------------- fused concat + final 1x1 conv + BN + ReLU --------------------

def _fused_concat_conv_kernel(x1_ref, x2_ref, x3_ref, x4_ref, x5_ref,
                              wf_ref, scale_ref, shift_ref, o_ref):
    # x1..x4: (1, TS, Cout)  x5: (1, 1, Cout)  wf: (5*Cout, Cout)
    cout = o_ref.shape[-1]
    wf = wf_ref[...]
    acc = jnp.dot(x1_ref[0], wf[0:cout], preferred_element_type=jnp.float32)
    acc = acc + jnp.dot(x2_ref[0], wf[cout:2 * cout],
                        preferred_element_type=jnp.float32)
    acc = acc + jnp.dot(x3_ref[0], wf[2 * cout:3 * cout],
                        preferred_element_type=jnp.float32)
    acc = acc + jnp.dot(x4_ref[0], wf[3 * cout:4 * cout],
                        preferred_element_type=jnp.float32)
    # pooled branch: per-image (1, Cout) row, broadcast over the tile --
    # this is exactly conv_f applied to the bilinear-upsampled 1x1 map.
    acc = acc + jnp.dot(x5_ref[0], wf[4 * cout:5 * cout],
                        preferred_element_type=jnp.float32)
    y = acc * scale_ref[...] + shift_ref[...]
    o_ref[0] = jnp.maximum(y, 0.0).astype(o_ref.dtype)


def fused_concat_conv(x1, x2, x3, x4, x5, wf, scale, shift, *, ts=512):
    N, HW, Cout = x1.shape
    if ts >= HW:
        ts = HW
    else:
        ts = max(8, (ts // 8) * 8)
    branch_spec = pl.BlockSpec((1, ts, Cout), lambda n, s: (n, s, 0))
    return pl.pallas_call(
        _fused_concat_conv_kernel,
        out_shape=jax.ShapeDtypeStruct((N, HW, Cout), jnp.float32),
        grid=(N, pl.cdiv(HW, ts)),
        in_specs=[
            branch_spec, branch_spec, branch_spec, branch_spec,
            pl.BlockSpec((1, 1, Cout), lambda n, s: (n, 0, 0)),
            pl.BlockSpec((5 * Cout, Cout), lambda n, s: (0, 0)),
            pl.BlockSpec((1, Cout), lambda n, s: (0, 0)),
            pl.BlockSpec((1, Cout), lambda n, s: (0, 0)),
        ],
        out_specs=pl.BlockSpec((1, ts, Cout), lambda n, s: (n, s, 0)),
        compiler_params=pltpu.CompilerParams(
            dimension_semantics=("parallel", "parallel"),
            vmem_limit_bytes=_VMEM_LIMIT),
    )(x1, x2, x3, x4, x5, wf, scale, shift)


# ------------------------------- glue / model -------------------------------

def bn_fold(bn):
    gamma, beta, mean, var = bn
    scale = gamma / jnp.sqrt(var + BN_EPS)
    shift = beta - mean * scale
    return scale.reshape(1, -1), shift.reshape(1, -1)


def aspp_forward(x_nchw, p, *, spatial_tile=512, pool_row_tile=8):
    x = jnp.transpose(x_nchw, (0, 2, 3, 1))          # NHWC
    N, H, W, Cin = x.shape
    Cout = p["w1"].shape[-1]
    HW = H * W
    x_flat = x.reshape(N, HW, Cin)

    # branch 1: 1x1 conv + bn + relu
    x1 = pw_conv_bn_relu(x_flat, p["w1"], *bn_fold(p["bn1"]), ts=spatial_tile)

    # branches 2-4: dilated 3x3 convs sharing ONE zero-padded copy of x.
    pad = 18                     # = max dilation, shared by all branches
    th = 6                       # row tile; divides pad and every dilation
    n_rb = pl.cdiv(H, th)
    hp = n_rb * th + 2 * pad     # enough rows so no block reads out of bounds
    wp = ((W + 2 * pad + 7) // 8) * 8
    x_pad = jnp.pad(x, ((0, 0), (pad, hp - H - pad), (pad, wp - W - pad),
                        (0, 0)))

    def dil(wkey, bnkey, d):
        y = dil_conv_bn_relu(x_pad, p[wkey], *bn_fold(p[bnkey]),
                             dil=d, out_h=H, out_w=W, pad=pad, th=th)
        return y.reshape(N, HW, Cout)

    x2 = dil("w2", "bn2", 6)
    x3 = dil("w3", "bn3", 12)
    x4 = dil("w4", "bn4", 18)

    # branch 5: global avg pool -> 1x1 conv -> relu.  The bilinear upsample
    # from a 1x1 map (applied twice in the reference) is a broadcast and is
    # folded into the fused final conv below (never materialized in HBM).
    x5 = pool_conv_relu(x, p["w5"], row_tile=pool_row_tile)   # (N, 1, Cout)

    # concat + convf + bnf + relu, fused: no (N,H,W,5*Cout) tensor in HBM.
    out = fused_concat_conv(x1, x2, x3, x4, x5, p["wf"], *bn_fold(p["bnf"]),
                            ts=spatial_tile)
    return jnp.transpose(out.reshape(N, H, W, Cout), (0, 3, 1, 2))  # NCHW


# ------------------------------ pure-JAX reference --------------------------

def ref_aspp(x_nchw, p):
    def conv(x, w_hwio, dil, padw):
        return jax.lax.conv_general_dilated(
            x, w_hwio, window_strides=(1, 1),
            padding=[(padw, padw), (padw, padw)], rhs_dilation=(dil, dil),
            dimension_numbers=("NCHW", "HWIO", "NCHW"))

    def bn_relu(y, bn):
        s, b = bn_fold(bn)
        y = y * s.reshape(1, -1, 1, 1) + b.reshape(1, -1, 1, 1)
        return jnp.maximum(y, 0.0)

    Cin = x_nchw.shape[1]
    Cout = p["w1"].shape[-1]
    x1 = bn_relu(conv(x_nchw, p["w1"].reshape(1, 1, Cin, Cout), 1, 0), p["bn1"])
    x2 = bn_relu(conv(x_nchw, p["w2"], 6, 6), p["bn2"])
    x3 = bn_relu(conv(x_nchw, p["w3"], 12, 12), p["bn3"])
    x4 = bn_relu(conv(x_nchw, p["w4"], 18, 18), p["bn4"])
    pooled = jnp.mean(x_nchw, axis=(2, 3), keepdims=True)
    x5 = jnp.maximum(conv(pooled, p["w5"].reshape(1, 1, Cin, Cout), 1, 0), 0.0)
    x5 = jnp.broadcast_to(x5, x4.shape)
    cat = jnp.concatenate([x1, x2, x3, x4, x5], axis=1)
    out = conv(cat, p["wf"].reshape(1, 1, 5 * Cout, Cout), 1, 0)
    return bn_relu(out, p["bnf"])


# ----------------------------------- main ------------------------------------

def make_params(key, cin, cout):
    ks = jax.random.split(key, 16)

    def bn(k):
        k1, k2, k3, k4 = jax.random.split(k, 4)
        gamma = 1.0 + 0.1 * jax.random.normal(k1, (cout,), jnp.float32)
        beta = 0.1 * jax.random.normal(k2, (cout,), jnp.float32)
        mean = 0.1 * jax.random.normal(k3, (cout,), jnp.float32)
        var = 0.5 + 0.1 * jnp.abs(jax.random.normal(k4, (cout,), jnp.float32))
        return (gamma, beta, mean, var)

    return {
        "w1": 0.1 * jax.random.normal(ks[0], (cin, cout), jnp.float32),
        "w2": 0.1 * jax.random.normal(ks[1], (3, 3, cin, cout), jnp.float32),
        "w3": 0.1 * jax.random.normal(ks[2], (3, 3, cin, cout), jnp.float32),
        "w4": 0.1 * jax.random.normal(ks[3], (3, 3, cin, cout), jnp.float32),
        "w5": 0.1 * jax.random.normal(ks[4], (cin, cout), jnp.float32),
        "wf": 0.1 * jax.random.normal(ks[5], (5 * cout, cout), jnp.float32),
        "bn1": bn(ks[6]), "bn2": bn(ks[7]), "bn3": bn(ks[8]),
        "bn4": bn(ks[9]), "bnf": bn(ks[10]),
    }


if __name__ == "__main__":
    key = jax.random.PRNGKey(0)
    k_x, k_p = jax.random.split(key)
    N, Cin, H, W = 2, 4, 16, 16
    Cout = 8  # small stand-in for the default 256
    x = jax.random.normal(k_x, (N, Cin, H, W), jnp.float32)
    params = make_params(k_p, Cin, Cout)

    # spatial_tile=128 / pool_row_tile=8 so the toy shapes exercise multi-tile
    # grids and the accumulate paths (production would use ~1024 / 16).
    fwd = jax.jit(functools.partial(aspp_forward, spatial_tile=128,
                                    pool_row_tile=8))
    out = jax.block_until_ready(fwd(x, params))
    assert out.shape == (N, Cout, H, W)

    ref = ref_aspp(x, params)
    err = float(jnp.max(jnp.abs(out - ref)))
    assert jnp.allclose(out, ref, atol=1e-4, rtol=1e-4), err

    print("KERNEL_OK")
</pallas_src>

<mosaic_0001>
module attributes {stable_mosaic.version = 11 : i64} {
  func.func @_dil_conv_bn_relu_kernel(%arg0: i32, %arg1: i32, %arg2: i32, %arg3: i32, %arg4: memref<1x6x56x4xf32, #tpu.memory_space<vmem>>, %arg5: memref<1x3x4x8xf32, #tpu.memory_space<vmem>>, %arg6: memref<1x8xf32, #tpu.memory_space<vmem>>, %arg7: memref<1x8xf32, #tpu.memory_space<vmem>>, %arg8: memref<1x6x16x8xf32, #tpu.memory_space<vmem>>, %arg9: memref<96x8xf32, #tpu.memory_space<vmem>>) attributes {dimension_semantics = [#tpu.dimension_semantics<parallel>, #tpu.dimension_semantics<parallel>, #tpu.dimension_semantics<arbitrary>, #tpu.dimension_semantics<arbitrary>], iteration_bounds = array<i64: 2, 3, 3, 1>, scalar_prefetch = 0 : i64, scratch_operands = 1 : i64, tpu.core_type = #tpu.core_type<tc>, window_params = [{transform_indices = @transform_0, window_bounds = array<i64: 1, 6, 56, 4>}, {transform_indices = @transform_1, window_bounds = array<i64: 1, 3, 4, 8>}, {pipeline_mode = #tpu.pipeline_mode<synchronous>, transform_indices = @transform_2, window_bounds = array<i64: 1, 8>}, {pipeline_mode = #tpu.pipeline_mode<synchronous>, transform_indices = @transform_3, window_bounds = array<i64: 1, 8>}, {transform_indices = @transform_4, window_bounds = array<i64: 1, 6, 16, 8>}]} {
    %c0_i32 = arith.constant 0 : i32
    %0 = arith.cmpi eq, %arg2, %c0_i32 : i32
    %c0_i32_0 = arith.constant 0 : i32
    %1 = arith.cmpi eq, %arg3, %c0_i32_0 : i32
    %2 = arith.andi %0, %1 : i1
    %3 = arith.extui %2 : i1 to i32
    %c0_i32_1 = arith.constant 0 : i32
    %4 = arith.cmpi ne, %3, %c0_i32_1 : i32
    scf.if %4 {
      %cst_29 = arith.constant 0.000000e+00 : f32
      %33 = vector.broadcast %cst_29 : f32 to vector<96x8xf32>
      %c0_30 = arith.constant 0 : index
      %c0_31 = arith.constant 0 : index
      %34 = vector.load %arg9[%c0_30, %c0_31] : memref<96x8xf32, #tpu.memory_space<vmem>>, vector<96x8xf32>
      tpu.vector_store %arg9[%c0_30, %c0_31], %33 {strides = array<i32>} : memref<96x8xf32, #tpu.memory_space<vmem>>, vector<96x8xf32>,
    } else {
    }
    %c0 = arith.constant 0 : index
    %c0_2 = arith.constant 0 : index
    %c0_3 = arith.constant 0 : index
    %c0_4 = arith.constant 0 : index
    %5 = vector.load %arg4[%c0, %c0_2, %c0_3, %c0_4] : memref<1x6x56x4xf32, #tpu.memory_space<vmem>>, vector<1x6x16x4xf32>
    %6 = vector.shape_cast %5 : vector<1x6x16x4xf32> to vector<6x16x4xf32>
    %7 = vector.shape_cast %6 : vector<6x16x4xf32> to vector<96x4xf32>
    %c0_5 = arith.constant 0 : index
    %c0_6 = arith.constant 0 : index
    %c0_7 = arith.constant 0 : index
    %c0_8 = arith.constant 0 : index
    %8 = vector.load %arg5[%c0_5, %c0_6, %c0_7, %c0_8] : memref<1x3x4x8xf32, #tpu.memory_space<vmem>>, vector<1x1x4x8xf32>
    %9 = vector.shape_cast %8 : vector<1x1x4x8xf32> to vector<4x8xf32>
    %cst = arith.constant dense<0.000000e+00> : vector<96x8xf32>
    %10 = tpu.matmul %7, %9, %cst {dimension_numbers = #tpu.dot_dimension_numbers<[1], [0], [0], [1], [0, 0, 1, 1], [], []>} : vector<96x4xf32>, vector<4x8xf32>, vector<96x8xf32> -> vector<96x8xf32>
    %c0_9 = arith.constant 0 : index
    %c0_10 = arith.constant 0 : index
    %c18 = arith.constant 18 : index
    %c0_11 = arith.constant 0 : index
    %11 = vector.load %arg4[%c0_9, %c0_10, %c18, %c0_11] : memref<1x6x56x4xf32, #tpu.memory_space<vmem>>, vector<1x6x16x4xf32>
    %12 = vector.shape_cast %11 : vector<1x6x16x4xf32> to vector<6x16x4xf32>
    %13 = vector.shape_cast %12 : vector<6x16x4xf32> to vector<96x4xf32>
    %c0_12 = arith.constant 0 : index
    %c1 = arith.constant 1 : index
    %c0_13 = arith.constant 0 : index
    %c0_14 = arith.constant 0 : index
    %14 = vector.load %arg5[%c0_12, %c1, %c0_13, %c0_14] : memref<1x3x4x8xf32, #tpu.memory_space<vmem>>, vector<1x1x4x8xf32>
    %15 = vector.shape_cast %14 : vector<1x1x4x8xf32> to vector<4x8xf32>
    %cst_15 = arith.constant dense<0.000000e+00> : vector<96x8xf32>
    %16 = tpu.matmul %13, %15, %cst_15 {dimension_numbers = #tpu.dot_dimension_numbers<[1], [0], [0], [1], [0, 0, 1, 1], [], []>} : vector<96x4xf32>, vector<4x8xf32>, vector<96x8xf32> -> vector<96x8xf32>
    %17 = arith.addf %10, %16 : vector<96x8xf32>
    %c0_16 = arith.constant 0 : index
    %c0_17 = arith.constant 0 : index
    %c36 = arith.constant 36 : index
    %c0_18 = arith.constant 0 : index
    %18 = vector.load %arg4[%c0_16, %c0_17, %c36, %c0_18] : memref<1x6x56x4xf32, #tpu.memory_space<vmem>>, vector<1x6x16x4xf32>
    %19 = vector.shape_cast %18 : vector<1x6x16x4xf32> to vector<6x16x4xf32>
    %20 = vector.shape_cast %19 : vector<6x16x4xf32> to vector<96x4xf32>
    %c0_19 = arith.constant 0 : index
    %c2 = arith.constant 2 : index
    %c0_20 = arith.constant 0 : index
    %c0_21 = arith.constant 0 : index
    %21 = vector.load %arg5[%c0_19, %c2, %c0_20, %c0_21] : memref<1x3x4x8xf32, #tpu.memory_space<vmem>>, vector<1x1x4x8xf32>
    %22 = vector.shape_cast %21 : vector<1x1x4x8xf32> to vector<4x8xf32>
    %cst_22 = arith.constant dense<0.000000e+00> : vector<96x8xf32>
    %23 = tpu.matmul %20, %22, %cst_22 {dimension_numbers = #tpu.dot_dimension_numbers<[1], [0], [0], [1], [0, 0, 1, 1], [], []>} : vector<96x4xf32>, vector<4x8xf32>, vector<96x8xf32> -> vector<96x8xf32>
    %24 = arith.addf %17, %23 : vector<96x8xf32>
    %c0_23 = arith.constant 0 : index
    %c0_24 = arith.constant 0 : index
    %25 = vector.load %arg9[%c0_23, %c0_24] : memref<96x8xf32, #tpu.memory_space<vmem>>, vector<96x8xf32>
    %26 = arith.addf %25, %24 : vector<96x8xf32>
    %c0_25 = arith.constant 0 : index
    %c0_26 = arith.constant 0 : index
    %27 = vector.load %arg9[%c0_25, %c0_26] : memref<96x8xf32, #tpu.memory_space<vmem>>, vector<96x8xf32>
    tpu.vector_store %arg9[%c0_25, %c0_26], %26 {strides = array<i32>} : memref<96x8xf32, #tpu.memory_space<vmem>>, vector<96x8xf32>,
    %c2_i32 = arith.constant 2 : i32
    %28 = arith.cmpi eq, %arg2, %c2_i32 : i32
    %c0_i32_27 = arith.constant 0 : i32
    %29 = arith.cmpi eq, %arg3, %c0_i32_27 : i32
    %30 = arith.andi %28, %29 : i1
    %31 = arith.extui %30 : i1 to i32
    %c0_i32_28 = arith.constant 0 : i32
    %32 = arith.cmpi ne, %31, %c0_i32_28 : i32
    scf.if %32 {
      %c0_29 = arith.constant 0 : index
      %c0_30 = arith.constant 0 : index
      %33 = vector.load %arg9[%c0_29, %c0_30] : memref<96x8xf32, #tpu.memory_space<vmem>>, vector<96x8xf32>
      %c0_31 = arith.constant 0 : index
      %c0_32 = arith.constant 0 : index
      %34 = vector.load %arg6[%c0_31, %c0_32] : memref<1x8xf32, #tpu.memory_space<vmem>>, vector<1x8xf32>
      %35 = vector.broadcast %34 : vector<1x8xf32> to vector<96x8xf32>
      %36 = arith.mulf %33, %35 : vector<96x8xf32>
      %c0_33 = arith.constant 0 : index
      %c0_34 = arith.constant 0 : index
      %37 = vector.load %arg7[%c0_33, %c0_34] : memref<1x8xf32, #tpu.memory_space<vmem>>, vector<1x8xf32>
      %38 = vector.broadcast %37 : vector<1x8xf32> to vector<96x8xf32>
      %39 = arith.addf %36, %38 : vector<96x8xf32>
      %cst_35 = arith.constant 0.000000e+00 : f32
      %40 = vector.broadcast %cst_35 : f32 to vector<96x8xf32>
      %41 = arith.maximumf %39, %40 : vector<96x8xf32>
      %42 = vector.shape_cast %41 : vector<96x8xf32> to vector<6x16x8xf32>
      %c0_36 = arith.constant 0 : index
      %c0_37 = arith.constant 0 : index
      %c0_38 = arith.constant 0 : index
      %c0_39 = arith.constant 0 : index
      %43 = vector.load %arg8[%c0_36, %c0_37, %c0_38, %c0_39] : memref<1x6x16x8xf32, #tpu.memory_space<vmem>>, vector<1x6x16x8xf32>
      %44 = vector.shape_cast %43 : vector<1x6x16x8xf32> to vector<6x16x8xf32>
      %45 = vector.shape_cast %42 : vector<6x16x8xf32> to vector<1x6x16x8xf32>
      tpu.vector_store %arg8[%c0_36, %c0_37, %c0_38, %c0_39], %45 {strides = array<i32>} : memref<1x6x16x8xf32, #tpu.memory_space<vmem>>, vector<1x6x16x8xf32>,
    } else {
    }
    return
  }
  func.func @transform_0(%arg0: i32, %arg1: i32, %arg2: i32, %arg3: i32) -> (i32, i32, i32, i32) {
    %c0_i32 = arith.constant 0 : i32
    %0 = arith.addi %arg1, %c0_i32 : i32
    %c3_i32 = arith.constant 3 : i32
    %1 = arith.muli %arg2, %c3_i32 : i32
    %2 = arith.addi %0, %1 : i32
    %c0_i32_0 = arith.constant 0 : i32
    %c0_i32_1 = arith.constant 0 : i32
    return %arg0, %2, %c0_i32_0, %arg3 : i32, i32, i32, i32
  }
  func.func @transform_1(%arg0: i32, %arg1: i32, %arg2: i32, %arg3: i32) -> (i32, i32, i32, i32) {
    %c0_i32 = arith.constant 0 : i32
    %c0_i32_0 = arith.constant 0 : i32
    %c0_i32_1 = arith.constant 0 : i32
    return %arg2, %c0_i32, %arg3, %c0_i32_0 : i32, i32, i32, i32
  }
  func.func @transform_2(%arg0: i32, %arg1: i32, %arg2: i32, %arg3: i32) -> (i32, i32) {
    %c0_i32 = arith.constant 0 : i32
    %c0_i32_0 = arith.constant 0 : i32
    %c0_i32_1 = arith.constant 0 : i32
    return %c0_i32, %c0_i32_0 : i32, i32
  }
  func.func @transform_3(%arg0: i32, %arg1: i32, %arg2: i32, %arg3: i32) -> (i32, i32) {
    %c0_i32 = arith.constant 0 : i32
    %c0_i32_0 = arith.constant 0 : i32
    %c0_i32_1 = arith.constant 0 : i32
    return %c0_i32, %c0_i32_0 : i32, i32
  }
  func.func @transform_4(%arg0: i32, %arg1: i32, %arg2: i32, %arg3: i32) -> (i32, i32, i32, i32) {
    %c0_i32 = arith.constant 0 : i32
    %c0_i32_0 = arith.constant 0 : i32
    %c0_i32_1 = arith.constant 0 : i32
    return %arg0, %arg1, %c0_i32, %c0_i32_0 : i32, i32, i32, i32
  }
}

module attributes {stable_mosaic.version = 11 : i64} {
  func.func @_dil_conv_bn_relu_kernel(%arg0: i32, %arg1: i32, %arg2: i32, %arg3: i32, %arg4: memref<1x6x56x4xf32, #tpu.memory_space<vmem>>, %arg5: memref<1x3x4x8xf32, #tpu.memory_space<vmem>>, %arg6: memref<1x8xf32, #tpu.memory_space<vmem>>, %arg7: memref<1x8xf32, #tpu.memory_space<vmem>>, %arg8: memref<1x6x16x8xf32, #tpu.memory_space<vmem>>, %arg9: memref<96x8xf32, #tpu.memory_space<vmem>>) attributes {dimension_semantics = [#tpu.dimension_semantics<parallel>, #tpu.dimension_semantics<parallel>, #tpu.dimension_semantics<arbitrary>, #tpu.dimension_semantics<arbitrary>], iteration_bounds = array<i64: 2, 3, 3, 1>, scalar_prefetch = 0 : i64, scratch_operands = 1 : i64, tpu.core_type = #tpu.core_type<tc>, window_params = [{transform_indices = @transform_0, window_bounds = array<i64: 1, 6, 56, 4>}, {transform_indices = @transform_1, window_bounds = array<i64: 1, 3, 4, 8>}, {pipeline_mode = #tpu.pipeline_mode<synchronous>, transform_indices = @transform_2, window_bounds = array<i64: 1, 8>}, {pipeline_mode = #tpu.pipeline_mode<synchronous>, transform_indices = @transform_3, window_bounds = array<i64: 1, 8>}, {transform_indices = @transform_4, window_bounds = array<i64: 1, 6, 16, 8>}]} {
    %c0_i32 = arith.constant 0 : i32
    %0 = arith.cmpi eq, %arg2, %c0_i32 : i32
    %c0_i32_0 = arith.constant 0 : i32
    %1 = arith.cmpi eq, %arg3, %c0_i32_0 : i32
    %2 = arith.andi %0, %1 : i1
    %3 = arith.extui %2 : i1 to i32
    %c0_i32_1 = arith.constant 0 : i32
    %4 = arith.cmpi ne, %3, %c0_i32_1 : i32
    scf.if %4 {
      %cst_28 = arith.constant 0.000000e+00 : f32
      %33 = vector.broadcast %cst_28 : f32 to vector<96x8xf32>
      %c0_29 = arith.constant 0 : index
      %c0_30 = arith.constant 0 : index
      %34 = vector.load %arg9[%c0_29, %c0_30] : memref<96x8xf32, #tpu.memory_space<vmem>>, vector<96x8xf32>
      tpu.vector_store %arg9[%c0_29, %c0_30], %33 {strides = array<i32>} : memref<96x8xf32, #tpu.memory_space<vmem>>, vector<96x8xf32>,
    } else {
    }
    %c0 = arith.constant 0 : index
    %c0_2 = arith.constant 0 : index
    %c6 = arith.constant 6 : index
    %c0_3 = arith.constant 0 : index
    %5 = vector.load %arg4[%c0, %c0_2, %c6, %c0_3] : memref<1x6x56x4xf32, #tpu.memory_space<vmem>>, vector<1x6x16x4xf32>
    %6 = vector.shape_cast %5 : vector<1x6x16x4xf32> to vector<6x16x4xf32>
    %7 = vector.shape_cast %6 : vector<6x16x4xf32> to vector<96x4xf32>
    %c0_4 = arith.constant 0 : index
    %c0_5 = arith.constant 0 : index
    %c0_6 = arith.constant 0 : index
    %c0_7 = arith.constant 0 : index
    %8 = vector.load %arg5[%c0_4, %c0_5, %c0_6, %c0_7] : memref<1x3x4x8xf32, #tpu.memory_space<vmem>>, vector<1x1x4x8xf32>
    %9 = vector.shape_cast %8 : vector<1x1x4x8xf32> to vector<4x8xf32>
    %cst = arith.constant dense<0.000000e+00> : vector<96x8xf32>
    %10 = tpu.matmul %7, %9, %cst {dimension_numbers = #tpu.dot_dimension_numbers<[1], [0], [0], [1], [0, 0, 1, 1], [], []>} : vector<96x4xf32>, vector<4x8xf32>, vector<96x8xf32> -> vector<96x8xf32>
    %c0_8 = arith.constant 0 : index
    %c0_9 = arith.constant 0 : index
    %c18 = arith.constant 18 : index
    %c0_10 = arith.constant 0 : index
    %11 = vector.load %arg4[%c0_8, %c0_9, %c18, %c0_10] : memref<1x6x56x4xf32, #tpu.memory_space<vmem>>, vector<1x6x16x4xf32>
    %12 = vector.shape_cast %11 : vector<1x6x16x4xf32> to vector<6x16x4xf32>
    %13 = vector.shape_cast %12 : vector<6x16x4xf32> to vector<96x4xf32>
    %c0_11 = arith.constant 0 : index
    %c1 = arith.constant 1 : index
    %c0_12 = arith.constant 0 : index
    %c0_13 = arith.constant 0 : index
    %14 = vector.load %arg5[%c0_11, %c1, %c0_12, %c0_13] : memref<1x3x4x8xf32, #tpu.memory_space<vmem>>, vector<1x1x4x8xf32>
    %15 = vector.shape_cast %14 : vector<1x1x4x8xf32> to vector<4x8xf32>
    %cst_14 = arith.constant dense<0.000000e+00> : vector<96x8xf32>
    %16 = tpu.matmul %13, %15, %cst_14 {dimension_numbers = #tpu.dot_dimension_numbers<[1], [0], [0], [1], [0, 0, 1, 1], [], []>} : vector<96x4xf32>, vector<4x8xf32>, vector<96x8xf32> -> vector<96x8xf32>
    %17 = arith.addf %10, %16 : vector<96x8xf32>
    %c0_15 = arith.constant 0 : index
    %c0_16 = arith.constant 0 : index
    %c30 = arith.constant 30 : index
    %c0_17 = arith.constant 0 : index
    %18 = vector.load %arg4[%c0_15, %c0_16, %c30, %c0_17] : memref<1x6x56x4xf32, #tpu.memory_space<vmem>>, vector<1x6x16x4xf32>
    %19 = vector.shape_cast %18 : vector<1x6x16x4xf32> to vector<6x16x4xf32>
    %20 = vector.shape_cast %19 : vector<6x16x4xf32> to vector<96x4xf32>
    %c0_18 = arith.constant 0 : index
    %c2 = arith.constant 2 : index
    %c0_19 = arith.constant 0 : index
    %c0_20 = arith.constant 0 : index
    %21 = vector.load %arg5[%c0_18, %c2, %c0_19, %c0_20] : memref<1x3x4x8xf32, #tpu.memory_space<vmem>>, vector<1x1x4x8xf32>
    %22 = vector.shape_cast %21 : vector<1x1x4x8xf32> to vector<4x8xf32>
    %cst_21 = arith.constant dense<0.000000e+00> : vector<96x8xf32>
    %23 = tpu.matmul %20, %22, %cst_21 {dimension_numbers = #tpu.dot_dimension_numbers<[1], [0], [0], [1], [0, 0, 1, 1], [], []>} : vector<96x4xf32>, vector<4x8xf32>, vector<96x8xf32> -> vector<96x8xf32>
    %24 = arith.addf %17, %23 : vector<96x8xf32>
    %c0_22 = arith.constant 0 : index
    %c0_23 = arith.constant 0 : index
    %25 = vector.load %arg9[%c0_22, %c0_23] : memref<96x8xf32, #tpu.memory_space<vmem>>, vector<96x8xf32>
    %26 = arith.addf %25, %24 : vector<96x8xf32>
    %c0_24 = arith.constant 0 : index
    %c0_25 = arith.constant 0 : index
    %27 = vector.load %arg9[%c0_24, %c0_25] : memref<96x8xf32, #tpu.memory_space<vmem>>, vector<96x8xf32>
    tpu.vector_store %arg9[%c0_24, %c0_25], %26 {strides = array<i32>} : memref<96x8xf32, #tpu.memory_space<vmem>>, vector<96x8xf32>,
    %c2_i32 = arith.constant 2 : i32
    %28 = arith.cmpi eq, %arg2, %c2_i32 : i32
    %c0_i32_26 = arith.constant 0 : i32
    %29 = arith.cmpi eq, %arg3, %c0_i32_26 : i32
    %30 = arith.andi %28, %29 : i1
    %31 = arith.extui %30 : i1 to i32
    %c0_i32_27 = arith.constant 0 : i32
    %32 = arith.cmpi ne, %31, %c0_i32_27 : i32
    scf.if %32 {
      %c0_28 = arith.constant 0 : index
      %c0_29 = arith.constant 0 : index
      %33 = vector.load %arg9[%c0_28, %c0_29] : memref<96x8xf32, #tpu.memory_space<vmem>>, vector<96x8xf32>
      %c0_30 = arith.constant 0 : index
      %c0_31 = arith.constant 0 : index
      %34 = vector.load %arg6[%c0_30, %c0_31] : memref<1x8xf32, #tpu.memory_space<vmem>>, vector<1x8xf32>
      %35 = vector.broadcast %34 : vector<1x8xf32> to vector<96x8xf32>
      %36 = arith.mulf %33, %35 : vector<96x8xf32>
      %c0_32 = arith.constant 0 : index
      %c0_33 = arith.constant 0 : index
      %37 = vector.load %arg7[%c0_32, %c0_33] : memref<1x8xf32, #tpu.memory_space<vmem>>, vector<1x8xf32>
      %38 = vector.broadcast %37 : vector<1x8xf32> to vector<96x8xf32>
      %39 = arith.addf %36, %38 : vector<96x8xf32>
      %cst_34 = arith.constant 0.000000e+00 : f32
      %40 = vector.broadcast %cst_34 : f32 to vector<96x8xf32>
      %41 = arith.maximumf %39, %40 : vector<96x8xf32>
      %42 = vector.shape_cast %41 : vector<96x8xf32> to vector<6x16x8xf32>
      %c0_35 = arith.constant 0 : index
      %c0_36 = arith.constant 0 : index
      %c0_37 = arith.constant 0 : index
      %c0_38 = arith.constant 0 : index
      %43 = vector.load %arg8[%c0_35, %c0_36, %c0_37, %c0_38] : memref<1x6x16x8xf32, #tpu.memory_space<vmem>>, vector<1x6x16x8xf32>
      %44 = vector.shape_cast %43 : vector<1x6x16x8xf32> to vector<6x16x8xf32>
      %45 = vector.shape_cast %42 : vector<6x16x8xf32> to vector<1x6x16x8xf32>
      tpu.vector_store %arg8[%c0_35, %c0_36, %c0_37, %c0_38], %45 {strides = array<i32>} : memref<1x6x16x8xf32, #tpu.memory_space<vmem>>, vector<1x6x16x8xf32>,
    } else {
    }
    return
  }
  func.func @transform_0(%arg0: i32, %arg1: i32, %arg2: i32, %arg3: i32) -> (i32, i32, i32, i32) {
    %c1_i32 = arith.constant 1 : i32
    %0 = arith.addi %arg1, %c1_i32 : i32
    %c2_i32 = arith.constant 2 : i32
    %1 = arith.muli %arg2, %c2_i32 : i32
    %2 = arith.addi %0, %1 : i32
    %c0_i32 = arith.constant 0 : i32
    %c0_i32_0 = arith.constant 0 : i32
    return %arg0, %2, %c0_i32, %arg3 : i32, i32, i32, i32
  }
  func.func @transform_1(%arg0: i32, %arg1: i32, %arg2: i32, %arg3: i32) -> (i32, i32, i32, i32) {
    %c0_i32 = arith.constant 0 : i32
    %c0_i32_0 = arith.constant 0 : i32
    %c0_i32_1 = arith.constant 0 : i32
    return %arg2, %c0_i32, %arg3, %c0_i32_0 : i32, i32, i32, i32
  }
  func.func @transform_2(%arg0: i32, %arg1: i32, %arg2: i32, %arg3: i32) -> (i32, i32) {
    %c0_i32 = arith.constant 0 : i32
    %c0_i32_0 = arith.constant 0 : i32
    %c0_i32_1 = arith.constant 0 : i32
    return %c0_i32, %c0_i32_0 : i32, i32
  }
  func.func @transform_3(%arg0: i32, %arg1: i32, %arg2: i32, %arg3: i32) -> (i32, i32) {
    %c0_i32 = arith.constant 0 : i32
    %c0_i32_0 = arith.constant 0 : i32
    %c0_i32_1 = arith.constant 0 : i32
    return %c0_i32, %c0_i32_0 : i32, i32
  }
  func.func @transform_4(%arg0: i32, %arg1: i32, %arg2: i32, %arg3: i32) -> (i32, i32, i32, i32) {
    %c0_i32 = arith.constant 0 : i32
    %c0_i32_0 = arith.constant 0 : i32
    %c0_i32_1 = arith.constant 0 : i32
    return %arg0, %arg1, %c0_i32, %c0_i32_0 : i32, i32, i32, i32
  }
}

module attributes {stable_mosaic.version = 11 : i64} {
  func.func @_dil_conv_bn_relu_kernel(%arg0: i32, %arg1: i32, %arg2: i32, %arg3: i32, %arg4: memref<1x6x56x4xf32, #tpu.memory_space<vmem>>, %arg5: memref<1x3x4x8xf32, #tpu.memory_space<vmem>>, %arg6: memref<1x8xf32, #tpu.memory_space<vmem>>, %arg7: memref<1x8xf32, #tpu.memory_space<vmem>>, %arg8: memref<1x6x16x8xf32, #tpu.memory_space<vmem>>, %arg9: memref<96x8xf32, #tpu.memory_space<vmem>>) attributes {dimension_semantics = [#tpu.dimension_semantics<parallel>, #tpu.dimension_semantics<parallel>, #tpu.dimension_semantics<arbitrary>, #tpu.dimension_semantics<arbitrary>], iteration_bounds = array<i64: 2, 3, 3, 1>, scalar_prefetch = 0 : i64, scratch_operands = 1 : i64, tpu.core_type = #tpu.core_type<tc>, window_params = [{transform_indices = @transform_0, window_bounds = array<i64: 1, 6, 56, 4>}, {transform_indices = @transform_1, window_bounds = array<i64: 1, 3, 4, 8>}, {pipeline_mode = #tpu.pipeline_mode<synchronous>, transform_indices = @transform_2, window_bounds = array<i64: 1, 8>}, {pipeline_mode = #tpu.pipeline_mode<synchronous>, transform_indices = @transform_3, window_bounds = array<i64: 1, 8>}, {transform_indices = @transform_4, window_bounds = array<i64: 1, 6, 16, 8>}]} {
    %c0_i32 = arith.constant 0 : i32
    %0 = arith.cmpi eq, %arg2, %c0_i32 : i32
    %c0_i32_0 = arith.constant 0 : i32
    %1 = arith.cmpi eq, %arg3, %c0_i32_0 : i32
    %2 = arith.andi %0, %1 : i1
    %3 = arith.extui %2 : i1 to i32
    %c0_i32_1 = arith.constant 0 : i32
    %4 = arith.cmpi ne, %3, %c0_i32_1 : i32
    scf.if %4 {
      %cst_28 = arith.constant 0.000000e+00 : f32
      %33 = vector.broadcast %cst_28 : f32 to vector<96x8xf32>
      %c0_29 = arith.constant 0 : index
      %c0_30 = arith.constant 0 : index
      %34 = vector.load %arg9[%c0_29, %c0_30] : memref<96x8xf32, #tpu.memory_space<vmem>>, vector<96x8xf32>
      tpu.vector_store %arg9[%c0_29, %c0_30], %33 {strides = array<i32>} : memref<96x8xf32, #tpu.memory_space<vmem>>, vector<96x8xf32>,
    } else {
    }
    %c0 = arith.constant 0 : index
    %c0_2 = arith.constant 0 : index
    %c12 = arith.constant 12 : index
    %c0_3 = arith.constant 0 : index
    %5 = vector.load %arg4[%c0, %c0_2, %c12, %c0_3] : memref<1x6x56x4xf32, #tpu.memory_space<vmem>>, vector<1x6x16x4xf32>
    %6 = vector.shape_cast %5 : vector<1x6x16x4xf32> to vector<6x16x4xf32>
    %7 = vector.shape_cast %6 : vector<6x16x4xf32> to vector<96x4xf32>
    %c0_4 = arith.constant 0 : index
    %c0_5 = arith.constant 0 : index
    %c0_6 = arith.constant 0 : index
    %c0_7 = arith.constant 0 : index
    %8 = vector.load %arg5[%c0_4, %c0_5, %c0_6, %c0_7] : memref<1x3x4x8xf32, #tpu.memory_space<vmem>>, vector<1x1x4x8xf32>
    %9 = vector.shape_cast %8 : vector<1x1x4x8xf32> to vector<4x8xf32>
    %cst = arith.constant dense<0.000000e+00> : vector<96x8xf32>
    %10 = tpu.matmul %7, %9, %cst {dimension_numbers = #tpu.dot_dimension_numbers<[1], [0], [0], [1], [0, 0, 1, 1], [], []>} : vector<96x4xf32>, vector<4x8xf32>, vector<96x8xf32> -> vector<96x8xf32>
    %c0_8 = arith.constant 0 : index
    %c0_9 = arith.constant 0 : index
    %c18 = arith.constant 18 : index
    %c0_10 = arith.constant 0 : index
    %11 = vector.load %arg4[%c0_8, %c0_9, %c18, %c0_10] : memref<1x6x56x4xf32, #tpu.memory_space<vmem>>, vector<1x6x16x4xf32>
    %12 = vector.shape_cast %11 : vector<1x6x16x4xf32> to vector<6x16x4xf32>
    %13 = vector.shape_cast %12 : vector<6x16x4xf32> to vector<96x4xf32>
    %c0_11 = arith.constant 0 : index
    %c1 = arith.constant 1 : index
    %c0_12 = arith.constant 0 : index
    %c0_13 = arith.constant 0 : index
    %14 = vector.load %arg5[%c0_11, %c1, %c0_12, %c0_13] : memref<1x3x4x8xf32, #tpu.memory_space<vmem>>, vector<1x1x4x8xf32>
    %15 = vector.shape_cast %14 : vector<1x1x4x8xf32> to vector<4x8xf32>
    %cst_14 = arith.constant dense<0.000000e+00> : vector<96x8xf32>
    %16 = tpu.matmul %13, %15, %cst_14 {dimension_numbers = #tpu.dot_dimension_numbers<[1], [0], [0], [1], [0, 0, 1, 1], [], []>} : vector<96x4xf32>, vector<4x8xf32>, vector<96x8xf32> -> vector<96x8xf32>
    %17 = arith.addf %10, %16 : vector<96x8xf32>
    %c0_15 = arith.constant 0 : index
    %c0_16 = arith.constant 0 : index
    %c24 = arith.constant 24 : index
    %c0_17 = arith.constant 0 : index
    %18 = vector.load %arg4[%c0_15, %c0_16, %c24, %c0_17] : memref<1x6x56x4xf32, #tpu.memory_space<vmem>>, vector<1x6x16x4xf32>
    %19 = vector.shape_cast %18 : vector<1x6x16x4xf32> to vector<6x16x4xf32>
    %20 = vector.shape_cast %19 : vector<6x16x4xf32> to vector<96x4xf32>
    %c0_18 = arith.constant 0 : index
    %c2 = arith.constant 2 : index
    %c0_19 = arith.constant 0 : index
    %c0_20 = arith.constant 0 : index
    %21 = vector.load %arg5[%c0_18, %c2, %c0_19, %c0_20] : memref<1x3x4x8xf32, #tpu.memory_space<vmem>>, vector<1x1x4x8xf32>
    %22 = vector.shape_cast %21 : vector<1x1x4x8xf32> to vector<4x8xf32>
    %cst_21 = arith.constant dense<0.000000e+00> : vector<96x8xf32>
    %23 = tpu.matmul %20, %22, %cst_21 {dimension_numbers = #tpu.dot_dimension_numbers<[1], [0], [0], [1], [0, 0, 1, 1], [], []>} : vector<96x4xf32>, vector<4x8xf32>, vector<96x8xf32> -> vector<96x8xf32>
    %24 = arith.addf %17, %23 : vector<96x8xf32>
    %c0_22 = arith.constant 0 : index
    %c0_23 = arith.constant 0 : index
    %25 = vector.load %arg9[%c0_22, %c0_23] : memref<96x8xf32, #tpu.memory_space<vmem>>, vector<96x8xf32>
    %26 = arith.addf %25, %24 : vector<96x8xf32>
    %c0_24 = arith.constant 0 : index
    %c0_25 = arith.constant 0 : index
    %27 = vector.load %arg9[%c0_24, %c0_25] : memref<96x8xf32, #tpu.memory_space<vmem>>, vector<96x8xf32>
    tpu.vector_store %arg9[%c0_24, %c0_25], %26 {strides = array<i32>} : memref<96x8xf32, #tpu.memory_space<vmem>>, vector<96x8xf32>,
    %c2_i32 = arith.constant 2 : i32
    %28 = arith.cmpi eq, %arg2, %c2_i32 : i32
    %c0_i32_26 = arith.constant 0 : i32
    %29 = arith.cmpi eq, %arg3, %c0_i32_26 : i32
    %30 = arith.andi %28, %29 : i1
    %31 = arith.extui %30 : i1 to i32
    %c0_i32_27 = arith.constant 0 : i32
    %32 = arith.cmpi ne, %31, %c0_i32_27 : i32
    scf.if %32 {
      %c0_28 = arith.constant 0 : index
      %c0_29 = arith.constant 0 : index
      %33 = vector.load %arg9[%c0_28, %c0_29] : memref<96x8xf32, #tpu.memory_space<vmem>>, vector<96x8xf32>
      %c0_30 = arith.constant 0 : index
      %c0_31 = arith.constant 0 : index
      %34 = vector.load %arg6[%c0_30, %c0_31] : memref<1x8xf32, #tpu.memory_space<vmem>>, vector<1x8xf32>
      %35 = vector.broadcast %34 : vector<1x8xf32> to vector<96x8xf32>
      %36 = arith.mulf %33, %35 : vector<96x8xf32>
      %c0_32 = arith.constant 0 : index
      %c0_33 = arith.constant 0 : index
      %37 = vector.load %arg7[%c0_32, %c0_33] : memref<1x8xf32, #tpu.memory_space<vmem>>, vector<1x8xf32>
      %38 = vector.broadcast %37 : vector<1x8xf32> to vector<96x8xf32>
      %39 = arith.addf %36, %38 : vector<96x8xf32>
      %cst_34 = arith.constant 0.000000e+00 : f32
      %40 = vector.broadcast %cst_34 : f32 to vector<96x8xf32>
      %41 = arith.maximumf %39, %40 : vector<96x8xf32>
      %42 = vector.shape_cast %41 : vector<96x8xf32> to vector<6x16x8xf32>
      %c0_35 = arith.constant 0 : index
      %c0_36 = arith.constant 0 : index
      %c0_37 = arith.constant 0 : index
      %c0_38 = arith.constant 0 : index
      %43 = vector.load %arg8[%c0_35, %c0_36, %c0_37, %c0_38] : memref<1x6x16x8xf32, #tpu.memory_space<vmem>>, vector<1x6x16x8xf32>
      %44 = vector.shape_cast %43 : vector<1x6x16x8xf32> to vector<6x16x8xf32>
      %45 = vector.shape_cast %42 : vector<6x16x8xf32> to vector<1x6x16x8xf32>
      tpu.vector_store %arg8[%c0_35, %c0_36, %c0_37, %c0_38], %45 {strides = array<i32>} : memref<1x6x16x8xf32, #tpu.memory_space<vmem>>, vector<1x6x16x8xf32>,
    } else {
    }
    return
  }
  func.func @transform_0(%arg0: i32, %arg1: i32, %arg2: i32, %arg3: i32) -> (i32, i32, i32, i32) {
    %c2_i32 = arith.constant 2 : i32
    %0 = arith.addi %arg1, %c2_i32 : i32
    %c1_i32 = arith.constant 1 : i32
    %1 = arith.muli %arg2, %c1_i32 : i32
    %2 = arith.addi %0, %1 : i32
    %c0_i32 = arith.constant 0 : i32
    %c0_i32_0 = arith.constant 0 : i32
    return %arg0, %2, %c0_i32, %arg3 : i32, i32, i32, i32
  }
  func.func @transform_1(%arg0: i32, %arg1: i32, %arg2: i32, %arg3: i32) -> (i32, i32, i32, i32) {
    %c0_i32 = arith.constant 0 : i32
    %c0_i32_0 = arith.constant 0 : i32
    %c0_i32_1 = arith.constant 0 : i32
    return %arg2, %c0_i32, %arg3, %c0_i32_0 : i32, i32, i32, i32
  }
  func.func @transform_2(%arg0: i32, %arg1: i32, %arg2: i32, %arg3: i32) -> (i32, i32) {
    %c0_i32 = arith.constant 0 : i32
    %c0_i32_0 = arith.constant 0 : i32
    %c0_i32_1 = arith.constant 0 : i32
    return %c0_i32, %c0_i32_0 : i32, i32
  }
  func.func @transform_3(%arg0: i32, %arg1: i32, %arg2: i32, %arg3: i32) -> (i32, i32) {
    %c0_i32 = arith.constant 0 : i32
    %c0_i32_0 = arith.constant 0 : i32
    %c0_i32_1 = arith.constant 0 : i32
    return %c0_i32, %c0_i32_0 : i32, i32
  }
  func.func @transform_4(%arg0: i32, %arg1: i32, %arg2: i32, %arg3: i32) -> (i32, i32, i32, i32) {
    %c0_i32 = arith.constant 0 : i32
    %c0_i32_0 = arith.constant 0 : i32
    %c0_i32_1 = arith.constant 0 : i32
    return %arg0, %arg1, %c0_i32, %c0_i32_0 : i32, i32, i32, i32
  }
}

module attributes {stable_mosaic.version = 11 : i64} {
  func.func @_pw_conv_bn_relu_kernel(%arg0: i32, %arg1: i32, %arg2: memref<1x128x4xf32, #tpu.memory_space<vmem>>, %arg3: memref<4x8xf32, #tpu.memory_space<vmem>>, %arg4: memref<1x8xf32, #tpu.memory_space<vmem>>, %arg5: memref<1x8xf32, #tpu.memory_space<vmem>>, %arg6: memref<1x128x8xf32, #tpu.memory_space<vmem>>) attributes {dimension_semantics = [#tpu.dimension_semantics<parallel>, #tpu.dimension_semantics<parallel>], iteration_bounds = array<i64: 2, 2>, scalar_prefetch = 0 : i64, scratch_operands = 0 : i64, tpu.core_type = #tpu.core_type<tc>, window_params = [{transform_indices = @transform_0, window_bounds = array<i64: 1, 128, 4>}, {pipeline_mode = #tpu.pipeline_mode<synchronous>, transform_indices = @transform_1, window_bounds = array<i64: 4, 8>}, {pipeline_mode = #tpu.pipeline_mode<synchronous>, transform_indices = @transform_2, window_bounds = array<i64: 1, 8>}, {pipeline_mode = #tpu.pipeline_mode<synchronous>, transform_indices = @transform_3, window_bounds = array<i64: 1, 8>}, {transform_indices = @transform_4, window_bounds = array<i64: 1, 128, 8>}]} {
    %c0 = arith.constant 0 : index
    %c0_0 = arith.constant 0 : index
    %c0_1 = arith.constant 0 : index
    %0 = vector.load %arg2[%c0, %c0_0, %c0_1] : memref<1x128x4xf32, #tpu.memory_space<vmem>>, vector<1x128x4xf32>
    %1 = vector.shape_cast %0 : vector<1x128x4xf32> to vector<128x4xf32>
    %c0_2 = arith.constant 0 : index
    %c0_3 = arith.constant 0 : index
    %2 = vector.load %arg3[%c0_2, %c0_3] : memref<4x8xf32, #tpu.memory_space<vmem>>, vector<4x8xf32>
    %cst = arith.constant dense<0.000000e+00> : vector<128x8xf32>
    %3 = tpu.matmul %1, %2, %cst {dimension_numbers = #tpu.dot_dimension_numbers<[1], [0], [0], [1], [0, 0, 1, 1], [], []>} : vector<128x4xf32>, vector<4x8xf32>, vector<128x8xf32> -> vector<128x8xf32>
    %c0_4 = arith.constant 0 : index
    %c0_5 = arith.constant 0 : index
    %4 = vector.load %arg4[%c0_4, %c0_5] : memref<1x8xf32, #tpu.memory_space<vmem>>, vector<1x8xf32>
    %5 = vector.broadcast %4 : vector<1x8xf32> to vector<128x8xf32>
    %6 = arith.mulf %3, %5 : vector<128x8xf32>
    %c0_6 = arith.constant 0 : index
    %c0_7 = arith.constant 0 : index
    %7 = vector.load %arg5[%c0_6, %c0_7] : memref<1x8xf32, #tpu.memory_space<vmem>>, vector<1x8xf32>
    %8 = vector.broadcast %7 : vector<1x8xf32> to vector<128x8xf32>
    %9 = arith.addf %6, %8 : vector<128x8xf32>
    %cst_8 = arith.constant 0.000000e+00 : f32
    %10 = vector.broadcast %cst_8 : f32 to vector<128x8xf32>
    %11 = arith.maximumf %9, %10 : vector<128x8xf32>
    %c0_9 = arith.constant 0 : index
    %c0_10 = arith.constant 0 : index
    %c0_11 = arith.constant 0 : index
    %12 = vector.load %arg6[%c0_9, %c0_10, %c0_11] : memref<1x128x8xf32, #tpu.memory_space<vmem>>, vector<1x128x8xf32>
    %13 = vector.shape_cast %12 : vector<1x128x8xf32> to vector<128x8xf32>
    %14 = vector.shape_cast %11 : vector<128x8xf32> to vector<1x128x8xf32>
    tpu.vector_store %arg6[%c0_9, %c0_10, %c0_11], %14 {strides = array<i32>} : memref<1x128x8xf32, #tpu.memory_space<vmem>>, vector<1x128x8xf32>,
    return
  }
  func.func @transform_0(%arg0: i32, %arg1: i32) -> (i32, i32, i32) {
    %c0_i32 = arith.constant 0 : i32
    %c0_i32_0 = arith.constant 0 : i32
    return %arg0, %arg1, %c0_i32 : i32, i32, i32
  }
  func.func @transform_1(%arg0: i32, %arg1: i32) -> (i32, i32) {
    %c0_i32 = arith.constant 0 : i32
    %c0_i32_0 = arith.constant 0 : i32
    %c0_i32_1 = arith.constant 0 : i32
    return %c0_i32, %c0_i32_0 : i32, i32
  }
  func.func @transform_2(%arg0: i32, %arg1: i32) -> (i32, i32) {
    %c0_i32 = arith.constant 0 : i32
    %c0_i32_0 = arith.constant 0 : i32
    %c0_i32_1 = arith.constant 0 : i32
    return %c0_i32, %c0_i32_0 : i32, i32
  }
  func.func @transform_3(%arg0: i32, %arg1: i32) -> (i32, i32) {
    %c0_i32 = arith.constant 0 : i32
    %c0_i32_0 = arith.constant 0 : i32
    %c0_i32_1 = arith.constant 0 : i32
    return %c0_i32, %c0_i32_0 : i32, i32
  }
  func.func @transform_4(%arg0: i32, %arg1: i32) -> (i32, i32, i32) {
    %c0_i32 = arith.constant 0 : i32
    %c0_i32_0 = arith.constant 0 : i32
    return %arg0, %arg1, %c0_i32 : i32, i32, i32
  }
}

module attributes {stable_mosaic.version = 11 : i64} {
  func.func @_pool_conv_relu_kernel(%arg0: i32, %arg1: i32, %arg2: memref<1x8x16x4xf32, #tpu.memory_space<vmem>>, %arg3: memref<4x8xf32, #tpu.memory_space<vmem>>, %arg4: memref<1x1x8xf32, #tpu.memory_space<vmem>>, %arg5: memref<1x4xf32, #tpu.memory_space<vmem>>) attributes {dimension_semantics = [#tpu.dimension_semantics<parallel>, #tpu.dimension_semantics<arbitrary>], iteration_bounds = array<i64: 2, 2>, scalar_prefetch = 0 : i64, scratch_operands = 1 : i64, tpu.core_type = #tpu.core_type<tc>, window_params = [{transform_indices = @transform_0, window_bounds = array<i64: 1, 8, 16, 4>}, {pipeline_mode = #tpu.pipeline_mode<synchronous>, transform_indices = @transform_1, window_bounds = array<i64: 4, 8>}, {transform_indices = @transform_2, window_bounds = array<i64: 1, 1, 8>}]} {
    %c0_i32 = arith.constant 0 : i32
    %0 = arith.cmpi eq, %arg1, %c0_i32 : i32
    %1 = arith.extui %0 : i1 to i32
    %c0_i32_0 = arith.constant 0 : i32
    %2 = arith.cmpi ne, %1, %c0_i32_0 : i32
    scf.if %2 {
      %cst_9 = arith.constant 0.000000e+00 : f32
      %14 = vector.broadcast %cst_9 : f32 to vector<1x4xf32>
      %c0_10 = arith.constant 0 : index
      %c0_11 = arith.constant 0 : index
      %15 = vector.load %arg5[%c0_10, %c0_11] : memref<1x4xf32, #tpu.memory_space<vmem>>, vector<1x4xf32>
      tpu.vector_store %arg5[%c0_10, %c0_11], %14 {strides = array<i32>} : memref<1x4xf32, #tpu.memory_space<vmem>>, vector<1x4xf32>,
    } else {
    }
    %c0 = arith.constant 0 : index
    %c0_1 = arith.constant 0 : index
    %c0_2 = arith.constant 0 : index
    %c0_3 = arith.constant 0 : index
    %3 = vector.load %arg2[%c0, %c0_1, %c0_2, %c0_3] : memref<1x8x16x4xf32, #tpu.memory_space<vmem>>, vector<1x8x16x4xf32>
    %4 = vector.shape_cast %3 : vector<1x8x16x4xf32> to vector<8x16x4xf32>
    %5 = vector.shape_cast %4 : vector<8x16x4xf32> to vector<128x4xf32>
    %c0_4 = arith.constant 0 : index
    %c0_5 = arith.constant 0 : index
    %6 = vector.load %arg5[%c0_4, %c0_5] : memref<1x4xf32, #tpu.memory_space<vmem>>, vector<1x4xf32>
    %cst = arith.constant dense<0.000000e+00> : vector<4xf32>
    %7 = vector.multi_reduction <add>, %5, %cst [0] : vector<128x4xf32> to vector<4xf32>
    %8 = vector.shape_cast %7 : vector<4xf32> to vector<1x4xf32>
    %9 = arith.addf %6, %8 : vector<1x4xf32>
    %c0_6 = arith.constant 0 : index
    %c0_7 = arith.constant 0 : index
    %10 = vector.load %arg5[%c0_6, %c0_7] : memref<1x4xf32, #tpu.memory_space<vmem>>, vector<1x4xf32>
    tpu.vector_store %arg5[%c0_6, %c0_7], %9 {strides = array<i32>} : memref<1x4xf32, #tpu.memory_space<vmem>>, vector<1x4xf32>,
    %c1_i32 = arith.constant 1 : i32
    %11 = arith.cmpi eq, %arg1, %c1_i32 : i32
    %12 = arith.extui %11 : i1 to i32
    %c0_i32_8 = arith.constant 0 : i32
    %13 = arith.cmpi ne, %12, %c0_i32_8 : i32
    scf.if %13 {
      %c0_9 = arith.constant 0 : index
      %c0_10 = arith.constant 0 : index
      %14 = vector.load %arg5[%c0_9, %c0_10] : memref<1x4xf32, #tpu.memory_space<vmem>>, vector<1x4xf32>
      %cst_11 = arith.constant 3.906250e-03 : f32
      %15 = vector.broadcast %cst_11 : f32 to vector<1x4xf32>
      %16 = arith.mulf %14, %15 : vector<1x4xf32>
      %c0_12 = arith.constant 0 : index
      %c0_13 = arith.constant 0 : index
      %17 = vector.load %arg3[%c0_12, %c0_13] : memref<4x8xf32, #tpu.memory_space<vmem>>, vector<4x8xf32>
      %cst_14 = arith.constant dense<0.000000e+00> : vector<1x8xf32>
      %18 = tpu.matmul %16, %17, %cst_14 {dimension_numbers = #tpu.dot_dimension_numbers<[1], [0], [0], [1], [0, 0, 1, 1], [], []>} : vector<1x4xf32>, vector<4x8xf32>, vector<1x8xf32> -> vector<1x8xf32>
      %cst_15 = arith.constant 0.000000e+00 : f32
      %19 = vector.broadcast %cst_15 : f32 to vector<1x8xf32>
      %20 = arith.maximumf %18, %19 : vector<1x8xf32>
      %c0_16 = arith.constant 0 : index
      %c0_17 = arith.constant 0 : index
      %c0_18 = arith.constant 0 : index
      %21 = vector.load %arg4[%c0_16, %c0_17, %c0_18] : memref<1x1x8xf32, #tpu.memory_space<vmem>>, vector<1x1x8xf32>
      %22 = vector.shape_cast %21 : vector<1x1x8xf32> to vector<1x8xf32>
      %23 = vector.shape_cast %20 : vector<1x8xf32> to vector<1x1x8xf32>
      tpu.vector_store %arg4[%c0_16, %c0_17, %c0_18], %23 {strides = array<i32>} : memref<1x1x8xf32, #tpu.memory_space<vmem>>, vector<1x1x8xf32>,
    } else {
    }
    return
  }
  func.func @transform_0(%arg0: i32, %arg1: i32) -> (i32, i32, i32, i32) {
    %c0_i32 = arith.constant 0 : i32
    %c0_i32_0 = arith.constant 0 : i32
    %c0_i32_1 = arith.constant 0 : i32
    return %arg0, %arg1, %c0_i32, %c0_i32_0 : i32, i32, i32, i32
  }
  func.func @transform_1(%arg0: i32, %arg1: i32) -> (i32, i32) {
    %c0_i32 = arith.constant 0 : i32
    %c0_i32_0 = arith.constant 0 : i32
    %c0_i32_1 = arith.constant 0 : i32
    return %c0_i32, %c0_i32_0 : i32, i32
  }
  func.func @transform_2(%arg0: i32, %arg1: i32) -> (i32, i32, i32) {
    %c0_i32 = arith.constant 0 : i32
    %c0_i32_0 = arith.constant 0 : i32
    %c0_i32_1 = arith.constant 0 : i32
    return %arg0, %c0_i32, %c0_i32_0 : i32, i32, i32
  }
}

module attributes {stable_mosaic.version = 11 : i64} {
  func.func @_fused_concat_conv_kernel(%arg0: i32, %arg1: i32, %arg2: memref<1x128x8xf32, #tpu.memory_space<vmem>>, %arg3: memref<1x128x8xf32, #tpu.memory_space<vmem>>, %arg4: memref<1x128x8xf32, #tpu.memory_space<vmem>>, %arg5: memref<1x128x8xf32, #tpu.memory_space<vmem>>, %arg6: memref<1x1x8xf32, #tpu.memory_space<vmem>>, %arg7: memref<40x8xf32, #tpu.memory_space<vmem>>, %arg8: memref<1x8xf32, #tpu.memory_space<vmem>>, %arg9: memref<1x8xf32, #tpu.memory_space<vmem>>, %arg10: memref<1x128x8xf32, #tpu.memory_space<vmem>>) attributes {dimension_semantics = [#tpu.dimension_semantics<parallel>, #tpu.dimension_semantics<parallel>], iteration_bounds = array<i64: 2, 2>, scalar_prefetch = 0 : i64, scratch_operands = 0 : i64, tpu.core_type = #tpu.core_type<tc>, window_params = [{transform_indices = @transform_0, window_bounds = array<i64: 1, 128, 8>}, {transform_indices = @transform_1, window_bounds = array<i64: 1, 128, 8>}, {transform_indices = @transform_2, window_bounds = array<i64: 1, 128, 8>}, {transform_indices = @transform_3, window_bounds = array<i64: 1, 128, 8>}, {transform_indices = @transform_4, window_bounds = array<i64: 1, 1, 8>}, {pipeline_mode = #tpu.pipeline_mode<synchronous>, transform_indices = @transform_5, window_bounds = array<i64: 40, 8>}, {pipeline_mode = #tpu.pipeline_mode<synchronous>, transform_indices = @transform_6, window_bounds = array<i64: 1, 8>}, {pipeline_mode = #tpu.pipeline_mode<synchronous>, transform_indices = @transform_7, window_bounds = array<i64: 1, 8>}, {transform_indices = @transform_8, window_bounds = array<i64: 1, 128, 8>}]} {
    %c0 = arith.constant 0 : index
    %c0_0 = arith.constant 0 : index
    %0 = vector.load %arg7[%c0, %c0_0] : memref<40x8xf32, #tpu.memory_space<vmem>>, vector<40x8xf32>
    %c0_1 = arith.constant 0 : index
    %c0_2 = arith.constant 0 : index
    %c0_3 = arith.constant 0 : index
    %1 = vector.load %arg2[%c0_1, %c0_2, %c0_3] : memref<1x128x8xf32, #tpu.memory_space<vmem>>, vector<1x128x8xf32>
    %2 = vector.shape_cast %1 : vector<1x128x8xf32> to vector<128x8xf32>
    %3 = vector.extract_strided_slice %0 {offsets = [0, 0], sizes = [8, 8], strides = [1, 1]} : vector<40x8xf32> to vector<8x8xf32>
    %cst = arith.constant dense<0.000000e+00> : vector<128x8xf32>
    %4 = tpu.matmul %2, %3, %cst {dimension_numbers = #tpu.dot_dimension_numbers<[1], [0], [0], [1], [0, 0, 1, 1], [], []>} : vector<128x8xf32>, vector<8x8xf32>, vector<128x8xf32> -> vector<128x8xf32>
    %c0_4 = arith.constant 0 : index
    %c0_5 = arith.constant 0 : index
    %c0_6 = arith.constant 0 : index
    %5 = vector.load %arg3[%c0_4, %c0_5, %c0_6] : memref<1x128x8xf32, #tpu.memory_space<vmem>>, vector<1x128x8xf32>
    %6 = vector.shape_cast %5 : vector<1x128x8xf32> to vector<128x8xf32>
    %7 = vector.extract_strided_slice %0 {offsets = [8, 0], sizes = [8, 8], strides = [1, 1]} : vector<40x8xf32> to vector<8x8xf32>
    %cst_7 = arith.constant dense<0.000000e+00> : vector<128x8xf32>
    %8 = tpu.matmul %6, %7, %cst_7 {dimension_numbers = #tpu.dot_dimension_numbers<[1], [0], [0], [1], [0, 0, 1, 1], [], []>} : vector<128x8xf32>, vector<8x8xf32>, vector<128x8xf32> -> vector<128x8xf32>
    %9 = arith.addf %4, %8 : vector<128x8xf32>
    %c0_8 = arith.constant 0 : index
    %c0_9 = arith.constant 0 : index
    %c0_10 = arith.constant 0 : index
    %10 = vector.load %arg4[%c0_8, %c0_9, %c0_10] : memref<1x128x8xf32, #tpu.memory_space<vmem>>, vector<1x128x8xf32>
    %11 = vector.shape_cast %10 : vector<1x128x8xf32> to vector<128x8xf32>
    %12 = vector.extract_strided_slice %0 {offsets = [16, 0], sizes = [8, 8], strides = [1, 1]} : vector<40x8xf32> to vector<8x8xf32>
    %cst_11 = arith.constant dense<0.000000e+00> : vector<128x8xf32>
    %13 = tpu.matmul %11, %12, %cst_11 {dimension_numbers = #tpu.dot_dimension_numbers<[1], [0], [0], [1], [0, 0, 1, 1], [], []>} : vector<128x8xf32>, vector<8x8xf32>, vector<128x8xf32> -> vector<128x8xf32>
    %14 = arith.addf %9, %13 : vector<128x8xf32>
    %c0_12 = arith.constant 0 : index
    %c0_13 = arith.constant 0 : index
    %c0_14 = arith.constant 0 : index
    %15 = vector.load %arg5[%c0_12, %c0_13, %c0_14] : memref<1x128x8xf32, #tpu.memory_space<vmem>>, vector<1x128x8xf32>
    %16 = vector.shape_cast %15 : vector<1x128x8xf32> to vector<128x8xf32>
    %17 = vector.extract_strided_slice %0 {offsets = [24, 0], sizes = [8, 8], strides = [1, 1]} : vector<40x8xf32> to vector<8x8xf32>
    %cst_15 = arith.constant dense<0.000000e+00> : vector<128x8xf32>
    %18 = tpu.matmul %16, %17, %cst_15 {dimension_numbers = #tpu.dot_dimension_numbers<[1], [0], [0], [1], [0, 0, 1, 1], [], []>} : vector<128x8xf32>, vector<8x8xf32>, vector<128x8xf32> -> vector<128x8xf32>
    %19 = arith.addf %14, %18 : vector<128x8xf32>
    %c0_16 = arith.constant 0 : index
    %c0_17 = arith.constant 0 : index
    %c0_18 = arith.constant 0 : index
    %20 = vector.load %arg6[%c0_16, %c0_17, %c0_18] : memref<1x1x8xf32, #tpu.memory_space<vmem>>, vector<1x1x8xf32>
    %21 = vector.shape_cast %20 : vector<1x1x8xf32> to vector<1x8xf32>
    %22 = vector.extract_strided_slice %0 {offsets = [32, 0], sizes = [8, 8], strides = [1, 1]} : vector<40x8xf32> to vector<8x8xf32>
    %cst_19 = arith.constant dense<0.000000e+00> : vector<1x8xf32>
    %23 = tpu.matmul %21, %22, %cst_19 {dimension_numbers = #tpu.dot_dimension_numbers<[1], [0], [0], [1], [0, 0, 1, 1], [], []>} : vector<1x8xf32>, vector<8x8xf32>, vector<1x8xf32> -> vector<1x8xf32>
    %24 = vector.broadcast %23 : vector<1x8xf32> to vector<128x8xf32>
    %25 = arith.addf %19, %24 : vector<128x8xf32>
    %c0_20 = arith.constant 0 : index
    %c0_21 = arith.constant 0 : index
    %26 = vector.load %arg8[%c0_20, %c0_21] : memref<1x8xf32, #tpu.memory_space<vmem>>, vector<1x8xf32>
    %27 = vector.broadcast %26 : vector<1x8xf32> to vector<128x8xf32>
    %28 = arith.mulf %25, %27 : vector<128x8xf32>
    %c0_22 = arith.constant 0 : index
    %c0_23 = arith.constant 0 : index
    %29 = vector.load %arg9[%c0_22, %c0_23] : memref<1x8xf32, #tpu.memory_space<vmem>>, vector<1x8xf32>
    %30 = vector.broadcast %29 : vector<1x8xf32> to vector<128x8xf32>
    %31 = arith.addf %28, %30 : vector<128x8xf32>
    %cst_24 = arith.constant 0.000000e+00 : f32
    %32 = vector.broadcast %cst_24 : f32 to vector<128x8xf32>
    %33 = arith.maximumf %31, %32 : vector<128x8xf32>
    %c0_25 = arith.constant 0 : index
    %c0_26 = arith.constant 0 : index
    %c0_27 = arith.constant 0 : index
    %34 = vector.load %arg10[%c0_25, %c0_26, %c0_27] : memref<1x128x8xf32, #tpu.memory_space<vmem>>, vector<1x128x8xf32>
    %35 = vector.shape_cast %34 : vector<1x128x8xf32> to vector<128x8xf32>
    %36 = vector.shape_cast %33 : vector<128x8xf32> to vector<1x128x8xf32>
    tpu.vector_store %arg10[%c0_25, %c0_26, %c0_27], %36 {strides = array<i32>} : memref<1x128x8xf32, #tpu.memory_space<vmem>>, vector<1x128x8xf32>,
    return
  }
  func.func @transform_0(%arg0: i32, %arg1: i32) -> (i32, i32, i32) {
    %c0_i32 = arith.constant 0 : i32
    %c0_i32_0 = arith.constant 0 : i32
    return %arg0, %arg1, %c0_i32 : i32, i32, i32
  }
  func.func @transform_1(%arg0: i32, %arg1: i32) -> (i32, i32, i32) {
    %c0_i32 = arith.constant 0 : i32
    %c0_i32_0 = arith.constant 0 : i32
    return %arg0, %arg1, %c0_i32 : i32, i32, i32
  }
  func.func @transform_2(%arg0: i32, %arg1: i32) -> (i32, i32, i32) {
    %c0_i32 = arith.constant 0 : i32
    %c0_i32_0 = arith.constant 0 : i32
    return %arg0, %arg1, %c0_i32 : i32, i32, i32
  }
  func.func @transform_3(%arg0: i32, %arg1: i32) -> (i32, i32, i32) {
    %c0_i32 = arith.constant 0 : i32
    %c0_i32_0 = arith.constant 0 : i32
    return %arg0, %arg1, %c0_i32 : i32, i32, i32
  }
  func.func @transform_4(%arg0: i32, %arg1: i32) -> (i32, i32, i32) {
    %c0_i32 = arith.constant 0 : i32
    %c0_i32_0 = arith.constant 0 : i32
    %c0_i32_1 = arith.constant 0 : i32
    return %arg0, %c0_i32, %c0_i32_0 : i32, i32, i32
  }
  func.func @transform_5(%arg0: i32, %arg1: i32) -> (i32, i32) {
    %c0_i32 = arith.constant 0 : i32
    %c0_i32_0 = arith.constant 0 : i32
    %c0_i32_1 = arith.constant 0 : i32
    return %c0_i32, %c0_i32_0 : i32, i32
  }
  func.func @transform_6(%arg0: i32, %arg1: i32) -> (i32, i32) {
    %c0_i32 = arith.constant 0 : i32
    %c0_i32_0 = arith.constant 0 : i32
    %c0_i32_1 = arith.constant 0 : i32
    return %c0_i32, %c0_i32_0 : i32, i32
  }
  func.func @transform_7(%arg0: i32, %arg1: i32) -> (i32, i32) {
    %c0_i32 = arith.constant 0 : i32
    %c0_i32_0 = arith.constant 0 : i32
    %c0_i32_1 = arith.constant 0 : i32
    return %c0_i32, %c0_i32_0 : i32, i32
  }
  func.func @transform_8(%arg0: i32, %arg1: i32) -> (i32, i32, i32) {
    %c0_i32 = arith.constant 0 : i32
    %c0_i32_0 = arith.constant 0 : i32
    return %arg0, %arg1, %c0_i32 : i32, i32, i32
  }
}

</mosaic_0001>

<llo_original>
// kernel: aspp_forward.9
$region0: #{aspp_forward.9}
  #allocation0 [shape = 'u32[]', space=smem, size = 0x4, offset = 0x4, fixed_abs, tag = 'smem constant byte address 0x4 - core index']
  #allocation1 [shape = 'u32[144,128]{1,0:T(1,128)}', space=vmem, size = 0x12000, scoped, tag = 'internal scratch']
  #allocation2 [shape = 'f32[96,8]{1,0:T(8,128)}', space=vmem, size = 0xc000, scoped, tag = 'scratch operand']
  %s0 = inlined_call_operand.vmem [shape: f32[2,54,56,4], index: 0, kind: input, shape index: {}]
  %s1 = inlined_call_operand.vmem [shape: f32[3,3,4,8], index: 1, kind: input, shape index: {}]
  %s2 = inlined_call_operand.vmem [shape: f32[1,8], index: 2, kind: input, shape index: {}]
  %s3 = inlined_call_operand.vmem [shape: f32[1,8], index: 3, kind: input, shape index: {}]
  %s4 = inlined_call_operand.vmem [shape: f32[2,16,16,8], index: 4, kind: output, shape index: {}]
  %s5 = sld [smem:[#allocation0]]
  $region105: #{aspp_forward.9} parent=0
    _
  %s7 = ssub.s32 1, %s5
  %s8 = scalar_select 0, %s7, %s5
  $region1: #{aspp_forward.9} parent=0
    #allocation3 [shape = 'u8[98304]{0}', space=vmem, size = 0x18000, scoped, tag = 'output window, operand 0']
    loop: start=0, step=1, limit=20
    $region2: #{aspp_forward.9} parent=1 // loop_pre_header
      _
    $region3: #{aspp_forward.9} parent=1 // loop_header
      %s10 = sphi 0, %s14
      %p11 = scmp.ge.s32.totalorder %s10, 20
      %s17 = sphi 0, %s43
      %s18 = sphi 0, %s39
      %s19 = sphi 0, %s35
      %s20 = sphi 0, %s31
      %s21 = sphi 0, %s17
      %s22 = sphi 0, %s18
      %s23 = sphi 0, %s19
      %s24 = sphi 0, %s20
      %s25 = sphi 0, %s21
      %s26 = sphi 0, %s22
      %s27 = sphi 0, %s23
      %s28 = sphi 0, %s24
      %s54 = sphi 0, %s56
      %s57 = sphi 0, %s54
      %s58 = sphi 0, %s57
      %s74 = sphi 0, %s58
      %s82 = sphi 0, %s84
      %s85 = sphi 0, %s82
      %s86 = sphi 0, %s85
      %s102 = sphi 0, %s86
      %s106 = sphi 0, %s106
      %s108 = sphi 0, %s106
      %s109 = sphi 0, %s108
      %s123 = sphi 0, %s109
      %s127 = sphi 0, %s127
      %s129 = sphi 0, %s127
      %s130 = sphi 0, %s129
      %s144 = sphi 0, %s130
      %s152 = sphi 0, %s154
      %s155 = sphi 0, %s152
      %s156 = sphi 0, %s155
      %s172 = sphi 0, %s156
    $region4: #{aspp_forward.9} parent=1 // loop_header_branch
      %13 = sbr.rel (%p11) target = $region8
    $region5: #{aspp_forward.9} parent=1 // loop_body
      %s15 = ssub.s32 %s10, 1
      %s16 = ssub.s32 %s10, 2
      %s29 = sadd.s32 1, %s20
      %p30 = scmp.ge.s32.totalorder %s29, 1
      %s31 = scalar_select %p30, 0, %s29
      %s32 = sadd.s32 1, %s19
      %s33 = scalar_select %p30, %s32, %s19
      %p34 = scmp.ge.s32.totalorder %s33, 3
      %s35 = scalar_select %p34, 0, %s33
      %s36 = sadd.s32 1, %s18
      %s37 = scalar_select %p34, %s36, %s18
      %p38 = scmp.ge.s32.totalorder %s37, 3
      %s39 = scalar_select %p38, 0, %s37
      %s40 = sadd.s32 1, %s17
      %s41 = scalar_select %p38, %s40, %s17
      %p42 = scmp.ge.s32.totalorder %s41, 2
      %s43 = scalar_select %p42, 0, %s41
      %s44 = smul.u32 %s19, 3
      %s45 = sadd.s32 %s18, %s44
      %s46 = smul.u32 %s35, 3
      %s47 = sadd.s32 %s39, %s46
      %s48 = ssub.s32 %s17, %s43
      %s49 = ssub.s32 %s45, %s47
      %s50 = sor.u32 %s48, %s49
      %s51 = ssub.s32 %s20, %s31
      %s52 = sor.u32 %s50, %s51
      %p53 = scmp.eq.s32.totalorder %s52, 0
      %s55 = sadd.s32 %s54, 1
      %s56 = scalar_select %p53, %s54, %s55
      %p59 = pneg %p53
      %p60 = scmp.eq.s32.totalorder %s10, 17
      %p61 = por %p59, %p60
      %p62 = scmp.ne.s32.totalorder %s54, %s57
      %p63 = scmp.eq.s32.totalorder %s10, 0
      %p64 = por %p62, %p63
      %p65 = scmp.ne.s32.totalorder %s54, %s57
      %p66 = scmp.eq.s32.totalorder %s15, 17
      %p67 = por %p65, %p66
      %p68 = scmp.ne.s32.totalorder %s57, %s58
      %p69 = scmp.eq.s32.totalorder %s15, 0
      %p70 = por %p68, %p69
      %p71 = scmp.ne.s32.totalorder %s57, %s58
      %p72 = scmp.eq.s32.totalorder %s16, 17
      %p73 = por %p71, %p72
      %p75 = scmp.ne.s32.totalorder %s58, %s74
      %p76 = scmp.eq.s32.totalorder %s16, 0
      %p77 = por %p75, %p76
      %s78 = ssub.s32 %s19, %s35
      %s79 = ssub.s32 %s20, %s31
      %s80 = sor.u32 %s78, %s79
      %p81 = scmp.eq.s32.totalorder %s80, 0
      %s83 = sadd.s32 %s82, 1
      %s84 = scalar_select %p81, %s82, %s83
      %p87 = pneg %p81
      %p88 = scmp.eq.s32.totalorder %s10, 17
      %p89 = por %p87, %p88
      %p90 = scmp.ne.s32.totalorder %s82, %s85
      %p91 = scmp.eq.s32.totalorder %s10, 0
      %p92 = por %p90, %p91
      %p93 = scmp.ne.s32.totalorder %s82, %s85
      %p94 = scmp.eq.s32.totalorder %s15, 17
      %p95 = por %p93, %p94
      %p96 = scmp.ne.s32.totalorder %s85, %s86
      %p97 = scmp.eq.s32.totalorder %s15, 0
      %p98 = por %p96, %p97
      %p99 = scmp.ne.s32.totalorder %s85, %s86
      %p100 = scmp.eq.s32.totalorder %s16, 17
      %p101 = por %p99, %p100
      %p103 = scmp.ne.s32.totalorder %s86, %s102
      %p104 = scmp.eq.s32.totalorder %s16, 0
      %p105 = por %p103, %p104
      %s107 = sadd.s32 %s106, 1
      %p110 = scmp.eq.s32.totalorder %s10, 17
      %p111 = scmp.ne.s32.totalorder %s106, %s108
      %p112 = scmp.eq.s32.totalorder %s10, 0
      %p113 = por %p111, %p112
      %p114 = scmp.ne.s32.totalorder %s106, %s108
      %p115 = scmp.eq.s32.totalorder %s15, 17
      %p116 = por %p114, %p115
      %p117 = scmp.ne.s32.totalorder %s108, %s109
      %p118 = scmp.eq.s32.totalorder %s15, 0
      %p119 = por %p117, %p118
      %p120 = scmp.ne.s32.totalorder %s108, %s109
      %p121 = scmp.eq.s32.totalorder %s16, 17
      %p122 = por %p120, %p121
      %p124 = scmp.ne.s32.totalorder %s109, %s123
      %p125 = scmp.eq.s32.totalorder %s16, 0
      %p126 = por %p124, %p125
      %s128 = sadd.s32 %s127, 1
      %p131 = scmp.eq.s32.totalorder %s10, 17
      %p132 = scmp.ne.s32.totalorder %s127, %s129
      %p133 = scmp.eq.s32.totalorder %s10, 0
      %p134 = por %p132, %p133
      %p135 = scmp.ne.s32.totalorder %s127, %s129
      %p136 = scmp.eq.s32.totalorder %s15, 17
      %p137 = por %p135, %p136
      %p138 = scmp.ne.s32.totalorder %s129, %s130
      %p139 = scmp.eq.s32.totalorder %s15, 0
      %p140 = por %p138, %p139
      %p141 = scmp.ne.s32.totalorder %s129, %s130
      %p142 = scmp.eq.s32.totalorder %s16, 17
      %p143 = por %p141, %p142
      %p145 = scmp.ne.s32.totalorder %s130, %s144
      %p146 = scmp.eq.s32.totalorder %s16, 0
      %p147 = por %p145, %p146
      %s148 = ssub.s32 %s17, %s43
      %s149 = ssub.s32 %s18, %s39
      %s150 = sor.u32 %s148, %s149
      %p151 = scmp.eq.s32.totalorder %s150, 0
      %s153 = sadd.s32 %s152, 1
      %s154 = scalar_select %p151, %s152, %s153
      %p157 = pneg %p151
      %p158 = scmp.eq.s32.totalorder %s10, 17
      %p159 = por %p157, %p158
      %p160 = scmp.ne.s32.totalorder %s152, %s155
      %p161 = scmp.eq.s32.totalorder %s10, 0
      %p162 = por %p160, %p161
      %p163 = scmp.ne.s32.totalorder %s152, %s155
      %p164 = scmp.eq.s32.totalorder %s15, 17
      %p165 = por %p163, %p164
      %p166 = scmp.ne.s32.totalorder %s155, %s156
      %p167 = scmp.eq.s32.totalorder %s15, 0
      %p168 = por %p166, %p167
      %p169 = scmp.ne.s32.totalorder %s155, %s156
      %p170 = scmp.eq.s32.totalorder %s16, 17
      %p171 = por %p169, %p170
      %p173 = scmp.ne.s32.totalorder %s156, %s172
      %p174 = scmp.eq.s32.totalorder %s16, 0
      %p175 = por %p173, %p174
      %p176 = scmp.le.s32.totalorder 1, %s10
      %p177 = scmp.lt.s32.totalorder %s10, 19
      %p178 = pnand %p176, %p177
      %p179 = pneg %p178
      // Predicated region
      $region9: #{aspp_forward.9} parent=5 // pred_check
        _
      $region10: #{aspp_forward.9} parent=5 // pred_check_branch
        %181 = sbr.rel (%p178) target = $region12
      $region11: #{aspp_forward.9} parent=5 // pred_region
        %s182 = ssub.s32 %s10, 1
        // Predicated region
        $region13: #{aspp_forward.9} parent=11 // pred_check
          %p183 = pneg %p119
        $region14: #{aspp_forward.9} parent=11 // pred_check_branch
          %185 = sbr.rel (%p183) target = $region16
        $region15: #{aspp_forward.9} parent=11 // pred_region
          _
        $region16: #{aspp_forward.9} parent=11 // pred_fallthru
          _
        // Predicated region
        $region17: #{aspp_forward.9} parent=11 // pred_check
          %p186 = pneg %p140
        $region18: #{aspp_forward.9} parent=11 // pred_check_branch
          %188 = sbr.rel (%p186) target = $region20
        $region19: #{aspp_forward.9} parent=11 // pred_region
          _
        $region20: #{aspp_forward.9} parent=11 // pred_fallthru
          _
      $region12: #{aspp_forward.9} parent=5 // pred_fallthru
        _
      %p189 = scmp.lt.s32.totalorder %s10, 18
      // Predicated region
      $region21: #{aspp_forward.9} parent=5 // pred_check
        %p190 = pneg %p189
      $region22: #{aspp_forward.9} parent=5 // pred_check_branch
        %192 = sbr.rel (%p190) target = $region24
      $region23: #{aspp_forward.9} parent=5 // pred_region
        // Predicated region
        $region25: #{aspp_forward.9} parent=23 // pred_check
          %p193 = pneg %p64
        $region26: #{aspp_forward.9} parent=23 // pred_check_branch
          %195 = sbr.rel (%p193) target = $region28
        $region27: #{aspp_forward.9} parent=23 // pred_region
          %s196 = smul.u32 %s19, 3
          %s197 = sadd.s32 %s18, %s196
          %s198 = smul.u32 6, %s197
          %p199 = scmp.lt.s32.totalorder %s17, 1
          %s200 = scalar_select %p199, %s17, 1
          %p201 = scmp.lt.s32.totalorder %s198, 53
          %s202 = scalar_select %p201, %s198, 53
          %p203 = scmp.lt.s32.totalorder %s20, 0
          %s204 = scalar_select %p203, %s20, 0
          %s205 = smul.addr %s202, 7
          %s206 = sadd.s32 %s204, %s205
          %s207 = smul.addr %s200, 378
          %s208 = sadd.s32 %s206, %s207
          %s209 = smul.addr %s208, 8
          %s210 = scalar_lea.vmem %s0, %s209
          %s211 = smul.u32 %s19, 3
          %s212 = sadd.s32 %s18, %s211
          %s213 = smul.u32 6, %s212
        $region28: #{aspp_forward.9} parent=23 // pred_fallthru
          _
        // Predicated region
        $region29: #{aspp_forward.9} parent=23 // pred_check
          %p214 = pneg %p92
        $region30: #{aspp_forward.9} parent=23 // pred_check_branch
          %216 = sbr.rel (%p214) target = $region32
        $region31: #{aspp_forward.9} parent=23 // pred_region
          %p217 = scmp.lt.s32.totalorder %s19, 2
          %s218 = scalar_select %p217, %s19, 2
          %p219 = scmp.lt.s32.totalorder %s20, 0
          %s220 = scalar_select %p219, %s20, 0
          %s221 = smul.addr %s218, 3
          %s222 = sadd.s32 %s220, %s221
          %s223 = smul.addr %s222, 4
          %s224 = scalar_lea.vmem %s1, %s223
        $region32: #{aspp_forward.9} parent=23 // pred_fallthru
          _
      $region24: #{aspp_forward.9} parent=5 // pred_fallthru
        _
      %p225 = scmp.le.s32.totalorder 1, %s10
      %p226 = scmp.lt.s32.totalorder %s10, 19
      %p227 = pnand %p225, %p226
      %p228 = pneg %p227
      // Predicated region
      $region33: #{aspp_forward.9} parent=5 // pred_check
        _
      $region34: #{aspp_forward.9} parent=5 // pred_check_branch
        %230 = sbr.rel (%p227) target = $region36
      $region35: #{aspp_forward.9} parent=5 // pred_region
        %s231 = ssub.s32 %s10, 1
        %s232 = smul.u32 %s23, 3
        %s233 = sadd.s32 %s22, %s232
        %s234 = smul.u32 6, %s233
        %p235 = scmp.lt.s32.totalorder %s21, 1
        %s236 = scalar_select %p235, %s21, 1
        %p237 = scmp.lt.s32.totalorder %s234, 53
        %s238 = scalar_select %p237, %s234, 53
        %p239 = scmp.lt.s32.totalorder %s24, 0
        %s240 = scalar_select %p239, %s24, 0
        %s241 = smul.addr %s238, 7
        %s242 = sadd.s32 %s240, %s241
        %s243 = smul.addr %s236, 378
        %s244 = sadd.s32 %s242, %s243
        %s245 = smul.addr %s244, 8
        %s246 = scalar_lea.vmem %s0, %s245
        %p247 = pneg %p70
        %p248 = pneg %p67
        %p249 = scmp.lt.s32.totalorder %s23, 2
        %s250 = scalar_select %p249, %s23, 2
        %p251 = scmp.lt.s32.totalorder %s24, 0
        %s252 = scalar_select %p251, %s24, 0
        %s253 = smul.addr %s250, 3
        %s254 = sadd.s32 %s252, %s253
        %s255 = smul.addr %s254, 4
        %s256 = scalar_lea.vmem %s1, %s255
        %p257 = pneg %p98
        %p258 = pneg %p95
        %p259 = pneg %p119
        %p260 = pneg %p116
        %p261 = pneg %p140
        %p262 = pneg %p137
        %p263 = pneg %p168
        %p264 = pneg %p165
        %s265 = sand.u32 %s155, 1
        %s266 = sand.u32 %s155, 1
        %s267 = smul.addr %s266, 96
        %s268 = scalar_lea.vmem [#allocation3], %s267
        %s269 = smul.u32 %s23, 3
        %s270 = sadd.s32 %s22, %s269
        %s271 = smul.u32 6, %s270
        %p272 = scmp.lt.s32.totalorder %s21, 1
        %s273 = scalar_select %p272, %s21, 1
        %p274 = scmp.lt.s32.totalorder %s271, 53
        %s275 = scalar_select %p274, %s271, 53
        %p276 = scmp.lt.s32.totalorder %s24, 0
        %s277 = scalar_select %p276, %s24, 0
        %s278 = smul.addr %s275, 7
        %s279 = sadd.s32 %s277, %s278
        %s280 = smul.addr %s273, 378
        %s281 = sadd.s32 %s279, %s280
        %s282 = smul.addr %s281, 8
        %s283 = scalar_lea.vmem %s0, %s282
        %s284 = smul.u32 %s23, 3
        %s285 = sadd.s32 %s22, %s284
        %s286 = smul.u32 6, %s285
        %p287 = scmp.lt.s32.totalorder %s23, 2
        %s288 = scalar_select %p287, %s23, 2
        %p289 = scmp.lt.s32.totalorder %s24, 0
        %s290 = scalar_select %p289, %s24, 0
        %s291 = smul.addr %s288, 3
        %s292 = sadd.s32 %s290, %s291
        %s293 = smul.addr %s292, 4
        %s294 = scalar_lea.vmem %s1, %s293
        %s295 = smul.u32 6, %s22
        %s296 = ssub.s32 16, %s295
        %p297 = scmp.lt.s32.totalorder %s296, 6
        %s298 = scalar_select %p297, %s296, 6
        %s299 = smul.u32 128, %s298
        %s300 = smul.u32 %s299, 2
        %p301 = scmp.eq.s32.totalorder %s23, 0
        %p302 = scmp.eq.s32.totalorder %s24, 0
        %p303 = pnand %p301, %p302
        %p304 = pneg %p303
        // Predicated region
        $region37: #{aspp_forward.9} parent=35 // pred_check
          _
        $region38: #{aspp_forward.9} parent=35 // pred_check_branch
          %306 = sbr.rel (%p303) target = $region40
        $region39: #{aspp_forward.9} parent=35 // pred_region
          %vm307 = vcmask 64512
          %308 = vst.msk [vmem:[#allocation2] sm:$0xff] %vm307, 0.0
          %309 = vst.msk [vmem:[#allocation2 + $0x8] sm:$0xff] %vm307, 0.0
          %310 = vst.msk [vmem:[#allocation2 + $0x10] sm:$0xff] %vm307, 0.0
          %311 = vst.msk [vmem:[#allocation2 + $0x18] sm:$0xff] %vm307, 0.0
          %312 = vst.msk [vmem:[#allocation2 + $0x20] sm:$0xff] %vm307, 0.0
          %313 = vst.msk [vmem:[#allocation2 + $0x28] sm:$0xff] %vm307, 0.0
          %314 = vst.msk [vmem:[#allocation2 + $0x30] sm:$0xff] %vm307, 0.0
          %315 = vst.msk [vmem:[#allocation2 + $0x38] sm:$0xff] %vm307, 0.0
          %316 = vst.msk [vmem:[#allocation2 + $0x40] sm:$0xff] %vm307, 0.0
          %317 = vst.msk [vmem:[#allocation2 + $0x48] sm:$0xff] %vm307, 0.0
          %318 = vst.msk [vmem:[#allocation2 + $0x50] sm:$0xff] %vm307, 0.0
          %319 = vst.msk [vmem:[#allocation2 + $0x58] sm:$0xff] %vm307, 0.0
        $region40: #{aspp_forward.9} parent=35 // pred_fallthru
          _
        %v320 = vld [vmem:[%s283] sm:$0xff]
        %v321 = vld [vmem:[%s283 + $0x8] sm:$0xff]
        %v322 = vld [vmem:[%s283 + $0x38] sm:$0xff]
        %v323 = vld [vmem:[%s283 + $0x40] sm:$0xff]
        %v324 = vld [vmem:[%s283 + $0x70] sm:$0xff]
        %v325 = vld [vmem:[%s283 + $0x78] sm:$0xff]
        %v326 = vld [vmem:[%s283 + $0xa8] sm:$0xff]
        %v327 = vld [vmem:[%s283 + $0xb0] sm:$0xff]
        %v328 = vld [vmem:[%s283 + $0xe0] sm:$0xff]
        %v329 = vld [vmem:[%s283 + $0xe8] sm:$0xff]
        %v330 = vld [vmem:[%s283 + $0x118] sm:$0xff]
        %v331 = vld [vmem:[%s283 + $0x120] sm:$0xff]
        %v332 = vld [vmem:[%s294] sm:$0xf]
        %v333 = vld [vmem:[%s283 + $0x12] sm:$0xff]
        %v334 = vld [vmem:[%s283 + $0x1a] sm:$0xff]
        %v335 = vld [vmem:[%s283 + $0x4a] sm:$0xff]
        %v336 = vld [vmem:[%s283 + $0x52] sm:$0xff]
        %v337 = vld [vmem:[%s283 + $0x82] sm:$0xff]
        %v338 = vld [vmem:[%s283 + $0x8a] sm:$0xff]
        %v339 = vld [vmem:[%s283 + $0xba] sm:$0xff]
        %v340 = vld [vmem:[%s283 + $0xc2] sm:$0xff]
        %v341 = vld [vmem:[%s283 + $0xf2] sm:$0xff]
        %v342 = vld [vmem:[%s283 + $0xfa] sm:$0xff]
        %v343 = vld [vmem:[%s283 + $0x12a] sm:$0xff]
        %v344 = vld [vmem:[%s283 + $0x132] sm:$0xff]
        %s345 = scalar_lea.vmem %s294, 4
        %v346 = vld [vmem:[%s345] sm:$0xf]
        %vm347 = vcmask 31744
        %v349 = vsel %vm347, %v333, 0
        %v352 = vsel %vm347, %v334, 0
        %v355 = vsel %vm347, %v335, 0
        %v358 = vsel %vm347, %v336, 0
        %v361 = vsel %vm347, %v337, 0
        %v364 = vsel %vm347, %v338, 0
        %v367 = vsel %vm347, %v339, 0
        %v370 = vsel %vm347, %v340, 0
        %v373 = vsel %vm347, %v341, 0
        %v376 = vsel %vm347, %v342, 0
        %v379 = vsel %vm347, %v343, 0
        %v382 = vsel %vm347, %v344, 0
        %vm384 = vcmask 1043456
        %v386 = vsel %vm384, %v346, 0
        %388 = vmatprep.subr.mxu0 0.0
        %389 = vmatpush1.msra.mxu0 %v386
        %390 = vmatprep.subr.mxu0 0.0
        %391 = vmatpush1.msra.mxu0 0.0
        %392 = vmatprep.subr.mxu0 0.0
        %393 = vmatpush1.msra.mxu0 0.0
        %394 = vmatprep.subr.mxu0 0.0
        %395 = vmatpush1.msra.mxu0 0.0
        %396 = vmatprep.subr.mxu0 0.0
        %397 = vmatpush1.msra.mxu0 0.0
        %398 = vmatprep.subr.mxu0 0.0
        %399 = vmatpush1.msra.mxu0 0.0
        %400 = vmatprep.subr.mxu0 0.0
        %401 = vmatpush1.msra.mxu0 0.0
        %402 = vmatprep.subr.mxu0 0.0
        %403 = vmatpush1.msra.mxu0 0.0
        %404 = vmatprep.subr.mxu0 0.0
        %405 = vmatpush1.msra.mxu0 0.0
        %406 = vmatprep.subr.mxu0 0.0
        %407 = vmatpush1.msra.mxu0 0.0
        %408 = vmatprep.subr.mxu0 0.0
        %409 = vmatpush1.msra.mxu0 0.0
        %410 = vmatprep.subr.mxu0 0.0
        %411 = vmatpush1.msra.mxu0 0.0
        %412 = vmatprep.subr.mxu0 0.0
        %413 = vmatpush1.msra.mxu0 0.0
        %414 = vmatprep.subr.mxu0 0.0
        %415 = vmatpush1.msra.mxu0 0.0
        %416 = vmatprep.subr.mxu0 0.0
        %417 = vmatpush1.msra.mxu0 0.0
        %418 = vmatprep.subr.mxu0 0.0
        %419 = vmatpush1.msra.mxu0 0.0
        %420 = vmatprep.subr.mxu0 0.0
        %421 = vmatpush1.msra.mxu0 0.0
        %422 = vmatprep.subr.mxu0 0.0
        %423 = vmatpush1.msra.mxu0 0.0
        %424 = vmatprep.subr.mxu0 0.0
        %425 = vmatpush1.msra.mxu0 0.0
        %426 = vmatprep.subr.mxu0 0.0
        %427 = vmatpush1.msra.mxu0 0.0
        %428 = vmatprep.subr.mxu0 0.0
        %429 = vmatpush1.msra.mxu0 0.0
        %430 = vmatprep.subr.mxu0 0.0
        %431 = vmatpush1.msra.mxu0 0.0
        %432 = vmatprep.subr.mxu0 0.0
        %433 = vmatpush1.msra.mxu0 0.0
        %434 = vmatprep.subr.mxu0 0.0
        %435 = vmatpush1.msra.mxu0 0.0
        %436 = vmatprep.subr.mxu0 0.0
        %437 = vmatpush1.msra.mxu0 0.0
        %438 = vmatprep.subr.mxu0 0.0
        %439 = vmatpush1.msra.mxu0 0.0
        %440 = vmatprep.subr.mxu0 0.0
        %441 = vmatpush1.msra.mxu0 0.0
        %442 = vmatprep.subr.mxu0 0.0
        %443 = vmatpush1.msra.mxu0 0.0
        %444 = vmatprep.subr.mxu0 0.0
        %445 = vmatpush1.msra.mxu0 0.0
        %446 = vmatprep.subr.mxu0 0.0
        %447 = vmatpush1.msra.mxu0 0.0
        %448 = vmatprep.subr.mxu0 0.0
        %449 = vmatpush1.msra.mxu0 0.0
        %450 = vmatprep.subr.mxu0 0.0
        %451 = vmatpush1.msra.mxu0 0.0
        %452 = vmatprep.mubr.f32.mxu0 0.0
        %453 = vmatmul.mubr.f32.gmra.mrb[0].mxu0 %v349
        %v454 = vpop.f32.mrb[0].mxu0
        %v455 = vadd.f32 0.0, %v454
        %v456 = vpop.f32.mrb[0].mxu0
        %457 = vmatprep.mubr.f32.mxu0 0.0
        %458 = vmatmul.mubr.f32.gmra.mrb[0].mxu0 %v352
        %v459 = vpop.f32.mrb[0].mxu0
        %v460 = vadd.f32 0.0, %v459
        %v461 = vpop.f32.mrb[0].mxu0
        %462 = vmatprep.mubr.f32.mxu0 0.0
        %463 = vmatmul.mubr.f32.gmra.mrb[0].mxu0 %v355
        %v464 = vpop.f32.mrb[0].mxu0
        %v465 = vadd.f32 0.0, %v464
        %v466 = vpop.f32.mrb[0].mxu0
        %467 = vmatprep.mubr.f32.mxu0 0.0
        %468 = vmatmul.mubr.f32.gmra.mrb[0].mxu0 %v358
        %v469 = vpop.f32.mrb[0].mxu0
        %v470 = vadd.f32 0.0, %v469
        %v471 = vpop.f32.mrb[0].mxu0
        %472 = vmatprep.mubr.f32.mxu0 0.0
        %473 = vmatmul.mubr.f32.gmra.mrb[0].mxu0 %v361
        %v474 = vpop.f32.mrb[0].mxu0
        %v475 = vadd.f32 0.0, %v474
        %v476 = vpop.f32.mrb[0].mxu0
        %477 = vmatprep.mubr.f32.mxu0 0.0
        %478 = vmatmul.mubr.f32.gmra.mrb[0].mxu0 %v364
        %v479 = vpop.f32.mrb[0].mxu0
        %v480 = vadd.f32 0.0, %v479
        %v481 = vpop.f32.mrb[0].mxu0
        %482 = vmatprep.mubr.f32.mxu0 0.0
        %483 = vmatmul.mubr.f32.gmra.mrb[0].mxu0 %v367
        %v484 = vpop.f32.mrb[0].mxu0
        %v485 = vadd.f32 0.0, %v484
        %v486 = vpop.f32.mrb[0].mxu0
        %487 = vmatprep.mubr.f32.mxu0 0.0
        %488 = vmatmul.mubr.f32.gmra.mrb[0].mxu0 %v370
        %v489 = vpop.f32.mrb[0].mxu0
        %v490 = vadd.f32 0.0, %v489
        %v491 = vpop.f32.mrb[0].mxu0
        %492 = vmatprep.mubr.f32.mxu0 0.0
        %493 = vmatmul.mubr.f32.gmra.mrb[0].mxu0 %v373
        %v494 = vpop.f32.mrb[0].mxu0
        %v495 = vadd.f32 0.0, %v494
        %v496 = vpop.f32.mrb[0].mxu0
        %497 = vmatprep.mubr.f32.mxu0 0.0
        %498 = vmatmul.mubr.f32.gmra.mrb[0].mxu0 %v376
        %v499 = vpop.f32.mrb[0].mxu0
        %v500 = vadd.f32 0.0, %v499
        %v501 = vpop.f32.mrb[0].mxu0
        %502 = vmatprep.mubr.f32.mxu0 0.0
        %503 = vmatmul.mubr.f32.gmra.mrb[0].mxu0 %v379
        %v504 = vpop.f32.mrb[0].mxu0
        %v505 = vadd.f32 0.0, %v504
        %v506 = vpop.f32.mrb[0].mxu0
        %507 = vmatprep.mubr.f32.mxu0 0.0
        %508 = vmatmul.mubr.f32.gmra.mrb[0].mxu0 %v382
        %v509 = vpop.f32.mrb[0].mxu0
        %v510 = vadd.f32 0.0, %v509
        %v511 = vpop.f32.mrb[0].mxu0
        %512 = vdwg.mxu0
        %v514 = vsel %vm347, %v320, 0
        %v517 = vsel %vm347, %v321, 0
        %v520 = vsel %vm347, %v322, 0
        %v523 = vsel %vm347, %v323, 0
        %v526 = vsel %vm347, %v324, 0
        %v529 = vsel %vm347, %v325, 0
        %v532 = vsel %vm347, %v326, 0
        %v535 = vsel %vm347, %v327, 0
        %v538 = vsel %vm347, %v328, 0
        %v541 = vsel %vm347, %v329, 0
        %v544 = vsel %vm347, %v330, 0
        %v547 = vsel %vm347, %v331, 0
        %v550 = vsel %vm384, %v332, 0
        %552 = vmatprep.subr.mxu0 0.0
        %553 = vmatpush1.msra.mxu0 %v550
        %554 = vmatprep.subr.mxu0 0.0
        %555 = vmatpush1.msra.mxu0 0.0
        %556 = vmatprep.subr.mxu0 0.0
        %557 = vmatpush1.msra.mxu0 0.0
        %558 = vmatprep.subr.mxu0 0.0
        %559 = vmatpush1.msra.mxu0 0.0
        %560 = vmatprep.subr.mxu0 0.0
        %561 = vmatpush1.msra.mxu0 0.0
        %562 = vmatprep.subr.mxu0 0.0
        %563 = vmatpush1.msra.mxu0 0.0
        %564 = vmatprep.subr.mxu0 0.0
        %565 = vmatpush1.msra.mxu0 0.0
        %566 = vmatprep.subr.mxu0 0.0
        %567 = vmatpush1.msra.mxu0 0.0
        %568 = vmatprep.subr.mxu0 0.0
        %569 = vmatpush1.msra.mxu0 0.0
        %570 = vmatprep.subr.mxu0 0.0
        %571 = vmatpush1.msra.mxu0 0.0
        %572 = vmatprep.subr.mxu0 0.0
        %573 = vmatpush1.msra.mxu0 0.0
        %574 = vmatprep.subr.mxu0 0.0
        %575 = vmatpush1.msra.mxu0 0.0
        %576 = vmatprep.subr.mxu0 0.0
        %577 = vmatpush1.msra.mxu0 0.0
        %578 = vmatprep.subr.mxu0 0.0
        %579 = vmatpush1.msra.mxu0 0.0
        %580 = vmatprep.subr.mxu0 0.0
        %581 = vmatpush1.msra.mxu0 0.0
        %582 = vmatprep.subr.mxu0 0.0
        %583 = vmatpush1.msra.mxu0 0.0
        %584 = vmatprep.subr.mxu0 0.0
        %585 = vmatpush1.msra.mxu0 0.0
        %586 = vmatprep.subr.mxu0 0.0
        %587 = vmatpush1.msra.mxu0 0.0
        %588 = vmatprep.subr.mxu0 0.0
        %589 = vmatpush1.msra.mxu0 0.0
        %590 = vmatprep.subr.mxu0 0.0
        %591 = vmatpush1.msra.mxu0 0.0
        %592 = vmatprep.subr.mxu0 0.0
        %593 = vmatpush1.msra.mxu0 0.0
        %594 = vmatprep.subr.mxu0 0.0
        %595 = vmatpush1.msra.mxu0 0.0
        %596 = vmatprep.subr.mxu0 0.0
        %597 = vmatpush1.msra.mxu0 0.0
        %598 = vmatprep.subr.mxu0 0.0
        %599 = vmatpush1.msra.mxu0 0.0
        %600 = vmatprep.subr.mxu0 0.0
        %601 = vmatpush1.msra.mxu0 0.0
        %602 = vmatprep.subr.mxu0 0.0
        %603 = vmatpush1.msra.mxu0 0.0
        %604 = vmatprep.subr.mxu0 0.0
        %605 = vmatpush1.msra.mxu0 0.0
        %606 = vmatprep.subr.mxu0 0.0
        %607 = vmatpush1.msra.mxu0 0.0
        %608 = vmatprep.subr.mxu0 0.0
        %609 = vmatpush1.msra.mxu0 0.0
        %610 = vmatprep.subr.mxu0 0.0
        %611 = vmatpush1.msra.mxu0 0.0
        %612 = vmatprep.subr.mxu0 0.0
        %613 = vmatpush1.msra.mxu0 0.0
        %614 = vmatprep.subr.mxu0 0.0
        %615 = vmatpush1.msra.mxu0 0.0
        %616 = vmatprep.mubr.f32.mxu0 0.0
        %617 = vmatmul.mubr.f32.gmra.mrb[0].mxu0 %v514
        %v618 = vpop.f32.mrb[0].mxu0
        %v619 = vadd.f32 %v455, %v618
        %v620 = vpop.f32.mrb[0].mxu0
        %621 = vmatprep.mubr.f32.mxu0 0.0
        %622 = vmatmul.mubr.f32.gmra.mrb[0].mxu0 %v517
        %v623 = vpop.f32.mrb[0].mxu0
        %v624 = vadd.f32 %v460, %v623
        %v625 = vpop.f32.mrb[0].mxu0
        %626 = vmatprep.mubr.f32.mxu0 0.0
        %627 = vmatmul.mubr.f32.gmra.mrb[0].mxu0 %v520
        %v628 = vpop.f32.mrb[0].mxu0
        %v629 = vadd.f32 %v465, %v628
        %v630 = vpop.f32.mrb[0].mxu0
        %631 = vmatprep.mubr.f32.mxu0 0.0
        %632 = vmatmul.mubr.f32.gmra.mrb[0].mxu0 %v523
        %v633 = vpop.f32.mrb[0].mxu0
        %v634 = vadd.f32 %v470, %v633
        %v635 = vpop.f32.mrb[0].mxu0
        %636 = vmatprep.mubr.f32.mxu0 0.0
        %637 = vmatmul.mubr.f32.gmra.mrb[0].mxu0 %v526
        %v638 = vpop.f32.mrb[0].mxu0
        %v639 = vadd.f32 %v475, %v638
        %v640 = vpop.f32.mrb[0].mxu0
        %641 = vmatprep.mubr.f32.mxu0 0.0
        %642 = vmatmul.mubr.f32.gmra.mrb[0].mxu0 %v529
        %v643 = vpop.f32.mrb[0].mxu0
        %v644 = vadd.f32 %v480, %v643
        %v645 = vpop.f32.mrb[0].mxu0
        %646 = vmatprep.mubr.f32.mxu0 0.0
        %647 = vmatmul.mubr.f32.gmra.mrb[0].mxu0 %v532
        %v648 = vpop.f32.mrb[0].mxu0
        %v649 = vadd.f32 %v485, %v648
        %v650 = vpop.f32.mrb[0].mxu0
        %651 = vmatprep.mubr.f32.mxu0 0.0
        %652 = vmatmul.mubr.f32.gmra.mrb[0].mxu0 %v535
        %v653 = vpop.f32.mrb[0].mxu0
        %v654 = vadd.f32 %v490, %v653
        %v655 = vpop.f32.mrb[0].mxu0
        %656 = vmatprep.mubr.f32.mxu0 0.0
        %657 = vmatmul.mubr.f32.gmra.mrb[0].mxu0 %v538
        %v658 = vpop.f32.mrb[0].mxu0
        %v659 = vadd.f32 %v495, %v658
        %v660 = vpop.f32.mrb[0].mxu0
        %661 = vmatprep.mubr.f32.mxu0 0.0
        %662 = vmatmul.mubr.f32.gmra.mrb[0].mxu0 %v541
        %v663 = vpop.f32.mrb[0].mxu0
        %v664 = vadd.f32 %v500, %v663
        %v665 = vpop.f32.mrb[0].mxu0
        %666 = vmatprep.mubr.f32.mxu0 0.0
        %667 = vmatmul.mubr.f32.gmra.mrb[0].mxu0 %v544
        %v668 = vpop.f32.mrb[0].mxu0
        %v669 = vadd.f32 %v505, %v668
        %v670 = vpop.f32.mrb[0].mxu0
        %671 = vmatprep.mubr.f32.mxu0 0.0
        %672 = vmatmul.mubr.f32.gmra.mrb[0].mxu0 %v547
        %v673 = vpop.f32.mrb[0].mxu0
        %v674 = vadd.f32 %v510, %v673
        %v675 = vpop.f32.mrb[0].mxu0
        %676 = vdwg.mxu0
        %v677 = vld [vmem:[%s283 + $0x24] sm:$0xff]
        %v678 = vld [vmem:[%s283 + $0x2c] sm:$0xff]
        %v679 = vld [vmem:[%s283 + $0x5c] sm:$0xff]
        %v680 = vld [vmem:[%s283 + $0x64] sm:$0xff]
        %v681 = vld [vmem:[%s283 + $0x94] sm:$0xff]
        %v682 = vld [vmem:[%s283 + $0x9c] sm:$0xff]
        %v683 = vld [vmem:[%s283 + $0xcc] sm:$0xff]
        %v684 = vld [vmem:[%s283 + $0xd4] sm:$0xff]
        %v685 = vld [vmem:[%s283 + $0x104] sm:$0xff]
        %v686 = vld [vmem:[%s283 + $0x10c] sm:$0xff]
        %v687 = vld [vmem:[%s283 + $0x13c] sm:$0xff]
        %v688 = vld [vmem:[%s283 + $0x144] sm:$0xff]
        %s689 = scalar_lea.vmem %s294, 8
        %v690 = vld [vmem:[%s689] sm:$0xf]
        %v692 = vsel %vm347, %v677, 0
        %v695 = vsel %vm347, %v678, 0
        %v698 = vsel %vm347, %v679, 0
        %v701 = vsel %vm347, %v680, 0
        %v704 = vsel %vm347, %v681, 0
        %v707 = vsel %vm347, %v682, 0
        %v710 = vsel %vm347, %v683, 0
        %v713 = vsel %vm347, %v684, 0
        %v716 = vsel %vm347, %v685, 0
        %v719 = vsel %vm347, %v686, 0
        %v722 = vsel %vm347, %v687, 0
        %v725 = vsel %vm347, %v688, 0
        %v728 = vsel %vm384, %v690, 0
        %730 = vmatprep.subr.mxu0 0.0
        %731 = vmatpush1.msra.mxu0 %v728
        %732 = vmatprep.subr.mxu0 0.0
        %733 = vmatpush1.msra.mxu0 0.0
        %734 = vmatprep.subr.mxu0 0.0
        %735 = vmatpush1.msra.mxu0 0.0
        %736 = vmatprep.subr.mxu0 0.0
        %737 = vmatpush1.msra.mxu0 0.0
        %738 = vmatprep.subr.mxu0 0.0
        %739 = vmatpush1.msra.mxu0 0.0
        %740 = vmatprep.subr.mxu0 0.0
        %741 = vmatpush1.msra.mxu0 0.0
        %742 = vmatprep.subr.mxu0 0.0
        %743 = vmatpush1.msra.mxu0 0.0
        %744 = vmatprep.subr.mxu0 0.0
        %745 = vmatpush1.msra.mxu0 0.0
        %746 = vmatprep.subr.mxu0 0.0
        %747 = vmatpush1.msra.mxu0 0.0
        %748 = vmatprep.subr.mxu0 0.0
        %749 = vmatpush1.msra.mxu0 0.0
        %750 = vmatprep.subr.mxu0 0.0
        %751 = vmatpush1.msra.mxu0 0.0
        %752 = vmatprep.subr.mxu0 0.0
        %753 = vmatpush1.msra.mxu0 0.0
        %754 = vmatprep.subr.mxu0 0.0
        %755 = vmatpush1.msra.mxu0 0.0
        %756 = vmatprep.subr.mxu0 0.0
        %757 = vmatpush1.msra.mxu0 0.0
        %758 = vmatprep.subr.mxu0 0.0
        %759 = vmatpush1.msra.mxu0 0.0
        %760 = vmatprep.subr.mxu0 0.0
        %761 = vmatpush1.msra.mxu0 0.0
        %762 = vmatprep.subr.mxu0 0.0
        %763 = vmatpush1.msra.mxu0 0.0
        %764 = vmatprep.subr.mxu0 0.0
        %765 = vmatpush1.msra.mxu0 0.0
        %766 = vmatprep.subr.mxu0 0.0
        %767 = vmatpush1.msra.mxu0 0.0
        %768 = vmatprep.subr.mxu0 0.0
        %769 = vmatpush1.msra.mxu0 0.0
        %770 = vmatprep.subr.mxu0 0.0
        %771 = vmatpush1.msra.mxu0 0.0
        %772 = vmatprep.subr.mxu0 0.0
        %773 = vmatpush1.msra.mxu0 0.0
        %774 = vmatprep.subr.mxu0 0.0
        %775 = vmatpush1.msra.mxu0 0.0
        %776 = vmatprep.subr.mxu0 0.0
        %777 = vmatpush1.msra.mxu0 0.0
        %778 = vmatprep.subr.mxu0 0.0
        %779 = vmatpush1.msra.mxu0 0.0
        %780 = vmatprep.subr.mxu0 0.0
        %781 = vmatpush1.msra.mxu0 0.0
        %782 = vmatprep.subr.mxu0 0.0
        %783 = vmatpush1.msra.mxu0 0.0
        %784 = vmatprep.subr.mxu0 0.0
        %785 = vmatpush1.msra.mxu0 0.0
        %786 = vmatprep.subr.mxu0 0.0
        %787 = vmatpush1.msra.mxu0 0.0
        %788 = vmatprep.subr.mxu0 0.0
        %789 = vmatpush1.msra.mxu0 0.0
        %790 = vmatprep.subr.mxu0 0.0
        %791 = vmatpush1.msra.mxu0 0.0
        %792 = vmatprep.subr.mxu0 0.0
        %793 = vmatpush1.msra.mxu0 0.0
        %794 = vmatprep.mubr.f32.mxu0 0.0
        %795 = vmatmul.mubr.f32.gmra.mrb[0].mxu0 %v692
        %v796 = vpop.f32.mrb[0].mxu0
        %v797 = vadd.f32 0.0, %v796
        %v798 = vpop.f32.mrb[0].mxu0
        %799 = vmatprep.mubr.f32.mxu0 0.0
        %800 = vmatmul.mubr.f32.gmra.mrb[0].mxu0 %v695
        %v801 = vpop.f32.mrb[0].mxu0
        %v802 = vadd.f32 0.0, %v801
        %v803 = vpop.f32.mrb[0].mxu0
        %804 = vmatprep.mubr.f32.mxu0 0.0
        %805 = vmatmul.mubr.f32.gmra.mrb[0].mxu0 %v698
        %v806 = vpop.f32.mrb[0].mxu0
        %v807 = vadd.f32 0.0, %v806
        %v808 = vpop.f32.mrb[0].mxu0
        %809 = vmatprep.mubr.f32.mxu0 0.0
        %810 = vmatmul.mubr.f32.gmra.mrb[0].mxu0 %v701
        %v811 = vpop.f32.mrb[0].mxu0
        %v812 = vadd.f32 0.0, %v811
        %v813 = vpop.f32.mrb[0].mxu0
        %814 = vmatprep.mubr.f32.mxu0 0.0
        %815 = vmatmul.mubr.f32.gmra.mrb[0].mxu0 %v704
        %v816 = vpop.f32.mrb[0].mxu0
        %v817 = vadd.f32 0.0, %v816
        %v818 = vpop.f32.mrb[0].mxu0
        %819 = vmatprep.mubr.f32.mxu0 0.0
        %820 = vmatmul.mubr.f32.gmra.mrb[0].mxu0 %v707
        %v821 = vpop.f32.mrb[0].mxu0
        %v822 = vadd.f32 0.0, %v821
        %v823 = vpop.f32.mrb[0].mxu0
        %824 = vmatprep.mubr.f32.mxu0 0.0
        %825 = vmatmul.mubr.f32.gmra.mrb[0].mxu0 %v710
        %v826 = vpop.f32.mrb[0].mxu0
        %v827 = vadd.f32 0.0, %v826
        %v828 = vpop.f32.mrb[0].mxu0
        %829 = vmatprep.mubr.f32.mxu0 0.0
        %830 = vmatmul.mubr.f32.gmra.mrb[0].mxu0 %v713
        %v831 = vpop.f32.mrb[0].mxu0
        %v832 = vadd.f32 0.0, %v831
        %v833 = vpop.f32.mrb[0].mxu0
        %834 = vmatprep.mubr.f32.mxu0 0.0
        %835 = vmatmul.mubr.f32.gmra.mrb[0].mxu0 %v716
        %v836 = vpop.f32.mrb[0].mxu0
        %v837 = vadd.f32 0.0, %v836
        %v838 = vpop.f32.mrb[0].mxu0
        %839 = vmatprep.mubr.f32.mxu0 0.0
        %840 = vmatmul.mubr.f32.gmra.mrb[0].mxu0 %v719
        %v841 = vpop.f32.mrb[0].mxu0
        %v842 = vadd.f32 0.0, %v841
        %v843 = vpop.f32.mrb[0].mxu0
        %844 = vmatprep.mubr.f32.mxu0 0.0
        %845 = vmatmul.mubr.f32.gmra.mrb[0].mxu0 %v722
        %v846 = vpop.f32.mrb[0].mxu0
        %v847 = vadd.f32 0.0, %v846
        %v848 = vpop.f32.mrb[0].mxu0
        %849 = vmatprep.mubr.f32.mxu0 0.0
        %850 = vmatmul.mubr.f32.gmra.mrb[0].mxu0 %v725
        %v851 = vpop.f32.mrb[0].mxu0
        %v852 = vadd.f32 0.0, %v851
        %v853 = vpop.f32.mrb[0].mxu0
        %854 = vdwg.mxu0
        %v855 = vadd.f32 %v619, %v797
        %v856 = vadd.f32 %v624, %v802
        %v857 = vadd.f32 %v629, %v807
        %v858 = vadd.f32 %v634, %v812
        %v859 = vadd.f32 %v639, %v817
        %v860 = vadd.f32 %v644, %v822
        %v861 = vadd.f32 %v649, %v827
        %v862 = vadd.f32 %v654, %v832
        %v863 = vadd.f32 %v659, %v837
        %v864 = vadd.f32 %v664, %v842
        %v865 = vadd.f32 %v669, %v847
        %v866 = vadd.f32 %v674, %v852
        %v867 = vld [vmem:[#allocation2] sm:$0xff]
        %v868 = vld [vmem:[#allocation2 + $0x8] sm:$0xff]
        %v869 = vld [vmem:[#allocation2 + $0x10] sm:$0xff]
        %v870 = vld [vmem:[#allocation2 + $0x18] sm:$0xff]
        %v871 = vld [vmem:[#allocation2 + $0x20] sm:$0xff]
        %v872 = vld [vmem:[#allocation2 + $0x28] sm:$0xff]
        %v873 = vld [vmem:[#allocation2 + $0x30] sm:$0xff]
        %v874 = vld [vmem:[#allocation2 + $0x38] sm:$0xff]
        %v875 = vld [vmem:[#allocation2 + $0x40] sm:$0xff]
        %v876 = vld [vmem:[#allocation2 + $0x48] sm:$0xff]
        %v877 = vld [vmem:[#allocation2 + $0x50] sm:$0xff]
        %v878 = vld [vmem:[#allocation2 + $0x58] sm:$0xff]
        %v879 = vadd.f32 %v867, %v855
        %v880 = vadd.f32 %v868, %v856
        %v881 = vadd.f32 %v869, %v857
        %v882 = vadd.f32 %v870, %v858
        %v883 = vadd.f32 %v871, %v859
        %v884 = vadd.f32 %v872, %v860
        %v885 = vadd.f32 %v873, %v861
        %v886 = vadd.f32 %v874, %v862
        %v887 = vadd.f32 %v875, %v863
        %v888 = vadd.f32 %v876, %v864
        %v889 = vadd.f32 %v877, %v865
        %v890 = vadd.f32 %v878, %v866
        %vm891 = vcmask 64512
        %892 = vst.msk [vmem:[#allocation2] sm:$0xff] %vm891, %v879
        %893 = vst.msk [vmem:[#allocation2 + $0x8] sm:$0xff] %vm891, %v880
        %894 = vst.msk [vmem:[#allocation2 + $0x10] sm:$0xff] %vm891, %v881
        %895 = vst.msk [vmem:[#allocation2 + $0x18] sm:$0xff] %vm891, %v882
        %896 = vst.msk [vmem:[#allocation2 + $0x20] sm:$0xff] %vm891, %v883
        %897 = vst.msk [vmem:[#allocation2 + $0x28] sm:$0xff] %vm891, %v884
        %898 = vst.msk [vmem:[#allocation2 + $0x30] sm:$0xff] %vm891, %v885
        %899 = vst.msk [vmem:[#allocation2 + $0x38] sm:$0xff] %vm891, %v886
        %900 = vst.msk [vmem:[#allocation2 + $0x40] sm:$0xff] %vm891, %v887
        %901 = vst.msk [vmem:[#allocation2 + $0x48] sm:$0xff] %vm891, %v888
        %902 = vst.msk [vmem:[#allocation2 + $0x50] sm:$0xff] %vm891, %v889
        %903 = vst.msk [vmem:[#allocation2 + $0x58] sm:$0xff] %vm891, %v890
        %p904 = scmp.eq.s32.totalorder %s23, 2
        %p905 = pnand %p904, %p302
        %p906 = pneg %p905
        // Predicated region
        $region41: #{aspp_forward.9} parent=35 // pred_check
          _
        $region42: #{aspp_forward.9} parent=35 // pred_check_branch
          %908 = sbr.rel (%p905) target = $region44
        $region43: #{aspp_forward.9} parent=35 // pred_region
          %v909 = vld [vmem:[#allocation2] sm:$0xff]
          %v910 = vld [vmem:[#allocation2 + $0x8] sm:$0xff]
          %v911 = vld [vmem:[#allocation2 + $0x10] sm:$0xff]
          %v912 = vld [vmem:[#allocation2 + $0x18] sm:$0xff]
          %v913 = vld [vmem:[#allocation2 + $0x20] sm:$0xff]
          %v914 = vld [vmem:[#allocation2 + $0x28] sm:$0xff]
          %v915 = vld [vmem:[#allocation2 + $0x30] sm:$0xff]
          %v916 = vld [vmem:[#allocation2 + $0x38] sm:$0xff]
          %v917 = vld [vmem:[#allocation2 + $0x40] sm:$0xff]
          %v918 = vld [vmem:[#allocation2 + $0x48] sm:$0xff]
          %v919 = vld [vmem:[#allocation2 + $0x50] sm:$0xff]
          %v920 = vld [vmem:[#allocation2 + $0x58] sm:$0xff]
          %v921 = vld [vmem:[%s2] sm:$0x1]
          %v923 = vlaneseq
          %v924 = vshrl.u32 %v923, 7
          %v925 = vsub.s32 0, %v924
          %v926 = vrot.slane %v921, %v925
          %v928 = vmul.f32 %v909, %v926
          %v929 = vmul.f32 %v910, %v926
          %v930 = vmul.f32 %v911, %v926
          %v931 = vmul.f32 %v912, %v926
          %v932 = vmul.f32 %v913, %v926
          %v933 = vmul.f32 %v914, %v926
          %v934 = vmul.f32 %v915, %v926
          %v935 = vmul.f32 %v916, %v926
          %v936 = vmul.f32 %v917, %v926
          %v937 = vmul.f32 %v918, %v926
          %v938 = vmul.f32 %v919, %v926
          %v939 = vmul.f32 %v920, %v926
          %v940 = vld [vmem:[%s3] sm:$0x1]
          %v942 = vlaneseq
          %v943 = vshrl.u32 %v942, 7
          %v944 = vsub.s32 0, %v943
          %v945 = vrot.slane %v940, %v944
          %v947 = vadd.f32 %v928, %v945
          %v948 = vadd.f32 %v929, %v945
          %v949 = vadd.f32 %v930, %v945
          %v950 = vadd.f32 %v931, %v945
          %v951 = vadd.f32 %v932, %v945
          %v952 = vadd.f32 %v933, %v945
          %v953 = vadd.f32 %v934, %v945
          %v954 = vadd.f32 %v935, %v945
          %v955 = vadd.f32 %v936, %v945
          %v956 = vadd.f32 %v937, %v945
          %v957 = vadd.f32 %v938, %v945
          %v958 = vadd.f32 %v939, %v945
          %v959 = vmax.f32 %v947, 0.0
          %v960 = vmax.f32 %v948, 0.0
          %v961 = vmax.f32 %v949, 0.0
          %v962 = vmax.f32 %v950, 0.0
          %v963 = vmax.f32 %v951, 0.0
          %v964 = vmax.f32 %v952, 0.0
          %v965 = vmax.f32 %v953, 0.0
          %v966 = vmax.f32 %v954, 0.0
          %v967 = vmax.f32 %v955, 0.0
          %v968 = vmax.f32 %v956, 0.0
          %v969 = vmax.f32 %v957, 0.0
          %v970 = vmax.f32 %v958, 0.0
          %971 = vst.msk [vmem:[%s268] sm:$0xff] %vm891, %v959
          %972 = vst.msk [vmem:[%s268 + $0x8] sm:$0xff] %vm891, %v960
          %973 = vst.msk [vmem:[%s268 + $0x10] sm:$0xff] %vm891, %v961
          %974 = vst.msk [vmem:[%s268 + $0x18] sm:$0xff] %vm891, %v962
          %975 = vst.msk [vmem:[%s268 + $0x20] sm:$0xff] %vm891, %v963
          %976 = vst.msk [vmem:[%s268 + $0x28] sm:$0xff] %vm891, %v964
          %977 = vst.msk [vmem:[%s268 + $0x30] sm:$0xff] %vm891, %v965
          %978 = vst.msk [vmem:[%s268 + $0x38] sm:$0xff] %vm891, %v966
          %979 = vst.msk [vmem:[%s268 + $0x40] sm:$0xff] %vm891, %v967
          %980 = vst.msk [vmem:[%s268 + $0x48] sm:$0xff] %vm891, %v968
          %981 = vst.msk [vmem:[%s268 + $0x50] sm:$0xff] %vm891, %v969
          %982 = vst.msk [vmem:[%s268 + $0x58] sm:$0xff] %vm891, %v970
        $region44: #{aspp_forward.9} parent=35 // pred_fallthru
          _
        %s983 = sand.u32 %s155, 1
        %s984 = sand.u32 %s155, 1
        %s985 = smul.addr %s984, 96
        %s986 = scalar_lea.vmem [#allocation3], %s985
        // Predicated region
        $region45: #{aspp_forward.9} parent=35 // pred_check
          %p987 = pneg %p165
        $region46: #{aspp_forward.9} parent=35 // pred_check_branch
          %989 = sbr.rel (%p987) target = $region48
        $region47: #{aspp_forward.9} parent=35 // pred_region
          %s990 = smul.u32 6, %s22
          %s991 = ssub.s32 16, %s990
          %p992 = scmp.lt.s32.totalorder %s991, 6
          %s993 = scalar_select %p992, %s991, 6
          %s994 = smul.u32 128, %s993
          %s995 = smul.u32 %s994, 2
          %p996 = scmp.ne.s32.totalorder 0, %s995
          %s997 = smul.addr %s990, 2
          %s998 = smul.addr %s21, 32
          %s999 = sadd.s32 %s997, %s998
          %s1000 = smul.addr %s999, 8
          %s1001 = scalar_lea.vmem %s4, %s1000
          %s1002 = smul.u32 %s993, 2
          // Predicated region
          $region49: #{aspp_forward.9} parent=47 // pred_check
            %p1003 = pneg %p996
          $region50: #{aspp_forward.9} parent=47 // pred_check_branch
            %1005 = sbr.rel (%p1003) target = $region52
          $region51: #{aspp_forward.9} parent=47 // pred_region
            // Predicated region
            $region53: #{aspp_forward.9} parent=51 // pred_check
              _
            $region54: #{aspp_forward.9} parent=51 // pred_check_branch
              %1007 = sbr.rel (0) target = $region56
            $region55: #{aspp_forward.9} parent=51 // pred_region
              // Predicated region
              $region75: #{aspp_forward.9} parent=55 // pred_check
                _
              $region76: #{aspp_forward.9} parent=55 // pred_check_branch
                %1079 = sbr.rel (0) target = $region78
              $region77: #{aspp_forward.9} parent=55 // pred_region
                %s1080 = sdiv.u32.pop %s1002, 12
                %s1081 = srem.u32.pop %s1002, 12
                // While loop
                $region79: #{aspp_forward.9} parent=77 // loop_pre_header
                  _
                $region80: #{aspp_forward.9} parent=77 // loop_header
                  %s1083 = sphi 0, %s1085
                  %p1084 = scmp.ge.s32.totalorder %s1083, %s1080
                  %s1088 = sphi 0, %s1117
                  %s1089 = sphi %s986, %s1120
                  %s1090 = sphi %s1001, %s1121
                $region81: #{aspp_forward.9} parent=77 // loop_header_branch
                  %1087 = sbr.rel (%p1084) target = $region85
                $region82: #{aspp_forward.9} parent=77 // loop_body
                  %v1091 = vld [vmem:[%s1089] sm:$0xff]
                  %1092 = vst [vmem:[%s1090] sm:$0xff] %v1091
                  %v1093 = vld [vmem:[%s1089 + $0x8] sm:$0xff]
                  %1094 = vst [vmem:[%s1090 + $0x8] sm:$0xff] %v1093
                  %v1095 = vld [vmem:[%s1089 + $0x10] sm:$0xff]
                  %1096 = vst [vmem:[%s1090 + $0x10] sm:$0xff] %v1095
                  %v1097 = vld [vmem:[%s1089 + $0x18] sm:$0xff]
                  %1098 = vst [vmem:[%s1090 + $0x18] sm:$0xff] %v1097
                  %v1099 = vld [vmem:[%s1089 + $0x20] sm:$0xff]
                  %1100 = vst [vmem:[%s1090 + $0x20] sm:$0xff] %v1099
                  %v1101 = vld [vmem:[%s1089 + $0x28] sm:$0xff]
                  %1102 = vst [vmem:[%s1090 + $0x28] sm:$0xff] %v1101
                  %v1103 = vld [vmem:[%s1089 + $0x30] sm:$0xff]
                  %1104 = vst [vmem:[%s1090 + $0x30] sm:$0xff] %v1103
                  %v1105 = vld [vmem:[%s1089 + $0x38] sm:$0xff]
                  %1106 = vst [vmem:[%s1090 + $0x38] sm:$0xff] %v1105
                  %v1107 = vld [vmem:[%s1089 + $0x40] sm:$0xff]
                  %1108 = vst [vmem:[%s1090 + $0x40] sm:$0xff] %v1107
                  %v1109 = vld [vmem:[%s1089 + $0x48] sm:$0xff]
                  %1110 = vst [vmem:[%s1090 + $0x48] sm:$0xff] %v1109
                  %v1111 = vld [vmem:[%s1089 + $0x50] sm:$0xff]
                  %1112 = vst [vmem:[%s1090 + $0x50] sm:$0xff] %v1111
                  %v1113 = vld [vmem:[%s1089 + $0x58] sm:$0xff]
                  %1114 = vst [vmem:[%s1090 + $0x58] sm:$0xff] %v1113
                  %s1115 = sadd.s32 1, %s1088
                  %p1116 = scmp.ge.s32.totalorder %s1115, %s1080
                  %s1117 = scalar_select %p1116, 0, %s1115
                  %s1118 = smul.u32 %s1117, 96
                  %s1119 = smul.u32 %s1117, 96
                  %s1120 = scalar_lea.vmem %s986, %s1118 [#allocation3]
                  %s1121 = scalar_lea.vmem %s1001, %s1119
                $region83: #{aspp_forward.9} parent=77 // loop_footer
                  %s1085 = sadd.s32 %s1083, 1
                $region84: #{aspp_forward.9} parent=77 // loop_footer_branch
                  %1082 = sbr.rel target = $region80
                $region85: #{aspp_forward.9} parent=77 // loop_exit
                  _
                %s1122 = sdiv.u32.pop %s1002, 12
                %s1123 = srem.u32.pop %s1002, 12
                %s1124 = smul.u32 %s1122, 12
                %s1125 = smul.u32 8, %s1124
                %s1126 = scalar_lea.vmem %s986, %s1125 [#allocation3]
                %s1127 = smul.u32 8, %s1124
                %s1128 = scalar_lea.vmem %s1001, %s1127
                // While loop
                $region86: #{aspp_forward.9} parent=77 // loop_pre_header
                  _
                $region87: #{aspp_forward.9} parent=77 // loop_header
                  %s1130 = sphi 0, %s1132
                  %p1131 = scmp.ge.s32.totalorder %s1130, %s1123
                  %s1135 = sphi 0, %s1142
                  %s1136 = sphi %s1126, %s1145
                  %s1137 = sphi %s1128, %s1146
                $region88: #{aspp_forward.9} parent=77 // loop_header_branch
                  %1134 = sbr.rel (%p1131) target = $region92
                $region89: #{aspp_forward.9} parent=77 // loop_body
                  %v1138 = vld [vmem:[%s1136] sm:$0xff]
                  %1139 = vst [vmem:[%s1137] sm:$0xff] %v1138
                  %s1140 = sadd.s32 1, %s1135
                  %p1141 = scmp.ge.s32.totalorder %s1140, %s1123
                  %s1142 = scalar_select %p1141, 0, %s1140
                  %s1143 = smul.u32 %s1142, 8
                  %s1144 = smul.u32 %s1142, 8
                  %s1145 = scalar_lea.vmem %s1126, %s1143 [#allocation3]
                  %s1146 = scalar_lea.vmem %s1128, %s1144
                $region90: #{aspp_forward.9} parent=77 // loop_footer
                  %s1132 = sadd.s32 %s1130, 1
                $region91: #{aspp_forward.9} parent=77 // loop_footer_branch
                  %1129 = sbr.rel target = $region87
                $region92: #{aspp_forward.9} parent=77 // loop_exit
                  _
              $region78: #{aspp_forward.9} parent=55 // pred_fallthru
                _
              // Predicated region
              $region93: #{aspp_forward.9} parent=55 // pred_check
                _
              $region94: #{aspp_forward.9} parent=55 // pred_check_branch
                %1148 = sbr.rel target = $region96
              $region95: #{aspp_forward.9} parent=55 // pred_region
                _
              $region96: #{aspp_forward.9} parent=55 // pred_fallthru
                _
            $region56: #{aspp_forward.9} parent=51 // pred_fallthru
              _
            // Predicated region
            $region57: #{aspp_forward.9} parent=51 // pred_check
              _
            $region58: #{aspp_forward.9} parent=51 // pred_check_branch
              %1009 = sbr.rel target = $region60
            $region59: #{aspp_forward.9} parent=51 // pred_region
              %s1011 = sdiv.u32.pop %s1002, 12
              %s1012 = srem.u32.pop %s1002, 12
              // While loop
              $region61: #{aspp_forward.9} parent=59 // loop_pre_header
                _
              $region62: #{aspp_forward.9} parent=59 // loop_header
                %s1014 = sphi 0, %s1016
                %p1015 = scmp.ge.s32.totalorder %s1014, %s1011
                %s1019 = sphi 0, %s1048
                %s1020 = sphi %s986, %s1051
                %s1021 = sphi %s1001, %s1052
              $region63: #{aspp_forward.9} parent=59 // loop_header_branch
                %1018 = sbr.rel (%p1015) target = $region67
              $region64: #{aspp_forward.9} parent=59 // loop_body
                %v1022 = vld [vmem:[%s1020] sm:$0xff]
                %1023 = vst [vmem:[%s1021] sm:$0xff] %v1022
                %v1024 = vld [vmem:[%s1020 + $0x8] sm:$0xff]
                %1025 = vst [vmem:[%s1021 + $0x8] sm:$0xff] %v1024
                %v1026 = vld [vmem:[%s1020 + $0x10] sm:$0xff]
                %1027 = vst [vmem:[%s1021 + $0x10] sm:$0xff] %v1026
                %v1028 = vld [vmem:[%s1020 + $0x18] sm:$0xff]
                %1029 = vst [vmem:[%s1021 + $0x18] sm:$0xff] %v1028
                %v1030 = vld [vmem:[%s1020 + $0x20] sm:$0xff]
                %1031 = vst [vmem:[%s1021 + $0x20] sm:$0xff] %v1030
                %v1032 = vld [vmem:[%s1020 + $0x28] sm:$0xff]
                %1033 = vst [vmem:[%s1021 + $0x28] sm:$0xff] %v1032
                %v1034 = vld [vmem:[%s1020 + $0x30] sm:$0xff]
                %1035 = vst [vmem:[%s1021 + $0x30] sm:$0xff] %v1034
                %v1036 = vld [vmem:[%s1020 + $0x38] sm:$0xff]
                %1037 = vst [vmem:[%s1021 + $0x38] sm:$0xff] %v1036
                %v1038 = vld [vmem:[%s1020 + $0x40] sm:$0xff]
                %1039 = vst [vmem:[%s1021 + $0x40] sm:$0xff] %v1038
                %v1040 = vld [vmem:[%s1020 + $0x48] sm:$0xff]
                %1041 = vst [vmem:[%s1021 + $0x48] sm:$0xff] %v1040
                %v1042 = vld [vmem:[%s1020 + $0x50] sm:$0xff]
                %1043 = vst [vmem:[%s1021 + $0x50] sm:$0xff] %v1042
                %v1044 = vld [vmem:[%s1020 + $0x58] sm:$0xff]
                %1045 = vst [vmem:[%s1021 + $0x58] sm:$0xff] %v1044
                %s1046 = sadd.s32 1, %s1019
                %p1047 = scmp.ge.s32.totalorder %s1046, %s1011
                %s1048 = scalar_select %p1047, 0, %s1046
                %s1049 = smul.u32 %s1048, 96
                %s1050 = smul.u32 %s1048, 96
                %s1051 = scalar_lea.vmem %s986, %s1049 [#allocation3]
                %s1052 = scalar_lea.vmem %s1001, %s1050
              $region65: #{aspp_forward.9} parent=59 // loop_footer
                %s1016 = sadd.s32 %s1014, 1
              $region66: #{aspp_forward.9} parent=59 // loop_footer_branch
                %1013 = sbr.rel target = $region62
              $region67: #{aspp_forward.9} parent=59 // loop_exit
                _
              %s1053 = sdiv.u32.pop %s1002, 12
              %s1054 = srem.u32.pop %s1002, 12
              %s1055 = smul.u32 %s1053, 12
              %s1056 = smul.u32 8, %s1055
              %s1057 = scalar_lea.vmem %s986, %s1056 [#allocation3]
              %s1058 = smul.u32 8, %s1055
              %s1059 = scalar_lea.vmem %s1001, %s1058
              // While loop
              $region68: #{aspp_forward.9} parent=59 // loop_pre_header
                _
              $region69: #{aspp_forward.9} parent=59 // loop_header
                %s1061 = sphi 0, %s1063
                %p1062 = scmp.ge.s32.totalorder %s1061, %s1054
                %s1066 = sphi 0, %s1073
                %s1067 = sphi %s1057, %s1076
                %s1068 = sphi %s1059, %s1077
              $region70: #{aspp_forward.9} parent=59 // loop_header_branch
                %1065 = sbr.rel (%p1062) target = $region74
              $region71: #{aspp_forward.9} parent=59 // loop_body
                %v1069 = vld [vmem:[%s1067] sm:$0xff]
                %1070 = vst [vmem:[%s1068] sm:$0xff] %v1069
                %s1071 = sadd.s32 1, %s1066
                %p1072 = scmp.ge.s32.totalorder %s1071, %s1054
                %s1073 = scalar_select %p1072, 0, %s1071
                %s1074 = smul.u32 %s1073, 8
                %s1075 = smul.u32 %s1073, 8
                %s1076 = scalar_lea.vmem %s1057, %s1074 [#allocation3]
                %s1077 = scalar_lea.vmem %s1059, %s1075
              $region72: #{aspp_forward.9} parent=59 // loop_footer
                %s1063 = sadd.s32 %s1061, 1
              $region73: #{aspp_forward.9} parent=59 // loop_footer_branch
                %1060 = sbr.rel target = $region69
              $region74: #{aspp_forward.9} parent=59 // loop_exit
                _
            $region60: #{aspp_forward.9} parent=51 // pred_fallthru
              _
          $region52: #{aspp_forward.9} parent=47 // pred_fallthru
            _
          %1149 = vnop
        $region48: #{aspp_forward.9} parent=35 // pred_fallthru
          _
      $region36: #{aspp_forward.9} parent=5 // pred_fallthru
        _
      %p1150 = scmp.le.s32.totalorder 2, %s10
      // Predicated region
      $region97: #{aspp_forward.9} parent=5 // pred_check
        %p1151 = pneg %p1150
      $region98: #{aspp_forward.9} parent=5 // pred_check_branch
        %1153 = sbr.rel (%p1151) target = $region100
      $region99: #{aspp_forward.9} parent=5 // pred_region
        %s1154 = ssub.s32 %s10, 2
        // Predicated region
        $region101: #{aspp_forward.9} parent=99 // pred_check
          %p1155 = pneg %p171
        $region102: #{aspp_forward.9} parent=99 // pred_check_branch
          %1157 = sbr.rel (%p1155) target = $region104
        $region103: #{aspp_forward.9} parent=99 // pred_region
          %s1158 = sand.u32 %s156, 1
          %s1159 = sand.u32 %s156, 1
          %s1160 = smul.addr %s1159, 96
          %s1161 = scalar_lea.vmem [#allocation3], %s1160
        $region104: #{aspp_forward.9} parent=99 // pred_fallthru
          _
      $region100: #{aspp_forward.9} parent=5 // pred_fallthru
        _
    $region6: #{aspp_forward.9} parent=1 // loop_footer
      %s14 = sadd.s32 1, %s10
    $region7: #{aspp_forward.9} parent=1 // loop_footer_branch
      %9 = sbr.rel target = $region3
    $region8: #{aspp_forward.9} parent=1 // loop_exit
      _

// kernel: aspp_forward.8
$region0: #{aspp_forward.8}
  #allocation0 [shape = 'u32[]', space=smem, size = 0x4, offset = 0x4, fixed_abs, tag = 'smem constant byte address 0x4 - core index']
  #allocation1 [shape = 'u32[144,128]{1,0:T(1,128)}', space=vmem, size = 0x12000, scoped, tag = 'internal scratch']
  #allocation2 [shape = 'f32[96,8]{1,0:T(8,128)}', space=vmem, size = 0xc000, scoped, tag = 'scratch operand']
  %s0 = inlined_call_operand.vmem [shape: f32[2,54,56,4], index: 0, kind: input, shape index: {}]
  %s1 = inlined_call_operand.vmem [shape: f32[3,3,4,8], index: 1, kind: input, shape index: {}]
  %s2 = inlined_call_operand.vmem [shape: f32[1,8], index: 2, kind: input, shape index: {}]
  %s3 = inlined_call_operand.vmem [shape: f32[1,8], index: 3, kind: input, shape index: {}]
  %s4 = inlined_call_operand.vmem [shape: f32[2,16,16,8], index: 4, kind: output, shape index: {}]
  %s5 = sld [smem:[#allocation0]]
  $region105: #{aspp_forward.8} parent=0
    _
  %s7 = ssub.s32 1, %s5
  %s8 = scalar_select 0, %s7, %s5
  $region1: #{aspp_forward.8} parent=0
    #allocation3 [shape = 'u8[98304]{0}', space=vmem, size = 0x18000, scoped, tag = 'output window, operand 0']
    loop: start=0, step=1, limit=20
    $region2: #{aspp_forward.8} parent=1 // loop_pre_header
      _
    $region3: #{aspp_forward.8} parent=1 // loop_header
      %s10 = sphi 0, %s14
      %p11 = scmp.ge.s32.totalorder %s10, 20
      %s17 = sphi 0, %s43
      %s18 = sphi 0, %s39
      %s19 = sphi 0, %s35
      %s20 = sphi 0, %s31
      %s21 = sphi 0, %s17
      %s22 = sphi 0, %s18
      %s23 = sphi 0, %s19
      %s24 = sphi 0, %s20
      %s25 = sphi 0, %s21
      %s26 = sphi 0, %s22
      %s27 = sphi 0, %s23
      %s28 = sphi 0, %s24
      %s56 = sphi 0, %s58
      %s59 = sphi 0, %s56
      %s60 = sphi 0, %s59
      %s76 = sphi 0, %s60
      %s84 = sphi 0, %s86
      %s87 = sphi 0, %s84
      %s88 = sphi 0, %s87
      %s104 = sphi 0, %s88
      %s108 = sphi 0, %s108
      %s110 = sphi 0, %s108
      %s111 = sphi 0, %s110
      %s125 = sphi 0, %s111
      %s129 = sphi 0, %s129
      %s131 = sphi 0, %s129
      %s132 = sphi 0, %s131
      %s146 = sphi 0, %s132
      %s154 = sphi 0, %s156
      %s157 = sphi 0, %s154
      %s158 = sphi 0, %s157
      %s174 = sphi 0, %s158
    $region4: #{aspp_forward.8} parent=1 // loop_header_branch
      %13 = sbr.rel (%p11) target = $region8
    $region5: #{aspp_forward.8} parent=1 // loop_body
      %s15 = ssub.s32 %s10, 1
      %s16 = ssub.s32 %s10, 2
      %s29 = sadd.s32 1, %s20
      %p30 = scmp.ge.s32.totalorder %s29, 1
      %s31 = scalar_select %p30, 0, %s29
      %s32 = sadd.s32 1, %s19
      %s33 = scalar_select %p30, %s32, %s19
      %p34 = scmp.ge.s32.totalorder %s33, 3
      %s35 = scalar_select %p34, 0, %s33
      %s36 = sadd.s32 1, %s18
      %s37 = scalar_select %p34, %s36, %s18
      %p38 = scmp.ge.s32.totalorder %s37, 3
      %s39 = scalar_select %p38, 0, %s37
      %s40 = sadd.s32 1, %s17
      %s41 = scalar_select %p38, %s40, %s17
      %p42 = scmp.ge.s32.totalorder %s41, 2
      %s43 = scalar_select %p42, 0, %s41
      %s44 = sadd.s32 %s18, 1
      %s45 = smul.u32 %s19, 2
      %s46 = sadd.s32 %s44, %s45
      %s47 = sadd.s32 %s39, 1
      %s48 = smul.u32 %s35, 2
      %s49 = sadd.s32 %s47, %s48
      %s50 = ssub.s32 %s17, %s43
      %s51 = ssub.s32 %s46, %s49
      %s52 = sor.u32 %s50, %s51
      %s53 = ssub.s32 %s20, %s31
      %s54 = sor.u32 %s52, %s53
      %p55 = scmp.eq.s32.totalorder %s54, 0
      %s57 = sadd.s32 %s56, 1
      %s58 = scalar_select %p55, %s56, %s57
      %p61 = pneg %p55
      %p62 = scmp.eq.s32.totalorder %s10, 17
      %p63 = por %p61, %p62
      %p64 = scmp.ne.s32.totalorder %s56, %s59
      %p65 = scmp.eq.s32.totalorder %s10, 0
      %p66 = por %p64, %p65
      %p67 = scmp.ne.s32.totalorder %s56, %s59
      %p68 = scmp.eq.s32.totalorder %s15, 17
      %p69 = por %p67, %p68
      %p70 = scmp.ne.s32.totalorder %s59, %s60
      %p71 = scmp.eq.s32.totalorder %s15, 0
      %p72 = por %p70, %p71
      %p73 = scmp.ne.s32.totalorder %s59, %s60
      %p74 = scmp.eq.s32.totalorder %s16, 17
      %p75 = por %p73, %p74
      %p77 = scmp.ne.s32.totalorder %s60, %s76
      %p78 = scmp.eq.s32.totalorder %s16, 0
      %p79 = por %p77, %p78
      %s80 = ssub.s32 %s19, %s35
      %s81 = ssub.s32 %s20, %s31
      %s82 = sor.u32 %s80, %s81
      %p83 = scmp.eq.s32.totalorder %s82, 0
      %s85 = sadd.s32 %s84, 1
      %s86 = scalar_select %p83, %s84, %s85
      %p89 = pneg %p83
      %p90 = scmp.eq.s32.totalorder %s10, 17
      %p91 = por %p89, %p90
      %p92 = scmp.ne.s32.totalorder %s84, %s87
      %p93 = scmp.eq.s32.totalorder %s10, 0
      %p94 = por %p92, %p93
      %p95 = scmp.ne.s32.totalorder %s84, %s87
      %p96 = scmp.eq.s32.totalorder %s15, 17
      %p97 = por %p95, %p96
      %p98 = scmp.ne.s32.totalorder %s87, %s88
      %p99 = scmp.eq.s32.totalorder %s15, 0
      %p100 = por %p98, %p99
      %p101 = scmp.ne.s32.totalorder %s87, %s88
      %p102 = scmp.eq.s32.totalorder %s16, 17
      %p103 = por %p101, %p102
      %p105 = scmp.ne.s32.totalorder %s88, %s104
      %p106 = scmp.eq.s32.totalorder %s16, 0
      %p107 = por %p105, %p106
      %s109 = sadd.s32 %s108, 1
      %p112 = scmp.eq.s32.totalorder %s10, 17
      %p113 = scmp.ne.s32.totalorder %s108, %s110
      %p114 = scmp.eq.s32.totalorder %s10, 0
      %p115 = por %p113, %p114
      %p116 = scmp.ne.s32.totalorder %s108, %s110
      %p117 = scmp.eq.s32.totalorder %s15, 17
      %p118 = por %p116, %p117
      %p119 = scmp.ne.s32.totalorder %s110, %s111
      %p120 = scmp.eq.s32.totalorder %s15, 0
      %p121 = por %p119, %p120
      %p122 = scmp.ne.s32.totalorder %s110, %s111
      %p123 = scmp.eq.s32.totalorder %s16, 17
      %p124 = por %p122, %p123
      %p126 = scmp.ne.s32.totalorder %s111, %s125
      %p127 = scmp.eq.s32.totalorder %s16, 0
      %p128 = por %p126, %p127
      %s130 = sadd.s32 %s129, 1
      %p133 = scmp.eq.s32.totalorder %s10, 17
      %p134 = scmp.ne.s32.totalorder %s129, %s131
      %p135 = scmp.eq.s32.totalorder %s10, 0
      %p136 = por %p134, %p135
      %p137 = scmp.ne.s32.totalorder %s129, %s131
      %p138 = scmp.eq.s32.totalorder %s15, 17
      %p139 = por %p137, %p138
      %p140 = scmp.ne.s32.totalorder %s131, %s132
      %p141 = scmp.eq.s32.totalorder %s15, 0
      %p142 = por %p140, %p141
      %p143 = scmp.ne.s32.totalorder %s131, %s132
      %p144 = scmp.eq.s32.totalorder %s16, 17
      %p145 = por %p143, %p144
      %p147 = scmp.ne.s32.totalorder %s132, %s146
      %p148 = scmp.eq.s32.totalorder %s16, 0
      %p149 = por %p147, %p148
      %s150 = ssub.s32 %s17, %s43
      %s151 = ssub.s32 %s18, %s39
      %s152 = sor.u32 %s150, %s151
      %p153 = scmp.eq.s32.totalorder %s152, 0
      %s155 = sadd.s32 %s154, 1
      %s156 = scalar_select %p153, %s154, %s155
      %p159 = pneg %p153
      %p160 = scmp.eq.s32.totalorder %s10, 17
      %p161 = por %p159, %p160
      %p162 = scmp.ne.s32.totalorder %s154, %s157
      %p163 = scmp.eq.s32.totalorder %s10, 0
      %p164 = por %p162, %p163
      %p165 = scmp.ne.s32.totalorder %s154, %s157
      %p166 = scmp.eq.s32.totalorder %s15, 17
      %p167 = por %p165, %p166
      %p168 = scmp.ne.s32.totalorder %s157, %s158
      %p169 = scmp.eq.s32.totalorder %s15, 0
      %p170 = por %p168, %p169
      %p171 = scmp.ne.s32.totalorder %s157, %s158
      %p172 = scmp.eq.s32.totalorder %s16, 17
      %p173 = por %p171, %p172
      %p175 = scmp.ne.s32.totalorder %s158, %s174
      %p176 = scmp.eq.s32.totalorder %s16, 0
      %p177 = por %p175, %p176
      %p178 = scmp.le.s32.totalorder 1, %s10
      %p179 = scmp.lt.s32.totalorder %s10, 19
      %p180 = pnand %p178, %p179
      %p181 = pneg %p180
      // Predicated region
      $region9: #{aspp_forward.8} parent=5 // pred_check
        _
      $region10: #{aspp_forward.8} parent=5 // pred_check_branch
        %183 = sbr.rel (%p180) target = $region12
      $region11: #{aspp_forward.8} parent=5 // pred_region
        %s184 = ssub.s32 %s10, 1
        // Predicated region
        $region13: #{aspp_forward.8} parent=11 // pred_check
          %p185 = pneg %p121
        $region14: #{aspp_forward.8} parent=11 // pred_check_branch
          %187 = sbr.rel (%p185) target = $region16
        $region15: #{aspp_forward.8} parent=11 // pred_region
          _
        $region16: #{aspp_forward.8} parent=11 // pred_fallthru
          _
        // Predicated region
        $region17: #{aspp_forward.8} parent=11 // pred_check
          %p188 = pneg %p142
        $region18: #{aspp_forward.8} parent=11 // pred_check_branch
          %190 = sbr.rel (%p188) target = $region20
        $region19: #{aspp_forward.8} parent=11 // pred_region
          _
        $region20: #{aspp_forward.8} parent=11 // pred_fallthru
          _
      $region12: #{aspp_forward.8} parent=5 // pred_fallthru
        _
      %p191 = scmp.lt.s32.totalorder %s10, 18
      // Predicated region
      $region21: #{aspp_forward.8} parent=5 // pred_check
        %p192 = pneg %p191
      $region22: #{aspp_forward.8} parent=5 // pred_check_branch
        %194 = sbr.rel (%p192) target = $region24
      $region23: #{aspp_forward.8} parent=5 // pred_region
        // Predicated region
        $region25: #{aspp_forward.8} parent=23 // pred_check
          %p195 = pneg %p66
        $region26: #{aspp_forward.8} parent=23 // pred_check_branch
          %197 = sbr.rel (%p195) target = $region28
        $region27: #{aspp_forward.8} parent=23 // pred_region
          %s198 = sadd.s32 %s18, 1
          %s199 = smul.u32 %s19, 2
          %s200 = sadd.s32 %s198, %s199
          %s201 = smul.u32 6, %s200
          %p202 = scmp.lt.s32.totalorder %s17, 1
          %s203 = scalar_select %p202, %s17, 1
          %p204 = scmp.lt.s32.totalorder %s201, 53
          %s205 = scalar_select %p204, %s201, 53
          %p206 = scmp.lt.s32.totalorder %s20, 0
          %s207 = scalar_select %p206, %s20, 0
          %s208 = smul.addr %s205, 7
          %s209 = sadd.s32 %s207, %s208
          %s210 = smul.addr %s203, 378
          %s211 = sadd.s32 %s209, %s210
          %s212 = smul.addr %s211, 8
          %s213 = scalar_lea.vmem %s0, %s212
          %s214 = sadd.s32 %s18, 1
          %s215 = smul.u32 %s19, 2
          %s216 = sadd.s32 %s214, %s215
          %s217 = smul.u32 6, %s216
        $region28: #{aspp_forward.8} parent=23 // pred_fallthru
          _
        // Predicated region
        $region29: #{aspp_forward.8} parent=23 // pred_check
          %p218 = pneg %p94
        $region30: #{aspp_forward.8} parent=23 // pred_check_branch
          %220 = sbr.rel (%p218) target = $region32
        $region31: #{aspp_forward.8} parent=23 // pred_region
          %p221 = scmp.lt.s32.totalorder %s19, 2
          %s222 = scalar_select %p221, %s19, 2
          %p223 = scmp.lt.s32.totalorder %s20, 0
          %s224 = scalar_select %p223, %s20, 0
          %s225 = smul.addr %s222, 3
          %s226 = sadd.s32 %s224, %s225
          %s227 = smul.addr %s226, 4
          %s228 = scalar_lea.vmem %s1, %s227
        $region32: #{aspp_forward.8} parent=23 // pred_fallthru
          _
      $region24: #{aspp_forward.8} parent=5 // pred_fallthru
        _
      %p229 = scmp.le.s32.totalorder 1, %s10
      %p230 = scmp.lt.s32.totalorder %s10, 19
      %p231 = pnand %p229, %p230
      %p232 = pneg %p231
      // Predicated region
      $region33: #{aspp_forward.8} parent=5 // pred_check
        _
      $region34: #{aspp_forward.8} parent=5 // pred_check_branch
        %234 = sbr.rel (%p231) target = $region36
      $region35: #{aspp_forward.8} parent=5 // pred_region
        %s235 = ssub.s32 %s10, 1
        %s236 = sadd.s32 %s22, 1
        %s237 = smul.u32 %s23, 2
        %s238 = sadd.s32 %s236, %s237
        %s239 = smul.u32 6, %s238
        %p240 = scmp.lt.s32.totalorder %s21, 1
        %s241 = scalar_select %p240, %s21, 1
        %p242 = scmp.lt.s32.totalorder %s239, 53
        %s243 = scalar_select %p242, %s239, 53
        %p244 = scmp.lt.s32.totalorder %s24, 0
        %s245 = scalar_select %p244, %s24, 0
        %s246 = smul.addr %s243, 7
        %s247 = sadd.s32 %s245, %s246
        %s248 = smul.addr %s241, 378
        %s249 = sadd.s32 %s247, %s248
        %s250 = smul.addr %s249, 8
        %s251 = scalar_lea.vmem %s0, %s250
        %p252 = pneg %p72
        %p253 = pneg %p69
        %p254 = scmp.lt.s32.totalorder %s23, 2
        %s255 = scalar_select %p254, %s23, 2
        %p256 = scmp.lt.s32.totalorder %s24, 0
        %s257 = scalar_select %p256, %s24, 0
        %s258 = smul.addr %s255, 3
        %s259 = sadd.s32 %s257, %s258
        %s260 = smul.addr %s259, 4
        %s261 = scalar_lea.vmem %s1, %s260
        %p262 = pneg %p100
        %p263 = pneg %p97
        %p264 = pneg %p121
        %p265 = pneg %p118
        %p266 = pneg %p142
        %p267 = pneg %p139
        %p268 = pneg %p170
        %p269 = pneg %p167
        %s270 = sand.u32 %s157, 1
        %s271 = sand.u32 %s157, 1
        %s272 = smul.addr %s271, 96
        %s273 = scalar_lea.vmem [#allocation3], %s272
        %s274 = sadd.s32 %s22, 1
        %s275 = smul.u32 %s23, 2
        %s276 = sadd.s32 %s274, %s275
        %s277 = smul.u32 6, %s276
        %p278 = scmp.lt.s32.totalorder %s21, 1
        %s279 = scalar_select %p278, %s21, 1
        %p280 = scmp.lt.s32.totalorder %s277, 53
        %s281 = scalar_select %p280, %s277, 53
        %p282 = scmp.lt.s32.totalorder %s24, 0
        %s283 = scalar_select %p282, %s24, 0
        %s284 = smul.addr %s281, 7
        %s285 = sadd.s32 %s283, %s284
        %s286 = smul.addr %s279, 378
        %s287 = sadd.s32 %s285, %s286
        %s288 = smul.addr %s287, 8
        %s289 = scalar_lea.vmem %s0, %s288
        %s290 = sadd.s32 %s22, 1
        %s291 = smul.u32 %s23, 2
        %s292 = sadd.s32 %s290, %s291
        %s293 = smul.u32 6, %s292
        %p294 = scmp.lt.s32.totalorder %s23, 2
        %s295 = scalar_select %p294, %s23, 2
        %p296 = scmp.lt.s32.totalorder %s24, 0
        %s297 = scalar_select %p296, %s24, 0
        %s298 = smul.addr %s295, 3
        %s299 = sadd.s32 %s297, %s298
        %s300 = smul.addr %s299, 4
        %s301 = scalar_lea.vmem %s1, %s300
        %s302 = smul.u32 6, %s22
        %s303 = ssub.s32 16, %s302
        %p304 = scmp.lt.s32.totalorder %s303, 6
        %s305 = scalar_select %p304, %s303, 6
        %s306 = smul.u32 128, %s305
        %s307 = smul.u32 %s306, 2
        %p308 = scmp.eq.s32.totalorder %s23, 0
        %p309 = scmp.eq.s32.totalorder %s24, 0
        %p310 = pnand %p308, %p309
        %p311 = pneg %p310
        // Predicated region
        $region37: #{aspp_forward.8} parent=35 // pred_check
          _
        $region38: #{aspp_forward.8} parent=35 // pred_check_branch
          %313 = sbr.rel (%p310) target = $region40
        $region39: #{aspp_forward.8} parent=35 // pred_region
          %vm314 = vcmask 64512
          %315 = vst.msk [vmem:[#allocation2] sm:$0xff] %vm314, 0.0
          %316 = vst.msk [vmem:[#allocation2 + $0x8] sm:$0xff] %vm314, 0.0
          %317 = vst.msk [vmem:[#allocation2 + $0x10] sm:$0xff] %vm314, 0.0
          %318 = vst.msk [vmem:[#allocation2 + $0x18] sm:$0xff] %vm314, 0.0
          %319 = vst.msk [vmem:[#allocation2 + $0x20] sm:$0xff] %vm314, 0.0
          %320 = vst.msk [vmem:[#allocation2 + $0x28] sm:$0xff] %vm314, 0.0
          %321 = vst.msk [vmem:[#allocation2 + $0x30] sm:$0xff] %vm314, 0.0
          %322 = vst.msk [vmem:[#allocation2 + $0x38] sm:$0xff] %vm314, 0.0
          %323 = vst.msk [vmem:[#allocation2 + $0x40] sm:$0xff] %vm314, 0.0
          %324 = vst.msk [vmem:[#allocation2 + $0x48] sm:$0xff] %vm314, 0.0
          %325 = vst.msk [vmem:[#allocation2 + $0x50] sm:$0xff] %vm314, 0.0
          %326 = vst.msk [vmem:[#allocation2 + $0x58] sm:$0xff] %vm314, 0.0
        $region40: #{aspp_forward.8} parent=35 // pred_fallthru
          _
        %v327 = vld [vmem:[%s289 + $0x6] sm:$0xff]
        %v328 = vld [vmem:[%s289 + $0xe] sm:$0xff]
        %v329 = vld [vmem:[%s289 + $0x3e] sm:$0xff]
        %v330 = vld [vmem:[%s289 + $0x46] sm:$0xff]
        %v331 = vld [vmem:[%s289 + $0x76] sm:$0xff]
        %v332 = vld [vmem:[%s289 + $0x7e] sm:$0xff]
        %v333 = vld [vmem:[%s289 + $0xae] sm:$0xff]
        %v334 = vld [vmem:[%s289 + $0xb6] sm:$0xff]
        %v335 = vld [vmem:[%s289 + $0xe6] sm:$0xff]
        %v336 = vld [vmem:[%s289 + $0xee] sm:$0xff]
        %v337 = vld [vmem:[%s289 + $0x11e] sm:$0xff]
        %v338 = vld [vmem:[%s289 + $0x126] sm:$0xff]
        %v339 = vld [vmem:[%s301] sm:$0xf]
        %v340 = vld [vmem:[%s289 + $0x12] sm:$0xff]
        %v341 = vld [vmem:[%s289 + $0x1a] sm:$0xff]
        %v342 = vld [vmem:[%s289 + $0x4a] sm:$0xff]
        %v343 = vld [vmem:[%s289 + $0x52] sm:$0xff]
        %v344 = vld [vmem:[%s289 + $0x82] sm:$0xff]
        %v345 = vld [vmem:[%s289 + $0x8a] sm:$0xff]
        %v346 = vld [vmem:[%s289 + $0xba] sm:$0xff]
        %v347 = vld [vmem:[%s289 + $0xc2] sm:$0xff]
        %v348 = vld [vmem:[%s289 + $0xf2] sm:$0xff]
        %v349 = vld [vmem:[%s289 + $0xfa] sm:$0xff]
        %v350 = vld [vmem:[%s289 + $0x12a] sm:$0xff]
        %v351 = vld [vmem:[%s289 + $0x132] sm:$0xff]
        %s352 = scalar_lea.vmem %s301, 4
        %v353 = vld [vmem:[%s352] sm:$0xf]
        %vm354 = vcmask 31744
        %v356 = vsel %vm354, %v340, 0
        %v359 = vsel %vm354, %v341, 0
        %v362 = vsel %vm354, %v342, 0
        %v365 = vsel %vm354, %v343, 0
        %v368 = vsel %vm354, %v344, 0
        %v371 = vsel %vm354, %v345, 0
        %v374 = vsel %vm354, %v346, 0
        %v377 = vsel %vm354, %v347, 0
        %v380 = vsel %vm354, %v348, 0
        %v383 = vsel %vm354, %v349, 0
        %v386 = vsel %vm354, %v350, 0
        %v389 = vsel %vm354, %v351, 0
        %vm391 = vcmask 1043456
        %v393 = vsel %vm391, %v353, 0
        %395 = vmatprep.subr.mxu0 0.0
        %396 = vmatpush1.msra.mxu0 %v393
        %397 = vmatprep.subr.mxu0 0.0
        %398 = vmatpush1.msra.mxu0 0.0
        %399 = vmatprep.subr.mxu0 0.0
        %400 = vmatpush1.msra.mxu0 0.0
        %401 = vmatprep.subr.mxu0 0.0
        %402 = vmatpush1.msra.mxu0 0.0
        %403 = vmatprep.subr.mxu0 0.0
        %404 = vmatpush1.msra.mxu0 0.0
        %405 = vmatprep.subr.mxu0 0.0
        %406 = vmatpush1.msra.mxu0 0.0
        %407 = vmatprep.subr.mxu0 0.0
        %408 = vmatpush1.msra.mxu0 0.0
        %409 = vmatprep.subr.mxu0 0.0
        %410 = vmatpush1.msra.mxu0 0.0
        %411 = vmatprep.subr.mxu0 0.0
        %412 = vmatpush1.msra.mxu0 0.0
        %413 = vmatprep.subr.mxu0 0.0
        %414 = vmatpush1.msra.mxu0 0.0
        %415 = vmatprep.subr.mxu0 0.0
        %416 = vmatpush1.msra.mxu0 0.0
        %417 = vmatprep.subr.mxu0 0.0
        %418 = vmatpush1.msra.mxu0 0.0
        %419 = vmatprep.subr.mxu0 0.0
        %420 = vmatpush1.msra.mxu0 0.0
        %421 = vmatprep.subr.mxu0 0.0
        %422 = vmatpush1.msra.mxu0 0.0
        %423 = vmatprep.subr.mxu0 0.0
        %424 = vmatpush1.msra.mxu0 0.0
        %425 = vmatprep.subr.mxu0 0.0
        %426 = vmatpush1.msra.mxu0 0.0
        %427 = vmatprep.subr.mxu0 0.0
        %428 = vmatpush1.msra.mxu0 0.0
        %429 = vmatprep.subr.mxu0 0.0
        %430 = vmatpush1.msra.mxu0 0.0
        %431 = vmatprep.subr.mxu0 0.0
        %432 = vmatpush1.msra.mxu0 0.0
        %433 = vmatprep.subr.mxu0 0.0
        %434 = vmatpush1.msra.mxu0 0.0
        %435 = vmatprep.subr.mxu0 0.0
        %436 = vmatpush1.msra.mxu0 0.0
        %437 = vmatprep.subr.mxu0 0.0
        %438 = vmatpush1.msra.mxu0 0.0
        %439 = vmatprep.subr.mxu0 0.0
        %440 = vmatpush1.msra.mxu0 0.0
        %441 = vmatprep.subr.mxu0 0.0
        %442 = vmatpush1.msra.mxu0 0.0
        %443 = vmatprep.subr.mxu0 0.0
        %444 = vmatpush1.msra.mxu0 0.0
        %445 = vmatprep.subr.mxu0 0.0
        %446 = vmatpush1.msra.mxu0 0.0
        %447 = vmatprep.subr.mxu0 0.0
        %448 = vmatpush1.msra.mxu0 0.0
        %449 = vmatprep.subr.mxu0 0.0
        %450 = vmatpush1.msra.mxu0 0.0
        %451 = vmatprep.subr.mxu0 0.0
        %452 = vmatpush1.msra.mxu0 0.0
        %453 = vmatprep.subr.mxu0 0.0
        %454 = vmatpush1.msra.mxu0 0.0
        %455 = vmatprep.subr.mxu0 0.0
        %456 = vmatpush1.msra.mxu0 0.0
        %457 = vmatprep.subr.mxu0 0.0
        %458 = vmatpush1.msra.mxu0 0.0
        %459 = vmatprep.mubr.f32.mxu0 0.0
        %460 = vmatmul.mubr.f32.gmra.mrb[0].mxu0 %v356
        %v461 = vpop.f32.mrb[0].mxu0
        %v462 = vadd.f32 0.0, %v461
        %v463 = vpop.f32.mrb[0].mxu0
        %464 = vmatprep.mubr.f32.mxu0 0.0
        %465 = vmatmul.mubr.f32.gmra.mrb[0].mxu0 %v359
        %v466 = vpop.f32.mrb[0].mxu0
        %v467 = vadd.f32 0.0, %v466
        %v468 = vpop.f32.mrb[0].mxu0
        %469 = vmatprep.mubr.f32.mxu0 0.0
        %470 = vmatmul.mubr.f32.gmra.mrb[0].mxu0 %v362
        %v471 = vpop.f32.mrb[0].mxu0
        %v472 = vadd.f32 0.0, %v471
        %v473 = vpop.f32.mrb[0].mxu0
        %474 = vmatprep.mubr.f32.mxu0 0.0
        %475 = vmatmul.mubr.f32.gmra.mrb[0].mxu0 %v365
        %v476 = vpop.f32.mrb[0].mxu0
        %v477 = vadd.f32 0.0, %v476
        %v478 = vpop.f32.mrb[0].mxu0
        %479 = vmatprep.mubr.f32.mxu0 0.0
        %480 = vmatmul.mubr.f32.gmra.mrb[0].mxu0 %v368
        %v481 = vpop.f32.mrb[0].mxu0
        %v482 = vadd.f32 0.0, %v481
        %v483 = vpop.f32.mrb[0].mxu0
        %484 = vmatprep.mubr.f32.mxu0 0.0
        %485 = vmatmul.mubr.f32.gmra.mrb[0].mxu0 %v371
        %v486 = vpop.f32.mrb[0].mxu0
        %v487 = vadd.f32 0.0, %v486
        %v488 = vpop.f32.mrb[0].mxu0
        %489 = vmatprep.mubr.f32.mxu0 0.0
        %490 = vmatmul.mubr.f32.gmra.mrb[0].mxu0 %v374
        %v491 = vpop.f32.mrb[0].mxu0
        %v492 = vadd.f32 0.0, %v491
        %v493 = vpop.f32.mrb[0].mxu0
        %494 = vmatprep.mubr.f32.mxu0 0.0
        %495 = vmatmul.mubr.f32.gmra.mrb[0].mxu0 %v377
        %v496 = vpop.f32.mrb[0].mxu0
        %v497 = vadd.f32 0.0, %v496
        %v498 = vpop.f32.mrb[0].mxu0
        %499 = vmatprep.mubr.f32.mxu0 0.0
        %500 = vmatmul.mubr.f32.gmra.mrb[0].mxu0 %v380
        %v501 = vpop.f32.mrb[0].mxu0
        %v502 = vadd.f32 0.0, %v501
        %v503 = vpop.f32.mrb[0].mxu0
        %504 = vmatprep.mubr.f32.mxu0 0.0
        %505 = vmatmul.mubr.f32.gmra.mrb[0].mxu0 %v383
        %v506 = vpop.f32.mrb[0].mxu0
        %v507 = vadd.f32 0.0, %v506
        %v508 = vpop.f32.mrb[0].mxu0
        %509 = vmatprep.mubr.f32.mxu0 0.0
        %510 = vmatmul.mubr.f32.gmra.mrb[0].mxu0 %v386
        %v511 = vpop.f32.mrb[0].mxu0
        %v512 = vadd.f32 0.0, %v511
        %v513 = vpop.f32.mrb[0].mxu0
        %514 = vmatprep.mubr.f32.mxu0 0.0
        %515 = vmatmul.mubr.f32.gmra.mrb[0].mxu0 %v389
        %v516 = vpop.f32.mrb[0].mxu0
        %v517 = vadd.f32 0.0, %v516
        %v518 = vpop.f32.mrb[0].mxu0
        %519 = vdwg.mxu0
        %v521 = vsel %vm354, %v327, 0
        %v524 = vsel %vm354, %v328, 0
        %v527 = vsel %vm354, %v329, 0
        %v530 = vsel %vm354, %v330, 0
        %v533 = vsel %vm354, %v331, 0
        %v536 = vsel %vm354, %v332, 0
        %v539 = vsel %vm354, %v333, 0
        %v542 = vsel %vm354, %v334, 0
        %v545 = vsel %vm354, %v335, 0
        %v548 = vsel %vm354, %v336, 0
        %v551 = vsel %vm354, %v337, 0
        %v554 = vsel %vm354, %v338, 0
        %v557 = vsel %vm391, %v339, 0
        %559 = vmatprep.subr.mxu0 0.0
        %560 = vmatpush1.msra.mxu0 %v557
        %561 = vmatprep.subr.mxu0 0.0
        %562 = vmatpush1.msra.mxu0 0.0
        %563 = vmatprep.subr.mxu0 0.0
        %564 = vmatpush1.msra.mxu0 0.0
        %565 = vmatprep.subr.mxu0 0.0
        %566 = vmatpush1.msra.mxu0 0.0
        %567 = vmatprep.subr.mxu0 0.0
        %568 = vmatpush1.msra.mxu0 0.0
        %569 = vmatprep.subr.mxu0 0.0
        %570 = vmatpush1.msra.mxu0 0.0
        %571 = vmatprep.subr.mxu0 0.0
        %572 = vmatpush1.msra.mxu0 0.0
        %573 = vmatprep.subr.mxu0 0.0
        %574 = vmatpush1.msra.mxu0 0.0
        %575 = vmatprep.subr.mxu0 0.0
        %576 = vmatpush1.msra.mxu0 0.0
        %577 = vmatprep.subr.mxu0 0.0
        %578 = vmatpush1.msra.mxu0 0.0
        %579 = vmatprep.subr.mxu0 0.0
        %580 = vmatpush1.msra.mxu0 0.0
        %581 = vmatprep.subr.mxu0 0.0
        %582 = vmatpush1.msra.mxu0 0.0
        %583 = vmatprep.subr.mxu0 0.0
        %584 = vmatpush1.msra.mxu0 0.0
        %585 = vmatprep.subr.mxu0 0.0
        %586 = vmatpush1.msra.mxu0 0.0
        %587 = vmatprep.subr.mxu0 0.0
        %588 = vmatpush1.msra.mxu0 0.0
        %589 = vmatprep.subr.mxu0 0.0
        %590 = vmatpush1.msra.mxu0 0.0
        %591 = vmatprep.subr.mxu0 0.0
        %592 = vmatpush1.msra.mxu0 0.0
        %593 = vmatprep.subr.mxu0 0.0
        %594 = vmatpush1.msra.mxu0 0.0
        %595 = vmatprep.subr.mxu0 0.0
        %596 = vmatpush1.msra.mxu0 0.0
        %597 = vmatprep.subr.mxu0 0.0
        %598 = vmatpush1.msra.mxu0 0.0
        %599 = vmatprep.subr.mxu0 0.0
        %600 = vmatpush1.msra.mxu0 0.0
        %601 = vmatprep.subr.mxu0 0.0
        %602 = vmatpush1.msra.mxu0 0.0
        %603 = vmatprep.subr.mxu0 0.0
        %604 = vmatpush1.msra.mxu0 0.0
        %605 = vmatprep.subr.mxu0 0.0
        %606 = vmatpush1.msra.mxu0 0.0
        %607 = vmatprep.subr.mxu0 0.0
        %608 = vmatpush1.msra.mxu0 0.0
        %609 = vmatprep.subr.mxu0 0.0
        %610 = vmatpush1.msra.mxu0 0.0
        %611 = vmatprep.subr.mxu0 0.0
        %612 = vmatpush1.msra.mxu0 0.0
        %613 = vmatprep.subr.mxu0 0.0
        %614 = vmatpush1.msra.mxu0 0.0
        %615 = vmatprep.subr.mxu0 0.0
        %616 = vmatpush1.msra.mxu0 0.0
        %617 = vmatprep.subr.mxu0 0.0
        %618 = vmatpush1.msra.mxu0 0.0
        %619 = vmatprep.subr.mxu0 0.0
        %620 = vmatpush1.msra.mxu0 0.0
        %621 = vmatprep.subr.mxu0 0.0
        %622 = vmatpush1.msra.mxu0 0.0
        %623 = vmatprep.mubr.f32.mxu0 0.0
        %624 = vmatmul.mubr.f32.gmra.mrb[0].mxu0 %v521
        %v625 = vpop.f32.mrb[0].mxu0
        %v626 = vadd.f32 %v462, %v625
        %v627 = vpop.f32.mrb[0].mxu0
        %628 = vmatprep.mubr.f32.mxu0 0.0
        %629 = vmatmul.mubr.f32.gmra.mrb[0].mxu0 %v524
        %v630 = vpop.f32.mrb[0].mxu0
        %v631 = vadd.f32 %v467, %v630
        %v632 = vpop.f32.mrb[0].mxu0
        %633 = vmatprep.mubr.f32.mxu0 0.0
        %634 = vmatmul.mubr.f32.gmra.mrb[0].mxu0 %v527
        %v635 = vpop.f32.mrb[0].mxu0
        %v636 = vadd.f32 %v472, %v635
        %v637 = vpop.f32.mrb[0].mxu0
        %638 = vmatprep.mubr.f32.mxu0 0.0
        %639 = vmatmul.mubr.f32.gmra.mrb[0].mxu0 %v530
        %v640 = vpop.f32.mrb[0].mxu0
        %v641 = vadd.f32 %v477, %v640
        %v642 = vpop.f32.mrb[0].mxu0
        %643 = vmatprep.mubr.f32.mxu0 0.0
        %644 = vmatmul.mubr.f32.gmra.mrb[0].mxu0 %v533
        %v645 = vpop.f32.mrb[0].mxu0
        %v646 = vadd.f32 %v482, %v645
        %v647 = vpop.f32.mrb[0].mxu0
        %648 = vmatprep.mubr.f32.mxu0 0.0
        %649 = vmatmul.mubr.f32.gmra.mrb[0].mxu0 %v536
        %v650 = vpop.f32.mrb[0].mxu0
        %v651 = vadd.f32 %v487, %v650
        %v652 = vpop.f32.mrb[0].mxu0
        %653 = vmatprep.mubr.f32.mxu0 0.0
        %654 = vmatmul.mubr.f32.gmra.mrb[0].mxu0 %v539
        %v655 = vpop.f32.mrb[0].mxu0
        %v656 = vadd.f32 %v492, %v655
        %v657 = vpop.f32.mrb[0].mxu0
        %658 = vmatprep.mubr.f32.mxu0 0.0
        %659 = vmatmul.mubr.f32.gmra.mrb[0].mxu0 %v542
        %v660 = vpop.f32.mrb[0].mxu0
        %v661 = vadd.f32 %v497, %v660
        %v662 = vpop.f32.mrb[0].mxu0
        %663 = vmatprep.mubr.f32.mxu0 0.0
        %664 = vmatmul.mubr.f32.gmra.mrb[0].mxu0 %v545
        %v665 = vpop.f32.mrb[0].mxu0
        %v666 = vadd.f32 %v502, %v665
        %v667 = vpop.f32.mrb[0].mxu0
        %668 = vmatprep.mubr.f32.mxu0 0.0
        %669 = vmatmul.mubr.f32.gmra.mrb[0].mxu0 %v548
        %v670 = vpop.f32.mrb[0].mxu0
        %v671 = vadd.f32 %v507, %v670
        %v672 = vpop.f32.mrb[0].mxu0
        %673 = vmatprep.mubr.f32.mxu0 0.0
        %674 = vmatmul.mubr.f32.gmra.mrb[0].mxu0 %v551
        %v675 = vpop.f32.mrb[0].mxu0
        %v676 = vadd.f32 %v512, %v675
        %v677 = vpop.f32.mrb[0].mxu0
        %678 = vmatprep.mubr.f32.mxu0 0.0
        %679 = vmatmul.mubr.f32.gmra.mrb[0].mxu0 %v554
        %v680 = vpop.f32.mrb[0].mxu0
        %v681 = vadd.f32 %v517, %v680
        %v682 = vpop.f32.mrb[0].mxu0
        %683 = vdwg.mxu0
        %v684 = vld [vmem:[%s289 + $0x1e] sm:$0xff]
        %v685 = vld [vmem:[%s289 + $0x26] sm:$0xff]
        %v686 = vld [vmem:[%s289 + $0x56] sm:$0xff]
        %v687 = vld [vmem:[%s289 + $0x5e] sm:$0xff]
        %v688 = vld [vmem:[%s289 + $0x8e] sm:$0xff]
        %v689 = vld [vmem:[%s289 + $0x96] sm:$0xff]
        %v690 = vld [vmem:[%s289 + $0xc6] sm:$0xff]
        %v691 = vld [vmem:[%s289 + $0xce] sm:$0xff]
        %v692 = vld [vmem:[%s289 + $0xfe] sm:$0xff]
        %v693 = vld [vmem:[%s289 + $0x106] sm:$0xff]
        %v694 = vld [vmem:[%s289 + $0x136] sm:$0xff]
        %v695 = vld [vmem:[%s289 + $0x13e] sm:$0xff]
        %s696 = scalar_lea.vmem %s301, 8
        %v697 = vld [vmem:[%s696] sm:$0xf]
        %v699 = vsel %vm354, %v684, 0
        %v702 = vsel %vm354, %v685, 0
        %v705 = vsel %vm354, %v686, 0
        %v708 = vsel %vm354, %v687, 0
        %v711 = vsel %vm354, %v688, 0
        %v714 = vsel %vm354, %v689, 0
        %v717 = vsel %vm354, %v690, 0
        %v720 = vsel %vm354, %v691, 0
        %v723 = vsel %vm354, %v692, 0
        %v726 = vsel %vm354, %v693, 0
        %v729 = vsel %vm354, %v694, 0
        %v732 = vsel %vm354, %v695, 0
        %v735 = vsel %vm391, %v697, 0
        %737 = vmatprep.subr.mxu0 0.0
        %738 = vmatpush1.msra.mxu0 %v735
        %739 = vmatprep.subr.mxu0 0.0
        %740 = vmatpush1.msra.mxu0 0.0
        %741 = vmatprep.subr.mxu0 0.0
        %742 = vmatpush1.msra.mxu0 0.0
        %743 = vmatprep.subr.mxu0 0.0
        %744 = vmatpush1.msra.mxu0 0.0
        %745 = vmatprep.subr.mxu0 0.0
        %746 = vmatpush1.msra.mxu0 0.0
        %747 = vmatprep.subr.mxu0 0.0
        %748 = vmatpush1.msra.mxu0 0.0
        %749 = vmatprep.subr.mxu0 0.0
        %750 = vmatpush1.msra.mxu0 0.0
        %751 = vmatprep.subr.mxu0 0.0
        %752 = vmatpush1.msra.mxu0 0.0
        %753 = vmatprep.subr.mxu0 0.0
        %754 = vmatpush1.msra.mxu0 0.0
        %755 = vmatprep.subr.mxu0 0.0
        %756 = vmatpush1.msra.mxu0 0.0
        %757 = vmatprep.subr.mxu0 0.0
        %758 = vmatpush1.msra.mxu0 0.0
        %759 = vmatprep.subr.mxu0 0.0
        %760 = vmatpush1.msra.mxu0 0.0
        %761 = vmatprep.subr.mxu0 0.0
        %762 = vmatpush1.msra.mxu0 0.0
        %763 = vmatprep.subr.mxu0 0.0
        %764 = vmatpush1.msra.mxu0 0.0
        %765 = vmatprep.subr.mxu0 0.0
        %766 = vmatpush1.msra.mxu0 0.0
        %767 = vmatprep.subr.mxu0 0.0
        %768 = vmatpush1.msra.mxu0 0.0
        %769 = vmatprep.subr.mxu0 0.0
        %770 = vmatpush1.msra.mxu0 0.0
        %771 = vmatprep.subr.mxu0 0.0
        %772 = vmatpush1.msra.mxu0 0.0
        %773 = vmatprep.subr.mxu0 0.0
        %774 = vmatpush1.msra.mxu0 0.0
        %775 = vmatprep.subr.mxu0 0.0
        %776 = vmatpush1.msra.mxu0 0.0
        %777 = vmatprep.subr.mxu0 0.0
        %778 = vmatpush1.msra.mxu0 0.0
        %779 = vmatprep.subr.mxu0 0.0
        %780 = vmatpush1.msra.mxu0 0.0
        %781 = vmatprep.subr.mxu0 0.0
        %782 = vmatpush1.msra.mxu0 0.0
        %783 = vmatprep.subr.mxu0 0.0
        %784 = vmatpush1.msra.mxu0 0.0
        %785 = vmatprep.subr.mxu0 0.0
        %786 = vmatpush1.msra.mxu0 0.0
        %787 = vmatprep.subr.mxu0 0.0
        %788 = vmatpush1.msra.mxu0 0.0
        %789 = vmatprep.subr.mxu0 0.0
        %790 = vmatpush1.msra.mxu0 0.0
        %791 = vmatprep.subr.mxu0 0.0
        %792 = vmatpush1.msra.mxu0 0.0
        %793 = vmatprep.subr.mxu0 0.0
        %794 = vmatpush1.msra.mxu0 0.0
        %795 = vmatprep.subr.mxu0 0.0
        %796 = vmatpush1.msra.mxu0 0.0
        %797 = vmatprep.subr.mxu0 0.0
        %798 = vmatpush1.msra.mxu0 0.0
        %799 = vmatprep.subr.mxu0 0.0
        %800 = vmatpush1.msra.mxu0 0.0
        %801 = vmatprep.mubr.f32.mxu0 0.0
        %802 = vmatmul.mubr.f32.gmra.mrb[0].mxu0 %v699
        %v803 = vpop.f32.mrb[0].mxu0
        %v804 = vadd.f32 0.0, %v803
        %v805 = vpop.f32.mrb[0].mxu0
        %806 = vmatprep.mubr.f32.mxu0 0.0
        %807 = vmatmul.mubr.f32.gmra.mrb[0].mxu0 %v702
        %v808 = vpop.f32.mrb[0].mxu0
        %v809 = vadd.f32 0.0, %v808
        %v810 = vpop.f32.mrb[0].mxu0
        %811 = vmatprep.mubr.f32.mxu0 0.0
        %812 = vmatmul.mubr.f32.gmra.mrb[0].mxu0 %v705
        %v813 = vpop.f32.mrb[0].mxu0
        %v814 = vadd.f32 0.0, %v813
        %v815 = vpop.f32.mrb[0].mxu0
        %816 = vmatprep.mubr.f32.mxu0 0.0
        %817 = vmatmul.mubr.f32.gmra.mrb[0].mxu0 %v708
        %v818 = vpop.f32.mrb[0].mxu0
        %v819 = vadd.f32 0.0, %v818
        %v820 = vpop.f32.mrb[0].mxu0
        %821 = vmatprep.mubr.f32.mxu0 0.0
        %822 = vmatmul.mubr.f32.gmra.mrb[0].mxu0 %v711
        %v823 = vpop.f32.mrb[0].mxu0
        %v824 = vadd.f32 0.0, %v823
        %v825 = vpop.f32.mrb[0].mxu0
        %826 = vmatprep.mubr.f32.mxu0 0.0
        %827 = vmatmul.mubr.f32.gmra.mrb[0].mxu0 %v714
        %v828 = vpop.f32.mrb[0].mxu0
        %v829 = vadd.f32 0.0, %v828
        %v830 = vpop.f32.mrb[0].mxu0
        %831 = vmatprep.mubr.f32.mxu0 0.0
        %832 = vmatmul.mubr.f32.gmra.mrb[0].mxu0 %v717
        %v833 = vpop.f32.mrb[0].mxu0
        %v834 = vadd.f32 0.0, %v833
        %v835 = vpop.f32.mrb[0].mxu0
        %836 = vmatprep.mubr.f32.mxu0 0.0
        %837 = vmatmul.mubr.f32.gmra.mrb[0].mxu0 %v720
        %v838 = vpop.f32.mrb[0].mxu0
        %v839 = vadd.f32 0.0, %v838
        %v840 = vpop.f32.mrb[0].mxu0
        %841 = vmatprep.mubr.f32.mxu0 0.0
        %842 = vmatmul.mubr.f32.gmra.mrb[0].mxu0 %v723
        %v843 = vpop.f32.mrb[0].mxu0
        %v844 = vadd.f32 0.0, %v843
        %v845 = vpop.f32.mrb[0].mxu0
        %846 = vmatprep.mubr.f32.mxu0 0.0
        %847 = vmatmul.mubr.f32.gmra.mrb[0].mxu0 %v726
        %v848 = vpop.f32.mrb[0].mxu0
        %v849 = vadd.f32 0.0, %v848
        %v850 = vpop.f32.mrb[0].mxu0
        %851 = vmatprep.mubr.f32.mxu0 0.0
        %852 = vmatmul.mubr.f32.gmra.mrb[0].mxu0 %v729
        %v853 = vpop.f32.mrb[0].mxu0
        %v854 = vadd.f32 0.0, %v853
        %v855 = vpop.f32.mrb[0].mxu0
        %856 = vmatprep.mubr.f32.mxu0 0.0
        %857 = vmatmul.mubr.f32.gmra.mrb[0].mxu0 %v732
        %v858 = vpop.f32.mrb[0].mxu0
        %v859 = vadd.f32 0.0, %v858
        %v860 = vpop.f32.mrb[0].mxu0
        %861 = vdwg.mxu0
        %v862 = vadd.f32 %v626, %v804
        %v863 = vadd.f32 %v631, %v809
        %v864 = vadd.f32 %v636, %v814
        %v865 = vadd.f32 %v641, %v819
        %v866 = vadd.f32 %v646, %v824
        %v867 = vadd.f32 %v651, %v829
        %v868 = vadd.f32 %v656, %v834
        %v869 = vadd.f32 %v661, %v839
        %v870 = vadd.f32 %v666, %v844
        %v871 = vadd.f32 %v671, %v849
        %v872 = vadd.f32 %v676, %v854
        %v873 = vadd.f32 %v681, %v859
        %v874 = vld [vmem:[#allocation2] sm:$0xff]
        %v875 = vld [vmem:[#allocation2 + $0x8] sm:$0xff]
        %v876 = vld [vmem:[#allocation2 + $0x10] sm:$0xff]
        %v877 = vld [vmem:[#allocation2 + $0x18] sm:$0xff]
        %v878 = vld [vmem:[#allocation2 + $0x20] sm:$0xff]
        %v879 = vld [vmem:[#allocation2 + $0x28] sm:$0xff]
        %v880 = vld [vmem:[#allocation2 + $0x30] sm:$0xff]
        %v881 = vld [vmem:[#allocation2 + $0x38] sm:$0xff]
        %v882 = vld [vmem:[#allocation2 + $0x40] sm:$0xff]
        %v883 = vld [vmem:[#allocation2 + $0x48] sm:$0xff]
        %v884 = vld [vmem:[#allocation2 + $0x50] sm:$0xff]
        %v885 = vld [vmem:[#allocation2 + $0x58] sm:$0xff]
        %v886 = vadd.f32 %v874, %v862
        %v887 = vadd.f32 %v875, %v863
        %v888 = vadd.f32 %v876, %v864
        %v889 = vadd.f32 %v877, %v865
        %v890 = vadd.f32 %v878, %v866
        %v891 = vadd.f32 %v879, %v867
        %v892 = vadd.f32 %v880, %v868
        %v893 = vadd.f32 %v881, %v869
        %v894 = vadd.f32 %v882, %v870
        %v895 = vadd.f32 %v883, %v871
        %v896 = vadd.f32 %v884, %v872
        %v897 = vadd.f32 %v885, %v873
        %vm898 = vcmask 64512
        %899 = vst.msk [vmem:[#allocation2] sm:$0xff] %vm898, %v886
        %900 = vst.msk [vmem:[#allocation2 + $0x8] sm:$0xff] %vm898, %v887
        %901 = vst.msk [vmem:[#allocation2 + $0x10] sm:$0xff] %vm898, %v888
        %902 = vst.msk [vmem:[#allocation2 + $0x18] sm:$0xff] %vm898, %v889
        %903 = vst.msk [vmem:[#allocation2 + $0x20] sm:$0xff] %vm898, %v890
        %904 = vst.msk [vmem:[#allocation2 + $0x28] sm:$0xff] %vm898, %v891
        %905 = vst.msk [vmem:[#allocation2 + $0x30] sm:$0xff] %vm898, %v892
        %906 = vst.msk [vmem:[#allocation2 + $0x38] sm:$0xff] %vm898, %v893
        %907 = vst.msk [vmem:[#allocation2 + $0x40] sm:$0xff] %vm898, %v894
        %908 = vst.msk [vmem:[#allocation2 + $0x48] sm:$0xff] %vm898, %v895
        %909 = vst.msk [vmem:[#allocation2 + $0x50] sm:$0xff] %vm898, %v896
        %910 = vst.msk [vmem:[#allocation2 + $0x58] sm:$0xff] %vm898, %v897
        %p911 = scmp.eq.s32.totalorder %s23, 2
        %p912 = pnand %p911, %p309
        %p913 = pneg %p912
        // Predicated region
        $region41: #{aspp_forward.8} parent=35 // pred_check
          _
        $region42: #{aspp_forward.8} parent=35 // pred_check_branch
          %915 = sbr.rel (%p912) target = $region44
        $region43: #{aspp_forward.8} parent=35 // pred_region
          %v916 = vld [vmem:[#allocation2] sm:$0xff]
          %v917 = vld [vmem:[#allocation2 + $0x8] sm:$0xff]
          %v918 = vld [vmem:[#allocation2 + $0x10] sm:$0xff]
          %v919 = vld [vmem:[#allocation2 + $0x18] sm:$0xff]
          %v920 = vld [vmem:[#allocation2 + $0x20] sm:$0xff]
          %v921 = vld [vmem:[#allocation2 + $0x28] sm:$0xff]
          %v922 = vld [vmem:[#allocation2 + $0x30] sm:$0xff]
          %v923 = vld [vmem:[#allocation2 + $0x38] sm:$0xff]
          %v924 = vld [vmem:[#allocation2 + $0x40] sm:$0xff]
          %v925 = vld [vmem:[#allocation2 + $0x48] sm:$0xff]
          %v926 = vld [vmem:[#allocation2 + $0x50] sm:$0xff]
          %v927 = vld [vmem:[#allocation2 + $0x58] sm:$0xff]
          %v928 = vld [vmem:[%s2] sm:$0x1]
          %v930 = vlaneseq
          %v931 = vshrl.u32 %v930, 7
          %v932 = vsub.s32 0, %v931
          %v933 = vrot.slane %v928, %v932
          %v935 = vmul.f32 %v916, %v933
          %v936 = vmul.f32 %v917, %v933
          %v937 = vmul.f32 %v918, %v933
          %v938 = vmul.f32 %v919, %v933
          %v939 = vmul.f32 %v920, %v933
          %v940 = vmul.f32 %v921, %v933
          %v941 = vmul.f32 %v922, %v933
          %v942 = vmul.f32 %v923, %v933
          %v943 = vmul.f32 %v924, %v933
          %v944 = vmul.f32 %v925, %v933
          %v945 = vmul.f32 %v926, %v933
          %v946 = vmul.f32 %v927, %v933
          %v947 = vld [vmem:[%s3] sm:$0x1]
          %v949 = vlaneseq
          %v950 = vshrl.u32 %v949, 7
          %v951 = vsub.s32 0, %v950
          %v952 = vrot.slane %v947, %v951
          %v954 = vadd.f32 %v935, %v952
          %v955 = vadd.f32 %v936, %v952
          %v956 = vadd.f32 %v937, %v952
          %v957 = vadd.f32 %v938, %v952
          %v958 = vadd.f32 %v939, %v952
          %v959 = vadd.f32 %v940, %v952
          %v960 = vadd.f32 %v941, %v952
          %v961 = vadd.f32 %v942, %v952
          %v962 = vadd.f32 %v943, %v952
          %v963 = vadd.f32 %v944, %v952
          %v964 = vadd.f32 %v945, %v952
          %v965 = vadd.f32 %v946, %v952
          %v966 = vmax.f32 %v954, 0.0
          %v967 = vmax.f32 %v955, 0.0
          %v968 = vmax.f32 %v956, 0.0
          %v969 = vmax.f32 %v957, 0.0
          %v970 = vmax.f32 %v958, 0.0
          %v971 = vmax.f32 %v959, 0.0
          %v972 = vmax.f32 %v960, 0.0
          %v973 = vmax.f32 %v961, 0.0
          %v974 = vmax.f32 %v962, 0.0
          %v975 = vmax.f32 %v963, 0.0
          %v976 = vmax.f32 %v964, 0.0
          %v977 = vmax.f32 %v965, 0.0
          %978 = vst.msk [vmem:[%s273] sm:$0xff] %vm898, %v966
          %979 = vst.msk [vmem:[%s273 + $0x8] sm:$0xff] %vm898, %v967
          %980 = vst.msk [vmem:[%s273 + $0x10] sm:$0xff] %vm898, %v968
          %981 = vst.msk [vmem:[%s273 + $0x18] sm:$0xff] %vm898, %v969
          %982 = vst.msk [vmem:[%s273 + $0x20] sm:$0xff] %vm898, %v970
          %983 = vst.msk [vmem:[%s273 + $0x28] sm:$0xff] %vm898, %v971
          %984 = vst.msk [vmem:[%s273 + $0x30] sm:$0xff] %vm898, %v972
          %985 = vst.msk [vmem:[%s273 + $0x38] sm:$0xff] %vm898, %v973
          %986 = vst.msk [vmem:[%s273 + $0x40] sm:$0xff] %vm898, %v974
          %987 = vst.msk [vmem:[%s273 + $0x48] sm:$0xff] %vm898, %v975
          %988 = vst.msk [vmem:[%s273 + $0x50] sm:$0xff] %vm898, %v976
          %989 = vst.msk [vmem:[%s273 + $0x58] sm:$0xff] %vm898, %v977
        $region44: #{aspp_forward.8} parent=35 // pred_fallthru
          _
        %s990 = sand.u32 %s157, 1
        %s991 = sand.u32 %s157, 1
        %s992 = smul.addr %s991, 96
        %s993 = scalar_lea.vmem [#allocation3], %s992
        // Predicated region
        $region45: #{aspp_forward.8} parent=35 // pred_check
          %p994 = pneg %p167
        $region46: #{aspp_forward.8} parent=35 // pred_check_branch
          %996 = sbr.rel (%p994) target = $region48
        $region47: #{aspp_forward.8} parent=35 // pred_region
          %s997 = smul.u32 6, %s22
          %s998 = ssub.s32 16, %s997
          %p999 = scmp.lt.s32.totalorder %s998, 6
          %s1000 = scalar_select %p999, %s998, 6
          %s1001 = smul.u32 128, %s1000
          %s1002 = smul.u32 %s1001, 2
          %p1003 = scmp.ne.s32.totalorder 0, %s1002
          %s1004 = smul.addr %s997, 2
          %s1005 = smul.addr %s21, 32
          %s1006 = sadd.s32 %s1004, %s1005
          %s1007 = smul.addr %s1006, 8
          %s1008 = scalar_lea.vmem %s4, %s1007
          %s1009 = smul.u32 %s1000, 2
          // Predicated region
          $region49: #{aspp_forward.8} parent=47 // pred_check
            %p1010 = pneg %p1003
          $region50: #{aspp_forward.8} parent=47 // pred_check_branch
            %1012 = sbr.rel (%p1010) target = $region52
          $region51: #{aspp_forward.8} parent=47 // pred_region
            // Predicated region
            $region53: #{aspp_forward.8} parent=51 // pred_check
              _
            $region54: #{aspp_forward.8} parent=51 // pred_check_branch
              %1014 = sbr.rel (0) target = $region56
            $region55: #{aspp_forward.8} parent=51 // pred_region
              // Predicated region
              $region75: #{aspp_forward.8} parent=55 // pred_check
                _
              $region76: #{aspp_forward.8} parent=55 // pred_check_branch
                %1086 = sbr.rel (0) target = $region78
              $region77: #{aspp_forward.8} parent=55 // pred_region
                %s1087 = sdiv.u32.pop %s1009, 12
                %s1088 = srem.u32.pop %s1009, 12
                // While loop
                $region79: #{aspp_forward.8} parent=77 // loop_pre_header
                  _
                $region80: #{aspp_forward.8} parent=77 // loop_header
                  %s1090 = sphi 0, %s1092
                  %p1091 = scmp.ge.s32.totalorder %s1090, %s1087
                  %s1095 = sphi 0, %s1124
                  %s1096 = sphi %s993, %s1127
                  %s1097 = sphi %s1008, %s1128
                $region81: #{aspp_forward.8} parent=77 // loop_header_branch
                  %1094 = sbr.rel (%p1091) target = $region85
                $region82: #{aspp_forward.8} parent=77 // loop_body
                  %v1098 = vld [vmem:[%s1096] sm:$0xff]
                  %1099 = vst [vmem:[%s1097] sm:$0xff] %v1098
                  %v1100 = vld [vmem:[%s1096 + $0x8] sm:$0xff]
                  %1101 = vst [vmem:[%s1097 + $0x8] sm:$0xff] %v1100
                  %v1102 = vld [vmem:[%s1096 + $0x10] sm:$0xff]
                  %1103 = vst [vmem:[%s1097 + $0x10] sm:$0xff] %v1102
                  %v1104 = vld [vmem:[%s1096 + $0x18] sm:$0xff]
                  %1105 = vst [vmem:[%s1097 + $0x18] sm:$0xff] %v1104
                  %v1106 = vld [vmem:[%s1096 + $0x20] sm:$0xff]
                  %1107 = vst [vmem:[%s1097 + $0x20] sm:$0xff] %v1106
                  %v1108 = vld [vmem:[%s1096 + $0x28] sm:$0xff]
                  %1109 = vst [vmem:[%s1097 + $0x28] sm:$0xff] %v1108
                  %v1110 = vld [vmem:[%s1096 + $0x30] sm:$0xff]
                  %1111 = vst [vmem:[%s1097 + $0x30] sm:$0xff] %v1110
                  %v1112 = vld [vmem:[%s1096 + $0x38] sm:$0xff]
                  %1113 = vst [vmem:[%s1097 + $0x38] sm:$0xff] %v1112
                  %v1114 = vld [vmem:[%s1096 + $0x40] sm:$0xff]
                  %1115 = vst [vmem:[%s1097 + $0x40] sm:$0xff] %v1114
                  %v1116 = vld [vmem:[%s1096 + $0x48] sm:$0xff]
                  %1117 = vst [vmem:[%s1097 + $0x48] sm:$0xff] %v1116
                  %v1118 = vld [vmem:[%s1096 + $0x50] sm:$0xff]
                  %1119 = vst [vmem:[%s1097 + $0x50] sm:$0xff] %v1118
                  %v1120 = vld [vmem:[%s1096 + $0x58] sm:$0xff]
                  %1121 = vst [vmem:[%s1097 + $0x58] sm:$0xff] %v1120
                  %s1122 = sadd.s32 1, %s1095
                  %p1123 = scmp.ge.s32.totalorder %s1122, %s1087
                  %s1124 = scalar_select %p1123, 0, %s1122
                  %s1125 = smul.u32 %s1124, 96
                  %s1126 = smul.u32 %s1124, 96
                  %s1127 = scalar_lea.vmem %s993, %s1125 [#allocation3]
                  %s1128 = scalar_lea.vmem %s1008, %s1126
                $region83: #{aspp_forward.8} parent=77 // loop_footer
                  %s1092 = sadd.s32 %s1090, 1
                $region84: #{aspp_forward.8} parent=77 // loop_footer_branch
                  %1089 = sbr.rel target = $region80
                $region85: #{aspp_forward.8} parent=77 // loop_exit
                  _
                %s1129 = sdiv.u32.pop %s1009, 12
                %s1130 = srem.u32.pop %s1009, 12
                %s1131 = smul.u32 %s1129, 12
                %s1132 = smul.u32 8, %s1131
                %s1133 = scalar_lea.vmem %s993, %s1132 [#allocation3]
                %s1134 = smul.u32 8, %s1131
                %s1135 = scalar_lea.vmem %s1008, %s1134
                // While loop
                $region86: #{aspp_forward.8} parent=77 // loop_pre_header
                  _
                $region87: #{aspp_forward.8} parent=77 // loop_header
                  %s1137 = sphi 0, %s1139
                  %p1138 = scmp.ge.s32.totalorder %s1137, %s1130
                  %s1142 = sphi 0, %s1149
                  %s1143 = sphi %s1133, %s1152
                  %s1144 = sphi %s1135, %s1153
                $region88: #{aspp_forward.8} parent=77 // loop_header_branch
                  %1141 = sbr.rel (%p1138) target = $region92
                $region89: #{aspp_forward.8} parent=77 // loop_body
                  %v1145 = vld [vmem:[%s1143] sm:$0xff]
                  %1146 = vst [vmem:[%s1144] sm:$0xff] %v1145
                  %s1147 = sadd.s32 1, %s1142
                  %p1148 = scmp.ge.s32.totalorder %s1147, %s1130
                  %s1149 = scalar_select %p1148, 0, %s1147
                  %s1150 = smul.u32 %s1149, 8
                  %s1151 = smul.u32 %s1149, 8
                  %s1152 = scalar_lea.vmem %s1133, %s1150 [#allocation3]
                  %s1153 = scalar_lea.vmem %s1135, %s1151
                $region90: #{aspp_forward.8} parent=77 // loop_footer
                  %s1139 = sadd.s32 %s1137, 1
                $region91: #{aspp_forward.8} parent=77 // loop_footer_branch
                  %1136 = sbr.rel target = $region87
                $region92: #{aspp_forward.8} parent=77 // loop_exit
                  _
              $region78: #{aspp_forward.8} parent=55 // pred_fallthru
                _
              // Predicated region
              $region93: #{aspp_forward.8} parent=55 // pred_check
                _
              $region94: #{aspp_forward.8} parent=55 // pred_check_branch
                %1155 = sbr.rel target = $region96
              $region95: #{aspp_forward.8} parent=55 // pred_region
                _
              $region96: #{aspp_forward.8} parent=55 // pred_fallthru
                _
            $region56: #{aspp_forward.8} parent=51 // pred_fallthru
              _
            // Predicated region
            $region57: #{aspp_forward.8} parent=51 // pred_check
              _
            $region58: #{aspp_forward.8} parent=51 // pred_check_branch
              %1016 = sbr.rel target = $region60
            $region59: #{aspp_forward.8} parent=51 // pred_region
              %s1018 = sdiv.u32.pop %s1009, 12
              %s1019 = srem.u32.pop %s1009, 12
              // While loop
              $region61: #{aspp_forward.8} parent=59 // loop_pre_header
                _
              $region62: #{aspp_forward.8} parent=59 // loop_header
                %s1021 = sphi 0, %s1023
                %p1022 = scmp.ge.s32.totalorder %s1021, %s1018
                %s1026 = sphi 0, %s1055
                %s1027 = sphi %s993, %s1058
                %s1028 = sphi %s1008, %s1059
              $region63: #{aspp_forward.8} parent=59 // loop_header_branch
                %1025 = sbr.rel (%p1022) target = $region67
              $region64: #{aspp_forward.8} parent=59 // loop_body
                %v1029 = vld [vmem:[%s1027] sm:$0xff]
                %1030 = vst [vmem:[%s1028] sm:$0xff] %v1029
                %v1031 = vld [vmem:[%s1027 + $0x8] sm:$0xff]
                %1032 = vst [vmem:[%s1028 + $0x8] sm:$0xff] %v1031
                %v1033 = vld [vmem:[%s1027 + $0x10] sm:$0xff]
                %1034 = vst [vmem:[%s1028 + $0x10] sm:$0xff] %v1033
                %v1035 = vld [vmem:[%s1027 + $0x18] sm:$0xff]
                %1036 = vst [vmem:[%s1028 + $0x18] sm:$0xff] %v1035
                %v1037 = vld [vmem:[%s1027 + $0x20] sm:$0xff]
                %1038 = vst [vmem:[%s1028 + $0x20] sm:$0xff] %v1037
                %v1039 = vld [vmem:[%s1027 + $0x28] sm:$0xff]
                %1040 = vst [vmem:[%s1028 + $0x28] sm:$0xff] %v1039
                %v1041 = vld [vmem:[%s1027 + $0x30] sm:$0xff]
                %1042 = vst [vmem:[%s1028 + $0x30] sm:$0xff] %v1041
                %v1043 = vld [vmem:[%s1027 + $0x38] sm:$0xff]
                %1044 = vst [vmem:[%s1028 + $0x38] sm:$0xff] %v1043
                %v1045 = vld [vmem:[%s1027 + $0x40] sm:$0xff]
                %1046 = vst [vmem:[%s1028 + $0x40] sm:$0xff] %v1045
                %v1047 = vld [vmem:[%s1027 + $0x48] sm:$0xff]
                %1048 = vst [vmem:[%s1028 + $0x48] sm:$0xff] %v1047
                %v1049 = vld [vmem:[%s1027 + $0x50] sm:$0xff]
                %1050 = vst [vmem:[%s1028 + $0x50] sm:$0xff] %v1049
                %v1051 = vld [vmem:[%s1027 + $0x58] sm:$0xff]
                %1052 = vst [vmem:[%s1028 + $0x58] sm:$0xff] %v1051
                %s1053 = sadd.s32 1, %s1026
                %p1054 = scmp.ge.s32.totalorder %s1053, %s1018
                %s1055 = scalar_select %p1054, 0, %s1053
                %s1056 = smul.u32 %s1055, 96
                %s1057 = smul.u32 %s1055, 96
                %s1058 = scalar_lea.vmem %s993, %s1056 [#allocation3]
                %s1059 = scalar_lea.vmem %s1008, %s1057
              $region65: #{aspp_forward.8} parent=59 // loop_footer
                %s1023 = sadd.s32 %s1021, 1
              $region66: #{aspp_forward.8} parent=59 // loop_footer_branch
                %1020 = sbr.rel target = $region62
              $region67: #{aspp_forward.8} parent=59 // loop_exit
                _
              %s1060 = sdiv.u32.pop %s1009, 12
              %s1061 = srem.u32.pop %s1009, 12
              %s1062 = smul.u32 %s1060, 12
              %s1063 = smul.u32 8, %s1062
              %s1064 = scalar_lea.vmem %s993, %s1063 [#allocation3]
              %s1065 = smul.u32 8, %s1062
              %s1066 = scalar_lea.vmem %s1008, %s1065
              // While loop
              $region68: #{aspp_forward.8} parent=59 // loop_pre_header
                _
              $region69: #{aspp_forward.8} parent=59 // loop_header
                %s1068 = sphi 0, %s1070
                %p1069 = scmp.ge.s32.totalorder %s1068, %s1061
                %s1073 = sphi 0, %s1080
                %s1074 = sphi %s1064, %s1083
                %s1075 = sphi %s1066, %s1084
              $region70: #{aspp_forward.8} parent=59 // loop_header_branch
                %1072 = sbr.rel (%p1069) target = $region74
              $region71: #{aspp_forward.8} parent=59 // loop_body
                %v1076 = vld [vmem:[%s1074] sm:$0xff]
                %1077 = vst [vmem:[%s1075] sm:$0xff] %v1076
                %s1078 = sadd.s32 1, %s1073
                %p1079 = scmp.ge.s32.totalorder %s1078, %s1061
                %s1080 = scalar_select %p1079, 0, %s1078
                %s1081 = smul.u32 %s1080, 8
                %s1082 = smul.u32 %s1080, 8
                %s1083 = scalar_lea.vmem %s1064, %s1081 [#allocation3]
                %s1084 = scalar_lea.vmem %s1066, %s1082
              $region72: #{aspp_forward.8} parent=59 // loop_footer
                %s1070 = sadd.s32 %s1068, 1
              $region73: #{aspp_forward.8} parent=59 // loop_footer_branch
                %1067 = sbr.rel target = $region69
              $region74: #{aspp_forward.8} parent=59 // loop_exit
                _
            $region60: #{aspp_forward.8} parent=51 // pred_fallthru
              _
          $region52: #{aspp_forward.8} parent=47 // pred_fallthru
            _
          %1156 = vnop
        $region48: #{aspp_forward.8} parent=35 // pred_fallthru
          _
      $region36: #{aspp_forward.8} parent=5 // pred_fallthru
        _
      %p1157 = scmp.le.s32.totalorder 2, %s10
      // Predicated region
      $region97: #{aspp_forward.8} parent=5 // pred_check
        %p1158 = pneg %p1157
      $region98: #{aspp_forward.8} parent=5 // pred_check_branch
        %1160 = sbr.rel (%p1158) target = $region100
      $region99: #{aspp_forward.8} parent=5 // pred_region
        %s1161 = ssub.s32 %s10, 2
        // Predicated region
        $region101: #{aspp_forward.8} parent=99 // pred_check
          %p1162 = pneg %p173
        $region102: #{aspp_forward.8} parent=99 // pred_check_branch
          %1164 = sbr.rel (%p1162) target = $region104
        $region103: #{aspp_forward.8} parent=99 // pred_region
          %s1165 = sand.u32 %s158, 1
          %s1166 = sand.u32 %s158, 1
          %s1167 = smul.addr %s1166, 96
          %s1168 = scalar_lea.vmem [#allocation3], %s1167
        $region104: #{aspp_forward.8} parent=99 // pred_fallthru
          _
      $region100: #{aspp_forward.8} parent=5 // pred_fallthru
        _
    $region6: #{aspp_forward.8} parent=1 // loop_footer
      %s14 = sadd.s32 1, %s10
    $region7: #{aspp_forward.8} parent=1 // loop_footer_branch
      %9 = sbr.rel target = $region3
    $region8: #{aspp_forward.8} parent=1 // loop_exit
      _

// kernel: aspp_forward.7
$region0: #{aspp_forward.7}
  #allocation0 [shape = 'u32[]', space=smem, size = 0x4, offset = 0x4, fixed_abs, tag = 'smem constant byte address 0x4 - core index']
  #allocation1 [shape = 'u32[144,128]{1,0:T(1,128)}', space=vmem, size = 0x12000, scoped, tag = 'internal scratch']
  #allocation2 [shape = 'f32[96,8]{1,0:T(8,128)}', space=vmem, size = 0xc000, scoped, tag = 'scratch operand']
  %s0 = inlined_call_operand.vmem [shape: f32[2,54,56,4], index: 0, kind: input, shape index: {}]
  %s1 = inlined_call_operand.vmem [shape: f32[3,3,4,8], index: 1, kind: input, shape index: {}]
  %s2 = inlined_call_operand.vmem [shape: f32[1,8], index: 2, kind: input, shape index: {}]
  %s3 = inlined_call_operand.vmem [shape: f32[1,8], index: 3, kind: input, shape index: {}]
  %s4 = inlined_call_operand.vmem [shape: f32[2,16,16,8], index: 4, kind: output, shape index: {}]
  %s5 = sld [smem:[#allocation0]]
  $region105: #{aspp_forward.7} parent=0
    _
  %s7 = ssub.s32 1, %s5
  %s8 = scalar_select 0, %s7, %s5
  $region1: #{aspp_forward.7} parent=0
    #allocation3 [shape = 'u8[98304]{0}', space=vmem, size = 0x18000, scoped, tag = 'output window, operand 0']
    loop: start=0, step=1, limit=20
    $region2: #{aspp_forward.7} parent=1 // loop_pre_header
      _
    $region3: #{aspp_forward.7} parent=1 // loop_header
      %s10 = sphi 0, %s14
      %p11 = scmp.ge.s32.totalorder %s10, 20
      %s17 = sphi 0, %s43
      %s18 = sphi 0, %s39
      %s19 = sphi 0, %s35
      %s20 = sphi 0, %s31
      %s21 = sphi 0, %s17
      %s22 = sphi 0, %s18
      %s23 = sphi 0, %s19
      %s24 = sphi 0, %s20
      %s25 = sphi 0, %s21
      %s26 = sphi 0, %s22
      %s27 = sphi 0, %s23
      %s28 = sphi 0, %s24
      %s54 = sphi 0, %s56
      %s57 = sphi 0, %s54
      %s58 = sphi 0, %s57
      %s74 = sphi 0, %s58
      %s82 = sphi 0, %s84
      %s85 = sphi 0, %s82
      %s86 = sphi 0, %s85
      %s102 = sphi 0, %s86
      %s106 = sphi 0, %s106
      %s108 = sphi 0, %s106
      %s109 = sphi 0, %s108
      %s123 = sphi 0, %s109
      %s127 = sphi 0, %s127
      %s129 = sphi 0, %s127
      %s130 = sphi 0, %s129
      %s144 = sphi 0, %s130
      %s152 = sphi 0, %s154
      %s155 = sphi 0, %s152
      %s156 = sphi 0, %s155
      %s172 = sphi 0, %s156
    $region4: #{aspp_forward.7} parent=1 // loop_header_branch
      %13 = sbr.rel (%p11) target = $region8
    $region5: #{aspp_forward.7} parent=1 // loop_body
      %s15 = ssub.s32 %s10, 1
      %s16 = ssub.s32 %s10, 2
      %s29 = sadd.s32 1, %s20
      %p30 = scmp.ge.s32.totalorder %s29, 1
      %s31 = scalar_select %p30, 0, %s29
      %s32 = sadd.s32 1, %s19
      %s33 = scalar_select %p30, %s32, %s19
      %p34 = scmp.ge.s32.totalorder %s33, 3
      %s35 = scalar_select %p34, 0, %s33
      %s36 = sadd.s32 1, %s18
      %s37 = scalar_select %p34, %s36, %s18
      %p38 = scmp.ge.s32.totalorder %s37, 3
      %s39 = scalar_select %p38, 0, %s37
      %s40 = sadd.s32 1, %s17
      %s41 = scalar_select %p38, %s40, %s17
      %p42 = scmp.ge.s32.totalorder %s41, 2
      %s43 = scalar_select %p42, 0, %s41
      %s44 = sadd.s32 %s18, 2
      %s45 = sadd.s32 %s44, %s19
      %s46 = sadd.s32 %s39, 2
      %s47 = sadd.s32 %s46, %s35
      %s48 = ssub.s32 %s17, %s43
      %s49 = ssub.s32 %s45, %s47
      %s50 = sor.u32 %s48, %s49
      %s51 = ssub.s32 %s20, %s31
      %s52 = sor.u32 %s50, %s51
      %p53 = scmp.eq.s32.totalorder %s52, 0
      %s55 = sadd.s32 %s54, 1
      %s56 = scalar_select %p53, %s54, %s55
      %p59 = pneg %p53
      %p60 = scmp.eq.s32.totalorder %s10, 17
      %p61 = por %p59, %p60
      %p62 = scmp.ne.s32.totalorder %s54, %s57
      %p63 = scmp.eq.s32.totalorder %s10, 0
      %p64 = por %p62, %p63
      %p65 = scmp.ne.s32.totalorder %s54, %s57
      %p66 = scmp.eq.s32.totalorder %s15, 17
      %p67 = por %p65, %p66
      %p68 = scmp.ne.s32.totalorder %s57, %s58
      %p69 = scmp.eq.s32.totalorder %s15, 0
      %p70 = por %p68, %p69
      %p71 = scmp.ne.s32.totalorder %s57, %s58
      %p72 = scmp.eq.s32.totalorder %s16, 17
      %p73 = por %p71, %p72
      %p75 = scmp.ne.s32.totalorder %s58, %s74
      %p76 = scmp.eq.s32.totalorder %s16, 0
      %p77 = por %p75, %p76
      %s78 = ssub.s32 %s19, %s35
      %s79 = ssub.s32 %s20, %s31
      %s80 = sor.u32 %s78, %s79
      %p81 = scmp.eq.s32.totalorder %s80, 0
      %s83 = sadd.s32 %s82, 1
      %s84 = scalar_select %p81, %s82, %s83
      %p87 = pneg %p81
      %p88 = scmp.eq.s32.totalorder %s10, 17
      %p89 = por %p87, %p88
      %p90 = scmp.ne.s32.totalorder %s82, %s85
      %p91 = scmp.eq.s32.totalorder %s10, 0
      %p92 = por %p90, %p91
      %p93 = scmp.ne.s32.totalorder %s82, %s85
      %p94 = scmp.eq.s32.totalorder %s15, 17
      %p95 = por %p93, %p94
      %p96 = scmp.ne.s32.totalorder %s85, %s86
      %p97 = scmp.eq.s32.totalorder %s15, 0
      %p98 = por %p96, %p97
      %p99 = scmp.ne.s32.totalorder %s85, %s86
      %p100 = scmp.eq.s32.totalorder %s16, 17
      %p101 = por %p99, %p100
      %p103 = scmp.ne.s32.totalorder %s86, %s102
      %p104 = scmp.eq.s32.totalorder %s16, 0
      %p105 = por %p103, %p104
      %s107 = sadd.s32 %s106, 1
      %p110 = scmp.eq.s32.totalorder %s10, 17
      %p111 = scmp.ne.s32.totalorder %s106, %s108
      %p112 = scmp.eq.s32.totalorder %s10, 0
      %p113 = por %p111, %p112
      %p114 = scmp.ne.s32.totalorder %s106, %s108
      %p115 = scmp.eq.s32.totalorder %s15, 17
      %p116 = por %p114, %p115
      %p117 = scmp.ne.s32.totalorder %s108, %s109
      %p118 = scmp.eq.s32.totalorder %s15, 0
      %p119 = por %p117, %p118
      %p120 = scmp.ne.s32.totalorder %s108, %s109
      %p121 = scmp.eq.s32.totalorder %s16, 17
      %p122 = por %p120, %p121
      %p124 = scmp.ne.s32.totalorder %s109, %s123
      %p125 = scmp.eq.s32.totalorder %s16, 0
      %p126 = por %p124, %p125
      %s128 = sadd.s32 %s127, 1
      %p131 = scmp.eq.s32.totalorder %s10, 17
      %p132 = scmp.ne.s32.totalorder %s127, %s129
      %p133 = scmp.eq.s32.totalorder %s10, 0
      %p134 = por %p132, %p133
      %p135 = scmp.ne.s32.totalorder %s127, %s129
      %p136 = scmp.eq.s32.totalorder %s15, 17
      %p137 = por %p135, %p136
      %p138 = scmp.ne.s32.totalorder %s129, %s130
      %p139 = scmp.eq.s32.totalorder %s15, 0
      %p140 = por %p138, %p139
      %p141 = scmp.ne.s32.totalorder %s129, %s130
      %p142 = scmp.eq.s32.totalorder %s16, 17
      %p143 = por %p141, %p142
      %p145 = scmp.ne.s32.totalorder %s130, %s144
      %p146 = scmp.eq.s32.totalorder %s16, 0
      %p147 = por %p145, %p146
      %s148 = ssub.s32 %s17, %s43
      %s149 = ssub.s32 %s18, %s39
      %s150 = sor.u32 %s148, %s149
      %p151 = scmp.eq.s32.totalorder %s150, 0
      %s153 = sadd.s32 %s152, 1
      %s154 = scalar_select %p151, %s152, %s153
      %p157 = pneg %p151
      %p158 = scmp.eq.s32.totalorder %s10, 17
      %p159 = por %p157, %p158
      %p160 = scmp.ne.s32.totalorder %s152, %s155
      %p161 = scmp.eq.s32.totalorder %s10, 0
      %p162 = por %p160, %p161
      %p163 = scmp.ne.s32.totalorder %s152, %s155
      %p164 = scmp.eq.s32.totalorder %s15, 17
      %p165 = por %p163, %p164
      %p166 = scmp.ne.s32.totalorder %s155, %s156
      %p167 = scmp.eq.s32.totalorder %s15, 0
      %p168 = por %p166, %p167
      %p169 = scmp.ne.s32.totalorder %s155, %s156
      %p170 = scmp.eq.s32.totalorder %s16, 17
      %p171 = por %p169, %p170
      %p173 = scmp.ne.s32.totalorder %s156, %s172
      %p174 = scmp.eq.s32.totalorder %s16, 0
      %p175 = por %p173, %p174
      %p176 = scmp.le.s32.totalorder 1, %s10
      %p177 = scmp.lt.s32.totalorder %s10, 19
      %p178 = pnand %p176, %p177
      %p179 = pneg %p178
      // Predicated region
      $region9: #{aspp_forward.7} parent=5 // pred_check
        _
      $region10: #{aspp_forward.7} parent=5 // pred_check_branch
        %181 = sbr.rel (%p178) target = $region12
      $region11: #{aspp_forward.7} parent=5 // pred_region
        %s182 = ssub.s32 %s10, 1
        // Predicated region
        $region13: #{aspp_forward.7} parent=11 // pred_check
          %p183 = pneg %p119
        $region14: #{aspp_forward.7} parent=11 // pred_check_branch
          %185 = sbr.rel (%p183) target = $region16
        $region15: #{aspp_forward.7} parent=11 // pred_region
          _
        $region16: #{aspp_forward.7} parent=11 // pred_fallthru
          _
        // Predicated region
        $region17: #{aspp_forward.7} parent=11 // pred_check
          %p186 = pneg %p140
        $region18: #{aspp_forward.7} parent=11 // pred_check_branch
          %188 = sbr.rel (%p186) target = $region20
        $region19: #{aspp_forward.7} parent=11 // pred_region
          _
        $region20: #{aspp_forward.7} parent=11 // pred_fallthru
          _
      $region12: #{aspp_forward.7} parent=5 // pred_fallthru
        _
      %p189 = scmp.lt.s32.totalorder %s10, 18
      // Predicated region
      $region21: #{aspp_forward.7} parent=5 // pred_check
        %p190 = pneg %p189
      $region22: #{aspp_forward.7} parent=5 // pred_check_branch
        %192 = sbr.rel (%p190) target = $region24
      $region23: #{aspp_forward.7} parent=5 // pred_region
        // Predicated region
        $region25: #{aspp_forward.7} parent=23 // pred_check
          %p193 = pneg %p64
        $region26: #{aspp_forward.7} parent=23 // pred_check_branch
          %195 = sbr.rel (%p193) target = $region28
        $region27: #{aspp_forward.7} parent=23 // pred_region
          %s196 = sadd.s32 %s18, 2
          %s197 = sadd.s32 %s196, %s19
          %s198 = smul.u32 6, %s197
          %p199 = scmp.lt.s32.totalorder %s17, 1
          %s200 = scalar_select %p199, %s17, 1
          %p201 = scmp.lt.s32.totalorder %s198, 53
          %s202 = scalar_select %p201, %s198, 53
          %p203 = scmp.lt.s32.totalorder %s20, 0
          %s204 = scalar_select %p203, %s20, 0
          %s205 = smul.addr %s202, 7
          %s206 = sadd.s32 %s204, %s205
          %s207 = smul.addr %s200, 378
          %s208 = sadd.s32 %s206, %s207
          %s209 = smul.addr %s208, 8
          %s210 = scalar_lea.vmem %s0, %s209
          %s211 = sadd.s32 %s18, 2
          %s212 = sadd.s32 %s211, %s19
          %s213 = smul.u32 6, %s212
        $region28: #{aspp_forward.7} parent=23 // pred_fallthru
          _
        // Predicated region
        $region29: #{aspp_forward.7} parent=23 // pred_check
          %p214 = pneg %p92
        $region30: #{aspp_forward.7} parent=23 // pred_check_branch
          %216 = sbr.rel (%p214) target = $region32
        $region31: #{aspp_forward.7} parent=23 // pred_region
          %p217 = scmp.lt.s32.totalorder %s19, 2
          %s218 = scalar_select %p217, %s19, 2
          %p219 = scmp.lt.s32.totalorder %s20, 0
          %s220 = scalar_select %p219, %s20, 0
          %s221 = smul.addr %s218, 3
          %s222 = sadd.s32 %s220, %s221
          %s223 = smul.addr %s222, 4
          %s224 = scalar_lea.vmem %s1, %s223
        $region32: #{aspp_forward.7} parent=23 // pred_fallthru
          _
      $region24: #{aspp_forward.7} parent=5 // pred_fallthru
        _
      %p225 = scmp.le.s32.totalorder 1, %s10
      %p226 = scmp.lt.s32.totalorder %s10, 19
      %p227 = pnand %p225, %p226
      %p228 = pneg %p227
      // Predicated region
      $region33: #{aspp_forward.7} parent=5 // pred_check
        _
      $region34: #{aspp_forward.7} parent=5 // pred_check_branch
        %230 = sbr.rel (%p227) target = $region36
      $region35: #{aspp_forward.7} parent=5 // pred_region
        %s231 = ssub.s32 %s10, 1
        %s232 = sadd.s32 %s22, 2
        %s233 = sadd.s32 %s232, %s23
        %s234 = smul.u32 6, %s233
        %p235 = scmp.lt.s32.totalorder %s21, 1
        %s236 = scalar_select %p235, %s21, 1
        %p237 = scmp.lt.s32.totalorder %s234, 53
        %s238 = scalar_select %p237, %s234, 53
        %p239 = scmp.lt.s32.totalorder %s24, 0
        %s240 = scalar_select %p239, %s24, 0
        %s241 = smul.addr %s238, 7
        %s242 = sadd.s32 %s240, %s241
        %s243 = smul.addr %s236, 378
        %s244 = sadd.s32 %s242, %s243
        %s245 = smul.addr %s244, 8
        %s246 = scalar_lea.vmem %s0, %s245
        %p247 = pneg %p70
        %p248 = pneg %p67
        %p249 = scmp.lt.s32.totalorder %s23, 2
        %s250 = scalar_select %p249, %s23, 2
        %p251 = scmp.lt.s32.totalorder %s24, 0
        %s252 = scalar_select %p251, %s24, 0
        %s253 = smul.addr %s250, 3
        %s254 = sadd.s32 %s252, %s253
        %s255 = smul.addr %s254, 4
        %s256 = scalar_lea.vmem %s1, %s255
        %p257 = pneg %p98
        %p258 = pneg %p95
        %p259 = pneg %p119
        %p260 = pneg %p116
        %p261 = pneg %p140
        %p262 = pneg %p137
        %p263 = pneg %p168
        %p264 = pneg %p165
        %s265 = sand.u32 %s155, 1
        %s266 = sand.u32 %s155, 1
        %s267 = smul.addr %s266, 96
        %s268 = scalar_lea.vmem [#allocation3], %s267
        %s269 = sadd.s32 %s22, 2
        %s270 = sadd.s32 %s269, %s23
        %s271 = smul.u32 6, %s270
        %p272 = scmp.lt.s32.totalorder %s21, 1
        %s273 = scalar_select %p272, %s21, 1
        %p274 = scmp.lt.s32.totalorder %s271, 53
        %s275 = scalar_select %p274, %s271, 53
        %p276 = scmp.lt.s32.totalorder %s24, 0
        %s277 = scalar_select %p276, %s24, 0
        %s278 = smul.addr %s275, 7
        %s279 = sadd.s32 %s277, %s278
        %s280 = smul.addr %s273, 378
        %s281 = sadd.s32 %s279, %s280
        %s282 = smul.addr %s281, 8
        %s283 = scalar_lea.vmem %s0, %s282
        %s284 = sadd.s32 %s22, 2
        %s285 = sadd.s32 %s284, %s23
        %s286 = smul.u32 6, %s285
        %p287 = scmp.lt.s32.totalorder %s23, 2
        %s288 = scalar_select %p287, %s23, 2
        %p289 = scmp.lt.s32.totalorder %s24, 0
        %s290 = scalar_select %p289, %s24, 0
        %s291 = smul.addr %s288, 3
        %s292 = sadd.s32 %s290, %s291
        %s293 = smul.addr %s292, 4
        %s294 = scalar_lea.vmem %s1, %s293
        %s295 = smul.u32 6, %s22
        %s296 = ssub.s32 16, %s295
        %p297 = scmp.lt.s32.totalorder %s296, 6
        %s298 = scalar_select %p297, %s296, 6
        %s299 = smul.u32 128, %s298
        %s300 = smul.u32 %s299, 2
        %p301 = scmp.eq.s32.totalorder %s23, 0
        %p302 = scmp.eq.s32.totalorder %s24, 0
        %p303 = pnand %p301, %p302
        %p304 = pneg %p303
        // Predicated region
        $region37: #{aspp_forward.7} parent=35 // pred_check
          _
        $region38: #{aspp_forward.7} parent=35 // pred_check_branch
          %306 = sbr.rel (%p303) target = $region40
        $region39: #{aspp_forward.7} parent=35 // pred_region
          %vm307 = vcmask 64512
          %308 = vst.msk [vmem:[#allocation2] sm:$0xff] %vm307, 0.0
          %309 = vst.msk [vmem:[#allocation2 + $0x8] sm:$0xff] %vm307, 0.0
          %310 = vst.msk [vmem:[#allocation2 + $0x10] sm:$0xff] %vm307, 0.0
          %311 = vst.msk [vmem:[#allocation2 + $0x18] sm:$0xff] %vm307, 0.0
          %312 = vst.msk [vmem:[#allocation2 + $0x20] sm:$0xff] %vm307, 0.0
          %313 = vst.msk [vmem:[#allocation2 + $0x28] sm:$0xff] %vm307, 0.0
          %314 = vst.msk [vmem:[#allocation2 + $0x30] sm:$0xff] %vm307, 0.0
          %315 = vst.msk [vmem:[#allocation2 + $0x38] sm:$0xff] %vm307, 0.0
          %316 = vst.msk [vmem:[#allocation2 + $0x40] sm:$0xff] %vm307, 0.0
          %317 = vst.msk [vmem:[#allocation2 + $0x48] sm:$0xff] %vm307, 0.0
          %318 = vst.msk [vmem:[#allocation2 + $0x50] sm:$0xff] %vm307, 0.0
          %319 = vst.msk [vmem:[#allocation2 + $0x58] sm:$0xff] %vm307, 0.0
        $region40: #{aspp_forward.7} parent=35 // pred_fallthru
          _
        %v320 = vld [vmem:[%s283 + $0xc] sm:$0xff]
        %v321 = vld [vmem:[%s283 + $0x14] sm:$0xff]
        %v322 = vld [vmem:[%s283 + $0x44] sm:$0xff]
        %v323 = vld [vmem:[%s283 + $0x4c] sm:$0xff]
        %v324 = vld [vmem:[%s283 + $0x7c] sm:$0xff]
        %v325 = vld [vmem:[%s283 + $0x84] sm:$0xff]
        %v326 = vld [vmem:[%s283 + $0xb4] sm:$0xff]
        %v327 = vld [vmem:[%s283 + $0xbc] sm:$0xff]
        %v328 = vld [vmem:[%s283 + $0xec] sm:$0xff]
        %v329 = vld [vmem:[%s283 + $0xf4] sm:$0xff]
        %v330 = vld [vmem:[%s283 + $0x124] sm:$0xff]
        %v331 = vld [vmem:[%s283 + $0x12c] sm:$0xff]
        %v332 = vld [vmem:[%s294] sm:$0xf]
        %v333 = vld [vmem:[%s283 + $0x12] sm:$0xff]
        %v334 = vld [vmem:[%s283 + $0x1a] sm:$0xff]
        %v335 = vld [vmem:[%s283 + $0x4a] sm:$0xff]
        %v336 = vld [vmem:[%s283 + $0x52] sm:$0xff]
        %v337 = vld [vmem:[%s283 + $0x82] sm:$0xff]
        %v338 = vld [vmem:[%s283 + $0x8a] sm:$0xff]
        %v339 = vld [vmem:[%s283 + $0xba] sm:$0xff]
        %v340 = vld [vmem:[%s283 + $0xc2] sm:$0xff]
        %v341 = vld [vmem:[%s283 + $0xf2] sm:$0xff]
        %v342 = vld [vmem:[%s283 + $0xfa] sm:$0xff]
        %v343 = vld [vmem:[%s283 + $0x12a] sm:$0xff]
        %v344 = vld [vmem:[%s283 + $0x132] sm:$0xff]
        %s345 = scalar_lea.vmem %s294, 4
        %v346 = vld [vmem:[%s345] sm:$0xf]
        %vm347 = vcmask 31744
        %v349 = vsel %vm347, %v333, 0
        %v352 = vsel %vm347, %v334, 0
        %v355 = vsel %vm347, %v335, 0
        %v358 = vsel %vm347, %v336, 0
        %v361 = vsel %vm347, %v337, 0
        %v364 = vsel %vm347, %v338, 0
        %v367 = vsel %vm347, %v339, 0
        %v370 = vsel %vm347, %v340, 0
        %v373 = vsel %vm347, %v341, 0
        %v376 = vsel %vm347, %v342, 0
        %v379 = vsel %vm347, %v343, 0
        %v382 = vsel %vm347, %v344, 0
        %vm384 = vcmask 1043456
        %v386 = vsel %vm384, %v346, 0
        %388 = vmatprep.subr.mxu0 0.0
        %389 = vmatpush1.msra.mxu0 %v386
        %390 = vmatprep.subr.mxu0 0.0
        %391 = vmatpush1.msra.mxu0 0.0
        %392 = vmatprep.subr.mxu0 0.0
        %393 = vmatpush1.msra.mxu0 0.0
        %394 = vmatprep.subr.mxu0 0.0
        %395 = vmatpush1.msra.mxu0 0.0
        %396 = vmatprep.subr.mxu0 0.0
        %397 = vmatpush1.msra.mxu0 0.0
        %398 = vmatprep.subr.mxu0 0.0
        %399 = vmatpush1.msra.mxu0 0.0
        %400 = vmatprep.subr.mxu0 0.0
        %401 = vmatpush1.msra.mxu0 0.0
        %402 = vmatprep.subr.mxu0 0.0
        %403 = vmatpush1.msra.mxu0 0.0
        %404 = vmatprep.subr.mxu0 0.0
        %405 = vmatpush1.msra.mxu0 0.0
        %406 = vmatprep.subr.mxu0 0.0
        %407 = vmatpush1.msra.mxu0 0.0
        %408 = vmatprep.subr.mxu0 0.0
        %409 = vmatpush1.msra.mxu0 0.0
        %410 = vmatprep.subr.mxu0 0.0
        %411 = vmatpush1.msra.mxu0 0.0
        %412 = vmatprep.subr.mxu0 0.0
        %413 = vmatpush1.msra.mxu0 0.0
        %414 = vmatprep.subr.mxu0 0.0
        %415 = vmatpush1.msra.mxu0 0.0
        %416 = vmatprep.subr.mxu0 0.0
        %417 = vmatpush1.msra.mxu0 0.0
        %418 = vmatprep.subr.mxu0 0.0
        %419 = vmatpush1.msra.mxu0 0.0
        %420 = vmatprep.subr.mxu0 0.0
        %421 = vmatpush1.msra.mxu0 0.0
        %422 = vmatprep.subr.mxu0 0.0
        %423 = vmatpush1.msra.mxu0 0.0
        %424 = vmatprep.subr.mxu0 0.0
        %425 = vmatpush1.msra.mxu0 0.0
        %426 = vmatprep.subr.mxu0 0.0
        %427 = vmatpush1.msra.mxu0 0.0
        %428 = vmatprep.subr.mxu0 0.0
        %429 = vmatpush1.msra.mxu0 0.0
        %430 = vmatprep.subr.mxu0 0.0
        %431 = vmatpush1.msra.mxu0 0.0
        %432 = vmatprep.subr.mxu0 0.0
        %433 = vmatpush1.msra.mxu0 0.0
        %434 = vmatprep.subr.mxu0 0.0
        %435 = vmatpush1.msra.mxu0 0.0
        %436 = vmatprep.subr.mxu0 0.0
        %437 = vmatpush1.msra.mxu0 0.0
        %438 = vmatprep.subr.mxu0 0.0
        %439 = vmatpush1.msra.mxu0 0.0
        %440 = vmatprep.subr.mxu0 0.0
        %441 = vmatpush1.msra.mxu0 0.0
        %442 = vmatprep.subr.mxu0 0.0
        %443 = vmatpush1.msra.mxu0 0.0
        %444 = vmatprep.subr.mxu0 0.0
        %445 = vmatpush1.msra.mxu0 0.0
        %446 = vmatprep.subr.mxu0 0.0
        %447 = vmatpush1.msra.mxu0 0.0
        %448 = vmatprep.subr.mxu0 0.0
        %449 = vmatpush1.msra.mxu0 0.0
        %450 = vmatprep.subr.mxu0 0.0
        %451 = vmatpush1.msra.mxu0 0.0
        %452 = vmatprep.mubr.f32.mxu0 0.0
        %453 = vmatmul.mubr.f32.gmra.mrb[0].mxu0 %v349
        %v454 = vpop.f32.mrb[0].mxu0
        %v455 = vadd.f32 0.0, %v454
        %v456 = vpop.f32.mrb[0].mxu0
        %457 = vmatprep.mubr.f32.mxu0 0.0
        %458 = vmatmul.mubr.f32.gmra.mrb[0].mxu0 %v352
        %v459 = vpop.f32.mrb[0].mxu0
        %v460 = vadd.f32 0.0, %v459
        %v461 = vpop.f32.mrb[0].mxu0
        %462 = vmatprep.mubr.f32.mxu0 0.0
        %463 = vmatmul.mubr.f32.gmra.mrb[0].mxu0 %v355
        %v464 = vpop.f32.mrb[0].mxu0
        %v465 = vadd.f32 0.0, %v464
        %v466 = vpop.f32.mrb[0].mxu0
        %467 = vmatprep.mubr.f32.mxu0 0.0
        %468 = vmatmul.mubr.f32.gmra.mrb[0].mxu0 %v358
        %v469 = vpop.f32.mrb[0].mxu0
        %v470 = vadd.f32 0.0, %v469
        %v471 = vpop.f32.mrb[0].mxu0
        %472 = vmatprep.mubr.f32.mxu0 0.0
        %473 = vmatmul.mubr.f32.gmra.mrb[0].mxu0 %v361
        %v474 = vpop.f32.mrb[0].mxu0
        %v475 = vadd.f32 0.0, %v474
        %v476 = vpop.f32.mrb[0].mxu0
        %477 = vmatprep.mubr.f32.mxu0 0.0
        %478 = vmatmul.mubr.f32.gmra.mrb[0].mxu0 %v364
        %v479 = vpop.f32.mrb[0].mxu0
        %v480 = vadd.f32 0.0, %v479
        %v481 = vpop.f32.mrb[0].mxu0
        %482 = vmatprep.mubr.f32.mxu0 0.0
        %483 = vmatmul.mubr.f32.gmra.mrb[0].mxu0 %v367
        %v484 = vpop.f32.mrb[0].mxu0
        %v485 = vadd.f32 0.0, %v484
        %v486 = vpop.f32.mrb[0].mxu0
        %487 = vmatprep.mubr.f32.mxu0 0.0
        %488 = vmatmul.mubr.f32.gmra.mrb[0].mxu0 %v370
        %v489 = vpop.f32.mrb[0].mxu0
        %v490 = vadd.f32 0.0, %v489
        %v491 = vpop.f32.mrb[0].mxu0
        %492 = vmatprep.mubr.f32.mxu0 0.0
        %493 = vmatmul.mubr.f32.gmra.mrb[0].mxu0 %v373
        %v494 = vpop.f32.mrb[0].mxu0
        %v495 = vadd.f32 0.0, %v494
        %v496 = vpop.f32.mrb[0].mxu0
        %497 = vmatprep.mubr.f32.mxu0 0.0
        %498 = vmatmul.mubr.f32.gmra.mrb[0].mxu0 %v376
        %v499 = vpop.f32.mrb[0].mxu0
        %v500 = vadd.f32 0.0, %v499
        %v501 = vpop.f32.mrb[0].mxu0
        %502 = vmatprep.mubr.f32.mxu0 0.0
        %503 = vmatmul.mubr.f32.gmra.mrb[0].mxu0 %v379
        %v504 = vpop.f32.mrb[0].mxu0
        %v505 = vadd.f32 0.0, %v504
        %v506 = vpop.f32.mrb[0].mxu0
        %507 = vmatprep.mubr.f32.mxu0 0.0
        %508 = vmatmul.mubr.f32.gmra.mrb[0].mxu0 %v382
        %v509 = vpop.f32.mrb[0].mxu0
        %v510 = vadd.f32 0.0, %v509
        %v511 = vpop.f32.mrb[0].mxu0
        %512 = vdwg.mxu0
        %v514 = vsel %vm347, %v320, 0
        %v517 = vsel %vm347, %v321, 0
        %v520 = vsel %vm347, %v322, 0
        %v523 = vsel %vm347, %v323, 0
        %v526 = vsel %vm347, %v324, 0
        %v529 = vsel %vm347, %v325, 0
        %v532 = vsel %vm347, %v326, 0
        %v535 = vsel %vm347, %v327, 0
        %v538 = vsel %vm347, %v328, 0
        %v541 = vsel %vm347, %v329, 0
        %v544 = vsel %vm347, %v330, 0
        %v547 = vsel %vm347, %v331, 0
        %v550 = vsel %vm384, %v332, 0
        %552 = vmatprep.subr.mxu0 0.0
        %553 = vmatpush1.msra.mxu0 %v550
        %554 = vmatprep.subr.mxu0 0.0
        %555 = vmatpush1.msra.mxu0 0.0
        %556 = vmatprep.subr.mxu0 0.0
        %557 = vmatpush1.msra.mxu0 0.0
        %558 = vmatprep.subr.mxu0 0.0
        %559 = vmatpush1.msra.mxu0 0.0
        %560 = vmatprep.subr.mxu0 0.0
        %561 = vmatpush1.msra.mxu0 0.0
        %562 = vmatprep.subr.mxu0 0.0
        %563 = vmatpush1.msra.mxu0 0.0
        %564 = vmatprep.subr.mxu0 0.0
        %565 = vmatpush1.msra.mxu0 0.0
        %566 = vmatprep.subr.mxu0 0.0
        %567 = vmatpush1.msra.mxu0 0.0
        %568 = vmatprep.subr.mxu0 0.0
        %569 = vmatpush1.msra.mxu0 0.0
        %570 = vmatprep.subr.mxu0 0.0
        %571 = vmatpush1.msra.mxu0 0.0
        %572 = vmatprep.subr.mxu0 0.0
        %573 = vmatpush1.msra.mxu0 0.0
        %574 = vmatprep.subr.mxu0 0.0
        %575 = vmatpush1.msra.mxu0 0.0
        %576 = vmatprep.subr.mxu0 0.0
        %577 = vmatpush1.msra.mxu0 0.0
        %578 = vmatprep.subr.mxu0 0.0
        %579 = vmatpush1.msra.mxu0 0.0
        %580 = vmatprep.subr.mxu0 0.0
        %581 = vmatpush1.msra.mxu0 0.0
        %582 = vmatprep.subr.mxu0 0.0
        %583 = vmatpush1.msra.mxu0 0.0
        %584 = vmatprep.subr.mxu0 0.0
        %585 = vmatpush1.msra.mxu0 0.0
        %586 = vmatprep.subr.mxu0 0.0
        %587 = vmatpush1.msra.mxu0 0.0
        %588 = vmatprep.subr.mxu0 0.0
        %589 = vmatpush1.msra.mxu0 0.0
        %590 = vmatprep.subr.mxu0 0.0
        %591 = vmatpush1.msra.mxu0 0.0
        %592 = vmatprep.subr.mxu0 0.0
        %593 = vmatpush1.msra.mxu0 0.0
        %594 = vmatprep.subr.mxu0 0.0
        %595 = vmatpush1.msra.mxu0 0.0
        %596 = vmatprep.subr.mxu0 0.0
        %597 = vmatpush1.msra.mxu0 0.0
        %598 = vmatprep.subr.mxu0 0.0
        %599 = vmatpush1.msra.mxu0 0.0
        %600 = vmatprep.subr.mxu0 0.0
        %601 = vmatpush1.msra.mxu0 0.0
        %602 = vmatprep.subr.mxu0 0.0
        %603 = vmatpush1.msra.mxu0 0.0
        %604 = vmatprep.subr.mxu0 0.0
        %605 = vmatpush1.msra.mxu0 0.0
        %606 = vmatprep.subr.mxu0 0.0
        %607 = vmatpush1.msra.mxu0 0.0
        %608 = vmatprep.subr.mxu0 0.0
        %609 = vmatpush1.msra.mxu0 0.0
        %610 = vmatprep.subr.mxu0 0.0
        %611 = vmatpush1.msra.mxu0 0.0
        %612 = vmatprep.subr.mxu0 0.0
        %613 = vmatpush1.msra.mxu0 0.0
        %614 = vmatprep.subr.mxu0 0.0
        %615 = vmatpush1.msra.mxu0 0.0
        %616 = vmatprep.mubr.f32.mxu0 0.0
        %617 = vmatmul.mubr.f32.gmra.mrb[0].mxu0 %v514
        %v618 = vpop.f32.mrb[0].mxu0
        %v619 = vadd.f32 %v455, %v618
        %v620 = vpop.f32.mrb[0].mxu0
        %621 = vmatprep.mubr.f32.mxu0 0.0
        %622 = vmatmul.mubr.f32.gmra.mrb[0].mxu0 %v517
        %v623 = vpop.f32.mrb[0].mxu0
        %v624 = vadd.f32 %v460, %v623
        %v625 = vpop.f32.mrb[0].mxu0
        %626 = vmatprep.mubr.f32.mxu0 0.0
        %627 = vmatmul.mubr.f32.gmra.mrb[0].mxu0 %v520
        %v628 = vpop.f32.mrb[0].mxu0
        %v629 = vadd.f32 %v465, %v628
        %v630 = vpop.f32.mrb[0].mxu0
        %631 = vmatprep.mubr.f32.mxu0 0.0
        %632 = vmatmul.mubr.f32.gmra.mrb[0].mxu0 %v523
        %v633 = vpop.f32.mrb[0].mxu0
        %v634 = vadd.f32 %v470, %v633
        %v635 = vpop.f32.mrb[0].mxu0
        %636 = vmatprep.mubr.f32.mxu0 0.0
        %637 = vmatmul.mubr.f32.gmra.mrb[0].mxu0 %v526
        %v638 = vpop.f32.mrb[0].mxu0
        %v639 = vadd.f32 %v475, %v638
        %v640 = vpop.f32.mrb[0].mxu0
        %641 = vmatprep.mubr.f32.mxu0 0.0
        %642 = vmatmul.mubr.f32.gmra.mrb[0].mxu0 %v529
        %v643 = vpop.f32.mrb[0].mxu0
        %v644 = vadd.f32 %v480, %v643
        %v645 = vpop.f32.mrb[0].mxu0
        %646 = vmatprep.mubr.f32.mxu0 0.0
        %647 = vmatmul.mubr.f32.gmra.mrb[0].mxu0 %v532
        %v648 = vpop.f32.mrb[0].mxu0
        %v649 = vadd.f32 %v485, %v648
        %v650 = vpop.f32.mrb[0].mxu0
        %651 = vmatprep.mubr.f32.mxu0 0.0
        %652 = vmatmul.mubr.f32.gmra.mrb[0].mxu0 %v535
        %v653 = vpop.f32.mrb[0].mxu0
        %v654 = vadd.f32 %v490, %v653
        %v655 = vpop.f32.mrb[0].mxu0
        %656 = vmatprep.mubr.f32.mxu0 0.0
        %657 = vmatmul.mubr.f32.gmra.mrb[0].mxu0 %v538
        %v658 = vpop.f32.mrb[0].mxu0
        %v659 = vadd.f32 %v495, %v658
        %v660 = vpop.f32.mrb[0].mxu0
        %661 = vmatprep.mubr.f32.mxu0 0.0
        %662 = vmatmul.mubr.f32.gmra.mrb[0].mxu0 %v541
        %v663 = vpop.f32.mrb[0].mxu0
        %v664 = vadd.f32 %v500, %v663
        %v665 = vpop.f32.mrb[0].mxu0
        %666 = vmatprep.mubr.f32.mxu0 0.0
        %667 = vmatmul.mubr.f32.gmra.mrb[0].mxu0 %v544
        %v668 = vpop.f32.mrb[0].mxu0
        %v669 = vadd.f32 %v505, %v668
        %v670 = vpop.f32.mrb[0].mxu0
        %671 = vmatprep.mubr.f32.mxu0 0.0
        %672 = vmatmul.mubr.f32.gmra.mrb[0].mxu0 %v547
        %v673 = vpop.f32.mrb[0].mxu0
        %v674 = vadd.f32 %v510, %v673
        %v675 = vpop.f32.mrb[0].mxu0
        %676 = vdwg.mxu0
        %v677 = vld [vmem:[%s283 + $0x18] sm:$0xff]
        %v678 = vld [vmem:[%s283 + $0x20] sm:$0xff]
        %v679 = vld [vmem:[%s283 + $0x50] sm:$0xff]
        %v680 = vld [vmem:[%s283 + $0x58] sm:$0xff]
        %v681 = vld [vmem:[%s283 + $0x88] sm:$0xff]
        %v682 = vld [vmem:[%s283 + $0x90] sm:$0xff]
        %v683 = vld [vmem:[%s283 + $0xc0] sm:$0xff]
        %v684 = vld [vmem:[%s283 + $0xc8] sm:$0xff]
        %v685 = vld [vmem:[%s283 + $0xf8] sm:$0xff]
        %v686 = vld [vmem:[%s283 + $0x100] sm:$0xff]
        %v687 = vld [vmem:[%s283 + $0x130] sm:$0xff]
        %v688 = vld [vmem:[%s283 + $0x138] sm:$0xff]
        %s689 = scalar_lea.vmem %s294, 8
        %v690 = vld [vmem:[%s689] sm:$0xf]
        %v692 = vsel %vm347, %v677, 0
        %v695 = vsel %vm347, %v678, 0
        %v698 = vsel %vm347, %v679, 0
        %v701 = vsel %vm347, %v680, 0
        %v704 = vsel %vm347, %v681, 0
        %v707 = vsel %vm347, %v682, 0
        %v710 = vsel %vm347, %v683, 0
        %v713 = vsel %vm347, %v684, 0
        %v716 = vsel %vm347, %v685, 0
        %v719 = vsel %vm347, %v686, 0
        %v722 = vsel %vm347, %v687, 0
        %v725 = vsel %vm347, %v688, 0
        %v728 = vsel %vm384, %v690, 0
        %730 = vmatprep.subr.mxu0 0.0
        %731 = vmatpush1.msra.mxu0 %v728
        %732 = vmatprep.subr.mxu0 0.0
        %733 = vmatpush1.msra.mxu0 0.0
        %734 = vmatprep.subr.mxu0 0.0
        %735 = vmatpush1.msra.mxu0 0.0
        %736 = vmatprep.subr.mxu0 0.0
        %737 = vmatpush1.msra.mxu0 0.0
        %738 = vmatprep.subr.mxu0 0.0
        %739 = vmatpush1.msra.mxu0 0.0
        %740 = vmatprep.subr.mxu0 0.0
        %741 = vmatpush1.msra.mxu0 0.0
        %742 = vmatprep.subr.mxu0 0.0
        %743 = vmatpush1.msra.mxu0 0.0
        %744 = vmatprep.subr.mxu0 0.0
        %745 = vmatpush1.msra.mxu0 0.0
        %746 = vmatprep.subr.mxu0 0.0
        %747 = vmatpush1.msra.mxu0 0.0
        %748 = vmatprep.subr.mxu0 0.0
        %749 = vmatpush1.msra.mxu0 0.0
        %750 = vmatprep.subr.mxu0 0.0
        %751 = vmatpush1.msra.mxu0 0.0
        %752 = vmatprep.subr.mxu0 0.0
        %753 = vmatpush1.msra.mxu0 0.0
        %754 = vmatprep.subr.mxu0 0.0
        %755 = vmatpush1.msra.mxu0 0.0
        %756 = vmatprep.subr.mxu0 0.0
        %757 = vmatpush1.msra.mxu0 0.0
        %758 = vmatprep.subr.mxu0 0.0
        %759 = vmatpush1.msra.mxu0 0.0
        %760 = vmatprep.subr.mxu0 0.0
        %761 = vmatpush1.msra.mxu0 0.0
        %762 = vmatprep.subr.mxu0 0.0
        %763 = vmatpush1.msra.mxu0 0.0
        %764 = vmatprep.subr.mxu0 0.0
        %765 = vmatpush1.msra.mxu0 0.0
        %766 = vmatprep.subr.mxu0 0.0
        %767 = vmatpush1.msra.mxu0 0.0
        %768 = vmatprep.subr.mxu0 0.0
        %769 = vmatpush1.msra.mxu0 0.0
        %770 = vmatprep.subr.mxu0 0.0
        %771 = vmatpush1.msra.mxu0 0.0
        %772 = vmatprep.subr.mxu0 0.0
        %773 = vmatpush1.msra.mxu0 0.0
        %774 = vmatprep.subr.mxu0 0.0
        %775 = vmatpush1.msra.mxu0 0.0
        %776 = vmatprep.subr.mxu0 0.0
        %777 = vmatpush1.msra.mxu0 0.0
        %778 = vmatprep.subr.mxu0 0.0
        %779 = vmatpush1.msra.mxu0 0.0
        %780 = vmatprep.subr.mxu0 0.0
        %781 = vmatpush1.msra.mxu0 0.0
        %782 = vmatprep.subr.mxu0 0.0
        %783 = vmatpush1.msra.mxu0 0.0
        %784 = vmatprep.subr.mxu0 0.0
        %785 = vmatpush1.msra.mxu0 0.0
        %786 = vmatprep.subr.mxu0 0.0
        %787 = vmatpush1.msra.mxu0 0.0
        %788 = vmatprep.subr.mxu0 0.0
        %789 = vmatpush1.msra.mxu0 0.0
        %790 = vmatprep.subr.mxu0 0.0
        %791 = vmatpush1.msra.mxu0 0.0
        %792 = vmatprep.subr.mxu0 0.0
        %793 = vmatpush1.msra.mxu0 0.0
        %794 = vmatprep.mubr.f32.mxu0 0.0
        %795 = vmatmul.mubr.f32.gmra.mrb[0].mxu0 %v692
        %v796 = vpop.f32.mrb[0].mxu0
        %v797 = vadd.f32 0.0, %v796
        %v798 = vpop.f32.mrb[0].mxu0
        %799 = vmatprep.mubr.f32.mxu0 0.0
        %800 = vmatmul.mubr.f32.gmra.mrb[0].mxu0 %v695
        %v801 = vpop.f32.mrb[0].mxu0
        %v802 = vadd.f32 0.0, %v801
        %v803 = vpop.f32.mrb[0].mxu0
        %804 = vmatprep.mubr.f32.mxu0 0.0
        %805 = vmatmul.mubr.f32.gmra.mrb[0].mxu0 %v698
        %v806 = vpop.f32.mrb[0].mxu0
        %v807 = vadd.f32 0.0, %v806
        %v808 = vpop.f32.mrb[0].mxu0
        %809 = vmatprep.mubr.f32.mxu0 0.0
        %810 = vmatmul.mubr.f32.gmra.mrb[0].mxu0 %v701
        %v811 = vpop.f32.mrb[0].mxu0
        %v812 = vadd.f32 0.0, %v811
        %v813 = vpop.f32.mrb[0].mxu0
        %814 = vmatprep.mubr.f32.mxu0 0.0
        %815 = vmatmul.mubr.f32.gmra.mrb[0].mxu0 %v704
        %v816 = vpop.f32.mrb[0].mxu0
        %v817 = vadd.f32 0.0, %v816
        %v818 = vpop.f32.mrb[0].mxu0
        %819 = vmatprep.mubr.f32.mxu0 0.0
        %820 = vmatmul.mubr.f32.gmra.mrb[0].mxu0 %v707
        %v821 = vpop.f32.mrb[0].mxu0
        %v822 = vadd.f32 0.0, %v821
        %v823 = vpop.f32.mrb[0].mxu0
        %824 = vmatprep.mubr.f32.mxu0 0.0
        %825 = vmatmul.mubr.f32.gmra.mrb[0].mxu0 %v710
        %v826 = vpop.f32.mrb[0].mxu0
        %v827 = vadd.f32 0.0, %v826
        %v828 = vpop.f32.mrb[0].mxu0
        %829 = vmatprep.mubr.f32.mxu0 0.0
        %830 = vmatmul.mubr.f32.gmra.mrb[0].mxu0 %v713
        %v831 = vpop.f32.mrb[0].mxu0
        %v832 = vadd.f32 0.0, %v831
        %v833 = vpop.f32.mrb[0].mxu0
        %834 = vmatprep.mubr.f32.mxu0 0.0
        %835 = vmatmul.mubr.f32.gmra.mrb[0].mxu0 %v716
        %v836 = vpop.f32.mrb[0].mxu0
        %v837 = vadd.f32 0.0, %v836
        %v838 = vpop.f32.mrb[0].mxu0
        %839 = vmatprep.mubr.f32.mxu0 0.0
        %840 = vmatmul.mubr.f32.gmra.mrb[0].mxu0 %v719
        %v841 = vpop.f32.mrb[0].mxu0
        %v842 = vadd.f32 0.0, %v841
        %v843 = vpop.f32.mrb[0].mxu0
        %844 = vmatprep.mubr.f32.mxu0 0.0
        %845 = vmatmul.mubr.f32.gmra.mrb[0].mxu0 %v722
        %v846 = vpop.f32.mrb[0].mxu0
        %v847 = vadd.f32 0.0, %v846
        %v848 = vpop.f32.mrb[0].mxu0
        %849 = vmatprep.mubr.f32.mxu0 0.0
        %850 = vmatmul.mubr.f32.gmra.mrb[0].mxu0 %v725
        %v851 = vpop.f32.mrb[0].mxu0
        %v852 = vadd.f32 0.0, %v851
        %v853 = vpop.f32.mrb[0].mxu0
        %854 = vdwg.mxu0
        %v855 = vadd.f32 %v619, %v797
        %v856 = vadd.f32 %v624, %v802
        %v857 = vadd.f32 %v629, %v807
        %v858 = vadd.f32 %v634, %v812
        %v859 = vadd.f32 %v639, %v817
        %v860 = vadd.f32 %v644, %v822
        %v861 = vadd.f32 %v649, %v827
        %v862 = vadd.f32 %v654, %v832
        %v863 = vadd.f32 %v659, %v837
        %v864 = vadd.f32 %v664, %v842
        %v865 = vadd.f32 %v669, %v847
        %v866 = vadd.f32 %v674, %v852
        %v867 = vld [vmem:[#allocation2] sm:$0xff]
        %v868 = vld [vmem:[#allocation2 + $0x8] sm:$0xff]
        %v869 = vld [vmem:[#allocation2 + $0x10] sm:$0xff]
        %v870 = vld [vmem:[#allocation2 + $0x18] sm:$0xff]
        %v871 = vld [vmem:[#allocation2 + $0x20] sm:$0xff]
        %v872 = vld [vmem:[#allocation2 + $0x28] sm:$0xff]
        %v873 = vld [vmem:[#allocation2 + $0x30] sm:$0xff]
        %v874 = vld [vmem:[#allocation2 + $0x38] sm:$0xff]
        %v875 = vld [vmem:[#allocation2 + $0x40] sm:$0xff]
        %v876 = vld [vmem:[#allocation2 + $0x48] sm:$0xff]
        %v877 = vld [vmem:[#allocation2 + $0x50] sm:$0xff]
        %v878 = vld [vmem:[#allocation2 + $0x58] sm:$0xff]
        %v879 = vadd.f32 %v867, %v855
        %v880 = vadd.f32 %v868, %v856
        %v881 = vadd.f32 %v869, %v857
        %v882 = vadd.f32 %v870, %v858
        %v883 = vadd.f32 %v871, %v859
        %v884 = vadd.f32 %v872, %v860
        %v885 = vadd.f32 %v873, %v861
        %v886 = vadd.f32 %v874, %v862
        %v887 = vadd.f32 %v875, %v863
        %v888 = vadd.f32 %v876, %v864
        %v889 = vadd.f32 %v877, %v865
        %v890 = vadd.f32 %v878, %v866
        %vm891 = vcmask 64512
        %892 = vst.msk [vmem:[#allocation2] sm:$0xff] %vm891, %v879
        %893 = vst.msk [vmem:[#allocation2 + $0x8] sm:$0xff] %vm891, %v880
        %894 = vst.msk [vmem:[#allocation2 + $0x10] sm:$0xff] %vm891, %v881
        %895 = vst.msk [vmem:[#allocation2 + $0x18] sm:$0xff] %vm891, %v882
        %896 = vst.msk [vmem:[#allocation2 + $0x20] sm:$0xff] %vm891, %v883
        %897 = vst.msk [vmem:[#allocation2 + $0x28] sm:$0xff] %vm891, %v884
        %898 = vst.msk [vmem:[#allocation2 + $0x30] sm:$0xff] %vm891, %v885
        %899 = vst.msk [vmem:[#allocation2 + $0x38] sm:$0xff] %vm891, %v886
        %900 = vst.msk [vmem:[#allocation2 + $0x40] sm:$0xff] %vm891, %v887
        %901 = vst.msk [vmem:[#allocation2 + $0x48] sm:$0xff] %vm891, %v888
        %902 = vst.msk [vmem:[#allocation2 + $0x50] sm:$0xff] %vm891, %v889
        %903 = vst.msk [vmem:[#allocation2 + $0x58] sm:$0xff] %vm891, %v890
        %p904 = scmp.eq.s32.totalorder %s23, 2
        %p905 = pnand %p904, %p302
        %p906 = pneg %p905
        // Predicated region
        $region41: #{aspp_forward.7} parent=35 // pred_check
          _
        $region42: #{aspp_forward.7} parent=35 // pred_check_branch
          %908 = sbr.rel (%p905) target = $region44
        $region43: #{aspp_forward.7} parent=35 // pred_region
          %v909 = vld [vmem:[#allocation2] sm:$0xff]
          %v910 = vld [vmem:[#allocation2 + $0x8] sm:$0xff]
          %v911 = vld [vmem:[#allocation2 + $0x10] sm:$0xff]
          %v912 = vld [vmem:[#allocation2 + $0x18] sm:$0xff]
          %v913 = vld [vmem:[#allocation2 + $0x20] sm:$0xff]
          %v914 = vld [vmem:[#allocation2 + $0x28] sm:$0xff]
          %v915 = vld [vmem:[#allocation2 + $0x30] sm:$0xff]
          %v916 = vld [vmem:[#allocation2 + $0x38] sm:$0xff]
          %v917 = vld [vmem:[#allocation2 + $0x40] sm:$0xff]
          %v918 = vld [vmem:[#allocation2 + $0x48] sm:$0xff]
          %v919 = vld [vmem:[#allocation2 + $0x50] sm:$0xff]
          %v920 = vld [vmem:[#allocation2 + $0x58] sm:$0xff]
          %v921 = vld [vmem:[%s2] sm:$0x1]
          %v923 = vlaneseq
          %v924 = vshrl.u32 %v923, 7
          %v925 = vsub.s32 0, %v924
          %v926 = vrot.slane %v921, %v925
          %v928 = vmul.f32 %v909, %v926
          %v929 = vmul.f32 %v910, %v926
          %v930 = vmul.f32 %v911, %v926
          %v931 = vmul.f32 %v912, %v926
          %v932 = vmul.f32 %v913, %v926
          %v933 = vmul.f32 %v914, %v926
          %v934 = vmul.f32 %v915, %v926
          %v935 = vmul.f32 %v916, %v926
          %v936 = vmul.f32 %v917, %v926
          %v937 = vmul.f32 %v918, %v926
          %v938 = vmul.f32 %v919, %v926
          %v939 = vmul.f32 %v920, %v926
          %v940 = vld [vmem:[%s3] sm:$0x1]
          %v942 = vlaneseq
          %v943 = vshrl.u32 %v942, 7
          %v944 = vsub.s32 0, %v943
          %v945 = vrot.slane %v940, %v944
          %v947 = vadd.f32 %v928, %v945
          %v948 = vadd.f32 %v929, %v945
          %v949 = vadd.f32 %v930, %v945
          %v950 = vadd.f32 %v931, %v945
          %v951 = vadd.f32 %v932, %v945
          %v952 = vadd.f32 %v933, %v945
          %v953 = vadd.f32 %v934, %v945
          %v954 = vadd.f32 %v935, %v945
          %v955 = vadd.f32 %v936, %v945
          %v956 = vadd.f32 %v937, %v945
          %v957 = vadd.f32 %v938, %v945
          %v958 = vadd.f32 %v939, %v945
          %v959 = vmax.f32 %v947, 0.0
          %v960 = vmax.f32 %v948, 0.0
          %v961 = vmax.f32 %v949, 0.0
          %v962 = vmax.f32 %v950, 0.0
          %v963 = vmax.f32 %v951, 0.0
          %v964 = vmax.f32 %v952, 0.0
          %v965 = vmax.f32 %v953, 0.0
          %v966 = vmax.f32 %v954, 0.0
          %v967 = vmax.f32 %v955, 0.0
          %v968 = vmax.f32 %v956, 0.0
          %v969 = vmax.f32 %v957, 0.0
          %v970 = vmax.f32 %v958, 0.0
          %971 = vst.msk [vmem:[%s268] sm:$0xff] %vm891, %v959
          %972 = vst.msk [vmem:[%s268 + $0x8] sm:$0xff] %vm891, %v960
          %973 = vst.msk [vmem:[%s268 + $0x10] sm:$0xff] %vm891, %v961
          %974 = vst.msk [vmem:[%s268 + $0x18] sm:$0xff] %vm891, %v962
          %975 = vst.msk [vmem:[%s268 + $0x20] sm:$0xff] %vm891, %v963
          %976 = vst.msk [vmem:[%s268 + $0x28] sm:$0xff] %vm891, %v964
          %977 = vst.msk [vmem:[%s268 + $0x30] sm:$0xff] %vm891, %v965
          %978 = vst.msk [vmem:[%s268 + $0x38] sm:$0xff] %vm891, %v966
          %979 = vst.msk [vmem:[%s268 + $0x40] sm:$0xff] %vm891, %v967
          %980 = vst.msk [vmem:[%s268 + $0x48] sm:$0xff] %vm891, %v968
          %981 = vst.msk [vmem:[%s268 + $0x50] sm:$0xff] %vm891, %v969
          %982 = vst.msk [vmem:[%s268 + $0x58] sm:$0xff] %vm891, %v970
        $region44: #{aspp_forward.7} parent=35 // pred_fallthru
          _
        %s983 = sand.u32 %s155, 1
        %s984 = sand.u32 %s155, 1
        %s985 = smul.addr %s984, 96
        %s986 = scalar_lea.vmem [#allocation3], %s985
        // Predicated region
        $region45: #{aspp_forward.7} parent=35 // pred_check
          %p987 = pneg %p165
        $region46: #{aspp_forward.7} parent=35 // pred_check_branch
          %989 = sbr.rel (%p987) target = $region48
        $region47: #{aspp_forward.7} parent=35 // pred_region
          %s990 = smul.u32 6, %s22
          %s991 = ssub.s32 16, %s990
          %p992 = scmp.lt.s32.totalorder %s991, 6
          %s993 = scalar_select %p992, %s991, 6
          %s994 = smul.u32 128, %s993
          %s995 = smul.u32 %s994, 2
          %p996 = scmp.ne.s32.totalorder 0, %s995
          %s997 = smul.addr %s990, 2
          %s998 = smul.addr %s21, 32
          %s999 = sadd.s32 %s997, %s998
          %s1000 = smul.addr %s999, 8
          %s1001 = scalar_lea.vmem %s4, %s1000
          %s1002 = smul.u32 %s993, 2
          // Predicated region
          $region49: #{aspp_forward.7} parent=47 // pred_check
            %p1003 = pneg %p996
          $region50: #{aspp_forward.7} parent=47 // pred_check_branch
            %1005 = sbr.rel (%p1003) target = $region52
          $region51: #{aspp_forward.7} parent=47 // pred_region
            // Predicated region
            $region53: #{aspp_forward.7} parent=51 // pred_check
              _
            $region54: #{aspp_forward.7} parent=51 // pred_check_branch
              %1007 = sbr.rel (0) target = $region56
            $region55: #{aspp_forward.7} parent=51 // pred_region
              // Predicated region
              $region75: #{aspp_forward.7} parent=55 // pred_check
                _
              $region76: #{aspp_forward.7} parent=55 // pred_check_branch
                %1079 = sbr.rel (0) target = $region78
              $region77: #{aspp_forward.7} parent=55 // pred_region
                %s1080 = sdiv.u32.pop %s1002, 12
                %s1081 = srem.u32.pop %s1002, 12
                // While loop
                $region79: #{aspp_forward.7} parent=77 // loop_pre_header
                  _
                $region80: #{aspp_forward.7} parent=77 // loop_header
                  %s1083 = sphi 0, %s1085
                  %p1084 = scmp.ge.s32.totalorder %s1083, %s1080
                  %s1088 = sphi 0, %s1117
                  %s1089 = sphi %s986, %s1120
                  %s1090 = sphi %s1001, %s1121
                $region81: #{aspp_forward.7} parent=77 // loop_header_branch
                  %1087 = sbr.rel (%p1084) target = $region85
                $region82: #{aspp_forward.7} parent=77 // loop_body
                  %v1091 = vld [vmem:[%s1089] sm:$0xff]
                  %1092 = vst [vmem:[%s1090] sm:$0xff] %v1091
                  %v1093 = vld [vmem:[%s1089 + $0x8] sm:$0xff]
                  %1094 = vst [vmem:[%s1090 + $0x8] sm:$0xff] %v1093
                  %v1095 = vld [vmem:[%s1089 + $0x10] sm:$0xff]
                  %1096 = vst [vmem:[%s1090 + $0x10] sm:$0xff] %v1095
                  %v1097 = vld [vmem:[%s1089 + $0x18] sm:$0xff]
                  %1098 = vst [vmem:[%s1090 + $0x18] sm:$0xff] %v1097
                  %v1099 = vld [vmem:[%s1089 + $0x20] sm:$0xff]
                  %1100 = vst [vmem:[%s1090 + $0x20] sm:$0xff] %v1099
                  %v1101 = vld [vmem:[%s1089 + $0x28] sm:$0xff]
                  %1102 = vst [vmem:[%s1090 + $0x28] sm:$0xff] %v1101
                  %v1103 = vld [vmem:[%s1089 + $0x30] sm:$0xff]
                  %1104 = vst [vmem:[%s1090 + $0x30] sm:$0xff] %v1103
                  %v1105 = vld [vmem:[%s1089 + $0x38] sm:$0xff]
                  %1106 = vst [vmem:[%s1090 + $0x38] sm:$0xff] %v1105
                  %v1107 = vld [vmem:[%s1089 + $0x40] sm:$0xff]
                  %1108 = vst [vmem:[%s1090 + $0x40] sm:$0xff] %v1107
                  %v1109 = vld [vmem:[%s1089 + $0x48] sm:$0xff]
                  %1110 = vst [vmem:[%s1090 + $0x48] sm:$0xff] %v1109
                  %v1111 = vld [vmem:[%s1089 + $0x50] sm:$0xff]
                  %1112 = vst [vmem:[%s1090 + $0x50] sm:$0xff] %v1111
                  %v1113 = vld [vmem:[%s1089 + $0x58] sm:$0xff]
                  %1114 = vst [vmem:[%s1090 + $0x58] sm:$0xff] %v1113
                  %s1115 = sadd.s32 1, %s1088
                  %p1116 = scmp.ge.s32.totalorder %s1115, %s1080
                  %s1117 = scalar_select %p1116, 0, %s1115
                  %s1118 = smul.u32 %s1117, 96
                  %s1119 = smul.u32 %s1117, 96
                  %s1120 = scalar_lea.vmem %s986, %s1118 [#allocation3]
                  %s1121 = scalar_lea.vmem %s1001, %s1119
                $region83: #{aspp_forward.7} parent=77 // loop_footer
                  %s1085 = sadd.s32 %s1083, 1
                $region84: #{aspp_forward.7} parent=77 // loop_footer_branch
                  %1082 = sbr.rel target = $region80
                $region85: #{aspp_forward.7} parent=77 // loop_exit
                  _
                %s1122 = sdiv.u32.pop %s1002, 12
                %s1123 = srem.u32.pop %s1002, 12
                %s1124 = smul.u32 %s1122, 12
                %s1125 = smul.u32 8, %s1124
                %s1126 = scalar_lea.vmem %s986, %s1125 [#allocation3]
                %s1127 = smul.u32 8, %s1124
                %s1128 = scalar_lea.vmem %s1001, %s1127
                // While loop
                $region86: #{aspp_forward.7} parent=77 // loop_pre_header
                  _
                $region87: #{aspp_forward.7} parent=77 // loop_header
                  %s1130 = sphi 0, %s1132
                  %p1131 = scmp.ge.s32.totalorder %s1130, %s1123
                  %s1135 = sphi 0, %s1142
                  %s1136 = sphi %s1126, %s1145
                  %s1137 = sphi %s1128, %s1146
                $region88: #{aspp_forward.7} parent=77 // loop_header_branch
                  %1134 = sbr.rel (%p1131) target = $region92
                $region89: #{aspp_forward.7} parent=77 // loop_body
                  %v1138 = vld [vmem:[%s1136] sm:$0xff]
                  %1139 = vst [vmem:[%s1137] sm:$0xff] %v1138
                  %s1140 = sadd.s32 1, %s1135
                  %p1141 = scmp.ge.s32.totalorder %s1140, %s1123
                  %s1142 = scalar_select %p1141, 0, %s1140
                  %s1143 = smul.u32 %s1142, 8
                  %s1144 = smul.u32 %s1142, 8
                  %s1145 = scalar_lea.vmem %s1126, %s1143 [#allocation3]
                  %s1146 = scalar_lea.vmem %s1128, %s1144
                $region90: #{aspp_forward.7} parent=77 // loop_footer
                  %s1132 = sadd.s32 %s1130, 1
                $region91: #{aspp_forward.7} parent=77 // loop_footer_branch
                  %1129 = sbr.rel target = $region87
                $region92: #{aspp_forward.7} parent=77 // loop_exit
                  _
              $region78: #{aspp_forward.7} parent=55 // pred_fallthru
                _
              // Predicated region
              $region93: #{aspp_forward.7} parent=55 // pred_check
                _
              $region94: #{aspp_forward.7} parent=55 // pred_check_branch
                %1148 = sbr.rel target = $region96
              $region95: #{aspp_forward.7} parent=55 // pred_region
                _
              $region96: #{aspp_forward.7} parent=55 // pred_fallthru
                _
            $region56: #{aspp_forward.7} parent=51 // pred_fallthru
              _
            // Predicated region
            $region57: #{aspp_forward.7} parent=51 // pred_check
              _
            $region58: #{aspp_forward.7} parent=51 // pred_check_branch
              %1009 = sbr.rel target = $region60
            $region59: #{aspp_forward.7} parent=51 // pred_region
              %s1011 = sdiv.u32.pop %s1002, 12
              %s1012 = srem.u32.pop %s1002, 12
              // While loop
              $region61: #{aspp_forward.7} parent=59 // loop_pre_header
                _
              $region62: #{aspp_forward.7} parent=59 // loop_header
                %s1014 = sphi 0, %s1016
                %p1015 = scmp.ge.s32.totalorder %s1014, %s1011
                %s1019 = sphi 0, %s1048
                %s1020 = sphi %s986, %s1051
                %s1021 = sphi %s1001, %s1052
              $region63: #{aspp_forward.7} parent=59 // loop_header_branch
                %1018 = sbr.rel (%p1015) target = $region67
              $region64: #{aspp_forward.7} parent=59 // loop_body
                %v1022 = vld [vmem:[%s1020] sm:$0xff]
                %1023 = vst [vmem:[%s1021] sm:$0xff] %v1022
                %v1024 = vld [vmem:[%s1020 + $0x8] sm:$0xff]
                %1025 = vst [vmem:[%s1021 + $0x8] sm:$0xff] %v1024
                %v1026 = vld [vmem:[%s1020 + $0x10] sm:$0xff]
                %1027 = vst [vmem:[%s1021 + $0x10] sm:$0xff] %v1026
                %v1028 = vld [vmem:[%s1020 + $0x18] sm:$0xff]
                %1029 = vst [vmem:[%s1021 + $0x18] sm:$0xff] %v1028
                %v1030 = vld [vmem:[%s1020 + $0x20] sm:$0xff]
                %1031 = vst [vmem:[%s1021 + $0x20] sm:$0xff] %v1030
                %v1032 = vld [vmem:[%s1020 + $0x28] sm:$0xff]
                %1033 = vst [vmem:[%s1021 + $0x28] sm:$0xff] %v1032
                %v1034 = vld [vmem:[%s1020 + $0x30] sm:$0xff]
                %1035 = vst [vmem:[%s1021 + $0x30] sm:$0xff] %v1034
                %v1036 = vld [vmem:[%s1020 + $0x38] sm:$0xff]
                %1037 = vst [vmem:[%s1021 + $0x38] sm:$0xff] %v1036
                %v1038 = vld [vmem:[%s1020 + $0x40] sm:$0xff]
                %1039 = vst [vmem:[%s1021 + $0x40] sm:$0xff] %v1038
                %v1040 = vld [vmem:[%s1020 + $0x48] sm:$0xff]
                %1041 = vst [vmem:[%s1021 + $0x48] sm:$0xff] %v1040
                %v1042 = vld [vmem:[%s1020 + $0x50] sm:$0xff]
                %1043 = vst [vmem:[%s1021 + $0x50] sm:$0xff] %v1042
                %v1044 = vld [vmem:[%s1020 + $0x58] sm:$0xff]
                %1045 = vst [vmem:[%s1021 + $0x58] sm:$0xff] %v1044
                %s1046 = sadd.s32 1, %s1019
                %p1047 = scmp.ge.s32.totalorder %s1046, %s1011
                %s1048 = scalar_select %p1047, 0, %s1046
                %s1049 = smul.u32 %s1048, 96
                %s1050 = smul.u32 %s1048, 96
                %s1051 = scalar_lea.vmem %s986, %s1049 [#allocation3]
                %s1052 = scalar_lea.vmem %s1001, %s1050
              $region65: #{aspp_forward.7} parent=59 // loop_footer
                %s1016 = sadd.s32 %s1014, 1
              $region66: #{aspp_forward.7} parent=59 // loop_footer_branch
                %1013 = sbr.rel target = $region62
              $region67: #{aspp_forward.7} parent=59 // loop_exit
                _
              %s1053 = sdiv.u32.pop %s1002, 12
              %s1054 = srem.u32.pop %s1002, 12
              %s1055 = smul.u32 %s1053, 12
              %s1056 = smul.u32 8, %s1055
              %s1057 = scalar_lea.vmem %s986, %s1056 [#allocation3]
              %s1058 = smul.u32 8, %s1055
              %s1059 = scalar_lea.vmem %s1001, %s1058
              // While loop
              $region68: #{aspp_forward.7} parent=59 // loop_pre_header
                _
              $region69: #{aspp_forward.7} parent=59 // loop_header
                %s1061 = sphi 0, %s1063
                %p1062 = scmp.ge.s32.totalorder %s1061, %s1054
                %s1066 = sphi 0, %s1073
                %s1067 = sphi %s1057, %s1076
                %s1068 = sphi %s1059, %s1077
              $region70: #{aspp_forward.7} parent=59 // loop_header_branch
                %1065 = sbr.rel (%p1062) target = $region74
              $region71: #{aspp_forward.7} parent=59 // loop_body
                %v1069 = vld [vmem:[%s1067] sm:$0xff]
                %1070 = vst [vmem:[%s1068] sm:$0xff] %v1069
                %s1071 = sadd.s32 1, %s1066
                %p1072 = scmp.ge.s32.totalorder %s1071, %s1054
                %s1073 = scalar_select %p1072, 0, %s1071
                %s1074 = smul.u32 %s1073, 8
                %s1075 = smul.u32 %s1073, 8
                %s1076 = scalar_lea.vmem %s1057, %s1074 [#allocation3]
                %s1077 = scalar_lea.vmem %s1059, %s1075
              $region72: #{aspp_forward.7} parent=59 // loop_footer
                %s1063 = sadd.s32 %s1061, 1
              $region73: #{aspp_forward.7} parent=59 // loop_footer_branch
                %1060 = sbr.rel target = $region69
              $region74: #{aspp_forward.7} parent=59 // loop_exit
                _
            $region60: #{aspp_forward.7} parent=51 // pred_fallthru
              _
          $region52: #{aspp_forward.7} parent=47 // pred_fallthru
            _
          %1149 = vnop
        $region48: #{aspp_forward.7} parent=35 // pred_fallthru
          _
      $region36: #{aspp_forward.7} parent=5 // pred_fallthru
        _
      %p1150 = scmp.le.s32.totalorder 2, %s10
      // Predicated region
      $region97: #{aspp_forward.7} parent=5 // pred_check
        %p1151 = pneg %p1150
      $region98: #{aspp_forward.7} parent=5 // pred_check_branch
        %1153 = sbr.rel (%p1151) target = $region100
      $region99: #{aspp_forward.7} parent=5 // pred_region
        %s1154 = ssub.s32 %s10, 2
        // Predicated region
        $region101: #{aspp_forward.7} parent=99 // pred_check
          %p1155 = pneg %p171
        $region102: #{aspp_forward.7} parent=99 // pred_check_branch
          %1157 = sbr.rel (%p1155) target = $region104
        $region103: #{aspp_forward.7} parent=99 // pred_region
          %s1158 = sand.u32 %s156, 1
          %s1159 = sand.u32 %s156, 1
          %s1160 = smul.addr %s1159, 96
          %s1161 = scalar_lea.vmem [#allocation3], %s1160
        $region104: #{aspp_forward.7} parent=99 // pred_fallthru
          _
      $region100: #{aspp_forward.7} parent=5 // pred_fallthru
        _
    $region6: #{aspp_forward.7} parent=1 // loop_footer
      %s14 = sadd.s32 1, %s10
    $region7: #{aspp_forward.7} parent=1 // loop_footer_branch
      %9 = sbr.rel target = $region3
    $region8: #{aspp_forward.7} parent=1 // loop_exit
      _

// kernel: aspp_forward.6
$region0: #{aspp_forward.6}
  #allocation0 [shape = 'u32[]', space=smem, size = 0x4, offset = 0x4, fixed_abs, tag = 'smem constant byte address 0x4 - core index']
  #allocation1 [shape = 'u32[144,128]{1,0:T(1,128)}', space=vmem, size = 0x12000, scoped, tag = 'internal scratch']
  %s0 = inlined_call_operand.vmem [shape: f32[2,256,4], index: 0, kind: input, shape index: {}]
  %s1 = inlined_call_operand.vmem [shape: f32[4,8], index: 1, kind: input, shape index: {}]
  %s2 = inlined_call_operand.vmem [shape: f32[1,8], index: 2, kind: input, shape index: {}]
  %s3 = inlined_call_operand.vmem [shape: f32[1,8], index: 3, kind: input, shape index: {}]
  %s4 = inlined_call_operand.vmem [shape: f32[2,256,8], index: 4, kind: output, shape index: {}]
  %s5 = sld [smem:[#allocation0]]
  $region49: #{aspp_forward.6} parent=0
    _
  %s7 = ssub.s32 1, %s5
  %s8 = scalar_select 0, %s7, %s5
  loop: start=0, step=1, limit=6
  $region2: #{aspp_forward.6} parent=0 // loop_pre_header
    _
  $region3: #{aspp_forward.6} parent=0 // loop_header
    %s10 = sphi 0, %s14
    %p11 = scmp.ge.s32.totalorder %s10, 6
    %s17 = sphi 0, %s29
    %s18 = sphi 0, %s25
    %s19 = sphi 0, %s17
    %s20 = sphi 0, %s18
    %s21 = sphi 0, %s19
    %s22 = sphi 0, %s20
    %s34 = sphi 0, %s36
    %s37 = sphi 0, %s34
    %s38 = sphi 0, %s37
    %s54 = sphi 0, %s38
    %s58 = sphi 0, %s58
    %s60 = sphi 0, %s58
    %s61 = sphi 0, %s60
    %s75 = sphi 0, %s61
    %s79 = sphi 0, %s79
    %s81 = sphi 0, %s79
    %s82 = sphi 0, %s81
    %s96 = sphi 0, %s82
    %s100 = sphi 0, %s100
    %s102 = sphi 0, %s100
    %s103 = sphi 0, %s102
    %s117 = sphi 0, %s103
    %s125 = sphi 0, %s127
    %s128 = sphi 0, %s125
    %s129 = sphi 0, %s128
    %s145 = sphi 0, %s129
  $region4: #{aspp_forward.6} parent=0 // loop_header_branch
    %13 = sbr.rel (%p11) target = $region8
  $region5: #{aspp_forward.6} parent=0 // loop_body
    %s15 = ssub.s32 %s10, 1
    %s16 = ssub.s32 %s10, 2
    %s23 = sadd.s32 1, %s18
    %p24 = scmp.ge.s32.totalorder %s23, 2
    %s25 = scalar_select %p24, 0, %s23
    %s26 = sadd.s32 1, %s17
    %s27 = scalar_select %p24, %s26, %s17
    %p28 = scmp.ge.s32.totalorder %s27, 2
    %s29 = scalar_select %p28, 0, %s27
    %s30 = ssub.s32 %s17, %s29
    %s31 = ssub.s32 %s18, %s25
    %s32 = sor.u32 %s30, %s31
    %p33 = scmp.eq.s32.totalorder %s32, 0
    %s35 = sadd.s32 %s34, 1
    %s36 = scalar_select %p33, %s34, %s35
    %p39 = pneg %p33
    %p40 = scmp.eq.s32.totalorder %s10, 3
    %p41 = por %p39, %p40
    %p42 = scmp.ne.s32.totalorder %s34, %s37
    %p43 = scmp.eq.s32.totalorder %s10, 0
    %p44 = por %p42, %p43
    %p45 = scmp.ne.s32.totalorder %s34, %s37
    %p46 = scmp.eq.s32.totalorder %s15, 3
    %p47 = por %p45, %p46
    %p48 = scmp.ne.s32.totalorder %s37, %s38
    %p49 = scmp.eq.s32.totalorder %s15, 0
    %p50 = por %p48, %p49
    %p51 = scmp.ne.s32.totalorder %s37, %s38
    %p52 = scmp.eq.s32.totalorder %s16, 3
    %p53 = por %p51, %p52
    %p55 = scmp.ne.s32.totalorder %s38, %s54
    %p56 = scmp.eq.s32.totalorder %s16, 0
    %p57 = por %p55, %p56
    %s59 = sadd.s32 %s58, 1
    %p62 = scmp.eq.s32.totalorder %s10, 3
    %p63 = scmp.ne.s32.totalorder %s58, %s60
    %p64 = scmp.eq.s32.totalorder %s10, 0
    %p65 = por %p63, %p64
    %p66 = scmp.ne.s32.totalorder %s58, %s60
    %p67 = scmp.eq.s32.totalorder %s15, 3
    %p68 = por %p66, %p67
    %p69 = scmp.ne.s32.totalorder %s60, %s61
    %p70 = scmp.eq.s32.totalorder %s15, 0
    %p71 = por %p69, %p70
    %p72 = scmp.ne.s32.totalorder %s60, %s61
    %p73 = scmp.eq.s32.totalorder %s16, 3
    %p74 = por %p72, %p73
    %p76 = scmp.ne.s32.totalorder %s61, %s75
    %p77 = scmp.eq.s32.totalorder %s16, 0
    %p78 = por %p76, %p77
    %s80 = sadd.s32 %s79, 1
    %p83 = scmp.eq.s32.totalorder %s10, 3
    %p84 = scmp.ne.s32.totalorder %s79, %s81
    %p85 = scmp.eq.s32.totalorder %s10, 0
    %p86 = por %p84, %p85
    %p87 = scmp.ne.s32.totalorder %s79, %s81
    %p88 = scmp.eq.s32.totalorder %s15, 3
    %p89 = por %p87, %p88
    %p90 = scmp.ne.s32.totalorder %s81, %s82
    %p91 = scmp.eq.s32.totalorder %s15, 0
    %p92 = por %p90, %p91
    %p93 = scmp.ne.s32.totalorder %s81, %s82
    %p94 = scmp.eq.s32.totalorder %s16, 3
    %p95 = por %p93, %p94
    %p97 = scmp.ne.s32.totalorder %s82, %s96
    %p98 = scmp.eq.s32.totalorder %s16, 0
    %p99 = por %p97, %p98
    %s101 = sadd.s32 %s100, 1
    %p104 = scmp.eq.s32.totalorder %s10, 3
    %p105 = scmp.ne.s32.totalorder %s100, %s102
    %p106 = scmp.eq.s32.totalorder %s10, 0
    %p107 = por %p105, %p106
    %p108 = scmp.ne.s32.totalorder %s100, %s102
    %p109 = scmp.eq.s32.totalorder %s15, 3
    %p110 = por %p108, %p109
    %p111 = scmp.ne.s32.totalorder %s102, %s103
    %p112 = scmp.eq.s32.totalorder %s15, 0
    %p113 = por %p111, %p112
    %p114 = scmp.ne.s32.totalorder %s102, %s103
    %p115 = scmp.eq.s32.totalorder %s16, 3
    %p116 = por %p114, %p115
    %p118 = scmp.ne.s32.totalorder %s103, %s117
    %p119 = scmp.eq.s32.totalorder %s16, 0
    %p120 = por %p118, %p119
    %s121 = ssub.s32 %s17, %s29
    %s122 = ssub.s32 %s18, %s25
    %s123 = sor.u32 %s121, %s122
    %p124 = scmp.eq.s32.totalorder %s123, 0
    %s126 = sadd.s32 %s125, 1
    %s127 = scalar_select %p124, %s125, %s126
    %p130 = pneg %p124
    %p131 = scmp.eq.s32.totalorder %s10, 3
    %p132 = por %p130, %p131
    %p133 = scmp.ne.s32.totalorder %s125, %s128
    %p134 = scmp.eq.s32.totalorder %s10, 0
    %p135 = por %p133, %p134
    %p136 = scmp.ne.s32.totalorder %s125, %s128
    %p137 = scmp.eq.s32.totalorder %s15, 3
    %p138 = por %p136, %p137
    %p139 = scmp.ne.s32.totalorder %s128, %s129
    %p140 = scmp.eq.s32.totalorder %s15, 0
    %p141 = por %p139, %p140
    %p142 = scmp.ne.s32.totalorder %s128, %s129
    %p143 = scmp.eq.s32.totalorder %s16, 3
    %p144 = por %p142, %p143
    %p146 = scmp.ne.s32.totalorder %s129, %s145
    %p147 = scmp.eq.s32.totalorder %s16, 0
    %p148 = por %p146, %p147
    %p149 = scmp.le.s32.totalorder 1, %s10
    %p150 = scmp.lt.s32.totalorder %s10, 5
    %p151 = pnand %p149, %p150
    %p152 = pneg %p151
    // Predicated region
    $region9: #{aspp_forward.6} parent=5 // pred_check
      _
    $region10: #{aspp_forward.6} parent=5 // pred_check_branch
      %154 = sbr.rel (%p151) target = $region12
    $region11: #{aspp_forward.6} parent=5 // pred_region
      %s155 = ssub.s32 %s10, 1
      // Predicated region
      $region13: #{aspp_forward.6} parent=11 // pred_check
        %p156 = pneg %p71
      $region14: #{aspp_forward.6} parent=11 // pred_check_branch
        %158 = sbr.rel (%p156) target = $region16
      $region15: #{aspp_forward.6} parent=11 // pred_region
        _
      $region16: #{aspp_forward.6} parent=11 // pred_fallthru
        _
      // Predicated region
      $region17: #{aspp_forward.6} parent=11 // pred_check
        %p159 = pneg %p92
      $region18: #{aspp_forward.6} parent=11 // pred_check_branch
        %161 = sbr.rel (%p159) target = $region20
      $region19: #{aspp_forward.6} parent=11 // pred_region
        _
      $region20: #{aspp_forward.6} parent=11 // pred_fallthru
        _
      // Predicated region
      $region21: #{aspp_forward.6} parent=11 // pred_check
        %p162 = pneg %p113
      $region22: #{aspp_forward.6} parent=11 // pred_check_branch
        %164 = sbr.rel (%p162) target = $region24
      $region23: #{aspp_forward.6} parent=11 // pred_region
        _
      $region24: #{aspp_forward.6} parent=11 // pred_fallthru
        _
    $region12: #{aspp_forward.6} parent=5 // pred_fallthru
      _
    %p165 = scmp.lt.s32.totalorder %s10, 4
    // Predicated region
    $region25: #{aspp_forward.6} parent=5 // pred_check
      %p166 = pneg %p165
    $region26: #{aspp_forward.6} parent=5 // pred_check_branch
      %168 = sbr.rel (%p166) target = $region28
    $region27: #{aspp_forward.6} parent=5 // pred_region
      // Predicated region
      $region29: #{aspp_forward.6} parent=27 // pred_check
        %p169 = pneg %p44
      $region30: #{aspp_forward.6} parent=27 // pred_check_branch
        %171 = sbr.rel (%p169) target = $region32
      $region31: #{aspp_forward.6} parent=27 // pred_region
        %s172 = smul.u32 16, %s18
        %p173 = scmp.lt.s32.totalorder %s17, 1
        %s174 = scalar_select %p173, %s17, 1
        %p175 = scmp.lt.s32.totalorder %s172, 31
        %s176 = scalar_select %p175, %s172, 31
        %s177 = smul.addr %s174, 32
        %s178 = sadd.s32 %s176, %s177
        %s179 = smul.addr %s178, 8
        %s180 = scalar_lea.vmem %s0, %s179
        %s181 = smul.u32 16, %s18
      $region32: #{aspp_forward.6} parent=27 // pred_fallthru
        _
    $region28: #{aspp_forward.6} parent=5 // pred_fallthru
      _
    %p182 = scmp.le.s32.totalorder 1, %s10
    %p183 = scmp.lt.s32.totalorder %s10, 5
    %p184 = pnand %p182, %p183
    %p185 = pneg %p184
    // Predicated region
    $region33: #{aspp_forward.6} parent=5 // pred_check
      _
    $region34: #{aspp_forward.6} parent=5 // pred_check_branch
      %187 = sbr.rel (%p184) target = $region36
    $region35: #{aspp_forward.6} parent=5 // pred_region
      %s188 = ssub.s32 %s10, 1
      %s189 = smul.u32 16, %s20
      %p190 = scmp.lt.s32.totalorder %s19, 1
      %s191 = scalar_select %p190, %s19, 1
      %p192 = scmp.lt.s32.totalorder %s189, 31
      %s193 = scalar_select %p192, %s189, 31
      %s194 = smul.addr %s191, 32
      %s195 = sadd.s32 %s193, %s194
      %s196 = smul.addr %s195, 8
      %s197 = scalar_lea.vmem %s0, %s196
      %p198 = pneg %p50
      %p199 = pneg %p47
      %p200 = pneg %p71
      %p201 = pneg %p68
      %p202 = pneg %p92
      %p203 = pneg %p89
      %p204 = pneg %p113
      %p205 = pneg %p110
      %p206 = pneg %p141
      %p207 = pneg %p138
      %s208 = smul.u32 16, %s20
      %p209 = scmp.lt.s32.totalorder %s19, 1
      %s210 = scalar_select %p209, %s19, 1
      %p211 = scmp.lt.s32.totalorder %s208, 31
      %s212 = scalar_select %p211, %s208, 31
      %s213 = smul.addr %s210, 32
      %s214 = sadd.s32 %s212, %s213
      %s215 = smul.addr %s214, 8
      %s216 = scalar_lea.vmem %s4, %s215
      %s217 = smul.u32 16, %s20
      %p218 = scmp.lt.s32.totalorder %s19, 1
      %s219 = scalar_select %p218, %s19, 1
      %p220 = scmp.lt.s32.totalorder %s217, 31
      %s221 = scalar_select %p220, %s217, 31
      %s222 = smul.addr %s219, 32
      %s223 = sadd.s32 %s221, %s222
      %s224 = smul.addr %s223, 8
      %s225 = scalar_lea.vmem %s0, %s224
      %s226 = smul.u32 16, %s20
      %s227 = smul.u32 16, %s20
      %p228 = scmp.lt.s32.totalorder %s19, 1
      %s229 = scalar_select %p228, %s19, 1
      %p230 = scmp.lt.s32.totalorder %s227, 31
      %s231 = scalar_select %p230, %s227, 31
      %s232 = smul.addr %s229, 32
      %s233 = sadd.s32 %s231, %s232
      %s234 = smul.addr %s233, 8
      %s235 = scalar_lea.vmem %s4, %s234
      %s236 = smul.u32 16, %s20
      %v237 = vld [vmem:[%s225] sm:$0xff]
      %v238 = vld [vmem:[%s225 + $0x8] sm:$0xff]
      %v239 = vld [vmem:[%s225 + $0x10] sm:$0xff]
      %v240 = vld [vmem:[%s225 + $0x18] sm:$0xff]
      %v241 = vld [vmem:[%s225 + $0x20] sm:$0xff]
      %v242 = vld [vmem:[%s225 + $0x28] sm:$0xff]
      %v243 = vld [vmem:[%s225 + $0x30] sm:$0xff]
      %v244 = vld [vmem:[%s225 + $0x38] sm:$0xff]
      %v245 = vld [vmem:[%s225 + $0x40] sm:$0xff]
      %v246 = vld [vmem:[%s225 + $0x48] sm:$0xff]
      %v247 = vld [vmem:[%s225 + $0x50] sm:$0xff]
      %v248 = vld [vmem:[%s225 + $0x58] sm:$0xff]
      %v249 = vld [vmem:[%s225 + $0x60] sm:$0xff]
      %v250 = vld [vmem:[%s225 + $0x68] sm:$0xff]
      %v251 = vld [vmem:[%s225 + $0x70] sm:$0xff]
      %v252 = vld [vmem:[%s225 + $0x78] sm:$0xff]
      %v253 = vld [vmem:[%s1] sm:$0xf]
      %vm254 = vcmask 31744
      %v256 = vsel %vm254, %v237, 0
      %v259 = vsel %vm254, %v238, 0
      %v262 = vsel %vm254, %v239, 0
      %v265 = vsel %vm254, %v240, 0
      %v268 = vsel %vm254, %v241, 0
      %v271 = vsel %vm254, %v242, 0
      %v274 = vsel %vm254, %v243, 0
      %v277 = vsel %vm254, %v244, 0
      %v280 = vsel %vm254, %v245, 0
      %v283 = vsel %vm254, %v246, 0
      %v286 = vsel %vm254, %v247, 0
      %v289 = vsel %vm254, %v248, 0
      %v292 = vsel %vm254, %v249, 0
      %v295 = vsel %vm254, %v250, 0
      %v298 = vsel %vm254, %v251, 0
      %v301 = vsel %vm254, %v252, 0
      %vm303 = vcmask 1043456
      %v305 = vsel %vm303, %v253, 0
      %307 = vmatprep.subr.mxu0 0.0
      %308 = vmatpush1.msra.mxu0 %v305
      %309 = vmatprep.subr.mxu0 0.0
      %310 = vmatpush1.msra.mxu0 0.0
      %311 = vmatprep.subr.mxu0 0.0
      %312 = vmatpush1.msra.mxu0 0.0
      %313 = vmatprep.subr.mxu0 0.0
      %314 = vmatpush1.msra.mxu0 0.0
      %315 = vmatprep.subr.mxu0 0.0
      %316 = vmatpush1.msra.mxu0 0.0
      %317 = vmatprep.subr.mxu0 0.0
      %318 = vmatpush1.msra.mxu0 0.0
      %319 = vmatprep.subr.mxu0 0.0
      %320 = vmatpush1.msra.mxu0 0.0
      %321 = vmatprep.subr.mxu0 0.0
      %322 = vmatpush1.msra.mxu0 0.0
      %323 = vmatprep.subr.mxu0 0.0
      %324 = vmatpush1.msra.mxu0 0.0
      %325 = vmatprep.subr.mxu0 0.0
      %326 = vmatpush1.msra.mxu0 0.0
      %327 = vmatprep.subr.mxu0 0.0
      %328 = vmatpush1.msra.mxu0 0.0
      %329 = vmatprep.subr.mxu0 0.0
      %330 = vmatpush1.msra.mxu0 0.0
      %331 = vmatprep.subr.mxu0 0.0
      %332 = vmatpush1.msra.mxu0 0.0
      %333 = vmatprep.subr.mxu0 0.0
      %334 = vmatpush1.msra.mxu0 0.0
      %335 = vmatprep.subr.mxu0 0.0
      %336 = vmatpush1.msra.mxu0 0.0
      %337 = vmatprep.subr.mxu0 0.0
      %338 = vmatpush1.msra.mxu0 0.0
      %339 = vmatprep.subr.mxu0 0.0
      %340 = vmatpush1.msra.mxu0 0.0
      %341 = vmatprep.subr.mxu0 0.0
      %342 = vmatpush1.msra.mxu0 0.0
      %343 = vmatprep.subr.mxu0 0.0
      %344 = vmatpush1.msra.mxu0 0.0
      %345 = vmatprep.subr.mxu0 0.0
      %346 = vmatpush1.msra.mxu0 0.0
      %347 = vmatprep.subr.mxu0 0.0
      %348 = vmatpush1.msra.mxu0 0.0
      %349 = vmatprep.subr.mxu0 0.0
      %350 = vmatpush1.msra.mxu0 0.0
      %351 = vmatprep.subr.mxu0 0.0
      %352 = vmatpush1.msra.mxu0 0.0
      %353 = vmatprep.subr.mxu0 0.0
      %354 = vmatpush1.msra.mxu0 0.0
      %355 = vmatprep.subr.mxu0 0.0
      %356 = vmatpush1.msra.mxu0 0.0
      %357 = vmatprep.subr.mxu0 0.0
      %358 = vmatpush1.msra.mxu0 0.0
      %359 = vmatprep.subr.mxu0 0.0
      %360 = vmatpush1.msra.mxu0 0.0
      %361 = vmatprep.subr.mxu0 0.0
      %362 = vmatpush1.msra.mxu0 0.0
      %363 = vmatprep.subr.mxu0 0.0
      %364 = vmatpush1.msra.mxu0 0.0
      %365 = vmatprep.subr.mxu0 0.0
      %366 = vmatpush1.msra.mxu0 0.0
      %367 = vmatprep.subr.mxu0 0.0
      %368 = vmatpush1.msra.mxu0 0.0
      %369 = vmatprep.subr.mxu0 0.0
      %370 = vmatpush1.msra.mxu0 0.0
      %371 = vmatprep.mubr.f32.mxu0 0.0
      %372 = vmatmul.mubr.f32.gmra.mrb[0].mxu0 %v256
      %v373 = vpop.f32.mrb[0].mxu0
      %v374 = vadd.f32 0.0, %v373
      %v375 = vpop.f32.mrb[0].mxu0
      %376 = vmatprep.mubr.f32.mxu0 0.0
      %377 = vmatmul.mubr.f32.gmra.mrb[0].mxu0 %v259
      %v378 = vpop.f32.mrb[0].mxu0
      %v379 = vadd.f32 0.0, %v378
      %v380 = vpop.f32.mrb[0].mxu0
      %381 = vmatprep.mubr.f32.mxu0 0.0
      %382 = vmatmul.mubr.f32.gmra.mrb[0].mxu0 %v262
      %v383 = vpop.f32.mrb[0].mxu0
      %v384 = vadd.f32 0.0, %v383
      %v385 = vpop.f32.mrb[0].mxu0
      %386 = vmatprep.mubr.f32.mxu0 0.0
      %387 = vmatmul.mubr.f32.gmra.mrb[0].mxu0 %v265
      %v388 = vpop.f32.mrb[0].mxu0
      %v389 = vadd.f32 0.0, %v388
      %v390 = vpop.f32.mrb[0].mxu0
      %391 = vmatprep.mubr.f32.mxu0 0.0
      %392 = vmatmul.mubr.f32.gmra.mrb[0].mxu0 %v268
      %v393 = vpop.f32.mrb[0].mxu0
      %v394 = vadd.f32 0.0, %v393
      %v395 = vpop.f32.mrb[0].mxu0
      %396 = vmatprep.mubr.f32.mxu0 0.0
      %397 = vmatmul.mubr.f32.gmra.mrb[0].mxu0 %v271
      %v398 = vpop.f32.mrb[0].mxu0
      %v399 = vadd.f32 0.0, %v398
      %v400 = vpop.f32.mrb[0].mxu0
      %401 = vmatprep.mubr.f32.mxu0 0.0
      %402 = vmatmul.mubr.f32.gmra.mrb[0].mxu0 %v274
      %v403 = vpop.f32.mrb[0].mxu0
      %v404 = vadd.f32 0.0, %v403
      %v405 = vpop.f32.mrb[0].mxu0
      %406 = vmatprep.mubr.f32.mxu0 0.0
      %407 = vmatmul.mubr.f32.gmra.mrb[0].mxu0 %v277
      %v408 = vpop.f32.mrb[0].mxu0
      %v409 = vadd.f32 0.0, %v408
      %v410 = vpop.f32.mrb[0].mxu0
      %411 = vmatprep.mubr.f32.mxu0 0.0
      %412 = vmatmul.mubr.f32.gmra.mrb[0].mxu0 %v280
      %v413 = vpop.f32.mrb[0].mxu0
      %v414 = vadd.f32 0.0, %v413
      %v415 = vpop.f32.mrb[0].mxu0
      %416 = vmatprep.mubr.f32.mxu0 0.0
      %417 = vmatmul.mubr.f32.gmra.mrb[0].mxu0 %v283
      %v418 = vpop.f32.mrb[0].mxu0
      %v419 = vadd.f32 0.0, %v418
      %v420 = vpop.f32.mrb[0].mxu0
      %421 = vmatprep.mubr.f32.mxu0 0.0
      %422 = vmatmul.mubr.f32.gmra.mrb[0].mxu0 %v286
      %v423 = vpop.f32.mrb[0].mxu0
      %v424 = vadd.f32 0.0, %v423
      %v425 = vpop.f32.mrb[0].mxu0
      %426 = vmatprep.mubr.f32.mxu0 0.0
      %427 = vmatmul.mubr.f32.gmra.mrb[0].mxu0 %v289
      %v428 = vpop.f32.mrb[0].mxu0
      %v429 = vadd.f32 0.0, %v428
      %v430 = vpop.f32.mrb[0].mxu0
      %431 = vmatprep.mubr.f32.mxu0 0.0
      %432 = vmatmul.mubr.f32.gmra.mrb[0].mxu0 %v292
      %v433 = vpop.f32.mrb[0].mxu0
      %v434 = vadd.f32 0.0, %v433
      %v435 = vpop.f32.mrb[0].mxu0
      %436 = vmatprep.mubr.f32.mxu0 0.0
      %437 = vmatmul.mubr.f32.gmra.mrb[0].mxu0 %v295
      %v438 = vpop.f32.mrb[0].mxu0
      %v439 = vadd.f32 0.0, %v438
      %v440 = vpop.f32.mrb[0].mxu0
      %441 = vmatprep.mubr.f32.mxu0 0.0
      %442 = vmatmul.mubr.f32.gmra.mrb[0].mxu0 %v298
      %v443 = vpop.f32.mrb[0].mxu0
      %v444 = vadd.f32 0.0, %v443
      %v445 = vpop.f32.mrb[0].mxu0
      %446 = vmatprep.mubr.f32.mxu0 0.0
      %447 = vmatmul.mubr.f32.gmra.mrb[0].mxu0 %v301
      %v448 = vpop.f32.mrb[0].mxu0
      %v449 = vadd.f32 0.0, %v448
      %v450 = vpop.f32.mrb[0].mxu0
      %451 = vdwg.mxu0
      %v452 = vld [vmem:[%s2] sm:$0x1]
      %v454 = vlaneseq
      %v455 = vshrl.u32 %v454, 7
      %v456 = vsub.s32 0, %v455
      %v457 = vrot.slane %v452, %v456
      %v459 = vmul.f32 %v374, %v457
      %v460 = vmul.f32 %v379, %v457
      %v461 = vmul.f32 %v384, %v457
      %v462 = vmul.f32 %v389, %v457
      %v463 = vmul.f32 %v394, %v457
      %v464 = vmul.f32 %v399, %v457
      %v465 = vmul.f32 %v404, %v457
      %v466 = vmul.f32 %v409, %v457
      %v467 = vmul.f32 %v414, %v457
      %v468 = vmul.f32 %v419, %v457
      %v469 = vmul.f32 %v424, %v457
      %v470 = vmul.f32 %v429, %v457
      %v471 = vmul.f32 %v434, %v457
      %v472 = vmul.f32 %v439, %v457
      %v473 = vmul.f32 %v444, %v457
      %v474 = vmul.f32 %v449, %v457
      %v475 = vld [vmem:[%s3] sm:$0x1]
      %v477 = vlaneseq
      %v478 = vshrl.u32 %v477, 7
      %v479 = vsub.s32 0, %v478
      %v480 = vrot.slane %v475, %v479
      %v482 = vadd.f32 %v459, %v480
      %v483 = vadd.f32 %v460, %v480
      %v484 = vadd.f32 %v461, %v480
      %v485 = vadd.f32 %v462, %v480
      %v486 = vadd.f32 %v463, %v480
      %v487 = vadd.f32 %v464, %v480
      %v488 = vadd.f32 %v465, %v480
      %v489 = vadd.f32 %v466, %v480
      %v490 = vadd.f32 %v467, %v480
      %v491 = vadd.f32 %v468, %v480
      %v492 = vadd.f32 %v469, %v480
      %v493 = vadd.f32 %v470, %v480
      %v494 = vadd.f32 %v471, %v480
      %v495 = vadd.f32 %v472, %v480
      %v496 = vadd.f32 %v473, %v480
      %v497 = vadd.f32 %v474, %v480
      %v498 = vmax.f32 %v482, 0.0
      %v499 = vmax.f32 %v483, 0.0
      %v500 = vmax.f32 %v484, 0.0
      %v501 = vmax.f32 %v485, 0.0
      %v502 = vmax.f32 %v486, 0.0
      %v503 = vmax.f32 %v487, 0.0
      %v504 = vmax.f32 %v488, 0.0
      %v505 = vmax.f32 %v489, 0.0
      %v506 = vmax.f32 %v490, 0.0
      %v507 = vmax.f32 %v491, 0.0
      %v508 = vmax.f32 %v492, 0.0
      %v509 = vmax.f32 %v493, 0.0
      %v510 = vmax.f32 %v494, 0.0
      %v511 = vmax.f32 %v495, 0.0
      %v512 = vmax.f32 %v496, 0.0
      %v513 = vmax.f32 %v497, 0.0
      %vm514 = vcmask 64512
      %515 = vst.msk [vmem:[%s235] sm:$0xff] %vm514, %v498
      %516 = vst.msk [vmem:[%s235 + $0x8] sm:$0xff] %vm514, %v499
      %517 = vst.msk [vmem:[%s235 + $0x10] sm:$0xff] %vm514, %v500
      %518 = vst.msk [vmem:[%s235 + $0x18] sm:$0xff] %vm514, %v501
      %519 = vst.msk [vmem:[%s235 + $0x20] sm:$0xff] %vm514, %v502
      %520 = vst.msk [vmem:[%s235 + $0x28] sm:$0xff] %vm514, %v503
      %521 = vst.msk [vmem:[%s235 + $0x30] sm:$0xff] %vm514, %v504
      %522 = vst.msk [vmem:[%s235 + $0x38] sm:$0xff] %vm514, %v505
      %523 = vst.msk [vmem:[%s235 + $0x40] sm:$0xff] %vm514, %v506
      %524 = vst.msk [vmem:[%s235 + $0x48] sm:$0xff] %vm514, %v507
      %525 = vst.msk [vmem:[%s235 + $0x50] sm:$0xff] %vm514, %v508
      %526 = vst.msk [vmem:[%s235 + $0x58] sm:$0xff] %vm514, %v509
      %527 = vst.msk [vmem:[%s235 + $0x60] sm:$0xff] %vm514, %v510
      %528 = vst.msk [vmem:[%s235 + $0x68] sm:$0xff] %vm514, %v511
      %529 = vst.msk [vmem:[%s235 + $0x70] sm:$0xff] %vm514, %v512
      %530 = vst.msk [vmem:[%s235 + $0x78] sm:$0xff] %vm514, %v513
      %s531 = smul.u32 16, %s20
      %p532 = scmp.lt.s32.totalorder %s19, 1
      %s533 = scalar_select %p532, %s19, 1
      %p534 = scmp.lt.s32.totalorder %s531, 31
      %s535 = scalar_select %p534, %s531, 31
      %s536 = smul.addr %s533, 32
      %s537 = sadd.s32 %s535, %s536
      %s538 = smul.addr %s537, 8
      %s539 = scalar_lea.vmem %s4, %s538
      // Predicated region
      $region37: #{aspp_forward.6} parent=35 // pred_check
        %p540 = pneg %p138
      $region38: #{aspp_forward.6} parent=35 // pred_check_branch
        %542 = sbr.rel (%p540) target = $region40
      $region39: #{aspp_forward.6} parent=35 // pred_region
        %s543 = smul.u32 16, %s20
      $region40: #{aspp_forward.6} parent=35 // pred_fallthru
        _
    $region36: #{aspp_forward.6} parent=5 // pred_fallthru
      _
    %p544 = scmp.le.s32.totalorder 2, %s10
    // Predicated region
    $region41: #{aspp_forward.6} parent=5 // pred_check
      %p545 = pneg %p544
    $region42: #{aspp_forward.6} parent=5 // pred_check_branch
      %547 = sbr.rel (%p545) target = $region44
    $region43: #{aspp_forward.6} parent=5 // pred_region
      %s548 = ssub.s32 %s10, 2
      // Predicated region
      $region45: #{aspp_forward.6} parent=43 // pred_check
        %p549 = pneg %p144
      $region46: #{aspp_forward.6} parent=43 // pred_check_branch
        %551 = sbr.rel (%p549) target = $region48
      $region47: #{aspp_forward.6} parent=43 // pred_region
        %s552 = smul.u32 16, %s22
        %p553 = scmp.lt.s32.totalorder %s21, 1
        %s554 = scalar_select %p553, %s21, 1
        %p555 = scmp.lt.s32.totalorder %s552, 31
        %s556 = scalar_select %p555, %s552, 31
        %s557 = smul.addr %s554, 32
        %s558 = sadd.s32 %s556, %s557
        %s559 = smul.addr %s558, 8
        %s560 = scalar_lea.vmem %s4, %s559
      $region48: #{aspp_forward.6} parent=43 // pred_fallthru
        _
    $region44: #{aspp_forward.6} parent=5 // pred_fallthru
      _
  $region6: #{aspp_forward.6} parent=0 // loop_footer
    %s14 = sadd.s32 1, %s10
  $region7: #{aspp_forward.6} parent=0 // loop_footer_branch
    %9 = sbr.rel target = $region3
  $region8: #{aspp_forward.6} parent=0 // loop_exit
    _

// kernel: aspp_forward.10
$region0: #{aspp_forward.10}
  #allocation0 [shape = 'u32[]', space=smem, size = 0x4, offset = 0x4, fixed_abs, tag = 'smem constant byte address 0x4 - core index']
  #allocation1 [shape = 'u32[144,128]{1,0:T(1,128)}', space=vmem, size = 0x12000, scoped, tag = 'internal scratch']
  #allocation2 [shape = 'f32[1,4]{1,0:T(1,128)}', space=vmem, size = 0x200, scoped, tag = 'scratch operand']
  %s0 = inlined_call_operand.vmem [shape: f32[2,16,16,4], index: 0, kind: input, shape index: {}]
  %s1 = inlined_call_operand.vmem [shape: f32[4,8], index: 1, kind: input, shape index: {}]
  %s2 = inlined_call_operand.vmem [shape: f32[2,1,8], index: 2, kind: output, shape index: {}]
  %s3 = sld [smem:[#allocation0]]
  $region49: #{aspp_forward.10} parent=0
    _
  %s5 = ssub.s32 1, %s3
  %s6 = scalar_select 0, %s5, %s3
  loop: start=0, step=1, limit=6
  $region2: #{aspp_forward.10} parent=0 // loop_pre_header
    _
  $region3: #{aspp_forward.10} parent=0 // loop_header
    %s8 = sphi 0, %s12
    %p9 = scmp.ge.s32.totalorder %s8, 6
    %s15 = sphi 0, %s27
    %s16 = sphi 0, %s23
    %s17 = sphi 0, %s15
    %s18 = sphi 0, %s16
    %s19 = sphi 0, %s17
    %s20 = sphi 0, %s18
    %s32 = sphi 0, %s34
    %s35 = sphi 0, %s32
    %s36 = sphi 0, %s35
    %s52 = sphi 0, %s36
    %s56 = sphi 0, %s56
    %s58 = sphi 0, %s56
    %s59 = sphi 0, %s58
    %s73 = sphi 0, %s59
    %s79 = sphi 0, %s81
    %s82 = sphi 0, %s79
    %s83 = sphi 0, %s82
    %s99 = sphi 0, %s83
  $region4: #{aspp_forward.10} parent=0 // loop_header_branch
    %11 = sbr.rel (%p9) target = $region8
  $region5: #{aspp_forward.10} parent=0 // loop_body
    %s13 = ssub.s32 %s8, 1
    %s14 = ssub.s32 %s8, 2
    %s21 = sadd.s32 1, %s16
    %p22 = scmp.ge.s32.totalorder %s21, 2
    %s23 = scalar_select %p22, 0, %s21
    %s24 = sadd.s32 1, %s15
    %s25 = scalar_select %p22, %s24, %s15
    %p26 = scmp.ge.s32.totalorder %s25, 2
    %s27 = scalar_select %p26, 0, %s25
    %s28 = ssub.s32 %s15, %s27
    %s29 = ssub.s32 %s16, %s23
    %s30 = sor.u32 %s28, %s29
    %p31 = scmp.eq.s32.totalorder %s30, 0
    %s33 = sadd.s32 %s32, 1
    %s34 = scalar_select %p31, %s32, %s33
    %p37 = pneg %p31
    %p38 = scmp.eq.s32.totalorder %s8, 3
    %p39 = por %p37, %p38
    %p40 = scmp.ne.s32.totalorder %s32, %s35
    %p41 = scmp.eq.s32.totalorder %s8, 0
    %p42 = por %p40, %p41
    %p43 = scmp.ne.s32.totalorder %s32, %s35
    %p44 = scmp.eq.s32.totalorder %s13, 3
    %p45 = por %p43, %p44
    %p46 = scmp.ne.s32.totalorder %s35, %s36
    %p47 = scmp.eq.s32.totalorder %s13, 0
    %p48 = por %p46, %p47
    %p49 = scmp.ne.s32.totalorder %s35, %s36
    %p50 = scmp.eq.s32.totalorder %s14, 3
    %p51 = por %p49, %p50
    %p53 = scmp.ne.s32.totalorder %s36, %s52
    %p54 = scmp.eq.s32.totalorder %s14, 0
    %p55 = por %p53, %p54
    %s57 = sadd.s32 %s56, 1
    %p60 = scmp.eq.s32.totalorder %s8, 3
    %p61 = scmp.ne.s32.totalorder %s56, %s58
    %p62 = scmp.eq.s32.totalorder %s8, 0
    %p63 = por %p61, %p62
    %p64 = scmp.ne.s32.totalorder %s56, %s58
    %p65 = scmp.eq.s32.totalorder %s13, 3
    %p66 = por %p64, %p65
    %p67 = scmp.ne.s32.totalorder %s58, %s59
    %p68 = scmp.eq.s32.totalorder %s13, 0
    %p69 = por %p67, %p68
    %p70 = scmp.ne.s32.totalorder %s58, %s59
    %p71 = scmp.eq.s32.totalorder %s14, 3
    %p72 = por %p70, %p71
    %p74 = scmp.ne.s32.totalorder %s59, %s73
    %p75 = scmp.eq.s32.totalorder %s14, 0
    %p76 = por %p74, %p75
    %s77 = ssub.s32 %s15, %s27
    %p78 = scmp.eq.s32.totalorder %s77, 0
    %s80 = sadd.s32 %s79, 1
    %s81 = scalar_select %p78, %s79, %s80
    %p84 = pneg %p78
    %p85 = scmp.eq.s32.totalorder %s8, 3
    %p86 = por %p84, %p85
    %p87 = scmp.ne.s32.totalorder %s79, %s82
    %p88 = scmp.eq.s32.totalorder %s8, 0
    %p89 = por %p87, %p88
    %p90 = scmp.ne.s32.totalorder %s79, %s82
    %p91 = scmp.eq.s32.totalorder %s13, 3
    %p92 = por %p90, %p91
    %p93 = scmp.ne.s32.totalorder %s82, %s83
    %p94 = scmp.eq.s32.totalorder %s13, 0
    %p95 = por %p93, %p94
    %p96 = scmp.ne.s32.totalorder %s82, %s83
    %p97 = scmp.eq.s32.totalorder %s14, 3
    %p98 = por %p96, %p97
    %p100 = scmp.ne.s32.totalorder %s83, %s99
    %p101 = scmp.eq.s32.totalorder %s14, 0
    %p102 = por %p100, %p101
    %p103 = scmp.le.s32.totalorder 1, %s8
    %p104 = scmp.lt.s32.totalorder %s8, 5
    %p105 = pnand %p103, %p104
    %p106 = pneg %p105
    // Predicated region
    $region9: #{aspp_forward.10} parent=5 // pred_check
      _
    $region10: #{aspp_forward.10} parent=5 // pred_check_branch
      %108 = sbr.rel (%p105) target = $region12
    $region11: #{aspp_forward.10} parent=5 // pred_region
      %s109 = ssub.s32 %s8, 1
      // Predicated region
      $region13: #{aspp_forward.10} parent=11 // pred_check
        %p110 = pneg %p69
      $region14: #{aspp_forward.10} parent=11 // pred_check_branch
        %112 = sbr.rel (%p110) target = $region16
      $region15: #{aspp_forward.10} parent=11 // pred_region
        _
      $region16: #{aspp_forward.10} parent=11 // pred_fallthru
        _
    $region12: #{aspp_forward.10} parent=5 // pred_fallthru
      _
    %p113 = scmp.lt.s32.totalorder %s8, 4
    // Predicated region
    $region17: #{aspp_forward.10} parent=5 // pred_check
      %p114 = pneg %p113
    $region18: #{aspp_forward.10} parent=5 // pred_check_branch
      %116 = sbr.rel (%p114) target = $region20
    $region19: #{aspp_forward.10} parent=5 // pred_region
      // Predicated region
      $region21: #{aspp_forward.10} parent=19 // pred_check
        %p117 = pneg %p42
      $region22: #{aspp_forward.10} parent=19 // pred_check_branch
        %119 = sbr.rel (%p117) target = $region24
      $region23: #{aspp_forward.10} parent=19 // pred_region
        %s120 = smul.u32 8, %s16
        %p121 = scmp.lt.s32.totalorder %s15, 1
        %s122 = scalar_select %p121, %s15, 1
        %p123 = scmp.lt.s32.totalorder %s120, 15
        %s124 = scalar_select %p123, %s120, 15
        %s125 = smul.addr %s124, 2
        %s126 = smul.addr %s122, 32
        %s127 = sadd.s32 %s125, %s126
        %s128 = smul.addr %s127, 8
        %s129 = scalar_lea.vmem %s0, %s128
        %s130 = smul.u32 8, %s16
      $region24: #{aspp_forward.10} parent=19 // pred_fallthru
        _
    $region20: #{aspp_forward.10} parent=5 // pred_fallthru
      _
    %p131 = scmp.le.s32.totalorder 1, %s8
    %p132 = scmp.lt.s32.totalorder %s8, 5
    %p133 = pnand %p131, %p132
    %p134 = pneg %p133
    // Predicated region
    $region25: #{aspp_forward.10} parent=5 // pred_check
      _
    $region26: #{aspp_forward.10} parent=5 // pred_check_branch
      %136 = sbr.rel (%p133) target = $region28
    $region27: #{aspp_forward.10} parent=5 // pred_region
      %s137 = ssub.s32 %s8, 1
      %s138 = smul.u32 8, %s18
      %p139 = scmp.lt.s32.totalorder %s17, 1
      %s140 = scalar_select %p139, %s17, 1
      %p141 = scmp.lt.s32.totalorder %s138, 15
      %s142 = scalar_select %p141, %s138, 15
      %s143 = smul.addr %s142, 2
      %s144 = smul.addr %s140, 32
      %s145 = sadd.s32 %s143, %s144
      %s146 = smul.addr %s145, 8
      %s147 = scalar_lea.vmem %s0, %s146
      %p148 = pneg %p48
      %p149 = pneg %p45
      %p150 = pneg %p69
      %p151 = pneg %p66
      %p152 = pneg %p95
      %p153 = pneg %p92
      %p154 = scmp.lt.s32.totalorder %s17, 1
      %s155 = scalar_select %p154, %s17, 1
      %s156 = scalar_lea.vmem %s2, %s155
      %s157 = smul.u32 8, %s18
      %p158 = scmp.lt.s32.totalorder %s17, 1
      %s159 = scalar_select %p158, %s17, 1
      %p160 = scmp.lt.s32.totalorder %s157, 15
      %s161 = scalar_select %p160, %s157, 15
      %s162 = smul.addr %s161, 2
      %s163 = smul.addr %s159, 32
      %s164 = sadd.s32 %s162, %s163
      %s165 = smul.addr %s164, 8
      %s166 = scalar_lea.vmem %s0, %s165
      %s167 = smul.u32 8, %s18
      %p168 = scmp.lt.s32.totalorder %s17, 1
      %s169 = scalar_select %p168, %s17, 1
      %s170 = scalar_lea.vmem %s2, %s169
      %p171 = scmp.eq.s32.totalorder %s18, 0
      // Predicated region
      $region29: #{aspp_forward.10} parent=27 // pred_check
        %p172 = pneg %p171
      $region30: #{aspp_forward.10} parent=27 // pred_check_branch
        %174 = sbr.rel (%p172) target = $region32
      $region31: #{aspp_forward.10} parent=27 // pred_region
        %vm175 = vcmask 24576
        %176 = vst.msk [vmem:[#allocation2] sm:$0x1] %vm175, 0.0
      $region32: #{aspp_forward.10} parent=27 // pred_fallthru
        _
      %v177 = vld [vmem:[%s166] sm:$0xff]
      %v178 = vld [vmem:[%s166 + $0x8] sm:$0xff]
      %v179 = vld [vmem:[%s166 + $0x10] sm:$0xff]
      %v180 = vld [vmem:[%s166 + $0x18] sm:$0xff]
      %v181 = vld [vmem:[%s166 + $0x20] sm:$0xff]
      %v182 = vld [vmem:[%s166 + $0x28] sm:$0xff]
      %v183 = vld [vmem:[%s166 + $0x30] sm:$0xff]
      %v184 = vld [vmem:[%s166 + $0x38] sm:$0xff]
      %v185 = vld [vmem:[%s166 + $0x40] sm:$0xff]
      %v186 = vld [vmem:[%s166 + $0x48] sm:$0xff]
      %v187 = vld [vmem:[%s166 + $0x50] sm:$0xff]
      %v188 = vld [vmem:[%s166 + $0x58] sm:$0xff]
      %v189 = vld [vmem:[%s166 + $0x60] sm:$0xff]
      %v190 = vld [vmem:[%s166 + $0x68] sm:$0xff]
      %v191 = vld [vmem:[%s166 + $0x70] sm:$0xff]
      %v192 = vld [vmem:[%s166 + $0x78] sm:$0xff]
      %v193 = vld [vmem:[#allocation2] sm:$0x1]
      %vm194 = vcmask 31744
      %v195 = vsel %vm194, %v177, 0.0
      %v196 = vsel %vm194, %v178, 0.0
      %v197 = vadd.f32 %v195, %v196
      %v198 = vsel %vm194, %v179, 0.0
      %v199 = vadd.f32 %v197, %v198
      %v200 = vsel %vm194, %v180, 0.0
      %v201 = vadd.f32 %v199, %v200
      %v202 = vsel %vm194, %v181, 0.0
      %v203 = vadd.f32 %v201, %v202
      %v204 = vsel %vm194, %v182, 0.0
      %v205 = vadd.f32 %v203, %v204
      %v206 = vsel %vm194, %v183, 0.0
      %v207 = vadd.f32 %v205, %v206
      %v208 = vsel %vm194, %v184, 0.0
      %v209 = vadd.f32 %v207, %v208
      %v210 = vsel %vm194, %v185, 0.0
      %v211 = vadd.f32 %v209, %v210
      %v212 = vsel %vm194, %v186, 0.0
      %v213 = vadd.f32 %v211, %v212
      %v214 = vsel %vm194, %v187, 0.0
      %v215 = vadd.f32 %v213, %v214
      %v216 = vsel %vm194, %v188, 0.0
      %v217 = vadd.f32 %v215, %v216
      %v218 = vsel %vm194, %v189, 0.0
      %v219 = vadd.f32 %v217, %v218
      %v220 = vsel %vm194, %v190, 0.0
      %v221 = vadd.f32 %v219, %v220
      %v222 = vsel %vm194, %v191, 0.0
      %v223 = vadd.f32 %v221, %v222
      %v224 = vsel %vm194, %v192, 0.0
      %v225 = vadd.f32 %v223, %v224
      %v226 = vrot.slane %v225, 4
      %v227 = vadd.f32 %v225, %v226
      %v228 = vrot.slane %v227, 2
      %v229 = vadd.f32 %v227, %v228
      %v230 = vrot.slane %v229, 1
      %v231 = vadd.f32 %v229, %v230
      %v232 = vadd.f32 %v193, %v231
      %vm233 = vcmask 24576
      %234 = vst.msk [vmem:[#allocation2] sm:$0x1] %vm233, %v232
      %p235 = scmp.eq.s32.totalorder %s18, 1
      // Predicated region
      $region33: #{aspp_forward.10} parent=27 // pred_check
        %p236 = pneg %p235
      $region34: #{aspp_forward.10} parent=27 // pred_check_branch
        %238 = sbr.rel (%p236) target = $region36
      $region35: #{aspp_forward.10} parent=27 // pred_region
        %v239 = vld [vmem:[#allocation2] sm:$0x1]
        %v240 = vmul.f32 %v239, 0.00390625
        %v241 = vld [vmem:[%s1] sm:$0xf]
        %v243 = vsel %vm194, %v240, 0
        %vm245 = vcmask 1043456
        %v247 = vsel %vm245, %v241, 0
        %249 = vmatprep.subr.mxu0 0.0
        %250 = vmatpush1.msra.mxu0 %v247
        %251 = vmatprep.subr.mxu0 0.0
        %252 = vmatpush1.msra.mxu0 0.0
        %253 = vmatprep.subr.mxu0 0.0
        %254 = vmatpush1.msra.mxu0 0.0
        %255 = vmatprep.subr.mxu0 0.0
        %256 = vmatpush1.msra.mxu0 0.0
        %257 = vmatprep.subr.mxu0 0.0
        %258 = vmatpush1.msra.mxu0 0.0
        %259 = vmatprep.subr.mxu0 0.0
        %260 = vmatpush1.msra.mxu0 0.0
        %261 = vmatprep.subr.mxu0 0.0
        %262 = vmatpush1.msra.mxu0 0.0
        %263 = vmatprep.subr.mxu0 0.0
        %264 = vmatpush1.msra.mxu0 0.0
        %265 = vmatprep.subr.mxu0 0.0
        %266 = vmatpush1.msra.mxu0 0.0
        %267 = vmatprep.subr.mxu0 0.0
        %268 = vmatpush1.msra.mxu0 0.0
        %269 = vmatprep.subr.mxu0 0.0
        %270 = vmatpush1.msra.mxu0 0.0
        %271 = vmatprep.subr.mxu0 0.0
        %272 = vmatpush1.msra.mxu0 0.0
        %273 = vmatprep.subr.mxu0 0.0
        %274 = vmatpush1.msra.mxu0 0.0
        %275 = vmatprep.subr.mxu0 0.0
        %276 = vmatpush1.msra.mxu0 0.0
        %277 = vmatprep.subr.mxu0 0.0
        %278 = vmatpush1.msra.mxu0 0.0
        %279 = vmatprep.subr.mxu0 0.0
        %280 = vmatpush1.msra.mxu0 0.0
        %281 = vmatprep.subr.mxu0 0.0
        %282 = vmatpush1.msra.mxu0 0.0
        %283 = vmatprep.subr.mxu0 0.0
        %284 = vmatpush1.msra.mxu0 0.0
        %285 = vmatprep.subr.mxu0 0.0
        %286 = vmatpush1.msra.mxu0 0.0
        %287 = vmatprep.subr.mxu0 0.0
        %288 = vmatpush1.msra.mxu0 0.0
        %289 = vmatprep.subr.mxu0 0.0
        %290 = vmatpush1.msra.mxu0 0.0
        %291 = vmatprep.subr.mxu0 0.0
        %292 = vmatpush1.msra.mxu0 0.0
        %293 = vmatprep.subr.mxu0 0.0
        %294 = vmatpush1.msra.mxu0 0.0
        %295 = vmatprep.subr.mxu0 0.0
        %296 = vmatpush1.msra.mxu0 0.0
        %297 = vmatprep.subr.mxu0 0.0
        %298 = vmatpush1.msra.mxu0 0.0
        %299 = vmatprep.subr.mxu0 0.0
        %300 = vmatpush1.msra.mxu0 0.0
        %301 = vmatprep.subr.mxu0 0.0
        %302 = vmatpush1.msra.mxu0 0.0
        %303 = vmatprep.subr.mxu0 0.0
        %304 = vmatpush1.msra.mxu0 0.0
        %305 = vmatprep.subr.mxu0 0.0
        %306 = vmatpush1.msra.mxu0 0.0
        %307 = vmatprep.subr.mxu0 0.0
        %308 = vmatpush1.msra.mxu0 0.0
        %309 = vmatprep.subr.mxu0 0.0
        %310 = vmatpush1.msra.mxu0 0.0
        %311 = vmatprep.subr.mxu0 0.0
        %312 = vmatpush1.msra.mxu0 0.0
        %313 = vmatprep.mubr.f32.mxu0 0.0
        %314 = vmatmul.mubr.f32.gmra.mrb[0].mxu0 %v243
        %v315 = vpop.f32.mrb[0].mxu0
        %v316 = vadd.f32 0.0, %v315
        %v317 = vpop.f32.mrb[0].mxu0
        %318 = vdwg.mxu0
        %v319 = vmax.f32 %v316, 0.0
        %vm320 = vcmask 57344
        %321 = vst.msk [vmem:[%s170] sm:$0x1] %vm320, %v319
      $region36: #{aspp_forward.10} parent=27 // pred_fallthru
        _
      %p322 = scmp.lt.s32.totalorder %s17, 1
      %s323 = scalar_select %p322, %s17, 1
      %s324 = scalar_lea.vmem %s2, %s323
      // Predicated region
      $region37: #{aspp_forward.10} parent=27 // pred_check
        %p325 = pneg %p92
      $region38: #{aspp_forward.10} parent=27 // pred_check_branch
        %327 = sbr.rel (%p325) target = $region40
      $region39: #{aspp_forward.10} parent=27 // pred_region
        _
      $region40: #{aspp_forward.10} parent=27 // pred_fallthru
        _
    $region28: #{aspp_forward.10} parent=5 // pred_fallthru
      _
    %p328 = scmp.le.s32.totalorder 2, %s8
    // Predicated region
    $region41: #{aspp_forward.10} parent=5 // pred_check
      %p329 = pneg %p328
    $region42: #{aspp_forward.10} parent=5 // pred_check_branch
      %331 = sbr.rel (%p329) target = $region44
    $region43: #{aspp_forward.10} parent=5 // pred_region
      %s332 = ssub.s32 %s8, 2
      // Predicated region
      $region45: #{aspp_forward.10} parent=43 // pred_check
        %p333 = pneg %p98
      $region46: #{aspp_forward.10} parent=43 // pred_check_branch
        %335 = sbr.rel (%p333) target = $region48
      $region47: #{aspp_forward.10} parent=43 // pred_region
        %p336 = scmp.lt.s32.totalorder %s19, 1
        %s337 = scalar_select %p336, %s19, 1
        %s338 = scalar_lea.vmem %s2, %s337
      $region48: #{aspp_forward.10} parent=43 // pred_fallthru
        _
    $region44: #{aspp_forward.10} parent=5 // pred_fallthru
      _
  $region6: #{aspp_forward.10} parent=0 // loop_footer
    %s12 = sadd.s32 1, %s8
  $region7: #{aspp_forward.10} parent=0 // loop_footer_branch
    %7 = sbr.rel target = $region3
  $region8: #{aspp_forward.10} parent=0 // loop_exit
    _

// kernel: aspp_forward.11
$region0: #{aspp_forward.11}
  #allocation0 [shape = 'u32[]', space=smem, size = 0x4, offset = 0x4, fixed_abs, tag = 'smem constant byte address 0x4 - core index']
  #allocation1 [shape = 'u32[144,128]{1,0:T(1,128)}', space=vmem, size = 0x12000, scoped, tag = 'internal scratch']
  %s0 = inlined_call_operand.vmem [shape: f32[2,256,8], index: 0, kind: input, shape index: {}]
  %s1 = inlined_call_operand.vmem [shape: f32[2,256,8], index: 1, kind: input, shape index: {}]
  %s2 = inlined_call_operand.vmem [shape: f32[2,256,8], index: 2, kind: input, shape index: {}]
  %s3 = inlined_call_operand.vmem [shape: f32[2,256,8], index: 3, kind: input, shape index: {}]
  %s4 = inlined_call_operand.vmem [shape: f32[2,1,8], index: 4, kind: input, shape index: {}]
  %s5 = inlined_call_operand.vmem [shape: f32[40,8], index: 5, kind: input, shape index: {}]
  %s6 = inlined_call_operand.vmem [shape: f32[1,8], index: 6, kind: input, shape index: {}]
  %s7 = inlined_call_operand.vmem [shape: f32[1,8], index: 7, kind: input, shape index: {}]
  %s8 = inlined_call_operand.vmem [shape: f32[2,256,8], index: 8, kind: output, shape index: {}]
  %s9 = sld [smem:[#allocation0]]
  $region65: #{aspp_forward.11} parent=0
    _
  %s11 = ssub.s32 1, %s9
  %s12 = scalar_select 0, %s11, %s9
  loop: start=0, step=1, limit=6
  $region2: #{aspp_forward.11} parent=0 // loop_pre_header
    _
  $region3: #{aspp_forward.11} parent=0 // loop_header
    %s14 = sphi 0, %s18
    %p15 = scmp.ge.s32.totalorder %s14, 6
    %s21 = sphi 0, %s33
    %s22 = sphi 0, %s29
    %s23 = sphi 0, %s21
    %s24 = sphi 0, %s22
    %s25 = sphi 0, %s23
    %s26 = sphi 0, %s24
    %s38 = sphi 0, %s40
    %s41 = sphi 0, %s38
    %s42 = sphi 0, %s41
    %s58 = sphi 0, %s42
    %s66 = sphi 0, %s68
    %s69 = sphi 0, %s66
    %s70 = sphi 0, %s69
    %s86 = sphi 0, %s70
    %s94 = sphi 0, %s96
    %s97 = sphi 0, %s94
    %s98 = sphi 0, %s97
    %s114 = sphi 0, %s98
    %s122 = sphi 0, %s124
    %s125 = sphi 0, %s122
    %s126 = sphi 0, %s125
    %s142 = sphi 0, %s126
    %s148 = sphi 0, %s150
    %s151 = sphi 0, %s148
    %s152 = sphi 0, %s151
    %s168 = sphi 0, %s152
    %s172 = sphi 0, %s172
    %s174 = sphi 0, %s172
    %s175 = sphi 0, %s174
    %s189 = sphi 0, %s175
    %s193 = sphi 0, %s193
    %s195 = sphi 0, %s193
    %s196 = sphi 0, %s195
    %s210 = sphi 0, %s196
    %s214 = sphi 0, %s214
    %s216 = sphi 0, %s214
    %s217 = sphi 0, %s216
    %s231 = sphi 0, %s217
    %s239 = sphi 0, %s241
    %s242 = sphi 0, %s239
    %s243 = sphi 0, %s242
    %s259 = sphi 0, %s243
  $region4: #{aspp_forward.11} parent=0 // loop_header_branch
    %17 = sbr.rel (%p15) target = $region8
  $region5: #{aspp_forward.11} parent=0 // loop_body
    %s19 = ssub.s32 %s14, 1
    %s20 = ssub.s32 %s14, 2
    %s27 = sadd.s32 1, %s22
    %p28 = scmp.ge.s32.totalorder %s27, 2
    %s29 = scalar_select %p28, 0, %s27
    %s30 = sadd.s32 1, %s21
    %s31 = scalar_select %p28, %s30, %s21
    %p32 = scmp.ge.s32.totalorder %s31, 2
    %s33 = scalar_select %p32, 0, %s31
    %s34 = ssub.s32 %s21, %s33
    %s35 = ssub.s32 %s22, %s29
    %s36 = sor.u32 %s34, %s35
    %p37 = scmp.eq.s32.totalorder %s36, 0
    %s39 = sadd.s32 %s38, 1
    %s40 = scalar_select %p37, %s38, %s39
    %p43 = pneg %p37
    %p44 = scmp.eq.s32.totalorder %s14, 3
    %p45 = por %p43, %p44
    %p46 = scmp.ne.s32.totalorder %s38, %s41
    %p47 = scmp.eq.s32.totalorder %s14, 0
    %p48 = por %p46, %p47
    %p49 = scmp.ne.s32.totalorder %s38, %s41
    %p50 = scmp.eq.s32.totalorder %s19, 3
    %p51 = por %p49, %p50
    %p52 = scmp.ne.s32.totalorder %s41, %s42
    %p53 = scmp.eq.s32.totalorder %s19, 0
    %p54 = por %p52, %p53
    %p55 = scmp.ne.s32.totalorder %s41, %s42
    %p56 = scmp.eq.s32.totalorder %s20, 3
    %p57 = por %p55, %p56
    %p59 = scmp.ne.s32.totalorder %s42, %s58
    %p60 = scmp.eq.s32.totalorder %s20, 0
    %p61 = por %p59, %p60
    %s62 = ssub.s32 %s21, %s33
    %s63 = ssub.s32 %s22, %s29
    %s64 = sor.u32 %s62, %s63
    %p65 = scmp.eq.s32.totalorder %s64, 0
    %s67 = sadd.s32 %s66, 1
    %s68 = scalar_select %p65, %s66, %s67
    %p71 = pneg %p65
    %p72 = scmp.eq.s32.totalorder %s14, 3
    %p73 = por %p71, %p72
    %p74 = scmp.ne.s32.totalorder %s66, %s69
    %p75 = scmp.eq.s32.totalorder %s14, 0
    %p76 = por %p74, %p75
    %p77 = scmp.ne.s32.totalorder %s66, %s69
    %p78 = scmp.eq.s32.totalorder %s19, 3
    %p79 = por %p77, %p78
    %p80 = scmp.ne.s32.totalorder %s69, %s70
    %p81 = scmp.eq.s32.totalorder %s19, 0
    %p82 = por %p80, %p81
    %p83 = scmp.ne.s32.totalorder %s69, %s70
    %p84 = scmp.eq.s32.totalorder %s20, 3
    %p85 = por %p83, %p84
    %p87 = scmp.ne.s32.totalorder %s70, %s86
    %p88 = scmp.eq.s32.totalorder %s20, 0
    %p89 = por %p87, %p88
    %s90 = ssub.s32 %s21, %s33
    %s91 = ssub.s32 %s22, %s29
    %s92 = sor.u32 %s90, %s91
    %p93 = scmp.eq.s32.totalorder %s92, 0
    %s95 = sadd.s32 %s94, 1
    %s96 = scalar_select %p93, %s94, %s95
    %p99 = pneg %p93
    %p100 = scmp.eq.s32.totalorder %s14, 3
    %p101 = por %p99, %p100
    %p102 = scmp.ne.s32.totalorder %s94, %s97
    %p103 = scmp.eq.s32.totalorder %s14, 0
    %p104 = por %p102, %p103
    %p105 = scmp.ne.s32.totalorder %s94, %s97
    %p106 = scmp.eq.s32.totalorder %s19, 3
    %p107 = por %p105, %p106
    %p108 = scmp.ne.s32.totalorder %s97, %s98
    %p109 = scmp.eq.s32.totalorder %s19, 0
    %p110 = por %p108, %p109
    %p111 = scmp.ne.s32.totalorder %s97, %s98
    %p112 = scmp.eq.s32.totalorder %s20, 3
    %p113 = por %p111, %p112
    %p115 = scmp.ne.s32.totalorder %s98, %s114
    %p116 = scmp.eq.s32.totalorder %s20, 0
    %p117 = por %p115, %p116
    %s118 = ssub.s32 %s21, %s33
    %s119 = ssub.s32 %s22, %s29
    %s120 = sor.u32 %s118, %s119
    %p121 = scmp.eq.s32.totalorder %s120, 0
    %s123 = sadd.s32 %s122, 1
    %s124 = scalar_select %p121, %s122, %s123
    %p127 = pneg %p121
    %p128 = scmp.eq.s32.totalorder %s14, 3
    %p129 = por %p127, %p128
    %p130 = scmp.ne.s32.totalorder %s122, %s125
    %p131 = scmp.eq.s32.totalorder %s14, 0
    %p132 = por %p130, %p131
    %p133 = scmp.ne.s32.totalorder %s122, %s125
    %p134 = scmp.eq.s32.totalorder %s19, 3
    %p135 = por %p133, %p134
    %p136 = scmp.ne.s32.totalorder %s125, %s126
    %p137 = scmp.eq.s32.totalorder %s19, 0
    %p138 = por %p136, %p137
    %p139 = scmp.ne.s32.totalorder %s125, %s126
    %p140 = scmp.eq.s32.totalorder %s20, 3
    %p141 = por %p139, %p140
    %p143 = scmp.ne.s32.totalorder %s126, %s142
    %p144 = scmp.eq.s32.totalorder %s20, 0
    %p145 = por %p143, %p144
    %s146 = ssub.s32 %s21, %s33
    %p147 = scmp.eq.s32.totalorder %s146, 0
    %s149 = sadd.s32 %s148, 1
    %s150 = scalar_select %p147, %s148, %s149
    %p153 = pneg %p147
    %p154 = scmp.eq.s32.totalorder %s14, 3
    %p155 = por %p153, %p154
    %p156 = scmp.ne.s32.totalorder %s148, %s151
    %p157 = scmp.eq.s32.totalorder %s14, 0
    %p158 = por %p156, %p157
    %p159 = scmp.ne.s32.totalorder %s148, %s151
    %p160 = scmp.eq.s32.totalorder %s19, 3
    %p161 = por %p159, %p160
    %p162 = scmp.ne.s32.totalorder %s151, %s152
    %p163 = scmp.eq.s32.totalorder %s19, 0
    %p164 = por %p162, %p163
    %p165 = scmp.ne.s32.totalorder %s151, %s152
    %p166 = scmp.eq.s32.totalorder %s20, 3
    %p167 = por %p165, %p166
    %p169 = scmp.ne.s32.totalorder %s152, %s168
    %p170 = scmp.eq.s32.totalorder %s20, 0
    %p171 = por %p169, %p170
    %s173 = sadd.s32 %s172, 1
    %p176 = scmp.eq.s32.totalorder %s14, 3
    %p177 = scmp.ne.s32.totalorder %s172, %s174
    %p178 = scmp.eq.s32.totalorder %s14, 0
    %p179 = por %p177, %p178
    %p180 = scmp.ne.s32.totalorder %s172, %s174
    %p181 = scmp.eq.s32.totalorder %s19, 3
    %p182 = por %p180, %p181
    %p183 = scmp.ne.s32.totalorder %s174, %s175
    %p184 = scmp.eq.s32.totalorder %s19, 0
    %p185 = por %p183, %p184
    %p186 = scmp.ne.s32.totalorder %s174, %s175
    %p187 = scmp.eq.s32.totalorder %s20, 3
    %p188 = por %p186, %p187
    %p190 = scmp.ne.s32.totalorder %s175, %s189
    %p191 = scmp.eq.s32.totalorder %s20, 0
    %p192 = por %p190, %p191
    %s194 = sadd.s32 %s193, 1
    %p197 = scmp.eq.s32.totalorder %s14, 3
    %p198 = scmp.ne.s32.totalorder %s193, %s195
    %p199 = scmp.eq.s32.totalorder %s14, 0
    %p200 = por %p198, %p199
    %p201 = scmp.ne.s32.totalorder %s193, %s195
    %p202 = scmp.eq.s32.totalorder %s19, 3
    %p203 = por %p201, %p202
    %p204 = scmp.ne.s32.totalorder %s195, %s196
    %p205 = scmp.eq.s32.totalorder %s19, 0
    %p206 = por %p204, %p205
    %p207 = scmp.ne.s32.totalorder %s195, %s196
    %p208 = scmp.eq.s32.totalorder %s20, 3
    %p209 = por %p207, %p208
    %p211 = scmp.ne.s32.totalorder %s196, %s210
    %p212 = scmp.eq.s32.totalorder %s20, 0
    %p213 = por %p211, %p212
    %s215 = sadd.s32 %s214, 1
    %p218 = scmp.eq.s32.totalorder %s14, 3
    %p219 = scmp.ne.s32.totalorder %s214, %s216
    %p220 = scmp.eq.s32.totalorder %s14, 0
    %p221 = por %p219, %p220
    %p222 = scmp.ne.s32.totalorder %s214, %s216
    %p223 = scmp.eq.s32.totalorder %s19, 3
    %p224 = por %p222, %p223
    %p225 = scmp.ne.s32.totalorder %s216, %s217
    %p226 = scmp.eq.s32.totalorder %s19, 0
    %p227 = por %p225, %p226
    %p228 = scmp.ne.s32.totalorder %s216, %s217
    %p229 = scmp.eq.s32.totalorder %s20, 3
    %p230 = por %p228, %p229
    %p232 = scmp.ne.s32.totalorder %s217, %s231
    %p233 = scmp.eq.s32.totalorder %s20, 0
    %p234 = por %p232, %p233
    %s235 = ssub.s32 %s21, %s33
    %s236 = ssub.s32 %s22, %s29
    %s237 = sor.u32 %s235, %s236
    %p238 = scmp.eq.s32.totalorder %s237, 0
    %s240 = sadd.s32 %s239, 1
    %s241 = scalar_select %p238, %s239, %s240
    %p244 = pneg %p238
    %p245 = scmp.eq.s32.totalorder %s14, 3
    %p246 = por %p244, %p245
    %p247 = scmp.ne.s32.totalorder %s239, %s242
    %p248 = scmp.eq.s32.totalorder %s14, 0
    %p249 = por %p247, %p248
    %p250 = scmp.ne.s32.totalorder %s239, %s242
    %p251 = scmp.eq.s32.totalorder %s19, 3
    %p252 = por %p250, %p251
    %p253 = scmp.ne.s32.totalorder %s242, %s243
    %p254 = scmp.eq.s32.totalorder %s19, 0
    %p255 = por %p253, %p254
    %p256 = scmp.ne.s32.totalorder %s242, %s243
    %p257 = scmp.eq.s32.totalorder %s20, 3
    %p258 = por %p256, %p257
    %p260 = scmp.ne.s32.totalorder %s243, %s259
    %p261 = scmp.eq.s32.totalorder %s20, 0
    %p262 = por %p260, %p261
    %p263 = scmp.le.s32.totalorder 1, %s14
    %p264 = scmp.lt.s32.totalorder %s14, 5
    %p265 = pnand %p263, %p264
    %p266 = pneg %p265
    // Predicated region
    $region9: #{aspp_forward.11} parent=5 // pred_check
      _
    $region10: #{aspp_forward.11} parent=5 // pred_check_branch
      %268 = sbr.rel (%p265) target = $region12
    $region11: #{aspp_forward.11} parent=5 // pred_region
      %s269 = ssub.s32 %s14, 1
      // Predicated region
      $region13: #{aspp_forward.11} parent=11 // pred_check
        %p270 = pneg %p185
      $region14: #{aspp_forward.11} parent=11 // pred_check_branch
        %272 = sbr.rel (%p270) target = $region16
      $region15: #{aspp_forward.11} parent=11 // pred_region
        _
      $region16: #{aspp_forward.11} parent=11 // pred_fallthru
        _
      // Predicated region
      $region17: #{aspp_forward.11} parent=11 // pred_check
        %p273 = pneg %p206
      $region18: #{aspp_forward.11} parent=11 // pred_check_branch
        %275 = sbr.rel (%p273) target = $region20
      $region19: #{aspp_forward.11} parent=11 // pred_region
        _
      $region20: #{aspp_forward.11} parent=11 // pred_fallthru
        _
      // Predicated region
      $region21: #{aspp_forward.11} parent=11 // pred_check
        %p276 = pneg %p227
      $region22: #{aspp_forward.11} parent=11 // pred_check_branch
        %278 = sbr.rel (%p276) target = $region24
      $region23: #{aspp_forward.11} parent=11 // pred_region
        _
      $region24: #{aspp_forward.11} parent=11 // pred_fallthru
        _
    $region12: #{aspp_forward.11} parent=5 // pred_fallthru
      _
    %p279 = scmp.lt.s32.totalorder %s14, 4
    // Predicated region
    $region25: #{aspp_forward.11} parent=5 // pred_check
      %p280 = pneg %p279
    $region26: #{aspp_forward.11} parent=5 // pred_check_branch
      %282 = sbr.rel (%p280) target = $region28
    $region27: #{aspp_forward.11} parent=5 // pred_region
      // Predicated region
      $region29: #{aspp_forward.11} parent=27 // pred_check
        %p283 = pneg %p48
      $region30: #{aspp_forward.11} parent=27 // pred_check_branch
        %285 = sbr.rel (%p283) target = $region32
      $region31: #{aspp_forward.11} parent=27 // pred_region
        %s286 = smul.u32 16, %s22
        %p287 = scmp.lt.s32.totalorder %s21, 1
        %s288 = scalar_select %p287, %s21, 1
        %p289 = scmp.lt.s32.totalorder %s286, 31
        %s290 = scalar_select %p289, %s286, 31
        %s291 = smul.addr %s288, 32
        %s292 = sadd.s32 %s290, %s291
        %s293 = smul.addr %s292, 8
        %s294 = scalar_lea.vmem %s0, %s293
        %s295 = smul.u32 16, %s22
      $region32: #{aspp_forward.11} parent=27 // pred_fallthru
        _
      // Predicated region
      $region33: #{aspp_forward.11} parent=27 // pred_check
        %p296 = pneg %p76
      $region34: #{aspp_forward.11} parent=27 // pred_check_branch
        %298 = sbr.rel (%p296) target = $region36
      $region35: #{aspp_forward.11} parent=27 // pred_region
        %s299 = smul.u32 16, %s22
        %p300 = scmp.lt.s32.totalorder %s21, 1
        %s301 = scalar_select %p300, %s21, 1
        %p302 = scmp.lt.s32.totalorder %s299, 31
        %s303 = scalar_select %p302, %s299, 31
        %s304 = smul.addr %s301, 32
        %s305 = sadd.s32 %s303, %s304
        %s306 = smul.addr %s305, 8
        %s307 = scalar_lea.vmem %s1, %s306
        %s308 = smul.u32 16, %s22
      $region36: #{aspp_forward.11} parent=27 // pred_fallthru
        _
      // Predicated region
      $region37: #{aspp_forward.11} parent=27 // pred_check
        %p309 = pneg %p104
      $region38: #{aspp_forward.11} parent=27 // pred_check_branch
        %311 = sbr.rel (%p309) target = $region40
      $region39: #{aspp_forward.11} parent=27 // pred_region
        %s312 = smul.u32 16, %s22
        %p313 = scmp.lt.s32.totalorder %s21, 1
        %s314 = scalar_select %p313, %s21, 1
        %p315 = scmp.lt.s32.totalorder %s312, 31
        %s316 = scalar_select %p315, %s312, 31
        %s317 = smul.addr %s314, 32
        %s318 = sadd.s32 %s316, %s317
        %s319 = smul.addr %s318, 8
        %s320 = scalar_lea.vmem %s2, %s319
        %s321 = smul.u32 16, %s22
      $region40: #{aspp_forward.11} parent=27 // pred_fallthru
        _
      // Predicated region
      $region41: #{aspp_forward.11} parent=27 // pred_check
        %p322 = pneg %p132
      $region42: #{aspp_forward.11} parent=27 // pred_check_branch
        %324 = sbr.rel (%p322) target = $region44
      $region43: #{aspp_forward.11} parent=27 // pred_region
        %s325 = smul.u32 16, %s22
        %p326 = scmp.lt.s32.totalorder %s21, 1
        %s327 = scalar_select %p326, %s21, 1
        %p328 = scmp.lt.s32.totalorder %s325, 31
        %s329 = scalar_select %p328, %s325, 31
        %s330 = smul.addr %s327, 32
        %s331 = sadd.s32 %s329, %s330
        %s332 = smul.addr %s331, 8
        %s333 = scalar_lea.vmem %s3, %s332
        %s334 = smul.u32 16, %s22
      $region44: #{aspp_forward.11} parent=27 // pred_fallthru
        _
      // Predicated region
      $region45: #{aspp_forward.11} parent=27 // pred_check
        %p335 = pneg %p158
      $region46: #{aspp_forward.11} parent=27 // pred_check_branch
        %337 = sbr.rel (%p335) target = $region48
      $region47: #{aspp_forward.11} parent=27 // pred_region
        %p338 = scmp.lt.s32.totalorder %s21, 1
        %s339 = scalar_select %p338, %s21, 1
        %s340 = scalar_lea.vmem %s4, %s339
      $region48: #{aspp_forward.11} parent=27 // pred_fallthru
        _
    $region28: #{aspp_forward.11} parent=5 // pred_fallthru
      _
    %p341 = scmp.le.s32.totalorder 1, %s14
    %p342 = scmp.lt.s32.totalorder %s14, 5
    %p343 = pnand %p341, %p342
    %p344 = pneg %p343
    // Predicated region
    $region49: #{aspp_forward.11} parent=5 // pred_check
      _
    $region50: #{aspp_forward.11} parent=5 // pred_check_branch
      %346 = sbr.rel (%p343) target = $region52
    $region51: #{aspp_forward.11} parent=5 // pred_region
      %s347 = ssub.s32 %s14, 1
      %s348 = smul.u32 16, %s24
      %p349 = scmp.lt.s32.totalorder %s23, 1
      %s350 = scalar_select %p349, %s23, 1
      %p351 = scmp.lt.s32.totalorder %s348, 31
      %s352 = scalar_select %p351, %s348, 31
      %s353 = smul.addr %s350, 32
      %s354 = sadd.s32 %s352, %s353
      %s355 = smul.addr %s354, 8
      %s356 = scalar_lea.vmem %s0, %s355
      %p357 = pneg %p54
      %p358 = pneg %p51
      %s359 = smul.u32 16, %s24
      %p360 = scmp.lt.s32.totalorder %s23, 1
      %s361 = scalar_select %p360, %s23, 1
      %p362 = scmp.lt.s32.totalorder %s359, 31
      %s363 = scalar_select %p362, %s359, 31
      %s364 = smul.addr %s361, 32
      %s365 = sadd.s32 %s363, %s364
      %s366 = smul.addr %s365, 8
      %s367 = scalar_lea.vmem %s1, %s366
      %p368 = pneg %p82
      %p369 = pneg %p79
      %s370 = smul.u32 16, %s24
      %p371 = scmp.lt.s32.totalorder %s23, 1
      %s372 = scalar_select %p371, %s23, 1
      %p373 = scmp.lt.s32.totalorder %s370, 31
      %s374 = scalar_select %p373, %s370, 31
      %s375 = smul.addr %s372, 32
      %s376 = sadd.s32 %s374, %s375
      %s377 = smul.addr %s376, 8
      %s378 = scalar_lea.vmem %s2, %s377
      %p379 = pneg %p110
      %p380 = pneg %p107
      %s381 = smul.u32 16, %s24
      %p382 = scmp.lt.s32.totalorder %s23, 1
      %s383 = scalar_select %p382, %s23, 1
      %p384 = scmp.lt.s32.totalorder %s381, 31
      %s385 = scalar_select %p384, %s381, 31
      %s386 = smul.addr %s383, 32
      %s387 = sadd.s32 %s385, %s386
      %s388 = smul.addr %s387, 8
      %s389 = scalar_lea.vmem %s3, %s388
      %p390 = pneg %p138
      %p391 = pneg %p135
      %p392 = scmp.lt.s32.totalorder %s23, 1
      %s393 = scalar_select %p392, %s23, 1
      %s394 = scalar_lea.vmem %s4, %s393
      %p395 = pneg %p164
      %p396 = pneg %p161
      %p397 = pneg %p185
      %p398 = pneg %p182
      %p399 = pneg %p206
      %p400 = pneg %p203
      %p401 = pneg %p227
      %p402 = pneg %p224
      %p403 = pneg %p255
      %p404 = pneg %p252
      %s405 = smul.u32 16, %s24
      %p406 = scmp.lt.s32.totalorder %s23, 1
      %s407 = scalar_select %p406, %s23, 1
      %p408 = scmp.lt.s32.totalorder %s405, 31
      %s409 = scalar_select %p408, %s405, 31
      %s410 = smul.addr %s407, 32
      %s411 = sadd.s32 %s409, %s410
      %s412 = smul.addr %s411, 8
      %s413 = scalar_lea.vmem %s8, %s412
      %s414 = smul.u32 16, %s24
      %p415 = scmp.lt.s32.totalorder %s23, 1
      %s416 = scalar_select %p415, %s23, 1
      %p417 = scmp.lt.s32.totalorder %s414, 31
      %s418 = scalar_select %p417, %s414, 31
      %s419 = smul.addr %s416, 32
      %s420 = sadd.s32 %s418, %s419
      %s421 = smul.addr %s420, 8
      %s422 = scalar_lea.vmem %s0, %s421
      %s423 = smul.u32 16, %s24
      %s424 = smul.u32 16, %s24
      %p425 = scmp.lt.s32.totalorder %s23, 1
      %s426 = scalar_select %p425, %s23, 1
      %p427 = scmp.lt.s32.totalorder %s424, 31
      %s428 = scalar_select %p427, %s424, 31
      %s429 = smul.addr %s426, 32
      %s430 = sadd.s32 %s428, %s429
      %s431 = smul.addr %s430, 8
      %s432 = scalar_lea.vmem %s1, %s431
      %s433 = smul.u32 16, %s24
      %s434 = smul.u32 16, %s24
      %p435 = scmp.lt.s32.totalorder %s23, 1
      %s436 = scalar_select %p435, %s23, 1
      %p437 = scmp.lt.s32.totalorder %s434, 31
      %s438 = scalar_select %p437, %s434, 31
      %s439 = smul.addr %s436, 32
      %s440 = sadd.s32 %s438, %s439
      %s441 = smul.addr %s440, 8
      %s442 = scalar_lea.vmem %s2, %s441
      %s443 = smul.u32 16, %s24
      %s444 = smul.u32 16, %s24
      %p445 = scmp.lt.s32.totalorder %s23, 1
      %s446 = scalar_select %p445, %s23, 1
      %p447 = scmp.lt.s32.totalorder %s444, 31
      %s448 = scalar_select %p447, %s444, 31
      %s449 = smul.addr %s446, 32
      %s450 = sadd.s32 %s448, %s449
      %s451 = smul.addr %s450, 8
      %s452 = scalar_lea.vmem %s3, %s451
      %s453 = smul.u32 16, %s24
      %p454 = scmp.lt.s32.totalorder %s23, 1
      %s455 = scalar_select %p454, %s23, 1
      %s456 = scalar_lea.vmem %s4, %s455
      %s457 = smul.u32 16, %s24
      %p458 = scmp.lt.s32.totalorder %s23, 1
      %s459 = scalar_select %p458, %s23, 1
      %p460 = scmp.lt.s32.totalorder %s457, 31
      %s461 = scalar_select %p460, %s457, 31
      %s462 = smul.addr %s459, 32
      %s463 = sadd.s32 %s461, %s462
      %s464 = smul.addr %s463, 8
      %s465 = scalar_lea.vmem %s8, %s464
      %s466 = smul.u32 16, %s24
      %v467 = vld [vmem:[%s5] sm:$0xff]
      %v468 = vld [vmem:[%s5 + $0x8] sm:$0xff]
      %v469 = vld [vmem:[%s5 + $0x10] sm:$0xff]
      %v470 = vld [vmem:[%s5 + $0x18] sm:$0xff]
      %v471 = vld [vmem:[%s5 + $0x20] sm:$0xff]
      %v472 = vld [vmem:[%s422] sm:$0xff]
      %v473 = vld [vmem:[%s422 + $0x8] sm:$0xff]
      %v474 = vld [vmem:[%s422 + $0x10] sm:$0xff]
      %v475 = vld [vmem:[%s422 + $0x18] sm:$0xff]
      %v476 = vld [vmem:[%s422 + $0x20] sm:$0xff]
      %v477 = vld [vmem:[%s422 + $0x28] sm:$0xff]
      %v478 = vld [vmem:[%s422 + $0x30] sm:$0xff]
      %v479 = vld [vmem:[%s422 + $0x38] sm:$0xff]
      %v480 = vld [vmem:[%s422 + $0x40] sm:$0xff]
      %v481 = vld [vmem:[%s422 + $0x48] sm:$0xff]
      %v482 = vld [vmem:[%s422 + $0x50] sm:$0xff]
      %v483 = vld [vmem:[%s422 + $0x58] sm:$0xff]
      %v484 = vld [vmem:[%s422 + $0x60] sm:$0xff]
      %v485 = vld [vmem:[%s422 + $0x68] sm:$0xff]
      %v486 = vld [vmem:[%s422 + $0x70] sm:$0xff]
      %v487 = vld [vmem:[%s422 + $0x78] sm:$0xff]
      %v488 = vld [vmem:[%s432] sm:$0xff]
      %v489 = vld [vmem:[%s432 + $0x8] sm:$0xff]
      %v490 = vld [vmem:[%s432 + $0x10] sm:$0xff]
      %v491 = vld [vmem:[%s432 + $0x18] sm:$0xff]
      %v492 = vld [vmem:[%s432 + $0x20] sm:$0xff]
      %v493 = vld [vmem:[%s432 + $0x28] sm:$0xff]
      %v494 = vld [vmem:[%s432 + $0x30] sm:$0xff]
      %v495 = vld [vmem:[%s432 + $0x38] sm:$0xff]
      %v496 = vld [vmem:[%s432 + $0x40] sm:$0xff]
      %v497 = vld [vmem:[%s432 + $0x48] sm:$0xff]
      %v498 = vld [vmem:[%s432 + $0x50] sm:$0xff]
      %v499 = vld [vmem:[%s432 + $0x58] sm:$0xff]
      %v500 = vld [vmem:[%s432 + $0x60] sm:$0xff]
      %v501 = vld [vmem:[%s432 + $0x68] sm:$0xff]
      %v502 = vld [vmem:[%s432 + $0x70] sm:$0xff]
      %v503 = vld [vmem:[%s432 + $0x78] sm:$0xff]
      %vm504 = vcmask 64512
      %v506 = vsel %vm504, %v488, 0
      %v509 = vsel %vm504, %v489, 0
      %v512 = vsel %vm504, %v490, 0
      %v515 = vsel %vm504, %v491, 0
      %v518 = vsel %vm504, %v492, 0
      %v521 = vsel %vm504, %v493, 0
      %v524 = vsel %vm504, %v494, 0
      %v527 = vsel %vm504, %v495, 0
      %v530 = vsel %vm504, %v496, 0
      %v533 = vsel %vm504, %v497, 0
      %v536 = vsel %vm504, %v498, 0
      %v539 = vsel %vm504, %v499, 0
      %v542 = vsel %vm504, %v500, 0
      %v545 = vsel %vm504, %v501, 0
      %v548 = vsel %vm504, %v502, 0
      %v551 = vsel %vm504, %v503, 0
      %553 = vmatprep.subr.mxu0 0.0
      %554 = vmatpush1.msra.mxu0 %v468
      %555 = vmatprep.subr.mxu0 0.0
      %556 = vmatpush1.msra.mxu0 0.0
      %557 = vmatprep.subr.mxu0 0.0
      %558 = vmatpush1.msra.mxu0 0.0
      %559 = vmatprep.subr.mxu0 0.0
      %560 = vmatpush1.msra.mxu0 0.0
      %561 = vmatprep.subr.mxu0 0.0
      %562 = vmatpush1.msra.mxu0 0.0
      %563 = vmatprep.subr.mxu0 0.0
      %564 = vmatpush1.msra.mxu0 0.0
      %565 = vmatprep.subr.mxu0 0.0
      %566 = vmatpush1.msra.mxu0 0.0
      %567 = vmatprep.subr.mxu0 0.0
      %568 = vmatpush1.msra.mxu0 0.0
      %569 = vmatprep.subr.mxu0 0.0
      %570 = vmatpush1.msra.mxu0 0.0
      %571 = vmatprep.subr.mxu0 0.0
      %572 = vmatpush1.msra.mxu0 0.0
      %573 = vmatprep.subr.mxu0 0.0
      %574 = vmatpush1.msra.mxu0 0.0
      %575 = vmatprep.subr.mxu0 0.0
      %576 = vmatpush1.msra.mxu0 0.0
      %577 = vmatprep.subr.mxu0 0.0
      %578 = vmatpush1.msra.mxu0 0.0
      %579 = vmatprep.subr.mxu0 0.0
      %580 = vmatpush1.msra.mxu0 0.0
      %581 = vmatprep.subr.mxu0 0.0
      %582 = vmatpush1.msra.mxu0 0.0
      %583 = vmatprep.subr.mxu0 0.0
      %584 = vmatpush1.msra.mxu0 0.0
      %585 = vmatprep.subr.mxu0 0.0
      %586 = vmatpush1.msra.mxu0 0.0
      %587 = vmatprep.subr.mxu0 0.0
      %588 = vmatpush1.msra.mxu0 0.0
      %589 = vmatprep.subr.mxu0 0.0
      %590 = vmatpush1.msra.mxu0 0.0
      %591 = vmatprep.subr.mxu0 0.0
      %592 = vmatpush1.msra.mxu0 0.0
      %593 = vmatprep.subr.mxu0 0.0
      %594 = vmatpush1.msra.mxu0 0.0
      %595 = vmatprep.subr.mxu0 0.0
      %596 = vmatpush1.msra.mxu0 0.0
      %597 = vmatprep.subr.mxu0 0.0
      %598 = vmatpush1.msra.mxu0 0.0
      %599 = vmatprep.subr.mxu0 0.0
      %600 = vmatpush1.msra.mxu0 0.0
      %601 = vmatprep.subr.mxu0 0.0
      %602 = vmatpush1.msra.mxu0 0.0
      %603 = vmatprep.subr.mxu0 0.0
      %604 = vmatpush1.msra.mxu0 0.0
      %605 = vmatprep.subr.mxu0 0.0
      %606 = vmatpush1.msra.mxu0 0.0
      %607 = vmatprep.subr.mxu0 0.0
      %608 = vmatpush1.msra.mxu0 0.0
      %609 = vmatprep.subr.mxu0 0.0
      %610 = vmatpush1.msra.mxu0 0.0
      %611 = vmatprep.subr.mxu0 0.0
      %612 = vmatpush1.msra.mxu0 0.0
      %613 = vmatprep.subr.mxu0 0.0
      %614 = vmatpush1.msra.mxu0 0.0
      %615 = vmatprep.subr.mxu0 0.0
      %616 = vmatpush1.msra.mxu0 0.0
      %617 = vmatprep.mubr.f32.mxu0 0.0
      %618 = vmatmul.mubr.f32.gmra.mrb[0].mxu0 %v506
      %v619 = vpop.f32.mrb[0].mxu0
      %v620 = vadd.f32 0.0, %v619
      %v621 = vpop.f32.mrb[0].mxu0
      %622 = vmatprep.mubr.f32.mxu0 0.0
      %623 = vmatmul.mubr.f32.gmra.mrb[0].mxu0 %v509
      %v624 = vpop.f32.mrb[0].mxu0
      %v625 = vadd.f32 0.0, %v624
      %v626 = vpop.f32.mrb[0].mxu0
      %627 = vmatprep.mubr.f32.mxu0 0.0
      %628 = vmatmul.mubr.f32.gmra.mrb[0].mxu0 %v512
      %v629 = vpop.f32.mrb[0].mxu0
      %v630 = vadd.f32 0.0, %v629
      %v631 = vpop.f32.mrb[0].mxu0
      %632 = vmatprep.mubr.f32.mxu0 0.0
      %633 = vmatmul.mubr.f32.gmra.mrb[0].mxu0 %v515
      %v634 = vpop.f32.mrb[0].mxu0
      %v635 = vadd.f32 0.0, %v634
      %v636 = vpop.f32.mrb[0].mxu0
      %637 = vmatprep.mubr.f32.mxu0 0.0
      %638 = vmatmul.mubr.f32.gmra.mrb[0].mxu0 %v518
      %v639 = vpop.f32.mrb[0].mxu0
      %v640 = vadd.f32 0.0, %v639
      %v641 = vpop.f32.mrb[0].mxu0
      %642 = vmatprep.mubr.f32.mxu0 0.0
      %643 = vmatmul.mubr.f32.gmra.mrb[0].mxu0 %v521
      %v644 = vpop.f32.mrb[0].mxu0
      %v645 = vadd.f32 0.0, %v644
      %v646 = vpop.f32.mrb[0].mxu0
      %647 = vmatprep.mubr.f32.mxu0 0.0
      %648 = vmatmul.mubr.f32.gmra.mrb[0].mxu0 %v524
      %v649 = vpop.f32.mrb[0].mxu0
      %v650 = vadd.f32 0.0, %v649
      %v651 = vpop.f32.mrb[0].mxu0
      %652 = vmatprep.mubr.f32.mxu0 0.0
      %653 = vmatmul.mubr.f32.gmra.mrb[0].mxu0 %v527
      %v654 = vpop.f32.mrb[0].mxu0
      %v655 = vadd.f32 0.0, %v654
      %v656 = vpop.f32.mrb[0].mxu0
      %657 = vmatprep.mubr.f32.mxu0 0.0
      %658 = vmatmul.mubr.f32.gmra.mrb[0].mxu0 %v530
      %v659 = vpop.f32.mrb[0].mxu0
      %v660 = vadd.f32 0.0, %v659
      %v661 = vpop.f32.mrb[0].mxu0
      %662 = vmatprep.mubr.f32.mxu0 0.0
      %663 = vmatmul.mubr.f32.gmra.mrb[0].mxu0 %v533
      %v664 = vpop.f32.mrb[0].mxu0
      %v665 = vadd.f32 0.0, %v664
      %v666 = vpop.f32.mrb[0].mxu0
      %667 = vmatprep.mubr.f32.mxu0 0.0
      %668 = vmatmul.mubr.f32.gmra.mrb[0].mxu0 %v536
      %v669 = vpop.f32.mrb[0].mxu0
      %v670 = vadd.f32 0.0, %v669
      %v671 = vpop.f32.mrb[0].mxu0
      %672 = vmatprep.mubr.f32.mxu0 0.0
      %673 = vmatmul.mubr.f32.gmra.mrb[0].mxu0 %v539
      %v674 = vpop.f32.mrb[0].mxu0
      %v675 = vadd.f32 0.0, %v674
      %v676 = vpop.f32.mrb[0].mxu0
      %677 = vmatprep.mubr.f32.mxu0 0.0
      %678 = vmatmul.mubr.f32.gmra.mrb[0].mxu0 %v542
      %v679 = vpop.f32.mrb[0].mxu0
      %v680 = vadd.f32 0.0, %v679
      %v681 = vpop.f32.mrb[0].mxu0
      %682 = vmatprep.mubr.f32.mxu0 0.0
      %683 = vmatmul.mubr.f32.gmra.mrb[0].mxu0 %v545
      %v684 = vpop.f32.mrb[0].mxu0
      %v685 = vadd.f32 0.0, %v684
      %v686 = vpop.f32.mrb[0].mxu0
      %687 = vmatprep.mubr.f32.mxu0 0.0
      %688 = vmatmul.mubr.f32.gmra.mrb[0].mxu0 %v548
      %v689 = vpop.f32.mrb[0].mxu0
      %v690 = vadd.f32 0.0, %v689
      %v691 = vpop.f32.mrb[0].mxu0
      %692 = vmatprep.mubr.f32.mxu0 0.0
      %693 = vmatmul.mubr.f32.gmra.mrb[0].mxu0 %v551
      %v694 = vpop.f32.mrb[0].mxu0
      %v695 = vadd.f32 0.0, %v694
      %v696 = vpop.f32.mrb[0].mxu0
      %697 = vdwg.mxu0
      %v699 = vsel %vm504, %v472, 0
      %v702 = vsel %vm504, %v473, 0
      %v705 = vsel %vm504, %v474, 0
      %v708 = vsel %vm504, %v475, 0
      %v711 = vsel %vm504, %v476, 0
      %v714 = vsel %vm504, %v477, 0
      %v717 = vsel %vm504, %v478, 0
      %v720 = vsel %vm504, %v479, 0
      %v723 = vsel %vm504, %v480, 0
      %v726 = vsel %vm504, %v481, 0
      %v729 = vsel %vm504, %v482, 0
      %v732 = vsel %vm504, %v483, 0
      %v735 = vsel %vm504, %v484, 0
      %v738 = vsel %vm504, %v485, 0
      %v741 = vsel %vm504, %v486, 0
      %v744 = vsel %vm504, %v487, 0
      %746 = vmatprep.subr.mxu0 0.0
      %747 = vmatpush1.msra.mxu0 %v467
      %748 = vmatprep.subr.mxu0 0.0
      %749 = vmatpush1.msra.mxu0 0.0
      %750 = vmatprep.subr.mxu0 0.0
      %751 = vmatpush1.msra.mxu0 0.0
      %752 = vmatprep.subr.mxu0 0.0
      %753 = vmatpush1.msra.mxu0 0.0
      %754 = vmatprep.subr.mxu0 0.0
      %755 = vmatpush1.msra.mxu0 0.0
      %756 = vmatprep.subr.mxu0 0.0
      %757 = vmatpush1.msra.mxu0 0.0
      %758 = vmatprep.subr.mxu0 0.0
      %759 = vmatpush1.msra.mxu0 0.0
      %760 = vmatprep.subr.mxu0 0.0
      %761 = vmatpush1.msra.mxu0 0.0
      %762 = vmatprep.subr.mxu0 0.0
      %763 = vmatpush1.msra.mxu0 0.0
      %764 = vmatprep.subr.mxu0 0.0
      %765 = vmatpush1.msra.mxu0 0.0
      %766 = vmatprep.subr.mxu0 0.0
      %767 = vmatpush1.msra.mxu0 0.0
      %768 = vmatprep.subr.mxu0 0.0
      %769 = vmatpush1.msra.mxu0 0.0
      %770 = vmatprep.subr.mxu0 0.0
      %771 = vmatpush1.msra.mxu0 0.0
      %772 = vmatprep.subr.mxu0 0.0
      %773 = vmatpush1.msra.mxu0 0.0
      %774 = vmatprep.subr.mxu0 0.0
      %775 = vmatpush1.msra.mxu0 0.0
      %776 = vmatprep.subr.mxu0 0.0
      %777 = vmatpush1.msra.mxu0 0.0
      %778 = vmatprep.subr.mxu0 0.0
      %779 = vmatpush1.msra.mxu0 0.0
      %780 = vmatprep.subr.mxu0 0.0
      %781 = vmatpush1.msra.mxu0 0.0
      %782 = vmatprep.subr.mxu0 0.0
      %783 = vmatpush1.msra.mxu0 0.0
      %784 = vmatprep.subr.mxu0 0.0
      %785 = vmatpush1.msra.mxu0 0.0
      %786 = vmatprep.subr.mxu0 0.0
      %787 = vmatpush1.msra.mxu0 0.0
      %788 = vmatprep.subr.mxu0 0.0
      %789 = vmatpush1.msra.mxu0 0.0
      %790 = vmatprep.subr.mxu0 0.0
      %791 = vmatpush1.msra.mxu0 0.0
      %792 = vmatprep.subr.mxu0 0.0
      %793 = vmatpush1.msra.mxu0 0.0
      %794 = vmatprep.subr.mxu0 0.0
      %795 = vmatpush1.msra.mxu0 0.0
      %796 = vmatprep.subr.mxu0 0.0
      %797 = vmatpush1.msra.mxu0 0.0
      %798 = vmatprep.subr.mxu0 0.0
      %799 = vmatpush1.msra.mxu0 0.0
      %800 = vmatprep.subr.mxu0 0.0
      %801 = vmatpush1.msra.mxu0 0.0
      %802 = vmatprep.subr.mxu0 0.0
      %803 = vmatpush1.msra.mxu0 0.0
      %804 = vmatprep.subr.mxu0 0.0
      %805 = vmatpush1.msra.mxu0 0.0
      %806 = vmatprep.subr.mxu0 0.0
      %807 = vmatpush1.msra.mxu0 0.0
      %808 = vmatprep.subr.mxu0 0.0
      %809 = vmatpush1.msra.mxu0 0.0
      %810 = vmatprep.mubr.f32.mxu0 0.0
      %811 = vmatmul.mubr.f32.gmra.mrb[0].mxu0 %v699
      %v812 = vpop.f32.mrb[0].mxu0
      %v813 = vadd.f32 %v620, %v812
      %v814 = vpop.f32.mrb[0].mxu0
      %815 = vmatprep.mubr.f32.mxu0 0.0
      %816 = vmatmul.mubr.f32.gmra.mrb[0].mxu0 %v702
      %v817 = vpop.f32.mrb[0].mxu0
      %v818 = vadd.f32 %v625, %v817
      %v819 = vpop.f32.mrb[0].mxu0
      %820 = vmatprep.mubr.f32.mxu0 0.0
      %821 = vmatmul.mubr.f32.gmra.mrb[0].mxu0 %v705
      %v822 = vpop.f32.mrb[0].mxu0
      %v823 = vadd.f32 %v630, %v822
      %v824 = vpop.f32.mrb[0].mxu0
      %825 = vmatprep.mubr.f32.mxu0 0.0
      %826 = vmatmul.mubr.f32.gmra.mrb[0].mxu0 %v708
      %v827 = vpop.f32.mrb[0].mxu0
      %v828 = vadd.f32 %v635, %v827
      %v829 = vpop.f32.mrb[0].mxu0
      %830 = vmatprep.mubr.f32.mxu0 0.0
      %831 = vmatmul.mubr.f32.gmra.mrb[0].mxu0 %v711
      %v832 = vpop.f32.mrb[0].mxu0
      %v833 = vadd.f32 %v640, %v832
      %v834 = vpop.f32.mrb[0].mxu0
      %835 = vmatprep.mubr.f32.mxu0 0.0
      %836 = vmatmul.mubr.f32.gmra.mrb[0].mxu0 %v714
      %v837 = vpop.f32.mrb[0].mxu0
      %v838 = vadd.f32 %v645, %v837
      %v839 = vpop.f32.mrb[0].mxu0
      %840 = vmatprep.mubr.f32.mxu0 0.0
      %841 = vmatmul.mubr.f32.gmra.mrb[0].mxu0 %v717
      %v842 = vpop.f32.mrb[0].mxu0
      %v843 = vadd.f32 %v650, %v842
      %v844 = vpop.f32.mrb[0].mxu0
      %845 = vmatprep.mubr.f32.mxu0 0.0
      %846 = vmatmul.mubr.f32.gmra.mrb[0].mxu0 %v720
      %v847 = vpop.f32.mrb[0].mxu0
      %v848 = vadd.f32 %v655, %v847
      %v849 = vpop.f32.mrb[0].mxu0
      %850 = vmatprep.mubr.f32.mxu0 0.0
      %851 = vmatmul.mubr.f32.gmra.mrb[0].mxu0 %v723
      %v852 = vpop.f32.mrb[0].mxu0
      %v853 = vadd.f32 %v660, %v852
      %v854 = vpop.f32.mrb[0].mxu0
      %855 = vmatprep.mubr.f32.mxu0 0.0
      %856 = vmatmul.mubr.f32.gmra.mrb[0].mxu0 %v726
      %v857 = vpop.f32.mrb[0].mxu0
      %v858 = vadd.f32 %v665, %v857
      %v859 = vpop.f32.mrb[0].mxu0
      %860 = vmatprep.mubr.f32.mxu0 0.0
      %861 = vmatmul.mubr.f32.gmra.mrb[0].mxu0 %v729
      %v862 = vpop.f32.mrb[0].mxu0
      %v863 = vadd.f32 %v670, %v862
      %v864 = vpop.f32.mrb[0].mxu0
      %865 = vmatprep.mubr.f32.mxu0 0.0
      %866 = vmatmul.mubr.f32.gmra.mrb[0].mxu0 %v732
      %v867 = vpop.f32.mrb[0].mxu0
      %v868 = vadd.f32 %v675, %v867
      %v869 = vpop.f32.mrb[0].mxu0
      %870 = vmatprep.mubr.f32.mxu0 0.0
      %871 = vmatmul.mubr.f32.gmra.mrb[0].mxu0 %v735
      %v872 = vpop.f32.mrb[0].mxu0
      %v873 = vadd.f32 %v680, %v872
      %v874 = vpop.f32.mrb[0].mxu0
      %875 = vmatprep.mubr.f32.mxu0 0.0
      %876 = vmatmul.mubr.f32.gmra.mrb[0].mxu0 %v738
      %v877 = vpop.f32.mrb[0].mxu0
      %v878 = vadd.f32 %v685, %v877
      %v879 = vpop.f32.mrb[0].mxu0
      %880 = vmatprep.mubr.f32.mxu0 0.0
      %881 = vmatmul.mubr.f32.gmra.mrb[0].mxu0 %v741
      %v882 = vpop.f32.mrb[0].mxu0
      %v883 = vadd.f32 %v690, %v882
      %v884 = vpop.f32.mrb[0].mxu0
      %885 = vmatprep.mubr.f32.mxu0 0.0
      %886 = vmatmul.mubr.f32.gmra.mrb[0].mxu0 %v744
      %v887 = vpop.f32.mrb[0].mxu0
      %v888 = vadd.f32 %v695, %v887
      %v889 = vpop.f32.mrb[0].mxu0
      %890 = vdwg.mxu0
      %v891 = vld [vmem:[%s442] sm:$0xff]
      %v892 = vld [vmem:[%s442 + $0x8] sm:$0xff]
      %v893 = vld [vmem:[%s442 + $0x10] sm:$0xff]
      %v894 = vld [vmem:[%s442 + $0x18] sm:$0xff]
      %v895 = vld [vmem:[%s442 + $0x20] sm:$0xff]
      %v896 = vld [vmem:[%s442 + $0x28] sm:$0xff]
      %v897 = vld [vmem:[%s442 + $0x30] sm:$0xff]
      %v898 = vld [vmem:[%s442 + $0x38] sm:$0xff]
      %v899 = vld [vmem:[%s442 + $0x40] sm:$0xff]
      %v900 = vld [vmem:[%s442 + $0x48] sm:$0xff]
      %v901 = vld [vmem:[%s442 + $0x50] sm:$0xff]
      %v902 = vld [vmem:[%s442 + $0x58] sm:$0xff]
      %v903 = vld [vmem:[%s442 + $0x60] sm:$0xff]
      %v904 = vld [vmem:[%s442 + $0x68] sm:$0xff]
      %v905 = vld [vmem:[%s442 + $0x70] sm:$0xff]
      %v906 = vld [vmem:[%s442 + $0x78] sm:$0xff]
      %v908 = vsel %vm504, %v891, 0
      %v911 = vsel %vm504, %v892, 0
      %v914 = vsel %vm504, %v893, 0
      %v917 = vsel %vm504, %v894, 0
      %v920 = vsel %vm504, %v895, 0
      %v923 = vsel %vm504, %v896, 0
      %v926 = vsel %vm504, %v897, 0
      %v929 = vsel %vm504, %v898, 0
      %v932 = vsel %vm504, %v899, 0
      %v935 = vsel %vm504, %v900, 0
      %v938 = vsel %vm504, %v901, 0
      %v941 = vsel %vm504, %v902, 0
      %v944 = vsel %vm504, %v903, 0
      %v947 = vsel %vm504, %v904, 0
      %v950 = vsel %vm504, %v905, 0
      %v953 = vsel %vm504, %v906, 0
      %955 = vmatprep.subr.mxu0 0.0
      %956 = vmatpush1.msra.mxu0 %v469
      %957 = vmatprep.subr.mxu0 0.0
      %958 = vmatpush1.msra.mxu0 0.0
      %959 = vmatprep.subr.mxu0 0.0
      %960 = vmatpush1.msra.mxu0 0.0
      %961 = vmatprep.subr.mxu0 0.0
      %962 = vmatpush1.msra.mxu0 0.0
      %963 = vmatprep.subr.mxu0 0.0
      %964 = vmatpush1.msra.mxu0 0.0
      %965 = vmatprep.subr.mxu0 0.0
      %966 = vmatpush1.msra.mxu0 0.0
      %967 = vmatprep.subr.mxu0 0.0
      %968 = vmatpush1.msra.mxu0 0.0
      %969 = vmatprep.subr.mxu0 0.0
      %970 = vmatpush1.msra.mxu0 0.0
      %971 = vmatprep.subr.mxu0 0.0
      %972 = vmatpush1.msra.mxu0 0.0
      %973 = vmatprep.subr.mxu0 0.0
      %974 = vmatpush1.msra.mxu0 0.0
      %975 = vmatprep.subr.mxu0 0.0
      %976 = vmatpush1.msra.mxu0 0.0
      %977 = vmatprep.subr.mxu0 0.0
      %978 = vmatpush1.msra.mxu0 0.0
      %979 = vmatprep.subr.mxu0 0.0
      %980 = vmatpush1.msra.mxu0 0.0
      %981 = vmatprep.subr.mxu0 0.0
      %982 = vmatpush1.msra.mxu0 0.0
      %983 = vmatprep.subr.mxu0 0.0
      %984 = vmatpush1.msra.mxu0 0.0
      %985 = vmatprep.subr.mxu0 0.0
      %986 = vmatpush1.msra.mxu0 0.0
      %987 = vmatprep.subr.mxu0 0.0
      %988 = vmatpush1.msra.mxu0 0.0
      %989 = vmatprep.subr.mxu0 0.0
      %990 = vmatpush1.msra.mxu0 0.0
      %991 = vmatprep.subr.mxu0 0.0
      %992 = vmatpush1.msra.mxu0 0.0
      %993 = vmatprep.subr.mxu0 0.0
      %994 = vmatpush1.msra.mxu0 0.0
      %995 = vmatprep.subr.mxu0 0.0
      %996 = vmatpush1.msra.mxu0 0.0
      %997 = vmatprep.subr.mxu0 0.0
      %998 = vmatpush1.msra.mxu0 0.0
      %999 = vmatprep.subr.mxu0 0.0
      %1000 = vmatpush1.msra.mxu0 0.0
      %1001 = vmatprep.subr.mxu0 0.0
      %1002 = vmatpush1.msra.mxu0 0.0
      %1003 = vmatprep.subr.mxu0 0.0
      %1004 = vmatpush1.msra.mxu0 0.0
      %1005 = vmatprep.subr.mxu0 0.0
      %1006 = vmatpush1.msra.mxu0 0.0
      %1007 = vmatprep.subr.mxu0 0.0
      %1008 = vmatpush1.msra.mxu0 0.0
      %1009 = vmatprep.subr.mxu0 0.0
      %1010 = vmatpush1.msra.mxu0 0.0
      %1011 = vmatprep.subr.mxu0 0.0
      %1012 = vmatpush1.msra.mxu0 0.0
      %1013 = vmatprep.subr.mxu0 0.0
      %1014 = vmatpush1.msra.mxu0 0.0
      %1015 = vmatprep.subr.mxu0 0.0
      %1016 = vmatpush1.msra.mxu0 0.0
      %1017 = vmatprep.subr.mxu0 0.0
      %1018 = vmatpush1.msra.mxu0 0.0
      %1019 = vmatprep.mubr.f32.mxu0 0.0
      %1020 = vmatmul.mubr.f32.gmra.mrb[0].mxu0 %v908
      %v1021 = vpop.f32.mrb[0].mxu0
      %v1022 = vadd.f32 0.0, %v1021
      %v1023 = vpop.f32.mrb[0].mxu0
      %1024 = vmatprep.mubr.f32.mxu0 0.0
      %1025 = vmatmul.mubr.f32.gmra.mrb[0].mxu0 %v911
      %v1026 = vpop.f32.mrb[0].mxu0
      %v1027 = vadd.f32 0.0, %v1026
      %v1028 = vpop.f32.mrb[0].mxu0
      %1029 = vmatprep.mubr.f32.mxu0 0.0
      %1030 = vmatmul.mubr.f32.gmra.mrb[0].mxu0 %v914
      %v1031 = vpop.f32.mrb[0].mxu0
      %v1032 = vadd.f32 0.0, %v1031
      %v1033 = vpop.f32.mrb[0].mxu0
      %1034 = vmatprep.mubr.f32.mxu0 0.0
      %1035 = vmatmul.mubr.f32.gmra.mrb[0].mxu0 %v917
      %v1036 = vpop.f32.mrb[0].mxu0
      %v1037 = vadd.f32 0.0, %v1036
      %v1038 = vpop.f32.mrb[0].mxu0
      %1039 = vmatprep.mubr.f32.mxu0 0.0
      %1040 = vmatmul.mubr.f32.gmra.mrb[0].mxu0 %v920
      %v1041 = vpop.f32.mrb[0].mxu0
      %v1042 = vadd.f32 0.0, %v1041
      %v1043 = vpop.f32.mrb[0].mxu0
      %1044 = vmatprep.mubr.f32.mxu0 0.0
      %1045 = vmatmul.mubr.f32.gmra.mrb[0].mxu0 %v923
      %v1046 = vpop.f32.mrb[0].mxu0
      %v1047 = vadd.f32 0.0, %v1046
      %v1048 = vpop.f32.mrb[0].mxu0
      %1049 = vmatprep.mubr.f32.mxu0 0.0
      %1050 = vmatmul.mubr.f32.gmra.mrb[0].mxu0 %v926
      %v1051 = vpop.f32.mrb[0].mxu0
      %v1052 = vadd.f32 0.0, %v1051
      %v1053 = vpop.f32.mrb[0].mxu0
      %1054 = vmatprep.mubr.f32.mxu0 0.0
      %1055 = vmatmul.mubr.f32.gmra.mrb[0].mxu0 %v929
      %v1056 = vpop.f32.mrb[0].mxu0
      %v1057 = vadd.f32 0.0, %v1056
      %v1058 = vpop.f32.mrb[0].mxu0
      %1059 = vmatprep.mubr.f32.mxu0 0.0
      %1060 = vmatmul.mubr.f32.gmra.mrb[0].mxu0 %v932
      %v1061 = vpop.f32.mrb[0].mxu0
      %v1062 = vadd.f32 0.0, %v1061
      %v1063 = vpop.f32.mrb[0].mxu0
      %1064 = vmatprep.mubr.f32.mxu0 0.0
      %1065 = vmatmul.mubr.f32.gmra.mrb[0].mxu0 %v935
      %v1066 = vpop.f32.mrb[0].mxu0
      %v1067 = vadd.f32 0.0, %v1066
      %v1068 = vpop.f32.mrb[0].mxu0
      %1069 = vmatprep.mubr.f32.mxu0 0.0
      %1070 = vmatmul.mubr.f32.gmra.mrb[0].mxu0 %v938
      %v1071 = vpop.f32.mrb[0].mxu0
      %v1072 = vadd.f32 0.0, %v1071
      %v1073 = vpop.f32.mrb[0].mxu0
      %1074 = vmatprep.mubr.f32.mxu0 0.0
      %1075 = vmatmul.mubr.f32.gmra.mrb[0].mxu0 %v941
      %v1076 = vpop.f32.mrb[0].mxu0
      %v1077 = vadd.f32 0.0, %v1076
      %v1078 = vpop.f32.mrb[0].mxu0
      %1079 = vmatprep.mubr.f32.mxu0 0.0
      %1080 = vmatmul.mubr.f32.gmra.mrb[0].mxu0 %v944
      %v1081 = vpop.f32.mrb[0].mxu0
      %v1082 = vadd.f32 0.0, %v1081
      %v1083 = vpop.f32.mrb[0].mxu0
      %1084 = vmatprep.mubr.f32.mxu0 0.0
      %1085 = vmatmul.mubr.f32.gmra.mrb[0].mxu0 %v947
      %v1086 = vpop.f32.mrb[0].mxu0
      %v1087 = vadd.f32 0.0, %v1086
      %v1088 = vpop.f32.mrb[0].mxu0
      %1089 = vmatprep.mubr.f32.mxu0 0.0
      %1090 = vmatmul.mubr.f32.gmra.mrb[0].mxu0 %v950
      %v1091 = vpop.f32.mrb[0].mxu0
      %v1092 = vadd.f32 0.0, %v1091
      %v1093 = vpop.f32.mrb[0].mxu0
      %1094 = vmatprep.mubr.f32.mxu0 0.0
      %1095 = vmatmul.mubr.f32.gmra.mrb[0].mxu0 %v953
      %v1096 = vpop.f32.mrb[0].mxu0
      %v1097 = vadd.f32 0.0, %v1096
      %v1098 = vpop.f32.mrb[0].mxu0
      %1099 = vdwg.mxu0
      %v1100 = vadd.f32 %v813, %v1022
      %v1101 = vadd.f32 %v818, %v1027
      %v1102 = vadd.f32 %v823, %v1032
      %v1103 = vadd.f32 %v828, %v1037
      %v1104 = vadd.f32 %v833, %v1042
      %v1105 = vadd.f32 %v838, %v1047
      %v1106 = vadd.f32 %v843, %v1052
      %v1107 = vadd.f32 %v848, %v1057
      %v1108 = vadd.f32 %v853, %v1062
      %v1109 = vadd.f32 %v858, %v1067
      %v1110 = vadd.f32 %v863, %v1072
      %v1111 = vadd.f32 %v868, %v1077
      %v1112 = vadd.f32 %v873, %v1082
      %v1113 = vadd.f32 %v878, %v1087
      %v1114 = vadd.f32 %v883, %v1092
      %v1115 = vadd.f32 %v888, %v1097
      %v1116 = vld [vmem:[%s452] sm:$0xff]
      %v1117 = vld [vmem:[%s452 + $0x8] sm:$0xff]
      %v1118 = vld [vmem:[%s452 + $0x10] sm:$0xff]
      %v1119 = vld [vmem:[%s452 + $0x18] sm:$0xff]
      %v1120 = vld [vmem:[%s452 + $0x20] sm:$0xff]
      %v1121 = vld [vmem:[%s452 + $0x28] sm:$0xff]
      %v1122 = vld [vmem:[%s452 + $0x30] sm:$0xff]
      %v1123 = vld [vmem:[%s452 + $0x38] sm:$0xff]
      %v1124 = vld [vmem:[%s452 + $0x40] sm:$0xff]
      %v1125 = vld [vmem:[%s452 + $0x48] sm:$0xff]
      %v1126 = vld [vmem:[%s452 + $0x50] sm:$0xff]
      %v1127 = vld [vmem:[%s452 + $0x58] sm:$0xff]
      %v1128 = vld [vmem:[%s452 + $0x60] sm:$0xff]
      %v1129 = vld [vmem:[%s452 + $0x68] sm:$0xff]
      %v1130 = vld [vmem:[%s452 + $0x70] sm:$0xff]
      %v1131 = vld [vmem:[%s452 + $0x78] sm:$0xff]
      %v1133 = vsel %vm504, %v1116, 0
      %v1136 = vsel %vm504, %v1117, 0
      %v1139 = vsel %vm504, %v1118, 0
      %v1142 = vsel %vm504, %v1119, 0
      %v1145 = vsel %vm504, %v1120, 0
      %v1148 = vsel %vm504, %v1121, 0
      %v1151 = vsel %vm504, %v1122, 0
      %v1154 = vsel %vm504, %v1123, 0
      %v1157 = vsel %vm504, %v1124, 0
      %v1160 = vsel %vm504, %v1125, 0
      %v1163 = vsel %vm504, %v1126, 0
      %v1166 = vsel %vm504, %v1127, 0
      %v1169 = vsel %vm504, %v1128, 0
      %v1172 = vsel %vm504, %v1129, 0
      %v1175 = vsel %vm504, %v1130, 0
      %v1178 = vsel %vm504, %v1131, 0
      %1180 = vmatprep.subr.mxu0 0.0
      %1181 = vmatpush1.msra.mxu0 %v470
      %1182 = vmatprep.subr.mxu0 0.0
      %1183 = vmatpush1.msra.mxu0 0.0
      %1184 = vmatprep.subr.mxu0 0.0
      %1185 = vmatpush1.msra.mxu0 0.0
      %1186 = vmatprep.subr.mxu0 0.0
      %1187 = vmatpush1.msra.mxu0 0.0
      %1188 = vmatprep.subr.mxu0 0.0
      %1189 = vmatpush1.msra.mxu0 0.0
      %1190 = vmatprep.subr.mxu0 0.0
      %1191 = vmatpush1.msra.mxu0 0.0
      %1192 = vmatprep.subr.mxu0 0.0
      %1193 = vmatpush1.msra.mxu0 0.0
      %1194 = vmatprep.subr.mxu0 0.0
      %1195 = vmatpush1.msra.mxu0 0.0
      %1196 = vmatprep.subr.mxu0 0.0
      %1197 = vmatpush1.msra.mxu0 0.0
      %1198 = vmatprep.subr.mxu0 0.0
      %1199 = vmatpush1.msra.mxu0 0.0
      %1200 = vmatprep.subr.mxu0 0.0
      %1201 = vmatpush1.msra.mxu0 0.0
      %1202 = vmatprep.subr.mxu0 0.0
      %1203 = vmatpush1.msra.mxu0 0.0
      %1204 = vmatprep.subr.mxu0 0.0
      %1205 = vmatpush1.msra.mxu0 0.0
      %1206 = vmatprep.subr.mxu0 0.0
      %1207 = vmatpush1.msra.mxu0 0.0
      %1208 = vmatprep.subr.mxu0 0.0
      %1209 = vmatpush1.msra.mxu0 0.0
      %1210 = vmatprep.subr.mxu0 0.0
      %1211 = vmatpush1.msra.mxu0 0.0
      %1212 = vmatprep.subr.mxu0 0.0
      %1213 = vmatpush1.msra.mxu0 0.0
      %1214 = vmatprep.subr.mxu0 0.0
      %1215 = vmatpush1.msra.mxu0 0.0
      %1216 = vmatprep.subr.mxu0 0.0
      %1217 = vmatpush1.msra.mxu0 0.0
      %1218 = vmatprep.subr.mxu0 0.0
      %1219 = vmatpush1.msra.mxu0 0.0
      %1220 = vmatprep.subr.mxu0 0.0
      %1221 = vmatpush1.msra.mxu0 0.0
      %1222 = vmatprep.subr.mxu0 0.0
      %1223 = vmatpush1.msra.mxu0 0.0
      %1224 = vmatprep.subr.mxu0 0.0
      %1225 = vmatpush1.msra.mxu0 0.0
      %1226 = vmatprep.subr.mxu0 0.0
      %1227 = vmatpush1.msra.mxu0 0.0
      %1228 = vmatprep.subr.mxu0 0.0
      %1229 = vmatpush1.msra.mxu0 0.0
      %1230 = vmatprep.subr.mxu0 0.0
      %1231 = vmatpush1.msra.mxu0 0.0
      %1232 = vmatprep.subr.mxu0 0.0
      %1233 = vmatpush1.msra.mxu0 0.0
      %1234 = vmatprep.subr.mxu0 0.0
      %1235 = vmatpush1.msra.mxu0 0.0
      %1236 = vmatprep.subr.mxu0 0.0
      %1237 = vmatpush1.msra.mxu0 0.0
      %1238 = vmatprep.subr.mxu0 0.0
      %1239 = vmatpush1.msra.mxu0 0.0
      %1240 = vmatprep.subr.mxu0 0.0
      %1241 = vmatpush1.msra.mxu0 0.0
      %1242 = vmatprep.subr.mxu0 0.0
      %1243 = vmatpush1.msra.mxu0 0.0
      %1244 = vmatprep.mubr.f32.mxu0 0.0
      %1245 = vmatmul.mubr.f32.gmra.mrb[0].mxu0 %v1133
      %v1246 = vpop.f32.mrb[0].mxu0
      %v1247 = vadd.f32 0.0, %v1246
      %v1248 = vpop.f32.mrb[0].mxu0
      %1249 = vmatprep.mubr.f32.mxu0 0.0
      %1250 = vmatmul.mubr.f32.gmra.mrb[0].mxu0 %v1136
      %v1251 = vpop.f32.mrb[0].mxu0
      %v1252 = vadd.f32 0.0, %v1251
      %v1253 = vpop.f32.mrb[0].mxu0
      %1254 = vmatprep.mubr.f32.mxu0 0.0
      %1255 = vmatmul.mubr.f32.gmra.mrb[0].mxu0 %v1139
      %v1256 = vpop.f32.mrb[0].mxu0
      %v1257 = vadd.f32 0.0, %v1256
      %v1258 = vpop.f32.mrb[0].mxu0
      %1259 = vmatprep.mubr.f32.mxu0 0.0
      %1260 = vmatmul.mubr.f32.gmra.mrb[0].mxu0 %v1142
      %v1261 = vpop.f32.mrb[0].mxu0
      %v1262 = vadd.f32 0.0, %v1261
      %v1263 = vpop.f32.mrb[0].mxu0
      %1264 = vmatprep.mubr.f32.mxu0 0.0
      %1265 = vmatmul.mubr.f32.gmra.mrb[0].mxu0 %v1145
      %v1266 = vpop.f32.mrb[0].mxu0
      %v1267 = vadd.f32 0.0, %v1266
      %v1268 = vpop.f32.mrb[0].mxu0
      %1269 = vmatprep.mubr.f32.mxu0 0.0
      %1270 = vmatmul.mubr.f32.gmra.mrb[0].mxu0 %v1148
      %v1271 = vpop.f32.mrb[0].mxu0
      %v1272 = vadd.f32 0.0, %v1271
      %v1273 = vpop.f32.mrb[0].mxu0
      %1274 = vmatprep.mubr.f32.mxu0 0.0
      %1275 = vmatmul.mubr.f32.gmra.mrb[0].mxu0 %v1151
      %v1276 = vpop.f32.mrb[0].mxu0
      %v1277 = vadd.f32 0.0, %v1276
      %v1278 = vpop.f32.mrb[0].mxu0
      %1279 = vmatprep.mubr.f32.mxu0 0.0
      %1280 = vmatmul.mubr.f32.gmra.mrb[0].mxu0 %v1154
      %v1281 = vpop.f32.mrb[0].mxu0
      %v1282 = vadd.f32 0.0, %v1281
      %v1283 = vpop.f32.mrb[0].mxu0
      %1284 = vmatprep.mubr.f32.mxu0 0.0
      %1285 = vmatmul.mubr.f32.gmra.mrb[0].mxu0 %v1157
      %v1286 = vpop.f32.mrb[0].mxu0
      %v1287 = vadd.f32 0.0, %v1286
      %v1288 = vpop.f32.mrb[0].mxu0
      %1289 = vmatprep.mubr.f32.mxu0 0.0
      %1290 = vmatmul.mubr.f32.gmra.mrb[0].mxu0 %v1160
      %v1291 = vpop.f32.mrb[0].mxu0
      %v1292 = vadd.f32 0.0, %v1291
      %v1293 = vpop.f32.mrb[0].mxu0
      %1294 = vmatprep.mubr.f32.mxu0 0.0
      %1295 = vmatmul.mubr.f32.gmra.mrb[0].mxu0 %v1163
      %v1296 = vpop.f32.mrb[0].mxu0
      %v1297 = vadd.f32 0.0, %v1296
      %v1298 = vpop.f32.mrb[0].mxu0
      %1299 = vmatprep.mubr.f32.mxu0 0.0
      %1300 = vmatmul.mubr.f32.gmra.mrb[0].mxu0 %v1166
      %v1301 = vpop.f32.mrb[0].mxu0
      %v1302 = vadd.f32 0.0, %v1301
      %v1303 = vpop.f32.mrb[0].mxu0
      %1304 = vmatprep.mubr.f32.mxu0 0.0
      %1305 = vmatmul.mubr.f32.gmra.mrb[0].mxu0 %v1169
      %v1306 = vpop.f32.mrb[0].mxu0
      %v1307 = vadd.f32 0.0, %v1306
      %v1308 = vpop.f32.mrb[0].mxu0
      %1309 = vmatprep.mubr.f32.mxu0 0.0
      %1310 = vmatmul.mubr.f32.gmra.mrb[0].mxu0 %v1172
      %v1311 = vpop.f32.mrb[0].mxu0
      %v1312 = vadd.f32 0.0, %v1311
      %v1313 = vpop.f32.mrb[0].mxu0
      %1314 = vmatprep.mubr.f32.mxu0 0.0
      %1315 = vmatmul.mubr.f32.gmra.mrb[0].mxu0 %v1175
      %v1316 = vpop.f32.mrb[0].mxu0
      %v1317 = vadd.f32 0.0, %v1316
      %v1318 = vpop.f32.mrb[0].mxu0
      %1319 = vmatprep.mubr.f32.mxu0 0.0
      %1320 = vmatmul.mubr.f32.gmra.mrb[0].mxu0 %v1178
      %v1321 = vpop.f32.mrb[0].mxu0
      %v1322 = vadd.f32 0.0, %v1321
      %v1323 = vpop.f32.mrb[0].mxu0
      %1324 = vdwg.mxu0
      %v1325 = vadd.f32 %v1100, %v1247
      %v1326 = vadd.f32 %v1101, %v1252
      %v1327 = vadd.f32 %v1102, %v1257
      %v1328 = vadd.f32 %v1103, %v1262
      %v1329 = vadd.f32 %v1104, %v1267
      %v1330 = vadd.f32 %v1105, %v1272
      %v1331 = vadd.f32 %v1106, %v1277
      %v1332 = vadd.f32 %v1107, %v1282
      %v1333 = vadd.f32 %v1108, %v1287
      %v1334 = vadd.f32 %v1109, %v1292
      %v1335 = vadd.f32 %v1110, %v1297
      %v1336 = vadd.f32 %v1111, %v1302
      %v1337 = vadd.f32 %v1112, %v1307
      %v1338 = vadd.f32 %v1113, %v1312
      %v1339 = vadd.f32 %v1114, %v1317
      %v1340 = vadd.f32 %v1115, %v1322
      %v1341 = vld [vmem:[%s456] sm:$0x1]
      %v1343 = vsel %vm504, %v1341, 0
      %1345 = vmatprep.subr.mxu0 0.0
      %1346 = vmatpush1.msra.mxu0 %v471
      %1347 = vmatprep.subr.mxu0 0.0
      %1348 = vmatpush1.msra.mxu0 0.0
      %1349 = vmatprep.subr.mxu0 0.0
      %1350 = vmatpush1.msra.mxu0 0.0
      %1351 = vmatprep.subr.mxu0 0.0
      %1352 = vmatpush1.msra.mxu0 0.0
      %1353 = vmatprep.subr.mxu0 0.0
      %1354 = vmatpush1.msra.mxu0 0.0
      %1355 = vmatprep.subr.mxu0 0.0
      %1356 = vmatpush1.msra.mxu0 0.0
      %1357 = vmatprep.subr.mxu0 0.0
      %1358 = vmatpush1.msra.mxu0 0.0
      %1359 = vmatprep.subr.mxu0 0.0
      %1360 = vmatpush1.msra.mxu0 0.0
      %1361 = vmatprep.subr.mxu0 0.0
      %1362 = vmatpush1.msra.mxu0 0.0
      %1363 = vmatprep.subr.mxu0 0.0
      %1364 = vmatpush1.msra.mxu0 0.0
      %1365 = vmatprep.subr.mxu0 0.0
      %1366 = vmatpush1.msra.mxu0 0.0
      %1367 = vmatprep.subr.mxu0 0.0
      %1368 = vmatpush1.msra.mxu0 0.0
      %1369 = vmatprep.subr.mxu0 0.0
      %1370 = vmatpush1.msra.mxu0 0.0
      %1371 = vmatprep.subr.mxu0 0.0
      %1372 = vmatpush1.msra.mxu0 0.0
      %1373 = vmatprep.subr.mxu0 0.0
      %1374 = vmatpush1.msra.mxu0 0.0
      %1375 = vmatprep.subr.mxu0 0.0
      %1376 = vmatpush1.msra.mxu0 0.0
      %1377 = vmatprep.subr.mxu0 0.0
      %1378 = vmatpush1.msra.mxu0 0.0
      %1379 = vmatprep.subr.mxu0 0.0
      %1380 = vmatpush1.msra.mxu0 0.0
      %1381 = vmatprep.subr.mxu0 0.0
      %1382 = vmatpush1.msra.mxu0 0.0
      %1383 = vmatprep.subr.mxu0 0.0
      %1384 = vmatpush1.msra.mxu0 0.0
      %1385 = vmatprep.subr.mxu0 0.0
      %1386 = vmatpush1.msra.mxu0 0.0
      %1387 = vmatprep.subr.mxu0 0.0
      %1388 = vmatpush1.msra.mxu0 0.0
      %1389 = vmatprep.subr.mxu0 0.0
      %1390 = vmatpush1.msra.mxu0 0.0
      %1391 = vmatprep.subr.mxu0 0.0
      %1392 = vmatpush1.msra.mxu0 0.0
      %1393 = vmatprep.subr.mxu0 0.0
      %1394 = vmatpush1.msra.mxu0 0.0
      %1395 = vmatprep.subr.mxu0 0.0
      %1396 = vmatpush1.msra.mxu0 0.0
      %1397 = vmatprep.subr.mxu0 0.0
      %1398 = vmatpush1.msra.mxu0 0.0
      %1399 = vmatprep.subr.mxu0 0.0
      %1400 = vmatpush1.msra.mxu0 0.0
      %1401 = vmatprep.subr.mxu0 0.0
      %1402 = vmatpush1.msra.mxu0 0.0
      %1403 = vmatprep.subr.mxu0 0.0
      %1404 = vmatpush1.msra.mxu0 0.0
      %1405 = vmatprep.subr.mxu0 0.0
      %1406 = vmatpush1.msra.mxu0 0.0
      %1407 = vmatprep.subr.mxu0 0.0
      %1408 = vmatpush1.msra.mxu0 0.0
      %1409 = vmatprep.mubr.f32.mxu0 0.0
      %1410 = vmatmul.mubr.f32.gmra.mrb[0].mxu0 %v1343
      %v1411 = vpop.f32.mrb[0].mxu0
      %v1412 = vadd.f32 0.0, %v1411
      %v1413 = vpop.f32.mrb[0].mxu0
      %1414 = vdwg.mxu0
      %v1415 = vlaneseq
      %v1416 = vshrl.u32 %v1415, 7
      %v1417 = vsub.s32 0, %v1416
      %v1418 = vrot.slane %v1412, %v1417
      %v1419 = vadd.f32 %v1325, %v1418
      %v1420 = vadd.f32 %v1326, %v1418
      %v1421 = vadd.f32 %v1327, %v1418
      %v1422 = vadd.f32 %v1328, %v1418
      %v1423 = vadd.f32 %v1329, %v1418
      %v1424 = vadd.f32 %v1330, %v1418
      %v1425 = vadd.f32 %v1331, %v1418
      %v1426 = vadd.f32 %v1332, %v1418
      %v1427 = vadd.f32 %v1333, %v1418
      %v1428 = vadd.f32 %v1334, %v1418
      %v1429 = vadd.f32 %v1335, %v1418
      %v1430 = vadd.f32 %v1336, %v1418
      %v1431 = vadd.f32 %v1337, %v1418
      %v1432 = vadd.f32 %v1338, %v1418
      %v1433 = vadd.f32 %v1339, %v1418
      %v1434 = vadd.f32 %v1340, %v1418
      %v1435 = vld [vmem:[%s6] sm:$0x1]
      %v1437 = vlaneseq
      %v1438 = vshrl.u32 %v1437, 7
      %v1439 = vsub.s32 0, %v1438
      %v1440 = vrot.slane %v1435, %v1439
      %v1442 = vmul.f32 %v1419, %v1440
      %v1443 = vmul.f32 %v1420, %v1440
      %v1444 = vmul.f32 %v1421, %v1440
      %v1445 = vmul.f32 %v1422, %v1440
      %v1446 = vmul.f32 %v1423, %v1440
      %v1447 = vmul.f32 %v1424, %v1440
      %v1448 = vmul.f32 %v1425, %v1440
      %v1449 = vmul.f32 %v1426, %v1440
      %v1450 = vmul.f32 %v1427, %v1440
      %v1451 = vmul.f32 %v1428, %v1440
      %v1452 = vmul.f32 %v1429, %v1440
      %v1453 = vmul.f32 %v1430, %v1440
      %v1454 = vmul.f32 %v1431, %v1440
      %v1455 = vmul.f32 %v1432, %v1440
      %v1456 = vmul.f32 %v1433, %v1440
      %v1457 = vmul.f32 %v1434, %v1440
      %v1458 = vld [vmem:[%s7] sm:$0x1]
      %v1460 = vlaneseq
      %v1461 = vshrl.u32 %v1460, 7
      %v1462 = vsub.s32 0, %v1461
      %v1463 = vrot.slane %v1458, %v1462
      %v1465 = vadd.f32 %v1442, %v1463
      %v1466 = vadd.f32 %v1443, %v1463
      %v1467 = vadd.f32 %v1444, %v1463
      %v1468 = vadd.f32 %v1445, %v1463
      %v1469 = vadd.f32 %v1446, %v1463
      %v1470 = vadd.f32 %v1447, %v1463
      %v1471 = vadd.f32 %v1448, %v1463
      %v1472 = vadd.f32 %v1449, %v1463
      %v1473 = vadd.f32 %v1450, %v1463
      %v1474 = vadd.f32 %v1451, %v1463
      %v1475 = vadd.f32 %v1452, %v1463
      %v1476 = vadd.f32 %v1453, %v1463
      %v1477 = vadd.f32 %v1454, %v1463
      %v1478 = vadd.f32 %v1455, %v1463
      %v1479 = vadd.f32 %v1456, %v1463
      %v1480 = vadd.f32 %v1457, %v1463
      %v1481 = vmax.f32 %v1465, 0.0
      %v1482 = vmax.f32 %v1466, 0.0
      %v1483 = vmax.f32 %v1467, 0.0
      %v1484 = vmax.f32 %v1468, 0.0
      %v1485 = vmax.f32 %v1469, 0.0
      %v1486 = vmax.f32 %v1470, 0.0
      %v1487 = vmax.f32 %v1471, 0.0
      %v1488 = vmax.f32 %v1472, 0.0
      %v1489 = vmax.f32 %v1473, 0.0
      %v1490 = vmax.f32 %v1474, 0.0
      %v1491 = vmax.f32 %v1475, 0.0
      %v1492 = vmax.f32 %v1476, 0.0
      %v1493 = vmax.f32 %v1477, 0.0
      %v1494 = vmax.f32 %v1478, 0.0
      %v1495 = vmax.f32 %v1479, 0.0
      %v1496 = vmax.f32 %v1480, 0.0
      %1497 = vst.msk [vmem:[%s465] sm:$0xff] %vm504, %v1481
      %1498 = vst.msk [vmem:[%s465 + $0x8] sm:$0xff] %vm504, %v1482
      %1499 = vst.msk [vmem:[%s465 + $0x10] sm:$0xff] %vm504, %v1483
      %1500 = vst.msk [vmem:[%s465 + $0x18] sm:$0xff] %vm504, %v1484
      %1501 = vst.msk [vmem:[%s465 + $0x20] sm:$0xff] %vm504, %v1485
      %1502 = vst.msk [vmem:[%s465 + $0x28] sm:$0xff] %vm504, %v1486
      %1503 = vst.msk [vmem:[%s465 + $0x30] sm:$0xff] %vm504, %v1487
      %1504 = vst.msk [vmem:[%s465 + $0x38] sm:$0xff] %vm504, %v1488
      %1505 = vst.msk [vmem:[%s465 + $0x40] sm:$0xff] %vm504, %v1489
      %1506 = vst.msk [vmem:[%s465 + $0x48] sm:$0xff] %vm504, %v1490
      %1507 = vst.msk [vmem:[%s465 + $0x50] sm:$0xff] %vm504, %v1491
      %1508 = vst.msk [vmem:[%s465 + $0x58] sm:$0xff] %vm504, %v1492
      %1509 = vst.msk [vmem:[%s465 + $0x60] sm:$0xff] %vm504, %v1493
      %1510 = vst.msk [vmem:[%s465 + $0x68] sm:$0xff] %vm504, %v1494
      %1511 = vst.msk [vmem:[%s465 + $0x70] sm:$0xff] %vm504, %v1495
      %1512 = vst.msk [vmem:[%s465 + $0x78] sm:$0xff] %vm504, %v1496
      %s1513 = smul.u32 16, %s24
      %p1514 = scmp.lt.s32.totalorder %s23, 1
      %s1515 = scalar_select %p1514, %s23, 1
      %p1516 = scmp.lt.s32.totalorder %s1513, 31
      %s1517 = scalar_select %p1516, %s1513, 31
      %s1518 = smul.addr %s1515, 32
      %s1519 = sadd.s32 %s1517, %s1518
      %s1520 = smul.addr %s1519, 8
      %s1521 = scalar_lea.vmem %s8, %s1520
      // Predicated region
      $region53: #{aspp_forward.11} parent=51 // pred_check
        %p1522 = pneg %p252
      $region54: #{aspp_forward.11} parent=51 // pred_check_branch
        %1524 = sbr.rel (%p1522) target = $region56
      $region55: #{aspp_forward.11} parent=51 // pred_region
        %s1525 = smul.u32 16, %s24
      $region56: #{aspp_forward.11} parent=51 // pred_fallthru
        _
    $region52: #{aspp_forward.11} parent=5 // pred_fallthru
      _
    %p1526 = scmp.le.s32.totalorder 2, %s14
    // Predicated region
    $region57: #{aspp_forward.11} parent=5 // pred_check
      %p1527 = pneg %p1526
    $region58: #{aspp_forward.11} parent=5 // pred_check_branch
      %1529 = sbr.rel (%p1527) target = $region60
    $region59: #{aspp_forward.11} parent=5 // pred_region
      %s1530 = ssub.s32 %s14, 2
      // Predicated region
      $region61: #{aspp_forward.11} parent=59 // pred_check
        %p1531 = pneg %p258
      $region62: #{aspp_forward.11} parent=59 // pred_check_branch
        %1533 = sbr.rel (%p1531) target = $region64
      $region63: #{aspp_forward.11} parent=59 // pred_region
        %s1534 = smul.u32 16, %s26
        %p1535 = scmp.lt.s32.totalorder %s25, 1
        %s1536 = scalar_select %p1535, %s25, 1
        %p1537 = scmp.lt.s32.totalorder %s1534, 31
        %s1538 = scalar_select %p1537, %s1534, 31
        %s1539 = smul.addr %s1536, 32
        %s1540 = sadd.s32 %s1538, %s1539
        %s1541 = smul.addr %s1540, 8
        %s1542 = scalar_lea.vmem %s8, %s1541
      $region64: #{aspp_forward.11} parent=59 // pred_fallthru
        _
    $region60: #{aspp_forward.11} parent=5 // pred_fallthru
      _
  $region6: #{aspp_forward.11} parent=0 // loop_footer
    %s18 = sadd.s32 1, %s14
  $region7: #{aspp_forward.11} parent=0 // loop_footer_branch
    %13 = sbr.rel target = $region3
  $region8: #{aspp_forward.11} parent=0 // loop_exit
    _

</llo_original>
